<compile_context>
chip_gen: v7x
topology: tpu7x:2x2x1
jax: 0.10.0
libtpu: 0.0.40
codegen_flags: <defaults>
</compile_context>

<pallas_src>
import functools

import jax
import jax.numpy as jnp
from jax import lax
from jax.experimental import pallas as pl
from jax.experimental.pallas import tpu as pltpu


# ----------------------------------------------------------------------------
# Helpers
# ----------------------------------------------------------------------------

def _vmem_limit_bytes():
    """~3/4 of physical VMEM (96 MiB on v5e/v6e, 48 MiB on v7x)."""
    cap = 64 * 1024 * 1024
    try:
        info = pltpu.get_tpu_info()
        cap = int(getattr(info, "vmem_capacity_bytes", cap) or cap)
    except Exception:
        pass
    return (cap * 3) // 4


def _pick_strip_h(H, W, strip_h):
    """Rows per grid step.

    Constraints: strip_h | H (static, always-in-bounds pl.ds row windows) and
    either strip_h == H or strip_h*W % 128 == 0 (lane-dense flat NCHW output
    block). Auto mode picks the smallest strip with >= 1024 pixels.
    """
    if strip_h is not None:
        assert H % strip_h == 0, (H, strip_h)
        assert strip_h == H or (strip_h * W) % 128 == 0, (strip_h, W)
        return strip_h
    for d in range(1, H):
        if H % d == 0 and (d * W) % 128 == 0 and d * W >= 1024:
            return d
    # TODO(synk): ragged / Element-indexed halo strips for resolutions where
    # no aligned divisor exists (e.g. 56x56) to keep v7x VMEM + pipelining.
    return H


# ----------------------------------------------------------------------------
# Fused kernel: proj_in -> 7x7 depthwise -> recursive gating -> proj_out
# ----------------------------------------------------------------------------

def _gnconv_kernel(*refs, dims, H, W, strip_h, mxu_bf16):
    n_pw = len(dims) - 1
    x_ref, win_ref, bin_ref, dww_ref, dwb_ref = refs[:5]
    pw_refs = refs[5:5 + 2 * n_pw]
    powT_ref = refs[5 + 2 * n_pw]
    powb_ref = refs[6 + 2 * n_pw]
    out_ref = refs[7 + 2 * n_pw]

    s = pl.program_id(1)
    SH = strip_h
    d0 = dims[0]
    C = x_ref.shape[-1]
    C2 = win_ref.shape[1]
    P = SH * W

    def mm(a, b, dn=None):
        if mxu_bf16:
            a = a.astype(jnp.bfloat16)
            b = b.astype(jnp.bfloat16)
        if dn is None:
            return jnp.dot(a, b, preferred_element_type=jnp.float32)
        return lax.dot_general(a, b, dn, preferred_element_type=jnp.float32)

    # ---- proj_in for this strip's rows + 3-row halo (all in VMEM) ----------
    row0 = pl.multiple_of(s * SH, SH)        # start row in the H-padded image
    x_rows = x_ref[0, pl.ds(row0, SH + 6)]                       # (SH+6, W, C)
    fused = mm(x_rows.reshape((SH + 6) * W, C), win_ref[...])    # f32 acc
    fused3 = fused.reshape(SH + 6, W, C2)
    # The dwconv input must be ZERO on the 3-row top/bottom image halo, but
    # proj_in of a zero-padded row would be the bias.  Add the bias only on
    # real image rows (padded rows 3 .. H+2): the mask is a skinny
    # (SH+6, 1, C2) tensor, so this *replaces* the bias-add pass.
    k = lax.broadcasted_iota(jnp.int32, (SH + 6, 1, 1), 0)
    in_image = (row0 + k >= 3) & (row0 + k < H + 3)
    fused3 = fused3 + jnp.where(in_image, bin_ref[...].reshape(1, 1, C2), 0.0)

    # ---- zero W-halo assembled in VMEM (never round-trips through HBM) -----
    zcol = jnp.zeros((SH + 6, 3, C2), jnp.float32)
    xpad = jnp.concatenate([zcol, fused3, zcol], axis=1)      # (SH+6, W+6, C2)

    # ---- 7x7 depthwise conv over the full 2*dim slab (pwa taps are zero) ---
    wtaps = dww_ref[...]                                      # (49, C2) hoisted
    acc = None
    pwa3 = None
    for kw in range(7):
        # 7 sublane-shifted views (one per kw column); kh shifts below are
        # cheap leading-dim slices.
        # TODO(synk): try pltpu.roll(xpad, W + 6 - kw, axis=1)[:, :W, :] to
        # move the shift onto the idle XLU slot.
        xs = xpad[:, kw:kw + W, :]                            # (SH+6, W, C2)
        if kw == 3:
            pwa3 = xs[3:3 + SH, :, :d0]     # reuse: unconvolved strip center
        for kh in range(7):
            t = xs[kh:kh + SH] * wtaps[kh * 7 + kw, :]
            acc = t if acc is None else acc + t               # init from tap 0
    dw = (acc + dwb_ref[0]).reshape(P, C2)    # scale pre-folded into taps/bias

    # ---- recursive gating chain (everything stays in VMEM) -----------------
    cur = pwa3.reshape(P, d0) * dw[:, d0:d0 + dims[0]]
    off = d0 + dims[0]
    for i in range(n_pw):
        w_i = pw_refs[2 * i][...]
        b_i = pw_refs[2 * i + 1][...]
        cur = (mm(cur, w_i) + b_i) * dw[:, off:off + dims[i + 1]]
        off += dims[i + 1]

    # ---- proj_out, emitted NCHW-flat: (dim, P) = W_out^T . cur^T -----------
    out_t = mm(powT_ref[...], cur, dn=(((1,), (1,)), ((), ())))
    out_ref[0] = out_t + powb_ref[...]


def _gnconv_pallas(x_pad, win, bin_, dww, dwb, pws_w, pws_b, powT, powb,
                   dims, H, W, strip_h, mxu_bf16):
    B, Hp, _, C = x_pad.shape
    dim = powT.shape[0]
    ns = H // strip_h
    n_pw = len(dims) - 1

    def whole(a):  # small weight: same full block every grid step
        return pl.BlockSpec(a.shape, lambda b, s, _n=a.ndim: (0,) * _n)

    in_specs = [pl.BlockSpec((1, Hp, W, C), lambda b, s: (b, 0, 0, 0))]
    args = [x_pad]
    for a in (win, bin_, dww, dwb):
        in_specs.append(whole(a))
        args.append(a)
    for i in range(n_pw):
        in_specs += [whole(pws_w[i]), whole(pws_b[i])]
        args += [pws_w[i], pws_b[i]]
    in_specs += [whole(powT), whole(powb)]
    args += [powT, powb]

    kern = functools.partial(
        _gnconv_kernel, dims=tuple(int(d) for d in dims), H=H, W=W,
        strip_h=strip_h, mxu_bf16=mxu_bf16)
    return pl.pallas_call(
        kern,
        out_shape=jax.ShapeDtypeStruct((B, dim, H * W), jnp.float32),
        grid=(B, ns),
        in_specs=in_specs,
        out_specs=pl.BlockSpec((1, dim, strip_h * W), lambda b, s: (b, 0, s)),
        compiler_params=pltpu.CompilerParams(
            dimension_semantics=("parallel", "arbitrary"),
            vmem_limit_bytes=_vmem_limit_bytes()),
    )(*args)


# ----------------------------------------------------------------------------
# gnconv: parameter init + forward
# ----------------------------------------------------------------------------

def init_gnconv_params(key, dim, order=5):
    dims = [dim // 2 ** i for i in range(order)]
    dims.reverse()
    csum = sum(dims)
    n_keys = 6 + 2 * (order - 1)
    keys = list(jax.random.split(key, n_keys))

    def nrm(k, shape, s=0.05):
        return jax.random.normal(k, shape, jnp.float32) * s

    params = {
        "dims": dims,
        "proj_in_w": nrm(keys[0], (dim, 2 * dim)),
        "proj_in_b": nrm(keys[1], (1, 2 * dim)),
        "dw_w": nrm(keys[2], (49, csum)),
        "dw_b": nrm(keys[3], (1, csum)),
        "proj_out_w": nrm(keys[4], (dim, dim)),
        "proj_out_b": nrm(keys[5], (1, dim)),
        "pws_w": [],
        "pws_b": [],
    }
    kidx = 6
    for i in range(order - 1):
        params["pws_w"].append(nrm(keys[kidx], (dims[i], dims[i + 1])))
        params["pws_b"].append(nrm(keys[kidx + 1], (1, dims[i + 1])))
        kidx += 2
    return params


def gnconv_forward(params, x_nchw, scale=1.0, strip_h=None, mxu_bf16=False):
    """Matches gnconv.forward (PyTorch, NCHW in / NCHW out)."""
    B, C, H, W = x_nchw.shape
    dims = params["dims"]
    d0 = dims[0]
    strip_h = _pick_strip_h(H, W, strip_h)

    # NCHW -> NHWC + 3-row top/bottom halo: ONE input-sized XLA copy.  The
    # 2*dim-wide fused slab itself never touches HBM.
    # TODO(synk): fold this transpose into the kernel (read (C, tile) blocks,
    # matmul in transposed orientation) to drop this last input pass too.
    x_pad = jnp.pad(jnp.transpose(x_nchw, (0, 2, 3, 1)).astype(jnp.float32),
                    ((0, 0), (3, 3), (0, 0), (0, 0)))

    # Tiny trace-time weight prep: zero taps/bias over the pwa channels so the
    # kernel convolves the lane-dense 2*dim slab without slicing; fold `scale`
    # into the depthwise weights+bias ((conv+b)*s == conv(w*s)+b*s).
    sc = jnp.float32(scale)
    dw_w_full = jnp.concatenate(
        [jnp.zeros((49, d0), jnp.float32), params["dw_w"] * sc], axis=1)
    dw_b_full = jnp.concatenate(
        [jnp.zeros((1, d0), jnp.float32), params["dw_b"] * sc], axis=1)
    pow_wT = params["proj_out_w"].T                     # (dim_out, dim_in)
    pow_b_col = params["proj_out_b"].reshape(-1, 1)     # (dim, 1)

    out_flat = _gnconv_pallas(
        x_pad, params["proj_in_w"], params["proj_in_b"],
        dw_w_full, dw_b_full, params["pws_w"], params["pws_b"],
        pow_wT, pow_b_col, dims, H, W, strip_h, mxu_bf16)   # (B, dim, H*W)
    return out_flat.reshape(B, C, H, W)                     # free metadata

# ----------------------------------------------------------------------------
# Pure-JAX reference (mirrors the PyTorch module in NCHW)
# ----------------------------------------------------------------------------

def gnconv_reference(params, x, scale=1.0):
    dims = params["dims"]

    def conv1x1(x, w, b):
        wk = w.T[:, :, None, None]  # (Cout, Cin, 1, 1)
        y = lax.conv_general_dilated(x, wk, (1, 1), "VALID")
        return y + b.reshape(1, -1, 1, 1)

    def dwconv(x, w49, b):
        C = x.shape[1]
        wk = w49.reshape(7, 7, C).transpose(2, 0, 1)[:, None]  # (C,1,7,7)
        y = lax.conv_general_dilated(x, wk, (1, 1), ((3, 3), (3, 3)),
                                     feature_group_count=C)
        return y + b.reshape(1, -1, 1, 1)

    fused = conv1x1(x, params["proj_in_w"], params["proj_in_b"])
    pwa, abc = fused[:, : dims[0]], fused[:, dims[0]:]
    dw_abc = dwconv(abc, params["dw_w"], params["dw_b"]) * scale
    dw_list, off = [], 0
    for d in dims:
        dw_list.append(dw_abc[:, off:off + d])
        off += d
    cur = pwa * dw_list[0]
    for i in range(len(dims) - 1):
        cur = conv1x1(cur, params["pws_w"][i], params["pws_b"][i]) * dw_list[i + 1]
    return conv1x1(cur, params["proj_out_w"], params["proj_out_b"])


# ----------------------------------------------------------------------------

if __name__ == "__main__":
    key = jax.random.PRNGKey(0)
    k_param, k_x1, k_x2 = jax.random.split(key, 3)

    dim, order = 32, 5                     # dims = [2, 4, 8, 16, 32]
    params = init_gnconv_params(k_param, dim, order)

    x1 = jax.random.normal(k_x1, (2, dim, 16, 16), jnp.float32)
    x2 = jax.random.normal(k_x2, (1, dim, 24, 16), jnp.float32)

    def check(x, scale, strip_h, mxu_bf16, rtol, atol):
        out = jax.block_until_ready(
            gnconv_forward(params, x, scale, strip_h=strip_h,
                           mxu_bf16=mxu_bf16))
        ref = jax.block_until_ready(gnconv_reference(params, x, scale))
        assert out.shape == ref.shape, (out.shape, ref.shape)
        err = float(jnp.max(jnp.abs(out - ref)))
        assert jnp.allclose(out, ref, rtol=rtol, atol=atol), (
            strip_h, mxu_bf16, err)

    check(x1, 1.0, 8, False, 1e-2, 1e-3)        # 2 strips: top+bottom halos
    check(x2, 1.0 / 3.0, 8, False, 1e-2, 1e-3)  # 3 strips incl. interior; scale fold
    check(x1, 1.0, None, False, 1e-2, 1e-3)     # auto -> single strip per image
    check(x1, 1.0, 8, True, 5e-2, 1e-2)         # bf16 MXU operand knob (v6e/v7x)

    print("KERNEL_OK")
</pallas_src>

<mosaic_0001>
module attributes {stable_mosaic.version = 11 : i64} {
  func.func @_gnconv_kernel(%arg0: i32, %arg1: i32, %arg2: memref<1x22x16x32xf32, #tpu.memory_space<vmem>>, %arg3: memref<32x64xf32, #tpu.memory_space<vmem>>, %arg4: memref<1x64xf32, #tpu.memory_space<vmem>>, %arg5: memref<49x64xf32, #tpu.memory_space<vmem>>, %arg6: memref<1x64xf32, #tpu.memory_space<vmem>>, %arg7: memref<2x4xf32, #tpu.memory_space<vmem>>, %arg8: memref<1x4xf32, #tpu.memory_space<vmem>>, %arg9: memref<4x8xf32, #tpu.memory_space<vmem>>, %arg10: memref<1x8xf32, #tpu.memory_space<vmem>>, %arg11: memref<8x16xf32, #tpu.memory_space<vmem>>, %arg12: memref<1x16xf32, #tpu.memory_space<vmem>>, %arg13: memref<16x32xf32, #tpu.memory_space<vmem>>, %arg14: memref<1x32xf32, #tpu.memory_space<vmem>>, %arg15: memref<32x32xf32, #tpu.memory_space<vmem>>, %arg16: memref<32x1xf32, #tpu.memory_space<vmem>>, %arg17: memref<1x32x128xf32, #tpu.memory_space<vmem>>) attributes {dimension_semantics = [#tpu.dimension_semantics<parallel>, #tpu.dimension_semantics<arbitrary>], iteration_bounds = array<i64: 2, 2>, scalar_prefetch = 0 : i64, scratch_operands = 0 : i64, tpu.core_type = #tpu.core_type<tc>, window_params = [{transform_indices = @transform_0, window_bounds = array<i64: 1, 22, 16, 32>}, {pipeline_mode = #tpu.pipeline_mode<synchronous>, transform_indices = @transform_1, window_bounds = array<i64: 32, 64>}, {pipeline_mode = #tpu.pipeline_mode<synchronous>, transform_indices = @transform_2, window_bounds = array<i64: 1, 64>}, {pipeline_mode = #tpu.pipeline_mode<synchronous>, transform_indices = @transform_3, window_bounds = array<i64: 49, 64>}, {pipeline_mode = #tpu.pipeline_mode<synchronous>, transform_indices = @transform_4, window_bounds = array<i64: 1, 64>}, {pipeline_mode = #tpu.pipeline_mode<synchronous>, transform_indices = @transform_5, window_bounds = array<i64: 2, 4>}, {pipeline_mode = #tpu.pipeline_mode<synchronous>, transform_indices = @transform_6, window_bounds = array<i64: 1, 4>}, {pipeline_mode = #tpu.pipeline_mode<synchronous>, transform_indices = @transform_7, window_bounds = array<i64: 4, 8>}, {pipeline_mode = #tpu.pipeline_mode<synchronous>, transform_indices = @transform_8, window_bounds = array<i64: 1, 8>}, {pipeline_mode = #tpu.pipeline_mode<synchronous>, transform_indices = @transform_9, window_bounds = array<i64: 8, 16>}, {pipeline_mode = #tpu.pipeline_mode<synchronous>, transform_indices = @transform_10, window_bounds = array<i64: 1, 16>}, {pipeline_mode = #tpu.pipeline_mode<synchronous>, transform_indices = @transform_11, window_bounds = array<i64: 16, 32>}, {pipeline_mode = #tpu.pipeline_mode<synchronous>, transform_indices = @transform_12, window_bounds = array<i64: 1, 32>}, {pipeline_mode = #tpu.pipeline_mode<synchronous>, transform_indices = @transform_13, window_bounds = array<i64: 32, 32>}, {pipeline_mode = #tpu.pipeline_mode<synchronous>, transform_indices = @transform_14, window_bounds = array<i64: 32, 1>}, {transform_indices = @transform_15, window_bounds = array<i64: 1, 32, 128>}]} {
    %c8_i32 = arith.constant 8 : i32
    %0 = arith.muli %arg1, %c8_i32 : i32
    %1 = tpu.assume_multiple %0, 8 : i32
    %c0 = arith.constant 0 : index
    %2 = arith.index_cast %1 : i32 to index
    %c0_0 = arith.constant 0 : index
    %c0_1 = arith.constant 0 : index
    %3 = vector.load %arg2[%c0, %2, %c0_0, %c0_1] : memref<1x22x16x32xf32, #tpu.memory_space<vmem>>, vector<1x14x16x32xf32>
    %4 = vector.shape_cast %3 : vector<1x14x16x32xf32> to vector<14x16x32xf32>
    %5 = vector.shape_cast %4 : vector<14x16x32xf32> to vector<224x32xf32>
    %c0_2 = arith.constant 0 : index
    %c0_3 = arith.constant 0 : index
    %6 = vector.load %arg3[%c0_2, %c0_3] : memref<32x64xf32, #tpu.memory_space<vmem>>, vector<32x64xf32>
    %cst = arith.constant dense<0.000000e+00> : vector<224x64xf32>
    %7 = tpu.matmul %5, %6, %cst {dimension_numbers = #tpu.dot_dimension_numbers<[1], [0], [0], [1], [0, 0, 1, 1], [], []>} : vector<224x32xf32>, vector<32x64xf32>, vector<224x64xf32> -> vector<224x64xf32>
    %8 = vector.shape_cast %7 : vector<224x64xf32> to vector<14x16x64xf32>
    %9 = tpu.iota {dimensions = array<i32: 0>} : vector<14x1x1xi32>
    %10 = vector.broadcast %1 : i32 to vector<14x1x1xi32>
    %11 = arith.addi %10, %9 : vector<14x1x1xi32>
    %c3_i32 = arith.constant 3 : i32
    %12 = vector.broadcast %c3_i32 : i32 to vector<14x1x1xi32>
    %13 = arith.cmpi sge, %11, %12 : vector<14x1x1xi32>
    %14 = vector.broadcast %1 : i32 to vector<14x1x1xi32>
    %15 = arith.addi %14, %9 : vector<14x1x1xi32>
    %c19_i32 = arith.constant 19 : i32
    %16 = vector.broadcast %c19_i32 : i32 to vector<14x1x1xi32>
    %17 = arith.cmpi slt, %15, %16 : vector<14x1x1xi32>
    %18 = arith.andi %13, %17 : vector<14x1x1xi1>
    %c0_4 = arith.constant 0 : index
    %c0_5 = arith.constant 0 : index
    %19 = vector.load %arg4[%c0_4, %c0_5] : memref<1x64xf32, #tpu.memory_space<vmem>>, vector<1x64xf32>
    %20 = vector.shape_cast %19 : vector<1x64xf32> to vector<1x1x64xf32>
    %cst_6 = arith.constant 0.000000e+00 : f32
    %21 = vector.shape_cast %18 : vector<14x1x1xi1> to vector<14x1x1xi1>
    %22 = vector.broadcast %21 : vector<14x1x1xi1> to vector<14x1x64xi1>
    %23 = vector.shape_cast %20 : vector<1x1x64xf32> to vector<1x1x64xf32>
    %24 = vector.broadcast %23 : vector<1x1x64xf32> to vector<14x1x64xf32>
    %25 = vector.broadcast %cst_6 : f32 to vector<14x1x64xf32>
    %26 = arith.select %22, %24, %25 : vector<14x1x64xi1>, vector<14x1x64xf32>
    %27 = vector.broadcast %26 : vector<14x1x64xf32> to vector<14x16x64xf32>
    %28 = arith.addf %8, %27 : vector<14x16x64xf32>
    %cst_7 = arith.constant 0.000000e+00 : f32
    %29 = vector.broadcast %cst_7 : f32 to vector<14x3x64xf32>
    %30 = tpu.concatenate %29, %28, %29 in 1 : vector<14x3x64xf32>, vector<14x16x64xf32>, vector<14x3x64xf32> -> vector<14x22x64xf32>
    %c0_8 = arith.constant 0 : index
    %c0_9 = arith.constant 0 : index
    %31 = vector.load %arg5[%c0_8, %c0_9] : memref<49x64xf32, #tpu.memory_space<vmem>>, vector<49x64xf32>
    %32 = vector.extract_strided_slice %30 {offsets = [0, 0, 0], sizes = [14, 16, 64], strides = [1, 1, 1]} : vector<14x22x64xf32> to vector<14x16x64xf32>
    %33 = vector.extract_strided_slice %32 {offsets = [0, 0, 0], sizes = [8, 16, 64], strides = [1, 1, 1]} : vector<14x16x64xf32> to vector<8x16x64xf32>
    %34 = vector.extract_strided_slice %31 {offsets = [0, 0], sizes = [1, 64], strides = [1, 1]} : vector<49x64xf32> to vector<1x64xf32>
    %35 = vector.shape_cast %34 : vector<1x64xf32> to vector<64xf32>
    %36 = vector.shape_cast %35 : vector<64xf32> to vector<1x1x64xf32>
    %37 = vector.broadcast %36 : vector<1x1x64xf32> to vector<8x16x64xf32>
    %38 = arith.mulf %33, %37 : vector<8x16x64xf32>
    %39 = vector.extract_strided_slice %32 {offsets = [1, 0, 0], sizes = [8, 16, 64], strides = [1, 1, 1]} : vector<14x16x64xf32> to vector<8x16x64xf32>
    %40 = vector.extract_strided_slice %31 {offsets = [7, 0], sizes = [1, 64], strides = [1, 1]} : vector<49x64xf32> to vector<1x64xf32>
    %41 = vector.shape_cast %40 : vector<1x64xf32> to vector<64xf32>
    %42 = vector.shape_cast %41 : vector<64xf32> to vector<1x1x64xf32>
    %43 = vector.broadcast %42 : vector<1x1x64xf32> to vector<8x16x64xf32>
    %44 = arith.mulf %39, %43 : vector<8x16x64xf32>
    %45 = arith.addf %38, %44 : vector<8x16x64xf32>
    %46 = vector.extract_strided_slice %32 {offsets = [2, 0, 0], sizes = [8, 16, 64], strides = [1, 1, 1]} : vector<14x16x64xf32> to vector<8x16x64xf32>
    %47 = vector.extract_strided_slice %31 {offsets = [14, 0], sizes = [1, 64], strides = [1, 1]} : vector<49x64xf32> to vector<1x64xf32>
    %48 = vector.shape_cast %47 : vector<1x64xf32> to vector<64xf32>
    %49 = vector.shape_cast %48 : vector<64xf32> to vector<1x1x64xf32>
    %50 = vector.broadcast %49 : vector<1x1x64xf32> to vector<8x16x64xf32>
    %51 = arith.mulf %46, %50 : vector<8x16x64xf32>
    %52 = arith.addf %45, %51 : vector<8x16x64xf32>
    %53 = vector.extract_strided_slice %32 {offsets = [3, 0, 0], sizes = [8, 16, 64], strides = [1, 1, 1]} : vector<14x16x64xf32> to vector<8x16x64xf32>
    %54 = vector.extract_strided_slice %31 {offsets = [21, 0], sizes = [1, 64], strides = [1, 1]} : vector<49x64xf32> to vector<1x64xf32>
    %55 = vector.shape_cast %54 : vector<1x64xf32> to vector<64xf32>
    %56 = vector.shape_cast %55 : vector<64xf32> to vector<1x1x64xf32>
    %57 = vector.broadcast %56 : vector<1x1x64xf32> to vector<8x16x64xf32>
    %58 = arith.mulf %53, %57 : vector<8x16x64xf32>
    %59 = arith.addf %52, %58 : vector<8x16x64xf32>
    %60 = vector.extract_strided_slice %32 {offsets = [4, 0, 0], sizes = [8, 16, 64], strides = [1, 1, 1]} : vector<14x16x64xf32> to vector<8x16x64xf32>
    %61 = vector.extract_strided_slice %31 {offsets = [28, 0], sizes = [1, 64], strides = [1, 1]} : vector<49x64xf32> to vector<1x64xf32>
    %62 = vector.shape_cast %61 : vector<1x64xf32> to vector<64xf32>
    %63 = vector.shape_cast %62 : vector<64xf32> to vector<1x1x64xf32>
    %64 = vector.broadcast %63 : vector<1x1x64xf32> to vector<8x16x64xf32>
    %65 = arith.mulf %60, %64 : vector<8x16x64xf32>
    %66 = arith.addf %59, %65 : vector<8x16x64xf32>
    %67 = vector.extract_strided_slice %32 {offsets = [5, 0, 0], sizes = [8, 16, 64], strides = [1, 1, 1]} : vector<14x16x64xf32> to vector<8x16x64xf32>
    %68 = vector.extract_strided_slice %31 {offsets = [35, 0], sizes = [1, 64], strides = [1, 1]} : vector<49x64xf32> to vector<1x64xf32>
    %69 = vector.shape_cast %68 : vector<1x64xf32> to vector<64xf32>
    %70 = vector.shape_cast %69 : vector<64xf32> to vector<1x1x64xf32>
    %71 = vector.broadcast %70 : vector<1x1x64xf32> to vector<8x16x64xf32>
    %72 = arith.mulf %67, %71 : vector<8x16x64xf32>
    %73 = arith.addf %66, %72 : vector<8x16x64xf32>
    %74 = vector.extract_strided_slice %32 {offsets = [6, 0, 0], sizes = [8, 16, 64], strides = [1, 1, 1]} : vector<14x16x64xf32> to vector<8x16x64xf32>
    %75 = vector.extract_strided_slice %31 {offsets = [42, 0], sizes = [1, 64], strides = [1, 1]} : vector<49x64xf32> to vector<1x64xf32>
    %76 = vector.shape_cast %75 : vector<1x64xf32> to vector<64xf32>
    %77 = vector.shape_cast %76 : vector<64xf32> to vector<1x1x64xf32>
    %78 = vector.broadcast %77 : vector<1x1x64xf32> to vector<8x16x64xf32>
    %79 = arith.mulf %74, %78 : vector<8x16x64xf32>
    %80 = arith.addf %73, %79 : vector<8x16x64xf32>
    %81 = vector.extract_strided_slice %30 {offsets = [0, 1, 0], sizes = [14, 16, 64], strides = [1, 1, 1]} : vector<14x22x64xf32> to vector<14x16x64xf32>
    %82 = vector.extract_strided_slice %81 {offsets = [0, 0, 0], sizes = [8, 16, 64], strides = [1, 1, 1]} : vector<14x16x64xf32> to vector<8x16x64xf32>
    %83 = vector.extract_strided_slice %31 {offsets = [1, 0], sizes = [1, 64], strides = [1, 1]} : vector<49x64xf32> to vector<1x64xf32>
    %84 = vector.shape_cast %83 : vector<1x64xf32> to vector<64xf32>
    %85 = vector.shape_cast %84 : vector<64xf32> to vector<1x1x64xf32>
    %86 = vector.broadcast %85 : vector<1x1x64xf32> to vector<8x16x64xf32>
    %87 = arith.mulf %82, %86 : vector<8x16x64xf32>
    %88 = arith.addf %80, %87 : vector<8x16x64xf32>
    %89 = vector.extract_strided_slice %81 {offsets = [1, 0, 0], sizes = [8, 16, 64], strides = [1, 1, 1]} : vector<14x16x64xf32> to vector<8x16x64xf32>
    %90 = vector.extract_strided_slice %31 {offsets = [8, 0], sizes = [1, 64], strides = [1, 1]} : vector<49x64xf32> to vector<1x64xf32>
    %91 = vector.shape_cast %90 : vector<1x64xf32> to vector<64xf32>
    %92 = vector.shape_cast %91 : vector<64xf32> to vector<1x1x64xf32>
    %93 = vector.broadcast %92 : vector<1x1x64xf32> to vector<8x16x64xf32>
    %94 = arith.mulf %89, %93 : vector<8x16x64xf32>
    %95 = arith.addf %88, %94 : vector<8x16x64xf32>
    %96 = vector.extract_strided_slice %81 {offsets = [2, 0, 0], sizes = [8, 16, 64], strides = [1, 1, 1]} : vector<14x16x64xf32> to vector<8x16x64xf32>
    %97 = vector.extract_strided_slice %31 {offsets = [15, 0], sizes = [1, 64], strides = [1, 1]} : vector<49x64xf32> to vector<1x64xf32>
    %98 = vector.shape_cast %97 : vector<1x64xf32> to vector<64xf32>
    %99 = vector.shape_cast %98 : vector<64xf32> to vector<1x1x64xf32>
    %100 = vector.broadcast %99 : vector<1x1x64xf32> to vector<8x16x64xf32>
    %101 = arith.mulf %96, %100 : vector<8x16x64xf32>
    %102 = arith.addf %95, %101 : vector<8x16x64xf32>
    %103 = vector.extract_strided_slice %81 {offsets = [3, 0, 0], sizes = [8, 16, 64], strides = [1, 1, 1]} : vector<14x16x64xf32> to vector<8x16x64xf32>
    %104 = vector.extract_strided_slice %31 {offsets = [22, 0], sizes = [1, 64], strides = [1, 1]} : vector<49x64xf32> to vector<1x64xf32>
    %105 = vector.shape_cast %104 : vector<1x64xf32> to vector<64xf32>
    %106 = vector.shape_cast %105 : vector<64xf32> to vector<1x1x64xf32>
    %107 = vector.broadcast %106 : vector<1x1x64xf32> to vector<8x16x64xf32>
    %108 = arith.mulf %103, %107 : vector<8x16x64xf32>
    %109 = arith.addf %102, %108 : vector<8x16x64xf32>
    %110 = vector.extract_strided_slice %81 {offsets = [4, 0, 0], sizes = [8, 16, 64], strides = [1, 1, 1]} : vector<14x16x64xf32> to vector<8x16x64xf32>
    %111 = vector.extract_strided_slice %31 {offsets = [29, 0], sizes = [1, 64], strides = [1, 1]} : vector<49x64xf32> to vector<1x64xf32>
    %112 = vector.shape_cast %111 : vector<1x64xf32> to vector<64xf32>
    %113 = vector.shape_cast %112 : vector<64xf32> to vector<1x1x64xf32>
    %114 = vector.broadcast %113 : vector<1x1x64xf32> to vector<8x16x64xf32>
    %115 = arith.mulf %110, %114 : vector<8x16x64xf32>
    %116 = arith.addf %109, %115 : vector<8x16x64xf32>
    %117 = vector.extract_strided_slice %81 {offsets = [5, 0, 0], sizes = [8, 16, 64], strides = [1, 1, 1]} : vector<14x16x64xf32> to vector<8x16x64xf32>
    %118 = vector.extract_strided_slice %31 {offsets = [36, 0], sizes = [1, 64], strides = [1, 1]} : vector<49x64xf32> to vector<1x64xf32>
    %119 = vector.shape_cast %118 : vector<1x64xf32> to vector<64xf32>
    %120 = vector.shape_cast %119 : vector<64xf32> to vector<1x1x64xf32>
    %121 = vector.broadcast %120 : vector<1x1x64xf32> to vector<8x16x64xf32>
    %122 = arith.mulf %117, %121 : vector<8x16x64xf32>
    %123 = arith.addf %116, %122 : vector<8x16x64xf32>
    %124 = vector.extract_strided_slice %81 {offsets = [6, 0, 0], sizes = [8, 16, 64], strides = [1, 1, 1]} : vector<14x16x64xf32> to vector<8x16x64xf32>
    %125 = vector.extract_strided_slice %31 {offsets = [43, 0], sizes = [1, 64], strides = [1, 1]} : vector<49x64xf32> to vector<1x64xf32>
    %126 = vector.shape_cast %125 : vector<1x64xf32> to vector<64xf32>
    %127 = vector.shape_cast %126 : vector<64xf32> to vector<1x1x64xf32>
    %128 = vector.broadcast %127 : vector<1x1x64xf32> to vector<8x16x64xf32>
    %129 = arith.mulf %124, %128 : vector<8x16x64xf32>
    %130 = arith.addf %123, %129 : vector<8x16x64xf32>
    %131 = vector.extract_strided_slice %30 {offsets = [0, 2, 0], sizes = [14, 16, 64], strides = [1, 1, 1]} : vector<14x22x64xf32> to vector<14x16x64xf32>
    %132 = vector.extract_strided_slice %131 {offsets = [0, 0, 0], sizes = [8, 16, 64], strides = [1, 1, 1]} : vector<14x16x64xf32> to vector<8x16x64xf32>
    %133 = vector.extract_strided_slice %31 {offsets = [2, 0], sizes = [1, 64], strides = [1, 1]} : vector<49x64xf32> to vector<1x64xf32>
    %134 = vector.shape_cast %133 : vector<1x64xf32> to vector<64xf32>
    %135 = vector.shape_cast %134 : vector<64xf32> to vector<1x1x64xf32>
    %136 = vector.broadcast %135 : vector<1x1x64xf32> to vector<8x16x64xf32>
    %137 = arith.mulf %132, %136 : vector<8x16x64xf32>
    %138 = arith.addf %130, %137 : vector<8x16x64xf32>
    %139 = vector.extract_strided_slice %131 {offsets = [1, 0, 0], sizes = [8, 16, 64], strides = [1, 1, 1]} : vector<14x16x64xf32> to vector<8x16x64xf32>
    %140 = vector.extract_strided_slice %31 {offsets = [9, 0], sizes = [1, 64], strides = [1, 1]} : vector<49x64xf32> to vector<1x64xf32>
    %141 = vector.shape_cast %140 : vector<1x64xf32> to vector<64xf32>
    %142 = vector.shape_cast %141 : vector<64xf32> to vector<1x1x64xf32>
    %143 = vector.broadcast %142 : vector<1x1x64xf32> to vector<8x16x64xf32>
    %144 = arith.mulf %139, %143 : vector<8x16x64xf32>
    %145 = arith.addf %138, %144 : vector<8x16x64xf32>
    %146 = vector.extract_strided_slice %131 {offsets = [2, 0, 0], sizes = [8, 16, 64], strides = [1, 1, 1]} : vector<14x16x64xf32> to vector<8x16x64xf32>
    %147 = vector.extract_strided_slice %31 {offsets = [16, 0], sizes = [1, 64], strides = [1, 1]} : vector<49x64xf32> to vector<1x64xf32>
    %148 = vector.shape_cast %147 : vector<1x64xf32> to vector<64xf32>
    %149 = vector.shape_cast %148 : vector<64xf32> to vector<1x1x64xf32>
    %150 = vector.broadcast %149 : vector<1x1x64xf32> to vector<8x16x64xf32>
    %151 = arith.mulf %146, %150 : vector<8x16x64xf32>
    %152 = arith.addf %145, %151 : vector<8x16x64xf32>
    %153 = vector.extract_strided_slice %131 {offsets = [3, 0, 0], sizes = [8, 16, 64], strides = [1, 1, 1]} : vector<14x16x64xf32> to vector<8x16x64xf32>
    %154 = vector.extract_strided_slice %31 {offsets = [23, 0], sizes = [1, 64], strides = [1, 1]} : vector<49x64xf32> to vector<1x64xf32>
    %155 = vector.shape_cast %154 : vector<1x64xf32> to vector<64xf32>
    %156 = vector.shape_cast %155 : vector<64xf32> to vector<1x1x64xf32>
    %157 = vector.broadcast %156 : vector<1x1x64xf32> to vector<8x16x64xf32>
    %158 = arith.mulf %153, %157 : vector<8x16x64xf32>
    %159 = arith.addf %152, %158 : vector<8x16x64xf32>
    %160 = vector.extract_strided_slice %131 {offsets = [4, 0, 0], sizes = [8, 16, 64], strides = [1, 1, 1]} : vector<14x16x64xf32> to vector<8x16x64xf32>
    %161 = vector.extract_strided_slice %31 {offsets = [30, 0], sizes = [1, 64], strides = [1, 1]} : vector<49x64xf32> to vector<1x64xf32>
    %162 = vector.shape_cast %161 : vector<1x64xf32> to vector<64xf32>
    %163 = vector.shape_cast %162 : vector<64xf32> to vector<1x1x64xf32>
    %164 = vector.broadcast %163 : vector<1x1x64xf32> to vector<8x16x64xf32>
    %165 = arith.mulf %160, %164 : vector<8x16x64xf32>
    %166 = arith.addf %159, %165 : vector<8x16x64xf32>
    %167 = vector.extract_strided_slice %131 {offsets = [5, 0, 0], sizes = [8, 16, 64], strides = [1, 1, 1]} : vector<14x16x64xf32> to vector<8x16x64xf32>
    %168 = vector.extract_strided_slice %31 {offsets = [37, 0], sizes = [1, 64], strides = [1, 1]} : vector<49x64xf32> to vector<1x64xf32>
    %169 = vector.shape_cast %168 : vector<1x64xf32> to vector<64xf32>
    %170 = vector.shape_cast %169 : vector<64xf32> to vector<1x1x64xf32>
    %171 = vector.broadcast %170 : vector<1x1x64xf32> to vector<8x16x64xf32>
    %172 = arith.mulf %167, %171 : vector<8x16x64xf32>
    %173 = arith.addf %166, %172 : vector<8x16x64xf32>
    %174 = vector.extract_strided_slice %131 {offsets = [6, 0, 0], sizes = [8, 16, 64], strides = [1, 1, 1]} : vector<14x16x64xf32> to vector<8x16x64xf32>
    %175 = vector.extract_strided_slice %31 {offsets = [44, 0], sizes = [1, 64], strides = [1, 1]} : vector<49x64xf32> to vector<1x64xf32>
    %176 = vector.shape_cast %175 : vector<1x64xf32> to vector<64xf32>
    %177 = vector.shape_cast %176 : vector<64xf32> to vector<1x1x64xf32>
    %178 = vector.broadcast %177 : vector<1x1x64xf32> to vector<8x16x64xf32>
    %179 = arith.mulf %174, %178 : vector<8x16x64xf32>
    %180 = arith.addf %173, %179 : vector<8x16x64xf32>
    %181 = vector.extract_strided_slice %30 {offsets = [0, 3, 0], sizes = [14, 16, 64], strides = [1, 1, 1]} : vector<14x22x64xf32> to vector<14x16x64xf32>
    %182 = vector.extract_strided_slice %181 {offsets = [3, 0, 0], sizes = [8, 16, 2], strides = [1, 1, 1]} : vector<14x16x64xf32> to vector<8x16x2xf32>
    %183 = vector.extract_strided_slice %181 {offsets = [0, 0, 0], sizes = [8, 16, 64], strides = [1, 1, 1]} : vector<14x16x64xf32> to vector<8x16x64xf32>
    %184 = vector.extract_strided_slice %31 {offsets = [3, 0], sizes = [1, 64], strides = [1, 1]} : vector<49x64xf32> to vector<1x64xf32>
    %185 = vector.shape_cast %184 : vector<1x64xf32> to vector<64xf32>
    %186 = vector.shape_cast %185 : vector<64xf32> to vector<1x1x64xf32>
    %187 = vector.broadcast %186 : vector<1x1x64xf32> to vector<8x16x64xf32>
    %188 = arith.mulf %183, %187 : vector<8x16x64xf32>
    %189 = arith.addf %180, %188 : vector<8x16x64xf32>
    %190 = vector.extract_strided_slice %181 {offsets = [1, 0, 0], sizes = [8, 16, 64], strides = [1, 1, 1]} : vector<14x16x64xf32> to vector<8x16x64xf32>
    %191 = vector.extract_strided_slice %31 {offsets = [10, 0], sizes = [1, 64], strides = [1, 1]} : vector<49x64xf32> to vector<1x64xf32>
    %192 = vector.shape_cast %191 : vector<1x64xf32> to vector<64xf32>
    %193 = vector.shape_cast %192 : vector<64xf32> to vector<1x1x64xf32>
    %194 = vector.broadcast %193 : vector<1x1x64xf32> to vector<8x16x64xf32>
    %195 = arith.mulf %190, %194 : vector<8x16x64xf32>
    %196 = arith.addf %189, %195 : vector<8x16x64xf32>
    %197 = vector.extract_strided_slice %181 {offsets = [2, 0, 0], sizes = [8, 16, 64], strides = [1, 1, 1]} : vector<14x16x64xf32> to vector<8x16x64xf32>
    %198 = vector.extract_strided_slice %31 {offsets = [17, 0], sizes = [1, 64], strides = [1, 1]} : vector<49x64xf32> to vector<1x64xf32>
    %199 = vector.shape_cast %198 : vector<1x64xf32> to vector<64xf32>
    %200 = vector.shape_cast %199 : vector<64xf32> to vector<1x1x64xf32>
    %201 = vector.broadcast %200 : vector<1x1x64xf32> to vector<8x16x64xf32>
    %202 = arith.mulf %197, %201 : vector<8x16x64xf32>
    %203 = arith.addf %196, %202 : vector<8x16x64xf32>
    %204 = vector.extract_strided_slice %181 {offsets = [3, 0, 0], sizes = [8, 16, 64], strides = [1, 1, 1]} : vector<14x16x64xf32> to vector<8x16x64xf32>
    %205 = vector.extract_strided_slice %31 {offsets = [24, 0], sizes = [1, 64], strides = [1, 1]} : vector<49x64xf32> to vector<1x64xf32>
    %206 = vector.shape_cast %205 : vector<1x64xf32> to vector<64xf32>
    %207 = vector.shape_cast %206 : vector<64xf32> to vector<1x1x64xf32>
    %208 = vector.broadcast %207 : vector<1x1x64xf32> to vector<8x16x64xf32>
    %209 = arith.mulf %204, %208 : vector<8x16x64xf32>
    %210 = arith.addf %203, %209 : vector<8x16x64xf32>
    %211 = vector.extract_strided_slice %181 {offsets = [4, 0, 0], sizes = [8, 16, 64], strides = [1, 1, 1]} : vector<14x16x64xf32> to vector<8x16x64xf32>
    %212 = vector.extract_strided_slice %31 {offsets = [31, 0], sizes = [1, 64], strides = [1, 1]} : vector<49x64xf32> to vector<1x64xf32>
    %213 = vector.shape_cast %212 : vector<1x64xf32> to vector<64xf32>
    %214 = vector.shape_cast %213 : vector<64xf32> to vector<1x1x64xf32>
    %215 = vector.broadcast %214 : vector<1x1x64xf32> to vector<8x16x64xf32>
    %216 = arith.mulf %211, %215 : vector<8x16x64xf32>
    %217 = arith.addf %210, %216 : vector<8x16x64xf32>
    %218 = vector.extract_strided_slice %181 {offsets = [5, 0, 0], sizes = [8, 16, 64], strides = [1, 1, 1]} : vector<14x16x64xf32> to vector<8x16x64xf32>
    %219 = vector.extract_strided_slice %31 {offsets = [38, 0], sizes = [1, 64], strides = [1, 1]} : vector<49x64xf32> to vector<1x64xf32>
    %220 = vector.shape_cast %219 : vector<1x64xf32> to vector<64xf32>
    %221 = vector.shape_cast %220 : vector<64xf32> to vector<1x1x64xf32>
    %222 = vector.broadcast %221 : vector<1x1x64xf32> to vector<8x16x64xf32>
    %223 = arith.mulf %218, %222 : vector<8x16x64xf32>
    %224 = arith.addf %217, %223 : vector<8x16x64xf32>
    %225 = vector.extract_strided_slice %181 {offsets = [6, 0, 0], sizes = [8, 16, 64], strides = [1, 1, 1]} : vector<14x16x64xf32> to vector<8x16x64xf32>
    %226 = vector.extract_strided_slice %31 {offsets = [45, 0], sizes = [1, 64], strides = [1, 1]} : vector<49x64xf32> to vector<1x64xf32>
    %227 = vector.shape_cast %226 : vector<1x64xf32> to vector<64xf32>
    %228 = vector.shape_cast %227 : vector<64xf32> to vector<1x1x64xf32>
    %229 = vector.broadcast %228 : vector<1x1x64xf32> to vector<8x16x64xf32>
    %230 = arith.mulf %225, %229 : vector<8x16x64xf32>
    %231 = arith.addf %224, %230 : vector<8x16x64xf32>
    %232 = vector.extract_strided_slice %30 {offsets = [0, 4, 0], sizes = [14, 16, 64], strides = [1, 1, 1]} : vector<14x22x64xf32> to vector<14x16x64xf32>
    %233 = vector.extract_strided_slice %232 {offsets = [0, 0, 0], sizes = [8, 16, 64], strides = [1, 1, 1]} : vector<14x16x64xf32> to vector<8x16x64xf32>
    %234 = vector.extract_strided_slice %31 {offsets = [4, 0], sizes = [1, 64], strides = [1, 1]} : vector<49x64xf32> to vector<1x64xf32>
    %235 = vector.shape_cast %234 : vector<1x64xf32> to vector<64xf32>
    %236 = vector.shape_cast %235 : vector<64xf32> to vector<1x1x64xf32>
    %237 = vector.broadcast %236 : vector<1x1x64xf32> to vector<8x16x64xf32>
    %238 = arith.mulf %233, %237 : vector<8x16x64xf32>
    %239 = arith.addf %231, %238 : vector<8x16x64xf32>
    %240 = vector.extract_strided_slice %232 {offsets = [1, 0, 0], sizes = [8, 16, 64], strides = [1, 1, 1]} : vector<14x16x64xf32> to vector<8x16x64xf32>
    %241 = vector.extract_strided_slice %31 {offsets = [11, 0], sizes = [1, 64], strides = [1, 1]} : vector<49x64xf32> to vector<1x64xf32>
    %242 = vector.shape_cast %241 : vector<1x64xf32> to vector<64xf32>
    %243 = vector.shape_cast %242 : vector<64xf32> to vector<1x1x64xf32>
    %244 = vector.broadcast %243 : vector<1x1x64xf32> to vector<8x16x64xf32>
    %245 = arith.mulf %240, %244 : vector<8x16x64xf32>
    %246 = arith.addf %239, %245 : vector<8x16x64xf32>
    %247 = vector.extract_strided_slice %232 {offsets = [2, 0, 0], sizes = [8, 16, 64], strides = [1, 1, 1]} : vector<14x16x64xf32> to vector<8x16x64xf32>
    %248 = vector.extract_strided_slice %31 {offsets = [18, 0], sizes = [1, 64], strides = [1, 1]} : vector<49x64xf32> to vector<1x64xf32>
    %249 = vector.shape_cast %248 : vector<1x64xf32> to vector<64xf32>
    %250 = vector.shape_cast %249 : vector<64xf32> to vector<1x1x64xf32>
    %251 = vector.broadcast %250 : vector<1x1x64xf32> to vector<8x16x64xf32>
    %252 = arith.mulf %247, %251 : vector<8x16x64xf32>
    %253 = arith.addf %246, %252 : vector<8x16x64xf32>
    %254 = vector.extract_strided_slice %232 {offsets = [3, 0, 0], sizes = [8, 16, 64], strides = [1, 1, 1]} : vector<14x16x64xf32> to vector<8x16x64xf32>
    %255 = vector.extract_strided_slice %31 {offsets = [25, 0], sizes = [1, 64], strides = [1, 1]} : vector<49x64xf32> to vector<1x64xf32>
    %256 = vector.shape_cast %255 : vector<1x64xf32> to vector<64xf32>
    %257 = vector.shape_cast %256 : vector<64xf32> to vector<1x1x64xf32>
    %258 = vector.broadcast %257 : vector<1x1x64xf32> to vector<8x16x64xf32>
    %259 = arith.mulf %254, %258 : vector<8x16x64xf32>
    %260 = arith.addf %253, %259 : vector<8x16x64xf32>
    %261 = vector.extract_strided_slice %232 {offsets = [4, 0, 0], sizes = [8, 16, 64], strides = [1, 1, 1]} : vector<14x16x64xf32> to vector<8x16x64xf32>
    %262 = vector.extract_strided_slice %31 {offsets = [32, 0], sizes = [1, 64], strides = [1, 1]} : vector<49x64xf32> to vector<1x64xf32>
    %263 = vector.shape_cast %262 : vector<1x64xf32> to vector<64xf32>
    %264 = vector.shape_cast %263 : vector<64xf32> to vector<1x1x64xf32>
    %265 = vector.broadcast %264 : vector<1x1x64xf32> to vector<8x16x64xf32>
    %266 = arith.mulf %261, %265 : vector<8x16x64xf32>
    %267 = arith.addf %260, %266 : vector<8x16x64xf32>
    %268 = vector.extract_strided_slice %232 {offsets = [5, 0, 0], sizes = [8, 16, 64], strides = [1, 1, 1]} : vector<14x16x64xf32> to vector<8x16x64xf32>
    %269 = vector.extract_strided_slice %31 {offsets = [39, 0], sizes = [1, 64], strides = [1, 1]} : vector<49x64xf32> to vector<1x64xf32>
    %270 = vector.shape_cast %269 : vector<1x64xf32> to vector<64xf32>
    %271 = vector.shape_cast %270 : vector<64xf32> to vector<1x1x64xf32>
    %272 = vector.broadcast %271 : vector<1x1x64xf32> to vector<8x16x64xf32>
    %273 = arith.mulf %268, %272 : vector<8x16x64xf32>
    %274 = arith.addf %267, %273 : vector<8x16x64xf32>
    %275 = vector.extract_strided_slice %232 {offsets = [6, 0, 0], sizes = [8, 16, 64], strides = [1, 1, 1]} : vector<14x16x64xf32> to vector<8x16x64xf32>
    %276 = vector.extract_strided_slice %31 {offsets = [46, 0], sizes = [1, 64], strides = [1, 1]} : vector<49x64xf32> to vector<1x64xf32>
    %277 = vector.shape_cast %276 : vector<1x64xf32> to vector<64xf32>
    %278 = vector.shape_cast %277 : vector<64xf32> to vector<1x1x64xf32>
    %279 = vector.broadcast %278 : vector<1x1x64xf32> to vector<8x16x64xf32>
    %280 = arith.mulf %275, %279 : vector<8x16x64xf32>
    %281 = arith.addf %274, %280 : vector<8x16x64xf32>
    %282 = vector.extract_strided_slice %30 {offsets = [0, 5, 0], sizes = [14, 16, 64], strides = [1, 1, 1]} : vector<14x22x64xf32> to vector<14x16x64xf32>
    %283 = vector.extract_strided_slice %282 {offsets = [0, 0, 0], sizes = [8, 16, 64], strides = [1, 1, 1]} : vector<14x16x64xf32> to vector<8x16x64xf32>
    %284 = vector.extract_strided_slice %31 {offsets = [5, 0], sizes = [1, 64], strides = [1, 1]} : vector<49x64xf32> to vector<1x64xf32>
    %285 = vector.shape_cast %284 : vector<1x64xf32> to vector<64xf32>
    %286 = vector.shape_cast %285 : vector<64xf32> to vector<1x1x64xf32>
    %287 = vector.broadcast %286 : vector<1x1x64xf32> to vector<8x16x64xf32>
    %288 = arith.mulf %283, %287 : vector<8x16x64xf32>
    %289 = arith.addf %281, %288 : vector<8x16x64xf32>
    %290 = vector.extract_strided_slice %282 {offsets = [1, 0, 0], sizes = [8, 16, 64], strides = [1, 1, 1]} : vector<14x16x64xf32> to vector<8x16x64xf32>
    %291 = vector.extract_strided_slice %31 {offsets = [12, 0], sizes = [1, 64], strides = [1, 1]} : vector<49x64xf32> to vector<1x64xf32>
    %292 = vector.shape_cast %291 : vector<1x64xf32> to vector<64xf32>
    %293 = vector.shape_cast %292 : vector<64xf32> to vector<1x1x64xf32>
    %294 = vector.broadcast %293 : vector<1x1x64xf32> to vector<8x16x64xf32>
    %295 = arith.mulf %290, %294 : vector<8x16x64xf32>
    %296 = arith.addf %289, %295 : vector<8x16x64xf32>
    %297 = vector.extract_strided_slice %282 {offsets = [2, 0, 0], sizes = [8, 16, 64], strides = [1, 1, 1]} : vector<14x16x64xf32> to vector<8x16x64xf32>
    %298 = vector.extract_strided_slice %31 {offsets = [19, 0], sizes = [1, 64], strides = [1, 1]} : vector<49x64xf32> to vector<1x64xf32>
    %299 = vector.shape_cast %298 : vector<1x64xf32> to vector<64xf32>
    %300 = vector.shape_cast %299 : vector<64xf32> to vector<1x1x64xf32>
    %301 = vector.broadcast %300 : vector<1x1x64xf32> to vector<8x16x64xf32>
    %302 = arith.mulf %297, %301 : vector<8x16x64xf32>
    %303 = arith.addf %296, %302 : vector<8x16x64xf32>
    %304 = vector.extract_strided_slice %282 {offsets = [3, 0, 0], sizes = [8, 16, 64], strides = [1, 1, 1]} : vector<14x16x64xf32> to vector<8x16x64xf32>
    %305 = vector.extract_strided_slice %31 {offsets = [26, 0], sizes = [1, 64], strides = [1, 1]} : vector<49x64xf32> to vector<1x64xf32>
    %306 = vector.shape_cast %305 : vector<1x64xf32> to vector<64xf32>
    %307 = vector.shape_cast %306 : vector<64xf32> to vector<1x1x64xf32>
    %308 = vector.broadcast %307 : vector<1x1x64xf32> to vector<8x16x64xf32>
    %309 = arith.mulf %304, %308 : vector<8x16x64xf32>
    %310 = arith.addf %303, %309 : vector<8x16x64xf32>
    %311 = vector.extract_strided_slice %282 {offsets = [4, 0, 0], sizes = [8, 16, 64], strides = [1, 1, 1]} : vector<14x16x64xf32> to vector<8x16x64xf32>
    %312 = vector.extract_strided_slice %31 {offsets = [33, 0], sizes = [1, 64], strides = [1, 1]} : vector<49x64xf32> to vector<1x64xf32>
    %313 = vector.shape_cast %312 : vector<1x64xf32> to vector<64xf32>
    %314 = vector.shape_cast %313 : vector<64xf32> to vector<1x1x64xf32>
    %315 = vector.broadcast %314 : vector<1x1x64xf32> to vector<8x16x64xf32>
    %316 = arith.mulf %311, %315 : vector<8x16x64xf32>
    %317 = arith.addf %310, %316 : vector<8x16x64xf32>
    %318 = vector.extract_strided_slice %282 {offsets = [5, 0, 0], sizes = [8, 16, 64], strides = [1, 1, 1]} : vector<14x16x64xf32> to vector<8x16x64xf32>
    %319 = vector.extract_strided_slice %31 {offsets = [40, 0], sizes = [1, 64], strides = [1, 1]} : vector<49x64xf32> to vector<1x64xf32>
    %320 = vector.shape_cast %319 : vector<1x64xf32> to vector<64xf32>
    %321 = vector.shape_cast %320 : vector<64xf32> to vector<1x1x64xf32>
    %322 = vector.broadcast %321 : vector<1x1x64xf32> to vector<8x16x64xf32>
    %323 = arith.mulf %318, %322 : vector<8x16x64xf32>
    %324 = arith.addf %317, %323 : vector<8x16x64xf32>
    %325 = vector.extract_strided_slice %282 {offsets = [6, 0, 0], sizes = [8, 16, 64], strides = [1, 1, 1]} : vector<14x16x64xf32> to vector<8x16x64xf32>
    %326 = vector.extract_strided_slice %31 {offsets = [47, 0], sizes = [1, 64], strides = [1, 1]} : vector<49x64xf32> to vector<1x64xf32>
    %327 = vector.shape_cast %326 : vector<1x64xf32> to vector<64xf32>
    %328 = vector.shape_cast %327 : vector<64xf32> to vector<1x1x64xf32>
    %329 = vector.broadcast %328 : vector<1x1x64xf32> to vector<8x16x64xf32>
    %330 = arith.mulf %325, %329 : vector<8x16x64xf32>
    %331 = arith.addf %324, %330 : vector<8x16x64xf32>
    %332 = vector.extract_strided_slice %30 {offsets = [0, 6, 0], sizes = [14, 16, 64], strides = [1, 1, 1]} : vector<14x22x64xf32> to vector<14x16x64xf32>
    %333 = vector.extract_strided_slice %332 {offsets = [0, 0, 0], sizes = [8, 16, 64], strides = [1, 1, 1]} : vector<14x16x64xf32> to vector<8x16x64xf32>
    %334 = vector.extract_strided_slice %31 {offsets = [6, 0], sizes = [1, 64], strides = [1, 1]} : vector<49x64xf32> to vector<1x64xf32>
    %335 = vector.shape_cast %334 : vector<1x64xf32> to vector<64xf32>
    %336 = vector.shape_cast %335 : vector<64xf32> to vector<1x1x64xf32>
    %337 = vector.broadcast %336 : vector<1x1x64xf32> to vector<8x16x64xf32>
    %338 = arith.mulf %333, %337 : vector<8x16x64xf32>
    %339 = arith.addf %331, %338 : vector<8x16x64xf32>
    %340 = vector.extract_strided_slice %332 {offsets = [1, 0, 0], sizes = [8, 16, 64], strides = [1, 1, 1]} : vector<14x16x64xf32> to vector<8x16x64xf32>
    %341 = vector.extract_strided_slice %31 {offsets = [13, 0], sizes = [1, 64], strides = [1, 1]} : vector<49x64xf32> to vector<1x64xf32>
    %342 = vector.shape_cast %341 : vector<1x64xf32> to vector<64xf32>
    %343 = vector.shape_cast %342 : vector<64xf32> to vector<1x1x64xf32>
    %344 = vector.broadcast %343 : vector<1x1x64xf32> to vector<8x16x64xf32>
    %345 = arith.mulf %340, %344 : vector<8x16x64xf32>
    %346 = arith.addf %339, %345 : vector<8x16x64xf32>
    %347 = vector.extract_strided_slice %332 {offsets = [2, 0, 0], sizes = [8, 16, 64], strides = [1, 1, 1]} : vector<14x16x64xf32> to vector<8x16x64xf32>
    %348 = vector.extract_strided_slice %31 {offsets = [20, 0], sizes = [1, 64], strides = [1, 1]} : vector<49x64xf32> to vector<1x64xf32>
    %349 = vector.shape_cast %348 : vector<1x64xf32> to vector<64xf32>
    %350 = vector.shape_cast %349 : vector<64xf32> to vector<1x1x64xf32>
    %351 = vector.broadcast %350 : vector<1x1x64xf32> to vector<8x16x64xf32>
    %352 = arith.mulf %347, %351 : vector<8x16x64xf32>
    %353 = arith.addf %346, %352 : vector<8x16x64xf32>
    %354 = vector.extract_strided_slice %332 {offsets = [3, 0, 0], sizes = [8, 16, 64], strides = [1, 1, 1]} : vector<14x16x64xf32> to vector<8x16x64xf32>
    %355 = vector.extract_strided_slice %31 {offsets = [27, 0], sizes = [1, 64], strides = [1, 1]} : vector<49x64xf32> to vector<1x64xf32>
    %356 = vector.shape_cast %355 : vector<1x64xf32> to vector<64xf32>
    %357 = vector.shape_cast %356 : vector<64xf32> to vector<1x1x64xf32>
    %358 = vector.broadcast %357 : vector<1x1x64xf32> to vector<8x16x64xf32>
    %359 = arith.mulf %354, %358 : vector<8x16x64xf32>
    %360 = arith.addf %353, %359 : vector<8x16x64xf32>
    %361 = vector.extract_strided_slice %332 {offsets = [4, 0, 0], sizes = [8, 16, 64], strides = [1, 1, 1]} : vector<14x16x64xf32> to vector<8x16x64xf32>
    %362 = vector.extract_strided_slice %31 {offsets = [34, 0], sizes = [1, 64], strides = [1, 1]} : vector<49x64xf32> to vector<1x64xf32>
    %363 = vector.shape_cast %362 : vector<1x64xf32> to vector<64xf32>
    %364 = vector.shape_cast %363 : vector<64xf32> to vector<1x1x64xf32>
    %365 = vector.broadcast %364 : vector<1x1x64xf32> to vector<8x16x64xf32>
    %366 = arith.mulf %361, %365 : vector<8x16x64xf32>
    %367 = arith.addf %360, %366 : vector<8x16x64xf32>
    %368 = vector.extract_strided_slice %332 {offsets = [5, 0, 0], sizes = [8, 16, 64], strides = [1, 1, 1]} : vector<14x16x64xf32> to vector<8x16x64xf32>
    %369 = vector.extract_strided_slice %31 {offsets = [41, 0], sizes = [1, 64], strides = [1, 1]} : vector<49x64xf32> to vector<1x64xf32>
    %370 = vector.shape_cast %369 : vector<1x64xf32> to vector<64xf32>
    %371 = vector.shape_cast %370 : vector<64xf32> to vector<1x1x64xf32>
    %372 = vector.broadcast %371 : vector<1x1x64xf32> to vector<8x16x64xf32>
    %373 = arith.mulf %368, %372 : vector<8x16x64xf32>
    %374 = arith.addf %367, %373 : vector<8x16x64xf32>
    %375 = vector.extract_strided_slice %332 {offsets = [6, 0, 0], sizes = [8, 16, 64], strides = [1, 1, 1]} : vector<14x16x64xf32> to vector<8x16x64xf32>
    %376 = vector.extract_strided_slice %31 {offsets = [48, 0], sizes = [1, 64], strides = [1, 1]} : vector<49x64xf32> to vector<1x64xf32>
    %377 = vector.shape_cast %376 : vector<1x64xf32> to vector<64xf32>
    %378 = vector.shape_cast %377 : vector<64xf32> to vector<1x1x64xf32>
    %379 = vector.broadcast %378 : vector<1x1x64xf32> to vector<8x16x64xf32>
    %380 = arith.mulf %375, %379 : vector<8x16x64xf32>
    %381 = arith.addf %374, %380 : vector<8x16x64xf32>
    %c0_10 = arith.constant 0 : index
    %c0_11 = arith.constant 0 : index
    %382 = vector.load %arg6[%c0_10, %c0_11] : memref<1x64xf32, #tpu.memory_space<vmem>>, vector<1x64xf32>
    %383 = vector.shape_cast %382 : vector<1x64xf32> to vector<64xf32>
    %384 = vector.shape_cast %383 : vector<64xf32> to vector<1x1x64xf32>
    %385 = vector.broadcast %384 : vector<1x1x64xf32> to vector<8x16x64xf32>
    %386 = arith.addf %381, %385 : vector<8x16x64xf32>
    %387 = vector.shape_cast %386 : vector<8x16x64xf32> to vector<128x64xf32>
    %388 = vector.shape_cast %182 : vector<8x16x2xf32> to vector<128x2xf32>
    %389 = vector.extract_strided_slice %387 {offsets = [0, 2], sizes = [128, 2], strides = [1, 1]} : vector<128x64xf32> to vector<128x2xf32>
    %390 = arith.mulf %388, %389 : vector<128x2xf32>
    %c0_12 = arith.constant 0 : index
    %c0_13 = arith.constant 0 : index
    %391 = vector.load %arg7[%c0_12, %c0_13] : memref<2x4xf32, #tpu.memory_space<vmem>>, vector<2x4xf32>
    %c0_14 = arith.constant 0 : index
    %c0_15 = arith.constant 0 : index
    %392 = vector.load %arg8[%c0_14, %c0_15] : memref<1x4xf32, #tpu.memory_space<vmem>>, vector<1x4xf32>
    %cst_16 = arith.constant dense<0.000000e+00> : vector<128x4xf32>
    %393 = tpu.matmul %390, %391, %cst_16 {dimension_numbers = #tpu.dot_dimension_numbers<[1], [0], [0], [1], [0, 0, 1, 1], [], []>} : vector<128x2xf32>, vector<2x4xf32>, vector<128x4xf32> -> vector<128x4xf32>
    %394 = vector.broadcast %392 : vector<1x4xf32> to vector<128x4xf32>
    %395 = arith.addf %393, %394 : vector<128x4xf32>
    %396 = vector.extract_strided_slice %387 {offsets = [0, 4], sizes = [128, 4], strides = [1, 1]} : vector<128x64xf32> to vector<128x4xf32>
    %397 = arith.mulf %395, %396 : vector<128x4xf32>
    %c0_17 = arith.constant 0 : index
    %c0_18 = arith.constant 0 : index
    %398 = vector.load %arg9[%c0_17, %c0_18] : memref<4x8xf32, #tpu.memory_space<vmem>>, vector<4x8xf32>
    %c0_19 = arith.constant 0 : index
    %c0_20 = arith.constant 0 : index
    %399 = vector.load %arg10[%c0_19, %c0_20] : memref<1x8xf32, #tpu.memory_space<vmem>>, vector<1x8xf32>
    %cst_21 = arith.constant dense<0.000000e+00> : vector<128x8xf32>
    %400 = tpu.matmul %397, %398, %cst_21 {dimension_numbers = #tpu.dot_dimension_numbers<[1], [0], [0], [1], [0, 0, 1, 1], [], []>} : vector<128x4xf32>, vector<4x8xf32>, vector<128x8xf32> -> vector<128x8xf32>
    %401 = vector.broadcast %399 : vector<1x8xf32> to vector<128x8xf32>
    %402 = arith.addf %400, %401 : vector<128x8xf32>
    %403 = vector.extract_strided_slice %387 {offsets = [0, 8], sizes = [128, 8], strides = [1, 1]} : vector<128x64xf32> to vector<128x8xf32>
    %404 = arith.mulf %402, %403 : vector<128x8xf32>
    %c0_22 = arith.constant 0 : index
    %c0_23 = arith.constant 0 : index
    %405 = vector.load %arg11[%c0_22, %c0_23] : memref<8x16xf32, #tpu.memory_space<vmem>>, vector<8x16xf32>
    %c0_24 = arith.constant 0 : index
    %c0_25 = arith.constant 0 : index
    %406 = vector.load %arg12[%c0_24, %c0_25] : memref<1x16xf32, #tpu.memory_space<vmem>>, vector<1x16xf32>
    %cst_26 = arith.constant dense<0.000000e+00> : vector<128x16xf32>
    %407 = tpu.matmul %404, %405, %cst_26 {dimension_numbers = #tpu.dot_dimension_numbers<[1], [0], [0], [1], [0, 0, 1, 1], [], []>} : vector<128x8xf32>, vector<8x16xf32>, vector<128x16xf32> -> vector<128x16xf32>
    %408 = vector.broadcast %406 : vector<1x16xf32> to vector<128x16xf32>
    %409 = arith.addf %407, %408 : vector<128x16xf32>
    %410 = vector.extract_strided_slice %387 {offsets = [0, 16], sizes = [128, 16], strides = [1, 1]} : vector<128x64xf32> to vector<128x16xf32>
    %411 = arith.mulf %409, %410 : vector<128x16xf32>
    %c0_27 = arith.constant 0 : index
    %c0_28 = arith.constant 0 : index
    %412 = vector.load %arg13[%c0_27, %c0_28] : memref<16x32xf32, #tpu.memory_space<vmem>>, vector<16x32xf32>
    %c0_29 = arith.constant 0 : index
    %c0_30 = arith.constant 0 : index
    %413 = vector.load %arg14[%c0_29, %c0_30] : memref<1x32xf32, #tpu.memory_space<vmem>>, vector<1x32xf32>
    %cst_31 = arith.constant dense<0.000000e+00> : vector<128x32xf32>
    %414 = tpu.matmul %411, %412, %cst_31 {dimension_numbers = #tpu.dot_dimension_numbers<[1], [0], [0], [1], [0, 0, 1, 1], [], []>} : vector<128x16xf32>, vector<16x32xf32>, vector<128x32xf32> -> vector<128x32xf32>
    %415 = vector.broadcast %413 : vector<1x32xf32> to vector<128x32xf32>
    %416 = arith.addf %414, %415 : vector<128x32xf32>
    %417 = vector.extract_strided_slice %387 {offsets = [0, 32], sizes = [128, 32], strides = [1, 1]} : vector<128x64xf32> to vector<128x32xf32>
    %418 = arith.mulf %416, %417 : vector<128x32xf32>
    %c0_32 = arith.constant 0 : index
    %c0_33 = arith.constant 0 : index
    %419 = vector.load %arg15[%c0_32, %c0_33] : memref<32x32xf32, #tpu.memory_space<vmem>>, vector<32x32xf32>
    %cst_34 = arith.constant dense<0.000000e+00> : vector<32x128xf32>
    %420 = tpu.matmul %419, %418, %cst_34 {dimension_numbers = #tpu.dot_dimension_numbers<[1], [1], [0], [0], [0, 0, 1, 0], [], []>} : vector<32x32xf32>, vector<128x32xf32>, vector<32x128xf32> -> vector<32x128xf32>
    %c0_35 = arith.constant 0 : index
    %c0_36 = arith.constant 0 : index
    %421 = vector.load %arg16[%c0_35, %c0_36] : memref<32x1xf32, #tpu.memory_space<vmem>>, vector<32x1xf32>
    %422 = vector.broadcast %421 : vector<32x1xf32> to vector<32x128xf32>
    %423 = arith.addf %420, %422 : vector<32x128xf32>
    %c0_37 = arith.constant 0 : index
    %c0_38 = arith.constant 0 : index
    %c0_39 = arith.constant 0 : index
    %424 = vector.load %arg17[%c0_37, %c0_38, %c0_39] : memref<1x32x128xf32, #tpu.memory_space<vmem>>, vector<1x32x128xf32>
    %425 = vector.shape_cast %424 : vector<1x32x128xf32> to vector<32x128xf32>
    %426 = vector.shape_cast %423 : vector<32x128xf32> to vector<1x32x128xf32>
    tpu.vector_store %arg17[%c0_37, %c0_38, %c0_39], %426 {strides = array<i32>} : memref<1x32x128xf32, #tpu.memory_space<vmem>>, vector<1x32x128xf32>,
    return
  }
  func.func @transform_0(%arg0: i32, %arg1: i32) -> (i32, i32, i32, i32) {
    %c0_i32 = arith.constant 0 : i32
    %c0_i32_0 = arith.constant 0 : i32
    %c0_i32_1 = arith.constant 0 : i32
    %c0_i32_2 = arith.constant 0 : i32
    return %arg0, %c0_i32, %c0_i32_0, %c0_i32_1 : i32, i32, i32, i32
  }
  func.func @transform_1(%arg0: i32, %arg1: i32) -> (i32, i32) {
    %c0_i32 = arith.constant 0 : i32
    %c0_i32_0 = arith.constant 0 : i32
    %c0_i32_1 = arith.constant 0 : i32
    return %c0_i32, %c0_i32_0 : i32, i32
  }
  func.func @transform_2(%arg0: i32, %arg1: i32) -> (i32, i32) {
    %c0_i32 = arith.constant 0 : i32
    %c0_i32_0 = arith.constant 0 : i32
    %c0_i32_1 = arith.constant 0 : i32
    return %c0_i32, %c0_i32_0 : i32, i32
  }
  func.func @transform_3(%arg0: i32, %arg1: i32) -> (i32, i32) {
    %c0_i32 = arith.constant 0 : i32
    %c0_i32_0 = arith.constant 0 : i32
    %c0_i32_1 = arith.constant 0 : i32
    return %c0_i32, %c0_i32_0 : i32, i32
  }
  func.func @transform_4(%arg0: i32, %arg1: i32) -> (i32, i32) {
    %c0_i32 = arith.constant 0 : i32
    %c0_i32_0 = arith.constant 0 : i32
    %c0_i32_1 = arith.constant 0 : i32
    return %c0_i32, %c0_i32_0 : i32, i32
  }
  func.func @transform_5(%arg0: i32, %arg1: i32) -> (i32, i32) {
    %c0_i32 = arith.constant 0 : i32
    %c0_i32_0 = arith.constant 0 : i32
    %c0_i32_1 = arith.constant 0 : i32
    return %c0_i32, %c0_i32_0 : i32, i32
  }
  func.func @transform_6(%arg0: i32, %arg1: i32) -> (i32, i32) {
    %c0_i32 = arith.constant 0 : i32
    %c0_i32_0 = arith.constant 0 : i32
    %c0_i32_1 = arith.constant 0 : i32
    return %c0_i32, %c0_i32_0 : i32, i32
  }
  func.func @transform_7(%arg0: i32, %arg1: i32) -> (i32, i32) {
    %c0_i32 = arith.constant 0 : i32
    %c0_i32_0 = arith.constant 0 : i32
    %c0_i32_1 = arith.constant 0 : i32
    return %c0_i32, %c0_i32_0 : i32, i32
  }
  func.func @transform_8(%arg0: i32, %arg1: i32) -> (i32, i32) {
    %c0_i32 = arith.constant 0 : i32
    %c0_i32_0 = arith.constant 0 : i32
    %c0_i32_1 = arith.constant 0 : i32
    return %c0_i32, %c0_i32_0 : i32, i32
  }
  func.func @transform_9(%arg0: i32, %arg1: i32) -> (i32, i32) {
    %c0_i32 = arith.constant 0 : i32
    %c0_i32_0 = arith.constant 0 : i32
    %c0_i32_1 = arith.constant 0 : i32
    return %c0_i32, %c0_i32_0 : i32, i32
  }
  func.func @transform_10(%arg0: i32, %arg1: i32) -> (i32, i32) {
    %c0_i32 = arith.constant 0 : i32
    %c0_i32_0 = arith.constant 0 : i32
    %c0_i32_1 = arith.constant 0 : i32
    return %c0_i32, %c0_i32_0 : i32, i32
  }
  func.func @transform_11(%arg0: i32, %arg1: i32) -> (i32, i32) {
    %c0_i32 = arith.constant 0 : i32
    %c0_i32_0 = arith.constant 0 : i32
    %c0_i32_1 = arith.constant 0 : i32
    return %c0_i32, %c0_i32_0 : i32, i32
  }
  func.func @transform_12(%arg0: i32, %arg1: i32) -> (i32, i32) {
    %c0_i32 = arith.constant 0 : i32
    %c0_i32_0 = arith.constant 0 : i32
    %c0_i32_1 = arith.constant 0 : i32
    return %c0_i32, %c0_i32_0 : i32, i32
  }
  func.func @transform_13(%arg0: i32, %arg1: i32) -> (i32, i32) {
    %c0_i32 = arith.constant 0 : i32
    %c0_i32_0 = arith.constant 0 : i32
    %c0_i32_1 = arith.constant 0 : i32
    return %c0_i32, %c0_i32_0 : i32, i32
  }
  func.func @transform_14(%arg0: i32, %arg1: i32) -> (i32, i32) {
    %c0_i32 = arith.constant 0 : i32
    %c0_i32_0 = arith.constant 0 : i32
    %c0_i32_1 = arith.constant 0 : i32
    return %c0_i32, %c0_i32_0 : i32, i32
  }
  func.func @transform_15(%arg0: i32, %arg1: i32) -> (i32, i32, i32) {
    %c0_i32 = arith.constant 0 : i32
    %c0_i32_0 = arith.constant 0 : i32
    return %arg0, %c0_i32, %arg1 : i32, i32, i32
  }
}

</mosaic_0001>

<llo_original>
// kernel: tpu_custom_call.1
$region0: #{tpu_custom_call.1}
  #allocation0 [shape = 'u32[]', space=smem, size = 0x4, offset = 0x4, fixed_abs, tag = 'smem constant byte address 0x4 - core index']
  #allocation1 [shape = 'u32[144,128]{1,0:T(1,128)}', space=vmem, size = 0x12000, scoped, tag = 'internal scratch']
  %s0 = inlined_call_operand.hbm [shape: f32[2,22,16,32], index: 0, kind: input, shape index: {}]
  %s1 = inlined_call_operand.vmem [shape: f32[32,64], index: 1, kind: input, shape index: {}]
  %s2 = inlined_call_operand.hbm [shape: f32[1,64], index: 2, kind: input, shape index: {}]
  %s3 = inlined_call_operand.hbm [shape: f32[49,64], index: 3, kind: input, shape index: {}]
  %s4 = inlined_call_operand.hbm [shape: f32[1,64], index: 4, kind: input, shape index: {}]
  %s5 = inlined_call_operand.vmem [shape: f32[2,4], index: 5, kind: input, shape index: {}]
  %s6 = inlined_call_operand.hbm [shape: f32[1,4], index: 6, kind: input, shape index: {}]
  %s7 = inlined_call_operand.hbm [shape: f32[4,8], index: 7, kind: input, shape index: {}]
  %s8 = inlined_call_operand.hbm [shape: f32[1,8], index: 8, kind: input, shape index: {}]
  %s9 = inlined_call_operand.hbm [shape: f32[8,16], index: 9, kind: input, shape index: {}]
  %s10 = inlined_call_operand.vmem [shape: f32[1,16], index: 10, kind: input, shape index: {}]
  %s11 = inlined_call_operand.hbm [shape: f32[16,32], index: 11, kind: input, shape index: {}]
  %s12 = inlined_call_operand.vmem [shape: f32[1,32], index: 12, kind: input, shape index: {}]
  %s13 = inlined_call_operand.vmem [shape: f32[32,32], index: 13, kind: input, shape index: {}]
  %s14 = inlined_call_operand.vmem [shape: f32[32,1], index: 14, kind: input, shape index: {}]
  %s15 = inlined_call_operand.hbm [shape: f32[2,32,256], index: 15, kind: output, shape index: {}]
  %s16 = sld [smem:[#allocation0]]
  $region129: #{tpu_custom_call.1} parent=0
    _
  %s18 = ssub.s32 1, %s16
  %s19 = scalar_select 0, %s18, %s16
  $region1: #{tpu_custom_call.1} parent=0
    #allocation2 [shape = 'u8[360448]{0}', space=vmem, size = 0x58000, scoped, tag = 'input window, operand 0']
    #allocation3 [shape = 's32[2]{0}', space=sflag, size = 0x8, scoped, tag = 'scoped memory for tpu_custom_call.1']
    #allocation4 [shape = 's32[2]{0}', space=sflag, size = 0x8, scoped, tag = 'scoped memory for tpu_custom_call.1']
    #allocation5 [shape = 'u8[512]{0}', space=vmem, size = 0x400, scoped, tag = 'input window, operand 2, single buffered']
    #allocation6 [shape = 's32[1]{0}', space=sflag, size = 0x4, scoped, tag = 'scoped memory for tpu_custom_call.1']
    #allocation7 [shape = 'u8[28672]{0}', space=vmem, size = 0x7000, scoped, tag = 'input window, operand 3, single buffered']
    #allocation8 [shape = 'u8[512]{0}', space=vmem, size = 0x400, scoped, tag = 'input window, operand 4, single buffered']
    #allocation9 [shape = 's32[1]{0}', space=sflag, size = 0x4, scoped, tag = 'scoped memory for tpu_custom_call.1']
    #allocation10 [shape = 'u8[512]{0}', space=vmem, size = 0x400, scoped, tag = 'input window, operand 6, single buffered']
    #allocation11 [shape = 'u8[2048]{0}', space=vmem, size = 0x800, scoped, tag = 'input window, operand 7, single buffered']
    #allocation12 [shape = 's32[1]{0}', space=sflag, size = 0x4, scoped, tag = 'scoped memory for tpu_custom_call.1']
    #allocation13 [shape = 'u8[512]{0}', space=vmem, size = 0x400, scoped, tag = 'input window, operand 8, single buffered']
    #allocation14 [shape = 'u8[4096]{0}', space=vmem, size = 0x1000, scoped, tag = 'input window, operand 9, single buffered']
    #allocation15 [shape = 's32[1]{0}', space=sflag, size = 0x4, scoped, tag = 'scoped memory for tpu_custom_call.1']
    #allocation16 [shape = 'u8[8192]{0}', space=vmem, size = 0x2000, scoped, tag = 'input window, operand 11, single buffered']
    #allocation17 [shape = 'u8[32768]{0}', space=vmem, size = 0x8000, scoped, tag = 'output window, operand 0']
    %20 = vsyncpa [#allocation3], 0
    %s21 = scalar_lea.sflag [#allocation3], 1
    %22 = vsyncpa %s21, 0
    %23 = vsyncpa [#allocation6], 0
    %24 = vsyncpa [#allocation9], 0
    %25 = vsyncpa [#allocation12], 0
    %26 = vsyncpa [#allocation15], 0
    %27 = vsyncpa [#allocation4], 0
    %s28 = scalar_lea.sflag [#allocation4], 1
    %29 = vsyncpa %s28, 0
    loop: start=0, step=1, limit=6
    $region2: #{tpu_custom_call.1} parent=1 // loop_pre_header
      _
    $region3: #{tpu_custom_call.1} parent=1 // loop_header
      %s31 = sphi 0, %s35
      %p32 = scmp.ge.s32.totalorder %s31, 6
      %s38 = sphi 0, %s50
      %s39 = sphi 0, %s46
      %s40 = sphi 0, %s38
      %s41 = sphi 0, %s39
      %s42 = sphi 0, %s40
      %s43 = sphi 0, %s41
      %s53 = sphi 0, %s55
      %s56 = sphi 0, %s53
      %s57 = sphi 0, %s56
      %s73 = sphi 0, %s57
      %s77 = sphi 0, %s77
      %s79 = sphi 0, %s77
      %s80 = sphi 0, %s79
      %s94 = sphi 0, %s80
      %s98 = sphi 0, %s98
      %s100 = sphi 0, %s98
      %s101 = sphi 0, %s100
      %s115 = sphi 0, %s101
      %s119 = sphi 0, %s119
      %s121 = sphi 0, %s119
      %s122 = sphi 0, %s121
      %s136 = sphi 0, %s122
      %s140 = sphi 0, %s140
      %s142 = sphi 0, %s140
      %s143 = sphi 0, %s142
      %s157 = sphi 0, %s143
      %s161 = sphi 0, %s161
      %s163 = sphi 0, %s161
      %s164 = sphi 0, %s163
      %s178 = sphi 0, %s164
      %s182 = sphi 0, %s182
      %s184 = sphi 0, %s182
      %s185 = sphi 0, %s184
      %s199 = sphi 0, %s185
      %s203 = sphi 0, %s203
      %s205 = sphi 0, %s203
      %s206 = sphi 0, %s205
      %s220 = sphi 0, %s206
      %s224 = sphi 0, %s224
      %s226 = sphi 0, %s224
      %s227 = sphi 0, %s226
      %s241 = sphi 0, %s227
      %s245 = sphi 0, %s245
      %s247 = sphi 0, %s245
      %s248 = sphi 0, %s247
      %s262 = sphi 0, %s248
      %s266 = sphi 0, %s266
      %s268 = sphi 0, %s266
      %s269 = sphi 0, %s268
      %s283 = sphi 0, %s269
      %s287 = sphi 0, %s287
      %s289 = sphi 0, %s287
      %s290 = sphi 0, %s289
      %s304 = sphi 0, %s290
      %s308 = sphi 0, %s308
      %s310 = sphi 0, %s308
      %s311 = sphi 0, %s310
      %s325 = sphi 0, %s311
      %s329 = sphi 0, %s329
      %s331 = sphi 0, %s329
      %s332 = sphi 0, %s331
      %s346 = sphi 0, %s332
      %s350 = sphi 0, %s350
      %s352 = sphi 0, %s350
      %s353 = sphi 0, %s352
      %s367 = sphi 0, %s353
      %s375 = sphi 0, %s377
      %s378 = sphi 0, %s375
      %s379 = sphi 0, %s378
      %s395 = sphi 0, %s379
    $region4: #{tpu_custom_call.1} parent=1 // loop_header_branch
      %34 = sbr.rel (%p32) target = $region8
    $region5: #{tpu_custom_call.1} parent=1 // loop_body
      %s36 = ssub.s32 %s31, 1
      %s37 = ssub.s32 %s31, 2
      %s44 = sadd.s32 1, %s39
      %p45 = scmp.ge.s32.totalorder %s44, 2
      %s46 = scalar_select %p45, 0, %s44
      %s47 = sadd.s32 1, %s38
      %s48 = scalar_select %p45, %s47, %s38
      %p49 = scmp.ge.s32.totalorder %s48, 2
      %s50 = scalar_select %p49, 0, %s48
      %s51 = ssub.s32 %s38, %s50
      %p52 = scmp.eq.s32.totalorder %s51, 0
      %s54 = sadd.s32 %s53, 1
      %s55 = scalar_select %p52, %s53, %s54
      %p58 = pneg %p52
      %p59 = scmp.eq.s32.totalorder %s31, 3
      %p60 = por %p58, %p59
      %p61 = scmp.ne.s32.totalorder %s53, %s56
      %p62 = scmp.eq.s32.totalorder %s31, 0
      %p63 = por %p61, %p62
      %p64 = scmp.ne.s32.totalorder %s53, %s56
      %p65 = scmp.eq.s32.totalorder %s36, 3
      %p66 = por %p64, %p65
      %p67 = scmp.ne.s32.totalorder %s56, %s57
      %p68 = scmp.eq.s32.totalorder %s36, 0
      %p69 = por %p67, %p68
      %p70 = scmp.ne.s32.totalorder %s56, %s57
      %p71 = scmp.eq.s32.totalorder %s37, 3
      %p72 = por %p70, %p71
      %p74 = scmp.ne.s32.totalorder %s57, %s73
      %p75 = scmp.eq.s32.totalorder %s37, 0
      %p76 = por %p74, %p75
      %s78 = sadd.s32 %s77, 1
      %p81 = scmp.eq.s32.totalorder %s31, 3
      %p82 = scmp.ne.s32.totalorder %s77, %s79
      %p83 = scmp.eq.s32.totalorder %s31, 0
      %p84 = por %p82, %p83
      %p85 = scmp.ne.s32.totalorder %s77, %s79
      %p86 = scmp.eq.s32.totalorder %s36, 3
      %p87 = por %p85, %p86
      %p88 = scmp.ne.s32.totalorder %s79, %s80
      %p89 = scmp.eq.s32.totalorder %s36, 0
      %p90 = por %p88, %p89
      %p91 = scmp.ne.s32.totalorder %s79, %s80
      %p92 = scmp.eq.s32.totalorder %s37, 3
      %p93 = por %p91, %p92
      %p95 = scmp.ne.s32.totalorder %s80, %s94
      %p96 = scmp.eq.s32.totalorder %s37, 0
      %p97 = por %p95, %p96
      %s99 = sadd.s32 %s98, 1
      %p102 = scmp.eq.s32.totalorder %s31, 3
      %p103 = scmp.ne.s32.totalorder %s98, %s100
      %p104 = scmp.eq.s32.totalorder %s31, 0
      %p105 = por %p103, %p104
      %p106 = scmp.ne.s32.totalorder %s98, %s100
      %p107 = scmp.eq.s32.totalorder %s36, 3
      %p108 = por %p106, %p107
      %p109 = scmp.ne.s32.totalorder %s100, %s101
      %p110 = scmp.eq.s32.totalorder %s36, 0
      %p111 = por %p109, %p110
      %p112 = scmp.ne.s32.totalorder %s100, %s101
      %p113 = scmp.eq.s32.totalorder %s37, 3
      %p114 = por %p112, %p113
      %p116 = scmp.ne.s32.totalorder %s101, %s115
      %p117 = scmp.eq.s32.totalorder %s37, 0
      %p118 = por %p116, %p117
      %s120 = sadd.s32 %s119, 1
      %p123 = scmp.eq.s32.totalorder %s31, 3
      %p124 = scmp.ne.s32.totalorder %s119, %s121
      %p125 = scmp.eq.s32.totalorder %s31, 0
      %p126 = por %p124, %p125
      %p127 = scmp.ne.s32.totalorder %s119, %s121
      %p128 = scmp.eq.s32.totalorder %s36, 3
      %p129 = por %p127, %p128
      %p130 = scmp.ne.s32.totalorder %s121, %s122
      %p131 = scmp.eq.s32.totalorder %s36, 0
      %p132 = por %p130, %p131
      %p133 = scmp.ne.s32.totalorder %s121, %s122
      %p134 = scmp.eq.s32.totalorder %s37, 3
      %p135 = por %p133, %p134
      %p137 = scmp.ne.s32.totalorder %s122, %s136
      %p138 = scmp.eq.s32.totalorder %s37, 0
      %p139 = por %p137, %p138
      %s141 = sadd.s32 %s140, 1
      %p144 = scmp.eq.s32.totalorder %s31, 3
      %p145 = scmp.ne.s32.totalorder %s140, %s142
      %p146 = scmp.eq.s32.totalorder %s31, 0
      %p147 = por %p145, %p146
      %p148 = scmp.ne.s32.totalorder %s140, %s142
      %p149 = scmp.eq.s32.totalorder %s36, 3
      %p150 = por %p148, %p149
      %p151 = scmp.ne.s32.totalorder %s142, %s143
      %p152 = scmp.eq.s32.totalorder %s36, 0
      %p153 = por %p151, %p152
      %p154 = scmp.ne.s32.totalorder %s142, %s143
      %p155 = scmp.eq.s32.totalorder %s37, 3
      %p156 = por %p154, %p155
      %p158 = scmp.ne.s32.totalorder %s143, %s157
      %p159 = scmp.eq.s32.totalorder %s37, 0
      %p160 = por %p158, %p159
      %s162 = sadd.s32 %s161, 1
      %p165 = scmp.eq.s32.totalorder %s31, 3
      %p166 = scmp.ne.s32.totalorder %s161, %s163
      %p167 = scmp.eq.s32.totalorder %s31, 0
      %p168 = por %p166, %p167
      %p169 = scmp.ne.s32.totalorder %s161, %s163
      %p170 = scmp.eq.s32.totalorder %s36, 3
      %p171 = por %p169, %p170
      %p172 = scmp.ne.s32.totalorder %s163, %s164
      %p173 = scmp.eq.s32.totalorder %s36, 0
      %p174 = por %p172, %p173
      %p175 = scmp.ne.s32.totalorder %s163, %s164
      %p176 = scmp.eq.s32.totalorder %s37, 3
      %p177 = por %p175, %p176
      %p179 = scmp.ne.s32.totalorder %s164, %s178
      %p180 = scmp.eq.s32.totalorder %s37, 0
      %p181 = por %p179, %p180
      %s183 = sadd.s32 %s182, 1
      %p186 = scmp.eq.s32.totalorder %s31, 3
      %p187 = scmp.ne.s32.totalorder %s182, %s184
      %p188 = scmp.eq.s32.totalorder %s31, 0
      %p189 = por %p187, %p188
      %p190 = scmp.ne.s32.totalorder %s182, %s184
      %p191 = scmp.eq.s32.totalorder %s36, 3
      %p192 = por %p190, %p191
      %p193 = scmp.ne.s32.totalorder %s184, %s185
      %p194 = scmp.eq.s32.totalorder %s36, 0
      %p195 = por %p193, %p194
      %p196 = scmp.ne.s32.totalorder %s184, %s185
      %p197 = scmp.eq.s32.totalorder %s37, 3
      %p198 = por %p196, %p197
      %p200 = scmp.ne.s32.totalorder %s185, %s199
      %p201 = scmp.eq.s32.totalorder %s37, 0
      %p202 = por %p200, %p201
      %s204 = sadd.s32 %s203, 1
      %p207 = scmp.eq.s32.totalorder %s31, 3
      %p208 = scmp.ne.s32.totalorder %s203, %s205
      %p209 = scmp.eq.s32.totalorder %s31, 0
      %p210 = por %p208, %p209
      %p211 = scmp.ne.s32.totalorder %s203, %s205
      %p212 = scmp.eq.s32.totalorder %s36, 3
      %p213 = por %p211, %p212
      %p214 = scmp.ne.s32.totalorder %s205, %s206
      %p215 = scmp.eq.s32.totalorder %s36, 0
      %p216 = por %p214, %p215
      %p217 = scmp.ne.s32.totalorder %s205, %s206
      %p218 = scmp.eq.s32.totalorder %s37, 3
      %p219 = por %p217, %p218
      %p221 = scmp.ne.s32.totalorder %s206, %s220
      %p222 = scmp.eq.s32.totalorder %s37, 0
      %p223 = por %p221, %p222
      %s225 = sadd.s32 %s224, 1
      %p228 = scmp.eq.s32.totalorder %s31, 3
      %p229 = scmp.ne.s32.totalorder %s224, %s226
      %p230 = scmp.eq.s32.totalorder %s31, 0
      %p231 = por %p229, %p230
      %p232 = scmp.ne.s32.totalorder %s224, %s226
      %p233 = scmp.eq.s32.totalorder %s36, 3
      %p234 = por %p232, %p233
      %p235 = scmp.ne.s32.totalorder %s226, %s227
      %p236 = scmp.eq.s32.totalorder %s36, 0
      %p237 = por %p235, %p236
      %p238 = scmp.ne.s32.totalorder %s226, %s227
      %p239 = scmp.eq.s32.totalorder %s37, 3
      %p240 = por %p238, %p239
      %p242 = scmp.ne.s32.totalorder %s227, %s241
      %p243 = scmp.eq.s32.totalorder %s37, 0
      %p244 = por %p242, %p243
      %s246 = sadd.s32 %s245, 1
      %p249 = scmp.eq.s32.totalorder %s31, 3
      %p250 = scmp.ne.s32.totalorder %s245, %s247
      %p251 = scmp.eq.s32.totalorder %s31, 0
      %p252 = por %p250, %p251
      %p253 = scmp.ne.s32.totalorder %s245, %s247
      %p254 = scmp.eq.s32.totalorder %s36, 3
      %p255 = por %p253, %p254
      %p256 = scmp.ne.s32.totalorder %s247, %s248
      %p257 = scmp.eq.s32.totalorder %s36, 0
      %p258 = por %p256, %p257
      %p259 = scmp.ne.s32.totalorder %s247, %s248
      %p260 = scmp.eq.s32.totalorder %s37, 3
      %p261 = por %p259, %p260
      %p263 = scmp.ne.s32.totalorder %s248, %s262
      %p264 = scmp.eq.s32.totalorder %s37, 0
      %p265 = por %p263, %p264
      %s267 = sadd.s32 %s266, 1
      %p270 = scmp.eq.s32.totalorder %s31, 3
      %p271 = scmp.ne.s32.totalorder %s266, %s268
      %p272 = scmp.eq.s32.totalorder %s31, 0
      %p273 = por %p271, %p272
      %p274 = scmp.ne.s32.totalorder %s266, %s268
      %p275 = scmp.eq.s32.totalorder %s36, 3
      %p276 = por %p274, %p275
      %p277 = scmp.ne.s32.totalorder %s268, %s269
      %p278 = scmp.eq.s32.totalorder %s36, 0
      %p279 = por %p277, %p278
      %p280 = scmp.ne.s32.totalorder %s268, %s269
      %p281 = scmp.eq.s32.totalorder %s37, 3
      %p282 = por %p280, %p281
      %p284 = scmp.ne.s32.totalorder %s269, %s283
      %p285 = scmp.eq.s32.totalorder %s37, 0
      %p286 = por %p284, %p285
      %s288 = sadd.s32 %s287, 1
      %p291 = scmp.eq.s32.totalorder %s31, 3
      %p292 = scmp.ne.s32.totalorder %s287, %s289
      %p293 = scmp.eq.s32.totalorder %s31, 0
      %p294 = por %p292, %p293
      %p295 = scmp.ne.s32.totalorder %s287, %s289
      %p296 = scmp.eq.s32.totalorder %s36, 3
      %p297 = por %p295, %p296
      %p298 = scmp.ne.s32.totalorder %s289, %s290
      %p299 = scmp.eq.s32.totalorder %s36, 0
      %p300 = por %p298, %p299
      %p301 = scmp.ne.s32.totalorder %s289, %s290
      %p302 = scmp.eq.s32.totalorder %s37, 3
      %p303 = por %p301, %p302
      %p305 = scmp.ne.s32.totalorder %s290, %s304
      %p306 = scmp.eq.s32.totalorder %s37, 0
      %p307 = por %p305, %p306
      %s309 = sadd.s32 %s308, 1
      %p312 = scmp.eq.s32.totalorder %s31, 3
      %p313 = scmp.ne.s32.totalorder %s308, %s310
      %p314 = scmp.eq.s32.totalorder %s31, 0
      %p315 = por %p313, %p314
      %p316 = scmp.ne.s32.totalorder %s308, %s310
      %p317 = scmp.eq.s32.totalorder %s36, 3
      %p318 = por %p316, %p317
      %p319 = scmp.ne.s32.totalorder %s310, %s311
      %p320 = scmp.eq.s32.totalorder %s36, 0
      %p321 = por %p319, %p320
      %p322 = scmp.ne.s32.totalorder %s310, %s311
      %p323 = scmp.eq.s32.totalorder %s37, 3
      %p324 = por %p322, %p323
      %p326 = scmp.ne.s32.totalorder %s311, %s325
      %p327 = scmp.eq.s32.totalorder %s37, 0
      %p328 = por %p326, %p327
      %s330 = sadd.s32 %s329, 1
      %p333 = scmp.eq.s32.totalorder %s31, 3
      %p334 = scmp.ne.s32.totalorder %s329, %s331
      %p335 = scmp.eq.s32.totalorder %s31, 0
      %p336 = por %p334, %p335
      %p337 = scmp.ne.s32.totalorder %s329, %s331
      %p338 = scmp.eq.s32.totalorder %s36, 3
      %p339 = por %p337, %p338
      %p340 = scmp.ne.s32.totalorder %s331, %s332
      %p341 = scmp.eq.s32.totalorder %s36, 0
      %p342 = por %p340, %p341
      %p343 = scmp.ne.s32.totalorder %s331, %s332
      %p344 = scmp.eq.s32.totalorder %s37, 3
      %p345 = por %p343, %p344
      %p347 = scmp.ne.s32.totalorder %s332, %s346
      %p348 = scmp.eq.s32.totalorder %s37, 0
      %p349 = por %p347, %p348
      %s351 = sadd.s32 %s350, 1
      %p354 = scmp.eq.s32.totalorder %s31, 3
      %p355 = scmp.ne.s32.totalorder %s350, %s352
      %p356 = scmp.eq.s32.totalorder %s31, 0
      %p357 = por %p355, %p356
      %p358 = scmp.ne.s32.totalorder %s350, %s352
      %p359 = scmp.eq.s32.totalorder %s36, 3
      %p360 = por %p358, %p359
      %p361 = scmp.ne.s32.totalorder %s352, %s353
      %p362 = scmp.eq.s32.totalorder %s36, 0
      %p363 = por %p361, %p362
      %p364 = scmp.ne.s32.totalorder %s352, %s353
      %p365 = scmp.eq.s32.totalorder %s37, 3
      %p366 = por %p364, %p365
      %p368 = scmp.ne.s32.totalorder %s353, %s367
      %p369 = scmp.eq.s32.totalorder %s37, 0
      %p370 = por %p368, %p369
      %s371 = ssub.s32 %s38, %s50
      %s372 = ssub.s32 %s39, %s46
      %s373 = sor.u32 %s371, %s372
      %p374 = scmp.eq.s32.totalorder %s373, 0
      %s376 = sadd.s32 %s375, 1
      %s377 = scalar_select %p374, %s375, %s376
      %p380 = pneg %p374
      %p381 = scmp.eq.s32.totalorder %s31, 3
      %p382 = por %p380, %p381
      %p383 = scmp.ne.s32.totalorder %s375, %s378
      %p384 = scmp.eq.s32.totalorder %s31, 0
      %p385 = por %p383, %p384
      %p386 = scmp.ne.s32.totalorder %s375, %s378
      %p387 = scmp.eq.s32.totalorder %s36, 3
      %p388 = por %p386, %p387
      %p389 = scmp.ne.s32.totalorder %s378, %s379
      %p390 = scmp.eq.s32.totalorder %s36, 0
      %p391 = por %p389, %p390
      %p392 = scmp.ne.s32.totalorder %s378, %s379
      %p393 = scmp.eq.s32.totalorder %s37, 3
      %p394 = por %p392, %p393
      %p396 = scmp.ne.s32.totalorder %s379, %s395
      %p397 = scmp.eq.s32.totalorder %s37, 0
      %p398 = por %p396, %p397
      %p399 = scmp.le.s32.totalorder 1, %s31
      %p400 = scmp.lt.s32.totalorder %s31, 5
      %p401 = pnand %p399, %p400
      %p402 = pneg %p401
      // Predicated region
      $region9: #{tpu_custom_call.1} parent=5 // pred_check
        _
      $region10: #{tpu_custom_call.1} parent=5 // pred_check_branch
        %404 = sbr.rel (%p401) target = $region12
      $region11: #{tpu_custom_call.1} parent=5 // pred_region
        %s405 = ssub.s32 %s31, 1
        // Predicated region
        $region13: #{tpu_custom_call.1} parent=11 // pred_check
          %p406 = pneg %p90
        $region14: #{tpu_custom_call.1} parent=11 // pred_check_branch
          %408 = sbr.rel (%p406) target = $region16
        $region15: #{tpu_custom_call.1} parent=11 // pred_region
          _
        $region16: #{tpu_custom_call.1} parent=11 // pred_fallthru
          _
        // Predicated region
        $region17: #{tpu_custom_call.1} parent=11 // pred_check
          %p409 = pneg %p111
        $region18: #{tpu_custom_call.1} parent=11 // pred_check_branch
          %411 = sbr.rel (%p409) target = $region20
        $region19: #{tpu_custom_call.1} parent=11 // pred_region
          %s413 = ssub.s32 16, 16
          %414 = vsyncadd [#allocation6], %s413
          %s416 = sshll.u32 [#allocation5], 4
          %s417 = int_to_ptr.vmem [resolvable:$true] %s416
          %419 = dma.hbm_to_vmem [thread:$0]  %s2, 16, %s417, [#allocation6]
        $region20: #{tpu_custom_call.1} parent=11 // pred_fallthru
          _
        // Predicated region
        $region21: #{tpu_custom_call.1} parent=11 // pred_check
          %p420 = pneg %p132
        $region22: #{tpu_custom_call.1} parent=11 // pred_check_branch
          %422 = sbr.rel (%p420) target = $region24
        $region23: #{tpu_custom_call.1} parent=11 // pred_region
          %s424 = ssub.s32 896, 896
          %425 = vsyncadd [#allocation6], %s424
          %s426 = sshll.u32 [#allocation7], 4
          %s427 = int_to_ptr.vmem [resolvable:$true] %s426
          %432 = dma.hbm_to_vmem [thread:$0]  %s3, 896, %s427, [#allocation6], 128, 128, 8
        $region24: #{tpu_custom_call.1} parent=11 // pred_fallthru
          _
        // Predicated region
        $region25: #{tpu_custom_call.1} parent=11 // pred_check
          %p433 = pneg %p153
        $region26: #{tpu_custom_call.1} parent=11 // pred_check_branch
          %435 = sbr.rel (%p433) target = $region28
        $region27: #{tpu_custom_call.1} parent=11 // pred_region
          %s437 = ssub.s32 16, 16
          %438 = vsyncadd [#allocation9], %s437
          %s440 = sshll.u32 [#allocation8], 4
          %s441 = int_to_ptr.vmem [resolvable:$true] %s440
          %443 = dma.hbm_to_vmem [thread:$0]  %s4, 16, %s441, [#allocation9]
        $region28: #{tpu_custom_call.1} parent=11 // pred_fallthru
          _
        // Predicated region
        $region29: #{tpu_custom_call.1} parent=11 // pred_check
          %p444 = pneg %p174
        $region30: #{tpu_custom_call.1} parent=11 // pred_check_branch
          %446 = sbr.rel (%p444) target = $region32
        $region31: #{tpu_custom_call.1} parent=11 // pred_region
          _
        $region32: #{tpu_custom_call.1} parent=11 // pred_fallthru
          _
        // Predicated region
        $region33: #{tpu_custom_call.1} parent=11 // pred_check
          %p447 = pneg %p195
        $region34: #{tpu_custom_call.1} parent=11 // pred_check_branch
          %449 = sbr.rel (%p447) target = $region36
        $region35: #{tpu_custom_call.1} parent=11 // pred_region
          %s451 = ssub.s32 16, 16
          %452 = vsyncadd [#allocation9], %s451
          %s454 = sshll.u32 [#allocation10], 4
          %s455 = int_to_ptr.vmem [resolvable:$true] %s454
          %457 = dma.hbm_to_vmem [thread:$0]  %s6, 16, %s455, [#allocation9]
        $region36: #{tpu_custom_call.1} parent=11 // pred_fallthru
          _
        // Predicated region
        $region37: #{tpu_custom_call.1} parent=11 // pred_check
          %p458 = pneg %p216
        $region38: #{tpu_custom_call.1} parent=11 // pred_check_branch
          %460 = sbr.rel (%p458) target = $region40
        $region39: #{tpu_custom_call.1} parent=11 // pred_region
          %s462 = ssub.s32 64, 64
          %463 = vsyncadd [#allocation12], %s462
          %s465 = sshll.u32 [#allocation11], 4
          %s466 = int_to_ptr.vmem [resolvable:$true] %s465
          %468 = dma.hbm_to_vmem [thread:$0]  %s7, 64, %s466, [#allocation12]
        $region40: #{tpu_custom_call.1} parent=11 // pred_fallthru
          _
        // Predicated region
        $region41: #{tpu_custom_call.1} parent=11 // pred_check
          %p469 = pneg %p237
        $region42: #{tpu_custom_call.1} parent=11 // pred_check_branch
          %471 = sbr.rel (%p469) target = $region44
        $region43: #{tpu_custom_call.1} parent=11 // pred_region
          %s473 = ssub.s32 16, 16
          %474 = vsyncadd [#allocation12], %s473
          %s476 = sshll.u32 [#allocation13], 4
          %s477 = int_to_ptr.vmem [resolvable:$true] %s476
          %479 = dma.hbm_to_vmem [thread:$0]  %s8, 16, %s477, [#allocation12]
        $region44: #{tpu_custom_call.1} parent=11 // pred_fallthru
          _
        // Predicated region
        $region45: #{tpu_custom_call.1} parent=11 // pred_check
          %p480 = pneg %p258
        $region46: #{tpu_custom_call.1} parent=11 // pred_check_branch
          %482 = sbr.rel (%p480) target = $region48
        $region47: #{tpu_custom_call.1} parent=11 // pred_region
          %s484 = ssub.s32 128, 128
          %485 = vsyncadd [#allocation15], %s484
          %s487 = sshll.u32 [#allocation14], 4
          %s488 = int_to_ptr.vmem [resolvable:$true] %s487
          %490 = dma.hbm_to_vmem [thread:$0]  %s9, 128, %s488, [#allocation15]
        $region48: #{tpu_custom_call.1} parent=11 // pred_fallthru
          _
        // Predicated region
        $region49: #{tpu_custom_call.1} parent=11 // pred_check
          %p491 = pneg %p279
        $region50: #{tpu_custom_call.1} parent=11 // pred_check_branch
          %493 = sbr.rel (%p491) target = $region52
        $region51: #{tpu_custom_call.1} parent=11 // pred_region
          _
        $region52: #{tpu_custom_call.1} parent=11 // pred_fallthru
          _
        // Predicated region
        $region53: #{tpu_custom_call.1} parent=11 // pred_check
          %p494 = pneg %p300
        $region54: #{tpu_custom_call.1} parent=11 // pred_check_branch
          %496 = sbr.rel (%p494) target = $region56
        $region55: #{tpu_custom_call.1} parent=11 // pred_region
          %s498 = ssub.s32 256, 256
          %499 = vsyncadd [#allocation15], %s498
          %s500 = sshll.u32 [#allocation16], 4
          %s501 = int_to_ptr.vmem [resolvable:$true] %s500
          %506 = dma.hbm_to_vmem [thread:$0]  %s11, 256, %s501, [#allocation15], 128, 128, 8
        $region56: #{tpu_custom_call.1} parent=11 // pred_fallthru
          _
        // Predicated region
        $region57: #{tpu_custom_call.1} parent=11 // pred_check
          %p507 = pneg %p321
        $region58: #{tpu_custom_call.1} parent=11 // pred_check_branch
          %509 = sbr.rel (%p507) target = $region60
        $region59: #{tpu_custom_call.1} parent=11 // pred_region
          _
        $region60: #{tpu_custom_call.1} parent=11 // pred_fallthru
          _
        // Predicated region
        $region61: #{tpu_custom_call.1} parent=11 // pred_check
          %p510 = pneg %p342
        $region62: #{tpu_custom_call.1} parent=11 // pred_check_branch
          %512 = sbr.rel (%p510) target = $region64
        $region63: #{tpu_custom_call.1} parent=11 // pred_region
          _
        $region64: #{tpu_custom_call.1} parent=11 // pred_fallthru
          _
        // Predicated region
        $region65: #{tpu_custom_call.1} parent=11 // pred_check
          %p513 = pneg %p363
        $region66: #{tpu_custom_call.1} parent=11 // pred_check_branch
          %515 = sbr.rel (%p513) target = $region68
        $region67: #{tpu_custom_call.1} parent=11 // pred_region
          _
        $region68: #{tpu_custom_call.1} parent=11 // pred_fallthru
          _
      $region12: #{tpu_custom_call.1} parent=5 // pred_fallthru
        _
      %p516 = scmp.lt.s32.totalorder %s31, 4
      // Predicated region
      $region69: #{tpu_custom_call.1} parent=5 // pred_check
        %p517 = pneg %p516
      $region70: #{tpu_custom_call.1} parent=5 // pred_check_branch
        %519 = sbr.rel (%p517) target = $region72
      $region71: #{tpu_custom_call.1} parent=5 // pred_region
        // Predicated region
        $region73: #{tpu_custom_call.1} parent=71 // pred_check
          %p520 = pneg %p63
        $region74: #{tpu_custom_call.1} parent=71 // pred_check_branch
          %522 = sbr.rel (%p520) target = $region76
        $region75: #{tpu_custom_call.1} parent=71 // pred_region
          %s523 = sand.u32 %s53, 1
          %s524 = scalar_lea.sflag [#allocation3], %s523
          %s525 = sand.u32 %s53, 1
          %s526 = smul.addr %s525, 352
          %s527 = scalar_lea.vmem [#allocation2], %s526
          %s529 = ssub.s32 5632, 5632
          %530 = vsyncadd %s524, %s529
          %s531 = smul.addr %s38, 44
          %s532 = smul.addr %s531, 128
          %s533 = scalar_lea.hbm %s0, %s532
          %s534 = sshll.u32 %s527, 4
          %s535 = int_to_ptr.vmem [resolvable:$true] %s534
          %540 = dma.hbm_to_vmem [thread:$0]  %s533, 5632, %s535, %s524, 128, 128, 8
        $region76: #{tpu_custom_call.1} parent=71 // pred_fallthru
          _
      $region72: #{tpu_custom_call.1} parent=5 // pred_fallthru
        _
      %p541 = scmp.le.s32.totalorder 1, %s31
      %p542 = scmp.lt.s32.totalorder %s31, 5
      %p543 = pnand %p541, %p542
      %p544 = pneg %p543
      // Predicated region
      $region77: #{tpu_custom_call.1} parent=5 // pred_check
        _
      $region78: #{tpu_custom_call.1} parent=5 // pred_check_branch
        %546 = sbr.rel (%p543) target = $region80
      $region79: #{tpu_custom_call.1} parent=5 // pred_region
        %s547 = ssub.s32 %s31, 1
        %s548 = sand.u32 %s56, 1
        %s549 = scalar_lea.sflag [#allocation3], %s548
        %s550 = sand.u32 %s56, 1
        %s551 = smul.addr %s550, 352
        %s552 = scalar_lea.vmem [#allocation2], %s551
        // Predicated region
        $region81: #{tpu_custom_call.1} parent=79 // pred_check
          %p553 = pneg %p69
        $region82: #{tpu_custom_call.1} parent=79 // pred_check_branch
          %555 = sbr.rel (%p553) target = $region84
        $region83: #{tpu_custom_call.1} parent=79 // pred_region
          %556 = dma.done %s549, 5632
        $region84: #{tpu_custom_call.1} parent=79 // pred_fallthru
          _
        // Predicated region
        $region85: #{tpu_custom_call.1} parent=79 // pred_check
          %p557 = pneg %p111
        $region86: #{tpu_custom_call.1} parent=79 // pred_check_branch
          %559 = sbr.rel (%p557) target = $region88
        $region87: #{tpu_custom_call.1} parent=79 // pred_region
          %560 = dma.done [#allocation6], 16
        $region88: #{tpu_custom_call.1} parent=79 // pred_fallthru
          _
        // Predicated region
        $region89: #{tpu_custom_call.1} parent=79 // pred_check
          %p561 = pneg %p132
        $region90: #{tpu_custom_call.1} parent=79 // pred_check_branch
          %563 = sbr.rel (%p561) target = $region92
        $region91: #{tpu_custom_call.1} parent=79 // pred_region
          %564 = dma.done [#allocation6], 896
        $region92: #{tpu_custom_call.1} parent=79 // pred_fallthru
          _
        // Predicated region
        $region93: #{tpu_custom_call.1} parent=79 // pred_check
          %p565 = pneg %p153
        $region94: #{tpu_custom_call.1} parent=79 // pred_check_branch
          %567 = sbr.rel (%p565) target = $region96
        $region95: #{tpu_custom_call.1} parent=79 // pred_region
          %568 = dma.done [#allocation9], 16
        $region96: #{tpu_custom_call.1} parent=79 // pred_fallthru
          _
        // Predicated region
        $region97: #{tpu_custom_call.1} parent=79 // pred_check
          %p569 = pneg %p195
        $region98: #{tpu_custom_call.1} parent=79 // pred_check_branch
          %571 = sbr.rel (%p569) target = $region100
        $region99: #{tpu_custom_call.1} parent=79 // pred_region
          %572 = dma.done [#allocation9], 16
        $region100: #{tpu_custom_call.1} parent=79 // pred_fallthru
          _
        // Predicated region
        $region101: #{tpu_custom_call.1} parent=79 // pred_check
          %p573 = pneg %p216
        $region102: #{tpu_custom_call.1} parent=79 // pred_check_branch
          %575 = sbr.rel (%p573) target = $region104
        $region103: #{tpu_custom_call.1} parent=79 // pred_region
          %576 = dma.done [#allocation12], 64
        $region104: #{tpu_custom_call.1} parent=79 // pred_fallthru
          _
        // Predicated region
        $region105: #{tpu_custom_call.1} parent=79 // pred_check
          %p577 = pneg %p237
        $region106: #{tpu_custom_call.1} parent=79 // pred_check_branch
          %579 = sbr.rel (%p577) target = $region108
        $region107: #{tpu_custom_call.1} parent=79 // pred_region
          %580 = dma.done [#allocation12], 16
        $region108: #{tpu_custom_call.1} parent=79 // pred_fallthru
          _
        // Predicated region
        $region109: #{tpu_custom_call.1} parent=79 // pred_check
          %p581 = pneg %p258
        $region110: #{tpu_custom_call.1} parent=79 // pred_check_branch
          %583 = sbr.rel (%p581) target = $region112
        $region111: #{tpu_custom_call.1} parent=79 // pred_region
          %584 = dma.done [#allocation15], 128
        $region112: #{tpu_custom_call.1} parent=79 // pred_fallthru
          _
        // Predicated region
        $region113: #{tpu_custom_call.1} parent=79 // pred_check
          %p585 = pneg %p300
        $region114: #{tpu_custom_call.1} parent=79 // pred_check_branch
          %587 = sbr.rel (%p585) target = $region116
        $region115: #{tpu_custom_call.1} parent=79 // pred_region
          %588 = dma.done [#allocation15], 256
        $region116: #{tpu_custom_call.1} parent=79 // pred_fallthru
          _
        %s589 = sand.u32 %s56, 1
        %s590 = scalar_lea.sflag [#allocation3], %s589
        %s591 = sand.u32 %s56, 1
        %s592 = smul.addr %s591, 352
        %s593 = scalar_lea.vmem [#allocation2], %s592
        %p594 = pneg %p69
        %p595 = pneg %p66
        %p596 = pneg %p90
        %p597 = pneg %p87
        %p598 = pneg %p111
        %p599 = pneg %p108
        %p600 = pneg %p132
        %p601 = pneg %p129
        %p602 = pneg %p153
        %p603 = pneg %p150
        %p604 = pneg %p174
        %p605 = pneg %p171
        %p606 = pneg %p195
        %p607 = pneg %p192
        %p608 = pneg %p216
        %p609 = pneg %p213
        %p610 = pneg %p237
        %p611 = pneg %p234
        %p612 = pneg %p258
        %p613 = pneg %p255
        %p614 = pneg %p279
        %p615 = pneg %p276
        %p616 = pneg %p300
        %p617 = pneg %p297
        %p618 = pneg %p321
        %p619 = pneg %p318
        %p620 = pneg %p342
        %p621 = pneg %p339
        %p622 = pneg %p363
        %p623 = pneg %p360
        %p624 = pneg %p391
        %p625 = pneg %p388
        %s626 = sand.u32 %s378, 1
        %s627 = scalar_lea.sflag [#allocation4], %s626
        %s628 = sand.u32 %s378, 1
        %s629 = smul.addr %s628, 32
        %s630 = scalar_lea.vmem [#allocation17], %s629
        %s631 = smul.u32 %s41, 8
        %s632 = smul.u32 %s631, 16
        %s633 = scalar_lea.vmem %s552, %s632 [#allocation2]
        %v634 = vld [vmem:[%s633] sm:$0xff]
        %v635 = vld [vmem:[%s633 + $0x8] sm:$0xff]
        %v636 = vld [vmem:[%s633 + $0x10] sm:$0xff]
        %v637 = vld [vmem:[%s633 + $0x18] sm:$0xff]
        %v638 = vld [vmem:[%s633 + $0x20] sm:$0xff]
        %v639 = vld [vmem:[%s633 + $0x28] sm:$0xff]
        %v640 = vld [vmem:[%s633 + $0x30] sm:$0xff]
        %v641 = vld [vmem:[%s633 + $0x38] sm:$0xff]
        %v642 = vld [vmem:[%s633 + $0x40] sm:$0xff]
        %v643 = vld [vmem:[%s633 + $0x48] sm:$0xff]
        %v644 = vld [vmem:[%s633 + $0x50] sm:$0xff]
        %v645 = vld [vmem:[%s633 + $0x58] sm:$0xff]
        %v646 = vld [vmem:[%s633 + $0x60] sm:$0xff]
        %v647 = vld [vmem:[%s633 + $0x68] sm:$0xff]
        %v648 = vld [vmem:[%s633 + $0x70] sm:$0xff]
        %v649 = vld [vmem:[%s633 + $0x78] sm:$0xff]
        %v650 = vld [vmem:[%s633 + $0x80] sm:$0xff]
        %v651 = vld [vmem:[%s633 + $0x88] sm:$0xff]
        %v652 = vld [vmem:[%s633 + $0x90] sm:$0xff]
        %v653 = vld [vmem:[%s633 + $0x98] sm:$0xff]
        %v654 = vld [vmem:[%s633 + $0xa0] sm:$0xff]
        %v655 = vld [vmem:[%s633 + $0xa8] sm:$0xff]
        %v656 = vld [vmem:[%s633 + $0xb0] sm:$0xff]
        %v657 = vld [vmem:[%s633 + $0xb8] sm:$0xff]
        %v658 = vld [vmem:[%s633 + $0xc0] sm:$0xff]
        %v659 = vld [vmem:[%s633 + $0xc8] sm:$0xff]
        %v660 = vld [vmem:[%s633 + $0xd0] sm:$0xff]
        %v661 = vld [vmem:[%s633 + $0xd8] sm:$0xff]
        %v662 = vld [vmem:[%s1] sm:$0xff]
        %v663 = vld [vmem:[%s1 + $0x8] sm:$0xff]
        %v664 = vld [vmem:[%s1 + $0x10] sm:$0xff]
        %v665 = vld [vmem:[%s1 + $0x18] sm:$0xff]
        %vm666 = vcmask 261120
        %v668 = vsel %vm666, %v634, 0
        %v671 = vsel %vm666, %v635, 0
        %v674 = vsel %vm666, %v636, 0
        %v677 = vsel %vm666, %v637, 0
        %v680 = vsel %vm666, %v638, 0
        %v683 = vsel %vm666, %v639, 0
        %v686 = vsel %vm666, %v640, 0
        %v689 = vsel %vm666, %v641, 0
        %v692 = vsel %vm666, %v642, 0
        %v695 = vsel %vm666, %v643, 0
        %v698 = vsel %vm666, %v644, 0
        %v701 = vsel %vm666, %v645, 0
        %v704 = vsel %vm666, %v646, 0
        %v707 = vsel %vm666, %v647, 0
        %v710 = vsel %vm666, %v648, 0
        %v713 = vsel %vm666, %v649, 0
        %v716 = vsel %vm666, %v650, 0
        %v719 = vsel %vm666, %v651, 0
        %v722 = vsel %vm666, %v652, 0
        %v725 = vsel %vm666, %v653, 0
        %v728 = vsel %vm666, %v654, 0
        %v731 = vsel %vm666, %v655, 0
        %v734 = vsel %vm666, %v656, 0
        %v737 = vsel %vm666, %v657, 0
        %v740 = vsel %vm666, %v658, 0
        %v743 = vsel %vm666, %v659, 0
        %v746 = vsel %vm666, %v660, 0
        %v749 = vsel %vm666, %v661, 0
        %751 = vmatprep.subr.mxu0 0.0
        %752 = vmatpush1.msra.mxu0 %v662
        %753 = vmatprep.subr.mxu0 0.0
        %754 = vmatpush1.msra.mxu0 %v663
        %755 = vmatprep.subr.mxu0 0.0
        %756 = vmatpush1.msra.mxu0 %v664
        %757 = vmatprep.subr.mxu0 0.0
        %758 = vmatpush1.msra.mxu0 %v665
        %759 = vmatprep.subr.mxu0 0.0
        %760 = vmatpush1.msra.mxu0 0.0
        %761 = vmatprep.subr.mxu0 0.0
        %762 = vmatpush1.msra.mxu0 0.0
        %763 = vmatprep.subr.mxu0 0.0
        %764 = vmatpush1.msra.mxu0 0.0
        %765 = vmatprep.subr.mxu0 0.0
        %766 = vmatpush1.msra.mxu0 0.0
        %767 = vmatprep.subr.mxu0 0.0
        %768 = vmatpush1.msra.mxu0 0.0
        %769 = vmatprep.subr.mxu0 0.0
        %770 = vmatpush1.msra.mxu0 0.0
        %771 = vmatprep.subr.mxu0 0.0
        %772 = vmatpush1.msra.mxu0 0.0
        %773 = vmatprep.subr.mxu0 0.0
        %774 = vmatpush1.msra.mxu0 0.0
        %775 = vmatprep.subr.mxu0 0.0
        %776 = vmatpush1.msra.mxu0 0.0
        %777 = vmatprep.subr.mxu0 0.0
        %778 = vmatpush1.msra.mxu0 0.0
        %779 = vmatprep.subr.mxu0 0.0
        %780 = vmatpush1.msra.mxu0 0.0
        %781 = vmatprep.subr.mxu0 0.0
        %782 = vmatpush1.msra.mxu0 0.0
        %783 = vmatprep.subr.mxu0 0.0
        %784 = vmatpush1.msra.mxu0 0.0
        %785 = vmatprep.subr.mxu0 0.0
        %786 = vmatpush1.msra.mxu0 0.0
        %787 = vmatprep.subr.mxu0 0.0
        %788 = vmatpush1.msra.mxu0 0.0
        %789 = vmatprep.subr.mxu0 0.0
        %790 = vmatpush1.msra.mxu0 0.0
        %791 = vmatprep.subr.mxu0 0.0
        %792 = vmatpush1.msra.mxu0 0.0
        %793 = vmatprep.subr.mxu0 0.0
        %794 = vmatpush1.msra.mxu0 0.0
        %795 = vmatprep.subr.mxu0 0.0
        %796 = vmatpush1.msra.mxu0 0.0
        %797 = vmatprep.subr.mxu0 0.0
        %798 = vmatpush1.msra.mxu0 0.0
        %799 = vmatprep.subr.mxu0 0.0
        %800 = vmatpush1.msra.mxu0 0.0
        %801 = vmatprep.subr.mxu0 0.0
        %802 = vmatpush1.msra.mxu0 0.0
        %803 = vmatprep.subr.mxu0 0.0
        %804 = vmatpush1.msra.mxu0 0.0
        %805 = vmatprep.subr.mxu0 0.0
        %806 = vmatpush1.msra.mxu0 0.0
        %807 = vmatprep.subr.mxu0 0.0
        %808 = vmatpush1.msra.mxu0 0.0
        %809 = vmatprep.subr.mxu0 0.0
        %810 = vmatpush1.msra.mxu0 0.0
        %811 = vmatprep.subr.mxu0 0.0
        %812 = vmatpush1.msra.mxu0 0.0
        %813 = vmatprep.subr.mxu0 0.0
        %814 = vmatpush1.msra.mxu0 0.0
        %815 = vmatprep.mubr.f32.mxu0 0.0
        %816 = vmatmul.mubr.f32.gmra.mrb[0].mxu0 %v668
        %v817 = vpop.f32.mrb[0].mxu0
        %v818 = vadd.f32 0.0, %v817
        %v819 = vpop.f32.mrb[0].mxu0
        %820 = vmatprep.mubr.f32.mxu0 0.0
        %821 = vmatmul.mubr.f32.gmra.mrb[0].mxu0 %v671
        %v822 = vpop.f32.mrb[0].mxu0
        %v823 = vadd.f32 0.0, %v822
        %v824 = vpop.f32.mrb[0].mxu0
        %825 = vmatprep.mubr.f32.mxu0 0.0
        %826 = vmatmul.mubr.f32.gmra.mrb[0].mxu0 %v674
        %v827 = vpop.f32.mrb[0].mxu0
        %v828 = vadd.f32 0.0, %v827
        %v829 = vpop.f32.mrb[0].mxu0
        %830 = vmatprep.mubr.f32.mxu0 0.0
        %831 = vmatmul.mubr.f32.gmra.mrb[0].mxu0 %v677
        %v832 = vpop.f32.mrb[0].mxu0
        %v833 = vadd.f32 0.0, %v832
        %v834 = vpop.f32.mrb[0].mxu0
        %835 = vmatprep.mubr.f32.mxu0 0.0
        %836 = vmatmul.mubr.f32.gmra.mrb[0].mxu0 %v680
        %v837 = vpop.f32.mrb[0].mxu0
        %v838 = vadd.f32 0.0, %v837
        %v839 = vpop.f32.mrb[0].mxu0
        %840 = vmatprep.mubr.f32.mxu0 0.0
        %841 = vmatmul.mubr.f32.gmra.mrb[0].mxu0 %v683
        %v842 = vpop.f32.mrb[0].mxu0
        %v843 = vadd.f32 0.0, %v842
        %v844 = vpop.f32.mrb[0].mxu0
        %845 = vmatprep.mubr.f32.mxu0 0.0
        %846 = vmatmul.mubr.f32.gmra.mrb[0].mxu0 %v686
        %v847 = vpop.f32.mrb[0].mxu0
        %v848 = vadd.f32 0.0, %v847
        %v849 = vpop.f32.mrb[0].mxu0
        %850 = vmatprep.mubr.f32.mxu0 0.0
        %851 = vmatmul.mubr.f32.gmra.mrb[0].mxu0 %v689
        %v852 = vpop.f32.mrb[0].mxu0
        %v853 = vadd.f32 0.0, %v852
        %v854 = vpop.f32.mrb[0].mxu0
        %855 = vmatprep.mubr.f32.mxu0 0.0
        %856 = vmatmul.mubr.f32.gmra.mrb[0].mxu0 %v692
        %v857 = vpop.f32.mrb[0].mxu0
        %v858 = vadd.f32 0.0, %v857
        %v859 = vpop.f32.mrb[0].mxu0
        %860 = vmatprep.mubr.f32.mxu0 0.0
        %861 = vmatmul.mubr.f32.gmra.mrb[0].mxu0 %v695
        %v862 = vpop.f32.mrb[0].mxu0
        %v863 = vadd.f32 0.0, %v862
        %v864 = vpop.f32.mrb[0].mxu0
        %865 = vmatprep.mubr.f32.mxu0 0.0
        %866 = vmatmul.mubr.f32.gmra.mrb[0].mxu0 %v698
        %v867 = vpop.f32.mrb[0].mxu0
        %v868 = vadd.f32 0.0, %v867
        %v869 = vpop.f32.mrb[0].mxu0
        %870 = vmatprep.mubr.f32.mxu0 0.0
        %871 = vmatmul.mubr.f32.gmra.mrb[0].mxu0 %v701
        %v872 = vpop.f32.mrb[0].mxu0
        %v873 = vadd.f32 0.0, %v872
        %v874 = vpop.f32.mrb[0].mxu0
        %875 = vmatprep.mubr.f32.mxu0 0.0
        %876 = vmatmul.mubr.f32.gmra.mrb[0].mxu0 %v704
        %v877 = vpop.f32.mrb[0].mxu0
        %v878 = vadd.f32 0.0, %v877
        %v879 = vpop.f32.mrb[0].mxu0
        %880 = vmatprep.mubr.f32.mxu0 0.0
        %881 = vmatmul.mubr.f32.gmra.mrb[0].mxu0 %v707
        %v882 = vpop.f32.mrb[0].mxu0
        %v883 = vadd.f32 0.0, %v882
        %v884 = vpop.f32.mrb[0].mxu0
        %885 = vmatprep.mubr.f32.mxu0 0.0
        %886 = vmatmul.mubr.f32.gmra.mrb[0].mxu0 %v710
        %v887 = vpop.f32.mrb[0].mxu0
        %v888 = vadd.f32 0.0, %v887
        %v889 = vpop.f32.mrb[0].mxu0
        %890 = vmatprep.mubr.f32.mxu0 0.0
        %891 = vmatmul.mubr.f32.gmra.mrb[0].mxu0 %v713
        %v892 = vpop.f32.mrb[0].mxu0
        %v893 = vadd.f32 0.0, %v892
        %v894 = vpop.f32.mrb[0].mxu0
        %895 = vmatprep.mubr.f32.mxu0 0.0
        %896 = vmatmul.mubr.f32.gmra.mrb[0].mxu0 %v716
        %v897 = vpop.f32.mrb[0].mxu0
        %v898 = vadd.f32 0.0, %v897
        %v899 = vpop.f32.mrb[0].mxu0
        %900 = vmatprep.mubr.f32.mxu0 0.0
        %901 = vmatmul.mubr.f32.gmra.mrb[0].mxu0 %v719
        %v902 = vpop.f32.mrb[0].mxu0
        %v903 = vadd.f32 0.0, %v902
        %v904 = vpop.f32.mrb[0].mxu0
        %905 = vmatprep.mubr.f32.mxu0 0.0
        %906 = vmatmul.mubr.f32.gmra.mrb[0].mxu0 %v722
        %v907 = vpop.f32.mrb[0].mxu0
        %v908 = vadd.f32 0.0, %v907
        %v909 = vpop.f32.mrb[0].mxu0
        %910 = vmatprep.mubr.f32.mxu0 0.0
        %911 = vmatmul.mubr.f32.gmra.mrb[0].mxu0 %v725
        %v912 = vpop.f32.mrb[0].mxu0
        %v913 = vadd.f32 0.0, %v912
        %v914 = vpop.f32.mrb[0].mxu0
        %915 = vmatprep.mubr.f32.mxu0 0.0
        %916 = vmatmul.mubr.f32.gmra.mrb[0].mxu0 %v728
        %v917 = vpop.f32.mrb[0].mxu0
        %v918 = vadd.f32 0.0, %v917
        %v919 = vpop.f32.mrb[0].mxu0
        %920 = vmatprep.mubr.f32.mxu0 0.0
        %921 = vmatmul.mubr.f32.gmra.mrb[0].mxu0 %v731
        %v922 = vpop.f32.mrb[0].mxu0
        %v923 = vadd.f32 0.0, %v922
        %v924 = vpop.f32.mrb[0].mxu0
        %925 = vmatprep.mubr.f32.mxu0 0.0
        %926 = vmatmul.mubr.f32.gmra.mrb[0].mxu0 %v734
        %v927 = vpop.f32.mrb[0].mxu0
        %v928 = vadd.f32 0.0, %v927
        %v929 = vpop.f32.mrb[0].mxu0
        %930 = vmatprep.mubr.f32.mxu0 0.0
        %931 = vmatmul.mubr.f32.gmra.mrb[0].mxu0 %v737
        %v932 = vpop.f32.mrb[0].mxu0
        %v933 = vadd.f32 0.0, %v932
        %v934 = vpop.f32.mrb[0].mxu0
        %935 = vmatprep.mubr.f32.mxu0 0.0
        %936 = vmatmul.mubr.f32.gmra.mrb[0].mxu0 %v740
        %v937 = vpop.f32.mrb[0].mxu0
        %v938 = vadd.f32 0.0, %v937
        %v939 = vpop.f32.mrb[0].mxu0
        %940 = vmatprep.mubr.f32.mxu0 0.0
        %941 = vmatmul.mubr.f32.gmra.mrb[0].mxu0 %v743
        %v942 = vpop.f32.mrb[0].mxu0
        %v943 = vadd.f32 0.0, %v942
        %v944 = vpop.f32.mrb[0].mxu0
        %945 = vmatprep.mubr.f32.mxu0 0.0
        %946 = vmatmul.mubr.f32.gmra.mrb[0].mxu0 %v746
        %v947 = vpop.f32.mrb[0].mxu0
        %v948 = vadd.f32 0.0, %v947
        %v949 = vpop.f32.mrb[0].mxu0
        %950 = vmatprep.mubr.f32.mxu0 0.0
        %951 = vmatmul.mubr.f32.gmra.mrb[0].mxu0 %v749
        %v952 = vpop.f32.mrb[0].mxu0
        %v953 = vadd.f32 0.0, %v952
        %v954 = vpop.f32.mrb[0].mxu0
        %955 = vdwg.mxu0
        %v956 = vstv %s631
        %v957 = vadd.s32 %v956, 1
        %v958 = vadd.s32 %v956, 2
        %v959 = vadd.s32 %v956, 3
        %v960 = vadd.s32 %v956, 4
        %v961 = vadd.s32 %v956, 5
        %v962 = vadd.s32 %v956, 6
        %v963 = vadd.s32 %v956, 7
        %v964 = vadd.s32 %v956, 8
        %v965 = vadd.s32 %v956, 9
        %v966 = vadd.s32 %v956, 10
        %v967 = vadd.s32 %v956, 11
        %v968 = vadd.s32 %v956, 12
        %v969 = vadd.s32 %v956, 13
        %vm970 = vcmp.ge.s32.totalorder %v956, 3
        %vm971 = vcmp.ge.s32.totalorder %v957, 3
        %vm972 = vcmp.ge.s32.totalorder %v958, 3
        %vm973 = vcmp.ge.s32.totalorder %v959, 3
        %vm974 = vcmp.ge.s32.totalorder %v960, 3
        %vm975 = vcmp.ge.s32.totalorder %v961, 3
        %vm976 = vcmp.ge.s32.totalorder %v962, 3
        %vm977 = vcmp.ge.s32.totalorder %v963, 3
        %vm978 = vcmp.ge.s32.totalorder %v964, 3
        %vm979 = vcmp.ge.s32.totalorder %v965, 3
        %vm980 = vcmp.ge.s32.totalorder %v966, 3
        %vm981 = vcmp.ge.s32.totalorder %v967, 3
        %vm982 = vcmp.ge.s32.totalorder %v968, 3
        %vm983 = vcmp.ge.s32.totalorder %v969, 3
        %vm984 = vcmp.lt.s32.totalorder %v956, 19
        %vm985 = vcmp.lt.s32.totalorder %v957, 19
        %vm986 = vcmp.lt.s32.totalorder %v958, 19
        %vm987 = vcmp.lt.s32.totalorder %v959, 19
        %vm988 = vcmp.lt.s32.totalorder %v960, 19
        %vm989 = vcmp.lt.s32.totalorder %v961, 19
        %vm990 = vcmp.lt.s32.totalorder %v962, 19
        %vm991 = vcmp.lt.s32.totalorder %v963, 19
        %vm992 = vcmp.lt.s32.totalorder %v964, 19
        %vm993 = vcmp.lt.s32.totalorder %v965, 19
        %vm994 = vcmp.lt.s32.totalorder %v966, 19
        %vm995 = vcmp.lt.s32.totalorder %v967, 19
        %vm996 = vcmp.lt.s32.totalorder %v968, 19
        %vm997 = vcmp.lt.s32.totalorder %v969, 19
        %vm998 = vmand %vm970, %vm984
        %vm999 = vmand %vm971, %vm985
        %vm1000 = vmand %vm972, %vm986
        %vm1001 = vmand %vm973, %vm987
        %vm1002 = vmand %vm974, %vm988
        %vm1003 = vmand %vm975, %vm989
        %vm1004 = vmand %vm976, %vm990
        %vm1005 = vmand %vm977, %vm991
        %vm1006 = vmand %vm978, %vm992
        %vm1007 = vmand %vm979, %vm993
        %vm1008 = vmand %vm980, %vm994
        %vm1009 = vmand %vm981, %vm995
        %vm1010 = vmand %vm982, %vm996
        %vm1011 = vmand %vm983, %vm997
        %v1012 = vld [vmem:[#allocation5] sm:$0x1]
        %v1013 = vsel %vm998, 1, 0
        %v1014 = vsel %vm999, 1, 0
        %v1015 = vsel %vm1000, 1, 0
        %v1016 = vsel %vm1001, 1, 0
        %v1017 = vsel %vm1002, 1, 0
        %v1018 = vsel %vm1003, 1, 0
        %v1019 = vsel %vm1004, 1, 0
        %v1020 = vsel %vm1005, 1, 0
        %v1021 = vsel %vm1006, 1, 0
        %v1022 = vsel %vm1007, 1, 0
        %v1023 = vsel %vm1008, 1, 0
        %v1024 = vsel %vm1009, 1, 0
        %v1025 = vsel %vm1010, 1, 0
        %v1026 = vsel %vm1011, 1, 0
        %vm1027 = vcmp.eq.s32.totalorder %v1013, 1
        %vm1028 = vcmp.eq.s32.totalorder %v1014, 1
        %vm1029 = vcmp.eq.s32.totalorder %v1015, 1
        %vm1030 = vcmp.eq.s32.totalorder %v1016, 1
        %vm1031 = vcmp.eq.s32.totalorder %v1017, 1
        %vm1032 = vcmp.eq.s32.totalorder %v1018, 1
        %vm1033 = vcmp.eq.s32.totalorder %v1019, 1
        %vm1034 = vcmp.eq.s32.totalorder %v1020, 1
        %vm1035 = vcmp.eq.s32.totalorder %v1021, 1
        %vm1036 = vcmp.eq.s32.totalorder %v1022, 1
        %vm1037 = vcmp.eq.s32.totalorder %v1023, 1
        %vm1038 = vcmp.eq.s32.totalorder %v1024, 1
        %vm1039 = vcmp.eq.s32.totalorder %v1025, 1
        %vm1040 = vcmp.eq.s32.totalorder %v1026, 1
        %v1041 = vsel %vm1027, %v1012, 0.0
        %v1042 = vsel %vm1028, %v1012, 0.0
        %v1043 = vsel %vm1029, %v1012, 0.0
        %v1044 = vsel %vm1030, %v1012, 0.0
        %v1045 = vsel %vm1031, %v1012, 0.0
        %v1046 = vsel %vm1032, %v1012, 0.0
        %v1047 = vsel %vm1033, %v1012, 0.0
        %v1048 = vsel %vm1034, %v1012, 0.0
        %v1049 = vsel %vm1035, %v1012, 0.0
        %v1050 = vsel %vm1036, %v1012, 0.0
        %v1051 = vsel %vm1037, %v1012, 0.0
        %v1052 = vsel %vm1038, %v1012, 0.0
        %v1053 = vsel %vm1039, %v1012, 0.0
        %v1054 = vsel %vm1040, %v1012, 0.0
        %v1069 = vlaneseq
        %v1070 = vshrl.u32 %v1069, 7
        %v1071 = vsub.s32 0, %v1070
        %v1072 = vrot.slane %v1041, %v1071
        %v1073 = vlaneseq
        %v1074 = vshrl.u32 %v1073, 7
        %v1075 = vsub.s32 0, %v1074
        %v1076 = vrot.slane %v1042, %v1075
        %v1077 = vlaneseq
        %v1078 = vshrl.u32 %v1077, 7
        %v1079 = vsub.s32 0, %v1078
        %v1080 = vrot.slane %v1043, %v1079
        %v1081 = vlaneseq
        %v1082 = vshrl.u32 %v1081, 7
        %v1083 = vsub.s32 0, %v1082
        %v1084 = vrot.slane %v1044, %v1083
        %v1085 = vlaneseq
        %v1086 = vshrl.u32 %v1085, 7
        %v1087 = vsub.s32 0, %v1086
        %v1088 = vrot.slane %v1045, %v1087
        %v1089 = vlaneseq
        %v1090 = vshrl.u32 %v1089, 7
        %v1091 = vsub.s32 0, %v1090
        %v1092 = vrot.slane %v1046, %v1091
        %v1093 = vlaneseq
        %v1094 = vshrl.u32 %v1093, 7
        %v1095 = vsub.s32 0, %v1094
        %v1096 = vrot.slane %v1047, %v1095
        %v1097 = vlaneseq
        %v1098 = vshrl.u32 %v1097, 7
        %v1099 = vsub.s32 0, %v1098
        %v1100 = vrot.slane %v1048, %v1099
        %v1101 = vlaneseq
        %v1102 = vshrl.u32 %v1101, 7
        %v1103 = vsub.s32 0, %v1102
        %v1104 = vrot.slane %v1049, %v1103
        %v1105 = vlaneseq
        %v1106 = vshrl.u32 %v1105, 7
        %v1107 = vsub.s32 0, %v1106
        %v1108 = vrot.slane %v1050, %v1107
        %v1109 = vlaneseq
        %v1110 = vshrl.u32 %v1109, 7
        %v1111 = vsub.s32 0, %v1110
        %v1112 = vrot.slane %v1051, %v1111
        %v1113 = vlaneseq
        %v1114 = vshrl.u32 %v1113, 7
        %v1115 = vsub.s32 0, %v1114
        %v1116 = vrot.slane %v1052, %v1115
        %v1117 = vlaneseq
        %v1118 = vshrl.u32 %v1117, 7
        %v1119 = vsub.s32 0, %v1118
        %v1120 = vrot.slane %v1053, %v1119
        %v1121 = vlaneseq
        %v1122 = vshrl.u32 %v1121, 7
        %v1123 = vsub.s32 0, %v1122
        %v1124 = vrot.slane %v1054, %v1123
        %v1139 = vadd.f32 %v818, %v1072
        %v1140 = vadd.f32 %v823, %v1072
        %v1141 = vadd.f32 %v828, %v1076
        %v1142 = vadd.f32 %v833, %v1076
        %v1143 = vadd.f32 %v838, %v1080
        %v1144 = vadd.f32 %v843, %v1080
        %v1145 = vadd.f32 %v848, %v1084
        %v1146 = vadd.f32 %v853, %v1084
        %v1147 = vadd.f32 %v858, %v1088
        %v1148 = vadd.f32 %v863, %v1088
        %v1149 = vadd.f32 %v868, %v1092
        %v1150 = vadd.f32 %v873, %v1092
        %v1151 = vadd.f32 %v878, %v1096
        %v1152 = vadd.f32 %v883, %v1096
        %v1153 = vadd.f32 %v888, %v1100
        %v1154 = vadd.f32 %v893, %v1100
        %v1155 = vadd.f32 %v898, %v1104
        %v1156 = vadd.f32 %v903, %v1104
        %v1157 = vadd.f32 %v908, %v1108
        %v1158 = vadd.f32 %v913, %v1108
        %v1159 = vadd.f32 %v918, %v1112
        %v1160 = vadd.f32 %v923, %v1112
        %v1161 = vadd.f32 %v928, %v1116
        %v1162 = vadd.f32 %v933, %v1116
        %v1163 = vadd.f32 %v938, %v1120
        %v1164 = vadd.f32 %v943, %v1120
        %v1165 = vadd.f32 %v948, %v1124
        %v1166 = vadd.f32 %v953, %v1124
        %vm1195 = vcmask 1042432
        %v1196 = vrot.slane %v1139, 5
        %v1197 = vrot.slane %v1140, 5
        %v1198 = vsel %vm1195, %v1196, %v1197
        %v1199 = vrot.slane %v1141, 5
        %v1200 = vrot.slane %v1142, 5
        %v1201 = vsel %vm1195, %v1199, %v1200
        %v1202 = vrot.slane %v1143, 5
        %v1203 = vrot.slane %v1144, 5
        %v1204 = vsel %vm1195, %v1202, %v1203
        %v1205 = vrot.slane %v1145, 5
        %v1206 = vrot.slane %v1146, 5
        %v1207 = vsel %vm1195, %v1205, %v1206
        %v1208 = vrot.slane %v1147, 5
        %v1209 = vrot.slane %v1148, 5
        %v1210 = vsel %vm1195, %v1208, %v1209
        %v1211 = vrot.slane %v1149, 5
        %v1212 = vrot.slane %v1150, 5
        %v1213 = vsel %vm1195, %v1211, %v1212
        %v1214 = vrot.slane %v1151, 5
        %v1215 = vrot.slane %v1152, 5
        %v1216 = vsel %vm1195, %v1214, %v1215
        %v1217 = vrot.slane %v1153, 5
        %v1218 = vrot.slane %v1154, 5
        %v1219 = vsel %vm1195, %v1217, %v1218
        %v1220 = vrot.slane %v1155, 5
        %v1221 = vrot.slane %v1156, 5
        %v1222 = vsel %vm1195, %v1220, %v1221
        %v1223 = vrot.slane %v1157, 5
        %v1224 = vrot.slane %v1158, 5
        %v1225 = vsel %vm1195, %v1223, %v1224
        %v1226 = vrot.slane %v1159, 5
        %v1227 = vrot.slane %v1160, 5
        %v1228 = vsel %vm1195, %v1226, %v1227
        %v1229 = vrot.slane %v1161, 5
        %v1230 = vrot.slane %v1162, 5
        %v1231 = vsel %vm1195, %v1229, %v1230
        %v1232 = vrot.slane %v1163, 5
        %v1233 = vrot.slane %v1164, 5
        %v1234 = vsel %vm1195, %v1232, %v1233
        %v1235 = vrot.slane %v1165, 5
        %v1236 = vrot.slane %v1166, 5
        %v1237 = vsel %vm1195, %v1235, %v1236
        %v1280 = vsel %vm1195, 0.0, %v1196
        %v1281 = vsel %vm1195, 0.0, %v1199
        %v1282 = vsel %vm1195, 0.0, %v1202
        %v1283 = vsel %vm1195, 0.0, %v1205
        %v1284 = vsel %vm1195, 0.0, %v1208
        %v1285 = vsel %vm1195, 0.0, %v1211
        %v1286 = vsel %vm1195, 0.0, %v1214
        %v1287 = vsel %vm1195, 0.0, %v1217
        %v1288 = vsel %vm1195, 0.0, %v1220
        %v1289 = vsel %vm1195, 0.0, %v1223
        %v1290 = vsel %vm1195, 0.0, %v1226
        %v1291 = vsel %vm1195, 0.0, %v1229
        %v1292 = vsel %vm1195, 0.0, %v1232
        %v1293 = vsel %vm1195, 0.0, %v1235
        %v1294 = vsel %vm1195, %v1197, 0.0
        %v1295 = vsel %vm1195, %v1200, 0.0
        %v1296 = vsel %vm1195, %v1203, 0.0
        %v1297 = vsel %vm1195, %v1206, 0.0
        %v1298 = vsel %vm1195, %v1209, 0.0
        %v1299 = vsel %vm1195, %v1212, 0.0
        %v1300 = vsel %vm1195, %v1215, 0.0
        %v1301 = vsel %vm1195, %v1218, 0.0
        %v1302 = vsel %vm1195, %v1221, 0.0
        %v1303 = vsel %vm1195, %v1224, 0.0
        %v1304 = vsel %vm1195, %v1227, 0.0
        %v1305 = vsel %vm1195, %v1230, 0.0
        %v1306 = vsel %vm1195, %v1233, 0.0
        %v1307 = vsel %vm1195, %v1236, 0.0
        %v1308 = vld [vmem:[#allocation7] sm:$0xff]
        %v1309 = vld [vmem:[#allocation7 + $0x8] sm:$0xff]
        %v1310 = vld [vmem:[#allocation7 + $0x10] sm:$0xff]
        %v1311 = vld [vmem:[#allocation7 + $0x18] sm:$0xff]
        %v1312 = vld [vmem:[#allocation7 + $0x20] sm:$0xff]
        %v1313 = vld [vmem:[#allocation7 + $0x28] sm:$0xff]
        %v1314 = vld [vmem:[#allocation7 + $0x30] sm:$0x1]
        %v1315 = vlaneseq
        %v1316 = vshrl.u32 %v1315, 7
        %v1317 = vsub.s32 0, %v1316
        %v1318 = vrot.slane %v1308, %v1317
        %v1319 = vmul.f32 %v1280, %v1318
        %v1320 = vmul.f32 %v1198, %v1318
        %v1321 = vmul.f32 %v1281, %v1318
        %v1322 = vmul.f32 %v1201, %v1318
        %v1323 = vmul.f32 %v1282, %v1318
        %v1324 = vmul.f32 %v1204, %v1318
        %v1325 = vmul.f32 %v1283, %v1318
        %v1326 = vmul.f32 %v1207, %v1318
        %v1327 = vmul.f32 %v1284, %v1318
        %v1328 = vmul.f32 %v1210, %v1318
        %v1329 = vmul.f32 %v1285, %v1318
        %v1330 = vmul.f32 %v1213, %v1318
        %v1331 = vmul.f32 %v1286, %v1318
        %v1332 = vmul.f32 %v1216, %v1318
        %v1333 = vmul.f32 %v1287, %v1318
        %v1334 = vmul.f32 %v1219, %v1318
        %v1335 = vlaneseq
        %v1336 = vshrl.u32 %v1335, 7
        %v1337 = vsub.s32 7, %v1336
        %v1338 = vrot.slane %v1308, %v1337
        %v1339 = vmul.f32 %v1281, %v1338
        %v1340 = vmul.f32 %v1201, %v1338
        %v1341 = vmul.f32 %v1282, %v1338
        %v1342 = vmul.f32 %v1204, %v1338
        %v1343 = vmul.f32 %v1283, %v1338
        %v1344 = vmul.f32 %v1207, %v1338
        %v1345 = vmul.f32 %v1284, %v1338
        %v1346 = vmul.f32 %v1210, %v1338
        %v1347 = vmul.f32 %v1285, %v1338
        %v1348 = vmul.f32 %v1213, %v1338
        %v1349 = vmul.f32 %v1286, %v1338
        %v1350 = vmul.f32 %v1216, %v1338
        %v1351 = vmul.f32 %v1287, %v1338
        %v1352 = vmul.f32 %v1219, %v1338
        %v1353 = vmul.f32 %v1288, %v1338
        %v1354 = vmul.f32 %v1222, %v1338
        %v1355 = vadd.f32 %v1319, %v1339
        %v1356 = vadd.f32 %v1320, %v1340
        %v1357 = vadd.f32 %v1321, %v1341
        %v1358 = vadd.f32 %v1322, %v1342
        %v1359 = vadd.f32 %v1323, %v1343
        %v1360 = vadd.f32 %v1324, %v1344
        %v1361 = vadd.f32 %v1325, %v1345
        %v1362 = vadd.f32 %v1326, %v1346
        %v1363 = vadd.f32 %v1327, %v1347
        %v1364 = vadd.f32 %v1328, %v1348
        %v1365 = vadd.f32 %v1329, %v1349
        %v1366 = vadd.f32 %v1330, %v1350
        %v1367 = vadd.f32 %v1331, %v1351
        %v1368 = vadd.f32 %v1332, %v1352
        %v1369 = vadd.f32 %v1333, %v1353
        %v1370 = vadd.f32 %v1334, %v1354
        %v1371 = vlaneseq
        %v1372 = vshrl.u32 %v1371, 7
        %v1373 = vsub.s32 6, %v1372
        %v1374 = vrot.slane %v1309, %v1373
        %v1375 = vmul.f32 %v1282, %v1374
        %v1376 = vmul.f32 %v1204, %v1374
        %v1377 = vmul.f32 %v1283, %v1374
        %v1378 = vmul.f32 %v1207, %v1374
        %v1379 = vmul.f32 %v1284, %v1374
        %v1380 = vmul.f32 %v1210, %v1374
        %v1381 = vmul.f32 %v1285, %v1374
        %v1382 = vmul.f32 %v1213, %v1374
        %v1383 = vmul.f32 %v1286, %v1374
        %v1384 = vmul.f32 %v1216, %v1374
        %v1385 = vmul.f32 %v1287, %v1374
        %v1386 = vmul.f32 %v1219, %v1374
        %v1387 = vmul.f32 %v1288, %v1374
        %v1388 = vmul.f32 %v1222, %v1374
        %v1389 = vmul.f32 %v1289, %v1374
        %v1390 = vmul.f32 %v1225, %v1374
        %v1391 = vadd.f32 %v1355, %v1375
        %v1392 = vadd.f32 %v1356, %v1376
        %v1393 = vadd.f32 %v1357, %v1377
        %v1394 = vadd.f32 %v1358, %v1378
        %v1395 = vadd.f32 %v1359, %v1379
        %v1396 = vadd.f32 %v1360, %v1380
        %v1397 = vadd.f32 %v1361, %v1381
        %v1398 = vadd.f32 %v1362, %v1382
        %v1399 = vadd.f32 %v1363, %v1383
        %v1400 = vadd.f32 %v1364, %v1384
        %v1401 = vadd.f32 %v1365, %v1385
        %v1402 = vadd.f32 %v1366, %v1386
        %v1403 = vadd.f32 %v1367, %v1387
        %v1404 = vadd.f32 %v1368, %v1388
        %v1405 = vadd.f32 %v1369, %v1389
        %v1406 = vadd.f32 %v1370, %v1390
        %v1407 = vlaneseq
        %v1408 = vshrl.u32 %v1407, 7
        %v1409 = vsub.s32 5, %v1408
        %v1410 = vrot.slane %v1310, %v1409
        %v1411 = vmul.f32 %v1283, %v1410
        %v1412 = vmul.f32 %v1207, %v1410
        %v1413 = vmul.f32 %v1284, %v1410
        %v1414 = vmul.f32 %v1210, %v1410
        %v1415 = vmul.f32 %v1285, %v1410
        %v1416 = vmul.f32 %v1213, %v1410
        %v1417 = vmul.f32 %v1286, %v1410
        %v1418 = vmul.f32 %v1216, %v1410
        %v1419 = vmul.f32 %v1287, %v1410
        %v1420 = vmul.f32 %v1219, %v1410
        %v1421 = vmul.f32 %v1288, %v1410
        %v1422 = vmul.f32 %v1222, %v1410
        %v1423 = vmul.f32 %v1289, %v1410
        %v1424 = vmul.f32 %v1225, %v1410
        %v1425 = vmul.f32 %v1290, %v1410
        %v1426 = vmul.f32 %v1228, %v1410
        %v1427 = vadd.f32 %v1391, %v1411
        %v1428 = vadd.f32 %v1392, %v1412
        %v1429 = vadd.f32 %v1393, %v1413
        %v1430 = vadd.f32 %v1394, %v1414
        %v1431 = vadd.f32 %v1395, %v1415
        %v1432 = vadd.f32 %v1396, %v1416
        %v1433 = vadd.f32 %v1397, %v1417
        %v1434 = vadd.f32 %v1398, %v1418
        %v1435 = vadd.f32 %v1399, %v1419
        %v1436 = vadd.f32 %v1400, %v1420
        %v1437 = vadd.f32 %v1401, %v1421
        %v1438 = vadd.f32 %v1402, %v1422
        %v1439 = vadd.f32 %v1403, %v1423
        %v1440 = vadd.f32 %v1404, %v1424
        %v1441 = vadd.f32 %v1405, %v1425
        %v1442 = vadd.f32 %v1406, %v1426
        %v1443 = vlaneseq
        %v1444 = vshrl.u32 %v1443, 7
        %v1445 = vsub.s32 4, %v1444
        %v1446 = vrot.slane %v1311, %v1445
        %v1447 = vmul.f32 %v1284, %v1446
        %v1448 = vmul.f32 %v1210, %v1446
        %v1449 = vmul.f32 %v1285, %v1446
        %v1450 = vmul.f32 %v1213, %v1446
        %v1451 = vmul.f32 %v1286, %v1446
        %v1452 = vmul.f32 %v1216, %v1446
        %v1453 = vmul.f32 %v1287, %v1446
        %v1454 = vmul.f32 %v1219, %v1446
        %v1455 = vmul.f32 %v1288, %v1446
        %v1456 = vmul.f32 %v1222, %v1446
        %v1457 = vmul.f32 %v1289, %v1446
        %v1458 = vmul.f32 %v1225, %v1446
        %v1459 = vmul.f32 %v1290, %v1446
        %v1460 = vmul.f32 %v1228, %v1446
        %v1461 = vmul.f32 %v1291, %v1446
        %v1462 = vmul.f32 %v1231, %v1446
        %v1463 = vadd.f32 %v1427, %v1447
        %v1464 = vadd.f32 %v1428, %v1448
        %v1465 = vadd.f32 %v1429, %v1449
        %v1466 = vadd.f32 %v1430, %v1450
        %v1467 = vadd.f32 %v1431, %v1451
        %v1468 = vadd.f32 %v1432, %v1452
        %v1469 = vadd.f32 %v1433, %v1453
        %v1470 = vadd.f32 %v1434, %v1454
        %v1471 = vadd.f32 %v1435, %v1455
        %v1472 = vadd.f32 %v1436, %v1456
        %v1473 = vadd.f32 %v1437, %v1457
        %v1474 = vadd.f32 %v1438, %v1458
        %v1475 = vadd.f32 %v1439, %v1459
        %v1476 = vadd.f32 %v1440, %v1460
        %v1477 = vadd.f32 %v1441, %v1461
        %v1478 = vadd.f32 %v1442, %v1462
        %v1479 = vlaneseq
        %v1480 = vshrl.u32 %v1479, 7
        %v1481 = vsub.s32 3, %v1480
        %v1482 = vrot.slane %v1312, %v1481
        %v1483 = vmul.f32 %v1285, %v1482
        %v1484 = vmul.f32 %v1213, %v1482
        %v1485 = vmul.f32 %v1286, %v1482
        %v1486 = vmul.f32 %v1216, %v1482
        %v1487 = vmul.f32 %v1287, %v1482
        %v1488 = vmul.f32 %v1219, %v1482
        %v1489 = vmul.f32 %v1288, %v1482
        %v1490 = vmul.f32 %v1222, %v1482
        %v1491 = vmul.f32 %v1289, %v1482
        %v1492 = vmul.f32 %v1225, %v1482
        %v1493 = vmul.f32 %v1290, %v1482
        %v1494 = vmul.f32 %v1228, %v1482
        %v1495 = vmul.f32 %v1291, %v1482
        %v1496 = vmul.f32 %v1231, %v1482
        %v1497 = vmul.f32 %v1292, %v1482
        %v1498 = vmul.f32 %v1234, %v1482
        %v1499 = vadd.f32 %v1463, %v1483
        %v1500 = vadd.f32 %v1464, %v1484
        %v1501 = vadd.f32 %v1465, %v1485
        %v1502 = vadd.f32 %v1466, %v1486
        %v1503 = vadd.f32 %v1467, %v1487
        %v1504 = vadd.f32 %v1468, %v1488
        %v1505 = vadd.f32 %v1469, %v1489
        %v1506 = vadd.f32 %v1470, %v1490
        %v1507 = vadd.f32 %v1471, %v1491
        %v1508 = vadd.f32 %v1472, %v1492
        %v1509 = vadd.f32 %v1473, %v1493
        %v1510 = vadd.f32 %v1474, %v1494
        %v1511 = vadd.f32 %v1475, %v1495
        %v1512 = vadd.f32 %v1476, %v1496
        %v1513 = vadd.f32 %v1477, %v1497
        %v1514 = vadd.f32 %v1478, %v1498
        %v1515 = vlaneseq
        %v1516 = vshrl.u32 %v1515, 7
        %v1517 = vsub.s32 2, %v1516
        %v1518 = vrot.slane %v1313, %v1517
        %v1519 = vmul.f32 %v1286, %v1518
        %v1520 = vmul.f32 %v1216, %v1518
        %v1521 = vmul.f32 %v1287, %v1518
        %v1522 = vmul.f32 %v1219, %v1518
        %v1523 = vmul.f32 %v1288, %v1518
        %v1524 = vmul.f32 %v1222, %v1518
        %v1525 = vmul.f32 %v1289, %v1518
        %v1526 = vmul.f32 %v1225, %v1518
        %v1527 = vmul.f32 %v1290, %v1518
        %v1528 = vmul.f32 %v1228, %v1518
        %v1529 = vmul.f32 %v1291, %v1518
        %v1530 = vmul.f32 %v1231, %v1518
        %v1531 = vmul.f32 %v1292, %v1518
        %v1532 = vmul.f32 %v1234, %v1518
        %v1533 = vmul.f32 %v1293, %v1518
        %v1534 = vmul.f32 %v1237, %v1518
        %v1535 = vadd.f32 %v1499, %v1519
        %v1536 = vadd.f32 %v1500, %v1520
        %v1537 = vadd.f32 %v1501, %v1521
        %v1538 = vadd.f32 %v1502, %v1522
        %v1539 = vadd.f32 %v1503, %v1523
        %v1540 = vadd.f32 %v1504, %v1524
        %v1541 = vadd.f32 %v1505, %v1525
        %v1542 = vadd.f32 %v1506, %v1526
        %v1543 = vadd.f32 %v1507, %v1527
        %v1544 = vadd.f32 %v1508, %v1528
        %v1545 = vadd.f32 %v1509, %v1529
        %v1546 = vadd.f32 %v1510, %v1530
        %v1547 = vadd.f32 %v1511, %v1531
        %v1548 = vadd.f32 %v1512, %v1532
        %v1549 = vadd.f32 %v1513, %v1533
        %v1550 = vadd.f32 %v1514, %v1534
        %v1551 = vlaneseq
        %v1552 = vshrl.u32 %v1551, 7
        %v1553 = vsub.s32 1, %v1552
        %v1554 = vrot.slane %v1308, %v1553
        %v1555 = vmul.f32 %v1280, %v1554
        %v1556 = vmul.f32 %v1198, %v1554
        %v1557 = vmul.f32 %v1294, %v1554
        %v1558 = vmul.f32 %v1281, %v1554
        %v1559 = vmul.f32 %v1201, %v1554
        %v1560 = vmul.f32 %v1295, %v1554
        %v1561 = vmul.f32 %v1282, %v1554
        %v1562 = vmul.f32 %v1204, %v1554
        %v1563 = vmul.f32 %v1296, %v1554
        %v1564 = vmul.f32 %v1283, %v1554
        %v1565 = vmul.f32 %v1207, %v1554
        %v1566 = vmul.f32 %v1297, %v1554
        %v1567 = vmul.f32 %v1284, %v1554
        %v1568 = vmul.f32 %v1210, %v1554
        %v1569 = vmul.f32 %v1298, %v1554
        %v1570 = vmul.f32 %v1285, %v1554
        %v1571 = vmul.f32 %v1213, %v1554
        %v1572 = vmul.f32 %v1299, %v1554
        %v1573 = vmul.f32 %v1286, %v1554
        %v1574 = vmul.f32 %v1216, %v1554
        %v1575 = vmul.f32 %v1300, %v1554
        %v1576 = vmul.f32 %v1287, %v1554
        %v1577 = vmul.f32 %v1219, %v1554
        %v1578 = vmul.f32 %v1301, %v1554
        %vm1603 = vcmask 1046528
        %v1604 = vrot.slane %v1555, 1
        %v1605 = vrot.slane %v1556, 1
        %v1606 = vsel %vm1603, %v1604, %v1605
        %v1607 = vrot.slane %v1557, 1
        %v1608 = vsel %vm1603, %v1605, %v1607
        %v1609 = vrot.slane %v1558, 1
        %v1610 = vrot.slane %v1559, 1
        %v1611 = vsel %vm1603, %v1609, %v1610
        %v1612 = vrot.slane %v1560, 1
        %v1613 = vsel %vm1603, %v1610, %v1612
        %v1614 = vrot.slane %v1561, 1
        %v1615 = vrot.slane %v1562, 1
        %v1616 = vsel %vm1603, %v1614, %v1615
        %v1617 = vrot.slane %v1563, 1
        %v1618 = vsel %vm1603, %v1615, %v1617
        %v1619 = vrot.slane %v1564, 1
        %v1620 = vrot.slane %v1565, 1
        %v1621 = vsel %vm1603, %v1619, %v1620
        %v1622 = vrot.slane %v1566, 1
        %v1623 = vsel %vm1603, %v1620, %v1622
        %v1624 = vrot.slane %v1567, 1
        %v1625 = vrot.slane %v1568, 1
        %v1626 = vsel %vm1603, %v1624, %v1625
        %v1627 = vrot.slane %v1569, 1
        %v1628 = vsel %vm1603, %v1625, %v1627
        %v1629 = vrot.slane %v1570, 1
        %v1630 = vrot.slane %v1571, 1
        %v1631 = vsel %vm1603, %v1629, %v1630
        %v1632 = vrot.slane %v1572, 1
        %v1633 = vsel %vm1603, %v1630, %v1632
        %v1634 = vrot.slane %v1573, 1
        %v1635 = vrot.slane %v1574, 1
        %v1636 = vsel %vm1603, %v1634, %v1635
        %v1637 = vrot.slane %v1575, 1
        %v1638 = vsel %vm1603, %v1635, %v1637
        %v1639 = vrot.slane %v1576, 1
        %v1640 = vrot.slane %v1577, 1
        %v1641 = vsel %vm1603, %v1639, %v1640
        %v1642 = vrot.slane %v1578, 1
        %v1643 = vsel %vm1603, %v1640, %v1642
        %v1660 = vadd.f32 %v1535, %v1606
        %v1661 = vadd.f32 %v1536, %v1608
        %v1662 = vadd.f32 %v1537, %v1611
        %v1663 = vadd.f32 %v1538, %v1613
        %v1664 = vadd.f32 %v1539, %v1616
        %v1665 = vadd.f32 %v1540, %v1618
        %v1666 = vadd.f32 %v1541, %v1621
        %v1667 = vadd.f32 %v1542, %v1623
        %v1668 = vadd.f32 %v1543, %v1626
        %v1669 = vadd.f32 %v1544, %v1628
        %v1670 = vadd.f32 %v1545, %v1631
        %v1671 = vadd.f32 %v1546, %v1633
        %v1672 = vadd.f32 %v1547, %v1636
        %v1673 = vadd.f32 %v1548, %v1638
        %v1674 = vadd.f32 %v1549, %v1641
        %v1675 = vadd.f32 %v1550, %v1643
        %v1676 = vlaneseq
        %v1677 = vshrl.u32 %v1676, 7
        %v1678 = vsub.s32 0, %v1677
        %v1679 = vrot.slane %v1309, %v1678
        %v1680 = vmul.f32 %v1281, %v1679
        %v1681 = vmul.f32 %v1201, %v1679
        %v1682 = vmul.f32 %v1295, %v1679
        %v1683 = vmul.f32 %v1282, %v1679
        %v1684 = vmul.f32 %v1204, %v1679
        %v1685 = vmul.f32 %v1296, %v1679
        %v1686 = vmul.f32 %v1283, %v1679
        %v1687 = vmul.f32 %v1207, %v1679
        %v1688 = vmul.f32 %v1297, %v1679
        %v1689 = vmul.f32 %v1284, %v1679
        %v1690 = vmul.f32 %v1210, %v1679
        %v1691 = vmul.f32 %v1298, %v1679
        %v1692 = vmul.f32 %v1285, %v1679
        %v1693 = vmul.f32 %v1213, %v1679
        %v1694 = vmul.f32 %v1299, %v1679
        %v1695 = vmul.f32 %v1286, %v1679
        %v1696 = vmul.f32 %v1216, %v1679
        %v1697 = vmul.f32 %v1300, %v1679
        %v1698 = vmul.f32 %v1287, %v1679
        %v1699 = vmul.f32 %v1219, %v1679
        %v1700 = vmul.f32 %v1301, %v1679
        %v1701 = vmul.f32 %v1288, %v1679
        %v1702 = vmul.f32 %v1222, %v1679
        %v1703 = vmul.f32 %v1302, %v1679
        %v1728 = vrot.slane %v1680, 1
        %v1729 = vrot.slane %v1681, 1
        %v1730 = vsel %vm1603, %v1728, %v1729
        %v1731 = vrot.slane %v1682, 1
        %v1732 = vsel %vm1603, %v1729, %v1731
        %v1733 = vrot.slane %v1683, 1
        %v1734 = vrot.slane %v1684, 1
        %v1735 = vsel %vm1603, %v1733, %v1734
        %v1736 = vrot.slane %v1685, 1
        %v1737 = vsel %vm1603, %v1734, %v1736
        %v1738 = vrot.slane %v1686, 1
        %v1739 = vrot.slane %v1687, 1
        %v1740 = vsel %vm1603, %v1738, %v1739
        %v1741 = vrot.slane %v1688, 1
        %v1742 = vsel %vm1603, %v1739, %v1741
        %v1743 = vrot.slane %v1689, 1
        %v1744 = vrot.slane %v1690, 1
        %v1745 = vsel %vm1603, %v1743, %v1744
        %v1746 = vrot.slane %v1691, 1
        %v1747 = vsel %vm1603, %v1744, %v1746
        %v1748 = vrot.slane %v1692, 1
        %v1749 = vrot.slane %v1693, 1
        %v1750 = vsel %vm1603, %v1748, %v1749
        %v1751 = vrot.slane %v1694, 1
        %v1752 = vsel %vm1603, %v1749, %v1751
        %v1753 = vrot.slane %v1695, 1
        %v1754 = vrot.slane %v1696, 1
        %v1755 = vsel %vm1603, %v1753, %v1754
        %v1756 = vrot.slane %v1697, 1
        %v1757 = vsel %vm1603, %v1754, %v1756
        %v1758 = vrot.slane %v1698, 1
        %v1759 = vrot.slane %v1699, 1
        %v1760 = vsel %vm1603, %v1758, %v1759
        %v1761 = vrot.slane %v1700, 1
        %v1762 = vsel %vm1603, %v1759, %v1761
        %v1763 = vrot.slane %v1701, 1
        %v1764 = vrot.slane %v1702, 1
        %v1765 = vsel %vm1603, %v1763, %v1764
        %v1766 = vrot.slane %v1703, 1
        %v1767 = vsel %vm1603, %v1764, %v1766
        %v1784 = vadd.f32 %v1660, %v1730
        %v1785 = vadd.f32 %v1661, %v1732
        %v1786 = vadd.f32 %v1662, %v1735
        %v1787 = vadd.f32 %v1663, %v1737
        %v1788 = vadd.f32 %v1664, %v1740
        %v1789 = vadd.f32 %v1665, %v1742
        %v1790 = vadd.f32 %v1666, %v1745
        %v1791 = vadd.f32 %v1667, %v1747
        %v1792 = vadd.f32 %v1668, %v1750
        %v1793 = vadd.f32 %v1669, %v1752
        %v1794 = vadd.f32 %v1670, %v1755
        %v1795 = vadd.f32 %v1671, %v1757
        %v1796 = vadd.f32 %v1672, %v1760
        %v1797 = vadd.f32 %v1673, %v1762
        %v1798 = vadd.f32 %v1674, %v1765
        %v1799 = vadd.f32 %v1675, %v1767
        %v1800 = vlaneseq
        %v1801 = vshrl.u32 %v1800, 7
        %v1802 = vsub.s32 7, %v1801
        %v1803 = vrot.slane %v1309, %v1802
        %v1804 = vmul.f32 %v1282, %v1803
        %v1805 = vmul.f32 %v1204, %v1803
        %v1806 = vmul.f32 %v1296, %v1803
        %v1807 = vmul.f32 %v1283, %v1803
        %v1808 = vmul.f32 %v1207, %v1803
        %v1809 = vmul.f32 %v1297, %v1803
        %v1810 = vmul.f32 %v1284, %v1803
        %v1811 = vmul.f32 %v1210, %v1803
        %v1812 = vmul.f32 %v1298, %v1803
        %v1813 = vmul.f32 %v1285, %v1803
        %v1814 = vmul.f32 %v1213, %v1803
        %v1815 = vmul.f32 %v1299, %v1803
        %v1816 = vmul.f32 %v1286, %v1803
        %v1817 = vmul.f32 %v1216, %v1803
        %v1818 = vmul.f32 %v1300, %v1803
        %v1819 = vmul.f32 %v1287, %v1803
        %v1820 = vmul.f32 %v1219, %v1803
        %v1821 = vmul.f32 %v1301, %v1803
        %v1822 = vmul.f32 %v1288, %v1803
        %v1823 = vmul.f32 %v1222, %v1803
        %v1824 = vmul.f32 %v1302, %v1803
        %v1825 = vmul.f32 %v1289, %v1803
        %v1826 = vmul.f32 %v1225, %v1803
        %v1827 = vmul.f32 %v1303, %v1803
        %v1852 = vrot.slane %v1804, 1
        %v1853 = vrot.slane %v1805, 1
        %v1854 = vsel %vm1603, %v1852, %v1853
        %v1855 = vrot.slane %v1806, 1
        %v1856 = vsel %vm1603, %v1853, %v1855
        %v1857 = vrot.slane %v1807, 1
        %v1858 = vrot.slane %v1808, 1
        %v1859 = vsel %vm1603, %v1857, %v1858
        %v1860 = vrot.slane %v1809, 1
        %v1861 = vsel %vm1603, %v1858, %v1860
        %v1862 = vrot.slane %v1810, 1
        %v1863 = vrot.slane %v1811, 1
        %v1864 = vsel %vm1603, %v1862, %v1863
        %v1865 = vrot.slane %v1812, 1
        %v1866 = vsel %vm1603, %v1863, %v1865
        %v1867 = vrot.slane %v1813, 1
        %v1868 = vrot.slane %v1814, 1
        %v1869 = vsel %vm1603, %v1867, %v1868
        %v1870 = vrot.slane %v1815, 1
        %v1871 = vsel %vm1603, %v1868, %v1870
        %v1872 = vrot.slane %v1816, 1
        %v1873 = vrot.slane %v1817, 1
        %v1874 = vsel %vm1603, %v1872, %v1873
        %v1875 = vrot.slane %v1818, 1
        %v1876 = vsel %vm1603, %v1873, %v1875
        %v1877 = vrot.slane %v1819, 1
        %v1878 = vrot.slane %v1820, 1
        %v1879 = vsel %vm1603, %v1877, %v1878
        %v1880 = vrot.slane %v1821, 1
        %v1881 = vsel %vm1603, %v1878, %v1880
        %v1882 = vrot.slane %v1822, 1
        %v1883 = vrot.slane %v1823, 1
        %v1884 = vsel %vm1603, %v1882, %v1883
        %v1885 = vrot.slane %v1824, 1
        %v1886 = vsel %vm1603, %v1883, %v1885
        %v1887 = vrot.slane %v1825, 1
        %v1888 = vrot.slane %v1826, 1
        %v1889 = vsel %vm1603, %v1887, %v1888
        %v1890 = vrot.slane %v1827, 1
        %v1891 = vsel %vm1603, %v1888, %v1890
        %v1908 = vadd.f32 %v1784, %v1854
        %v1909 = vadd.f32 %v1785, %v1856
        %v1910 = vadd.f32 %v1786, %v1859
        %v1911 = vadd.f32 %v1787, %v1861
        %v1912 = vadd.f32 %v1788, %v1864
        %v1913 = vadd.f32 %v1789, %v1866
        %v1914 = vadd.f32 %v1790, %v1869
        %v1915 = vadd.f32 %v1791, %v1871
        %v1916 = vadd.f32 %v1792, %v1874
        %v1917 = vadd.f32 %v1793, %v1876
        %v1918 = vadd.f32 %v1794, %v1879
        %v1919 = vadd.f32 %v1795, %v1881
        %v1920 = vadd.f32 %v1796, %v1884
        %v1921 = vadd.f32 %v1797, %v1886
        %v1922 = vadd.f32 %v1798, %v1889
        %v1923 = vadd.f32 %v1799, %v1891
        %v1924 = vlaneseq
        %v1925 = vshrl.u32 %v1924, 7
        %v1926 = vsub.s32 6, %v1925
        %v1927 = vrot.slane %v1310, %v1926
        %v1928 = vmul.f32 %v1283, %v1927
        %v1929 = vmul.f32 %v1207, %v1927
        %v1930 = vmul.f32 %v1297, %v1927
        %v1931 = vmul.f32 %v1284, %v1927
        %v1932 = vmul.f32 %v1210, %v1927
        %v1933 = vmul.f32 %v1298, %v1927
        %v1934 = vmul.f32 %v1285, %v1927
        %v1935 = vmul.f32 %v1213, %v1927
        %v1936 = vmul.f32 %v1299, %v1927
        %v1937 = vmul.f32 %v1286, %v1927
        %v1938 = vmul.f32 %v1216, %v1927
        %v1939 = vmul.f32 %v1300, %v1927
        %v1940 = vmul.f32 %v1287, %v1927
        %v1941 = vmul.f32 %v1219, %v1927
        %v1942 = vmul.f32 %v1301, %v1927
        %v1943 = vmul.f32 %v1288, %v1927
        %v1944 = vmul.f32 %v1222, %v1927
        %v1945 = vmul.f32 %v1302, %v1927
        %v1946 = vmul.f32 %v1289, %v1927
        %v1947 = vmul.f32 %v1225, %v1927
        %v1948 = vmul.f32 %v1303, %v1927
        %v1949 = vmul.f32 %v1290, %v1927
        %v1950 = vmul.f32 %v1228, %v1927
        %v1951 = vmul.f32 %v1304, %v1927
        %v1976 = vrot.slane %v1928, 1
        %v1977 = vrot.slane %v1929, 1
        %v1978 = vsel %vm1603, %v1976, %v1977
        %v1979 = vrot.slane %v1930, 1
        %v1980 = vsel %vm1603, %v1977, %v1979
        %v1981 = vrot.slane %v1931, 1
        %v1982 = vrot.slane %v1932, 1
        %v1983 = vsel %vm1603, %v1981, %v1982
        %v1984 = vrot.slane %v1933, 1
        %v1985 = vsel %vm1603, %v1982, %v1984
        %v1986 = vrot.slane %v1934, 1
        %v1987 = vrot.slane %v1935, 1
        %v1988 = vsel %vm1603, %v1986, %v1987
        %v1989 = vrot.slane %v1936, 1
        %v1990 = vsel %vm1603, %v1987, %v1989
        %v1991 = vrot.slane %v1937, 1
        %v1992 = vrot.slane %v1938, 1
        %v1993 = vsel %vm1603, %v1991, %v1992
        %v1994 = vrot.slane %v1939, 1
        %v1995 = vsel %vm1603, %v1992, %v1994
        %v1996 = vrot.slane %v1940, 1
        %v1997 = vrot.slane %v1941, 1
        %v1998 = vsel %vm1603, %v1996, %v1997
        %v1999 = vrot.slane %v1942, 1
        %v2000 = vsel %vm1603, %v1997, %v1999
        %v2001 = vrot.slane %v1943, 1
        %v2002 = vrot.slane %v1944, 1
        %v2003 = vsel %vm1603, %v2001, %v2002
        %v2004 = vrot.slane %v1945, 1
        %v2005 = vsel %vm1603, %v2002, %v2004
        %v2006 = vrot.slane %v1946, 1
        %v2007 = vrot.slane %v1947, 1
        %v2008 = vsel %vm1603, %v2006, %v2007
        %v2009 = vrot.slane %v1948, 1
        %v2010 = vsel %vm1603, %v2007, %v2009
        %v2011 = vrot.slane %v1949, 1
        %v2012 = vrot.slane %v1950, 1
        %v2013 = vsel %vm1603, %v2011, %v2012
        %v2014 = vrot.slane %v1951, 1
        %v2015 = vsel %vm1603, %v2012, %v2014
        %v2032 = vadd.f32 %v1908, %v1978
        %v2033 = vadd.f32 %v1909, %v1980
        %v2034 = vadd.f32 %v1910, %v1983
        %v2035 = vadd.f32 %v1911, %v1985
        %v2036 = vadd.f32 %v1912, %v1988
        %v2037 = vadd.f32 %v1913, %v1990
        %v2038 = vadd.f32 %v1914, %v1993
        %v2039 = vadd.f32 %v1915, %v1995
        %v2040 = vadd.f32 %v1916, %v1998
        %v2041 = vadd.f32 %v1917, %v2000
        %v2042 = vadd.f32 %v1918, %v2003
        %v2043 = vadd.f32 %v1919, %v2005
        %v2044 = vadd.f32 %v1920, %v2008
        %v2045 = vadd.f32 %v1921, %v2010
        %v2046 = vadd.f32 %v1922, %v2013
        %v2047 = vadd.f32 %v1923, %v2015
        %v2048 = vlaneseq
        %v2049 = vshrl.u32 %v2048, 7
        %v2050 = vsub.s32 5, %v2049
        %v2051 = vrot.slane %v1311, %v2050
        %v2052 = vmul.f32 %v1284, %v2051
        %v2053 = vmul.f32 %v1210, %v2051
        %v2054 = vmul.f32 %v1298, %v2051
        %v2055 = vmul.f32 %v1285, %v2051
        %v2056 = vmul.f32 %v1213, %v2051
        %v2057 = vmul.f32 %v1299, %v2051
        %v2058 = vmul.f32 %v1286, %v2051
        %v2059 = vmul.f32 %v1216, %v2051
        %v2060 = vmul.f32 %v1300, %v2051
        %v2061 = vmul.f32 %v1287, %v2051
        %v2062 = vmul.f32 %v1219, %v2051
        %v2063 = vmul.f32 %v1301, %v2051
        %v2064 = vmul.f32 %v1288, %v2051
        %v2065 = vmul.f32 %v1222, %v2051
        %v2066 = vmul.f32 %v1302, %v2051
        %v2067 = vmul.f32 %v1289, %v2051
        %v2068 = vmul.f32 %v1225, %v2051
        %v2069 = vmul.f32 %v1303, %v2051
        %v2070 = vmul.f32 %v1290, %v2051
        %v2071 = vmul.f32 %v1228, %v2051
        %v2072 = vmul.f32 %v1304, %v2051
        %v2073 = vmul.f32 %v1291, %v2051
        %v2074 = vmul.f32 %v1231, %v2051
        %v2075 = vmul.f32 %v1305, %v2051
        %v2100 = vrot.slane %v2052, 1
        %v2101 = vrot.slane %v2053, 1
        %v2102 = vsel %vm1603, %v2100, %v2101
        %v2103 = vrot.slane %v2054, 1
        %v2104 = vsel %vm1603, %v2101, %v2103
        %v2105 = vrot.slane %v2055, 1
        %v2106 = vrot.slane %v2056, 1
        %v2107 = vsel %vm1603, %v2105, %v2106
        %v2108 = vrot.slane %v2057, 1
        %v2109 = vsel %vm1603, %v2106, %v2108
        %v2110 = vrot.slane %v2058, 1
        %v2111 = vrot.slane %v2059, 1
        %v2112 = vsel %vm1603, %v2110, %v2111
        %v2113 = vrot.slane %v2060, 1
        %v2114 = vsel %vm1603, %v2111, %v2113
        %v2115 = vrot.slane %v2061, 1
        %v2116 = vrot.slane %v2062, 1
        %v2117 = vsel %vm1603, %v2115, %v2116
        %v2118 = vrot.slane %v2063, 1
        %v2119 = vsel %vm1603, %v2116, %v2118
        %v2120 = vrot.slane %v2064, 1
        %v2121 = vrot.slane %v2065, 1
        %v2122 = vsel %vm1603, %v2120, %v2121
        %v2123 = vrot.slane %v2066, 1
        %v2124 = vsel %vm1603, %v2121, %v2123
        %v2125 = vrot.slane %v2067, 1
        %v2126 = vrot.slane %v2068, 1
        %v2127 = vsel %vm1603, %v2125, %v2126
        %v2128 = vrot.slane %v2069, 1
        %v2129 = vsel %vm1603, %v2126, %v2128
        %v2130 = vrot.slane %v2070, 1
        %v2131 = vrot.slane %v2071, 1
        %v2132 = vsel %vm1603, %v2130, %v2131
        %v2133 = vrot.slane %v2072, 1
        %v2134 = vsel %vm1603, %v2131, %v2133
        %v2135 = vrot.slane %v2073, 1
        %v2136 = vrot.slane %v2074, 1
        %v2137 = vsel %vm1603, %v2135, %v2136
        %v2138 = vrot.slane %v2075, 1
        %v2139 = vsel %vm1603, %v2136, %v2138
        %v2156 = vadd.f32 %v2032, %v2102
        %v2157 = vadd.f32 %v2033, %v2104
        %v2158 = vadd.f32 %v2034, %v2107
        %v2159 = vadd.f32 %v2035, %v2109
        %v2160 = vadd.f32 %v2036, %v2112
        %v2161 = vadd.f32 %v2037, %v2114
        %v2162 = vadd.f32 %v2038, %v2117
        %v2163 = vadd.f32 %v2039, %v2119
        %v2164 = vadd.f32 %v2040, %v2122
        %v2165 = vadd.f32 %v2041, %v2124
        %v2166 = vadd.f32 %v2042, %v2127
        %v2167 = vadd.f32 %v2043, %v2129
        %v2168 = vadd.f32 %v2044, %v2132
        %v2169 = vadd.f32 %v2045, %v2134
        %v2170 = vadd.f32 %v2046, %v2137
        %v2171 = vadd.f32 %v2047, %v2139
        %v2172 = vlaneseq
        %v2173 = vshrl.u32 %v2172, 7
        %v2174 = vsub.s32 4, %v2173
        %v2175 = vrot.slane %v1312, %v2174
        %v2176 = vmul.f32 %v1285, %v2175
        %v2177 = vmul.f32 %v1213, %v2175
        %v2178 = vmul.f32 %v1299, %v2175
        %v2179 = vmul.f32 %v1286, %v2175
        %v2180 = vmul.f32 %v1216, %v2175
        %v2181 = vmul.f32 %v1300, %v2175
        %v2182 = vmul.f32 %v1287, %v2175
        %v2183 = vmul.f32 %v1219, %v2175
        %v2184 = vmul.f32 %v1301, %v2175
        %v2185 = vmul.f32 %v1288, %v2175
        %v2186 = vmul.f32 %v1222, %v2175
        %v2187 = vmul.f32 %v1302, %v2175
        %v2188 = vmul.f32 %v1289, %v2175
        %v2189 = vmul.f32 %v1225, %v2175
        %v2190 = vmul.f32 %v1303, %v2175
        %v2191 = vmul.f32 %v1290, %v2175
        %v2192 = vmul.f32 %v1228, %v2175
        %v2193 = vmul.f32 %v1304, %v2175
        %v2194 = vmul.f32 %v1291, %v2175
        %v2195 = vmul.f32 %v1231, %v2175
        %v2196 = vmul.f32 %v1305, %v2175
        %v2197 = vmul.f32 %v1292, %v2175
        %v2198 = vmul.f32 %v1234, %v2175
        %v2199 = vmul.f32 %v1306, %v2175
        %v2224 = vrot.slane %v2176, 1
        %v2225 = vrot.slane %v2177, 1
        %v2226 = vsel %vm1603, %v2224, %v2225
        %v2227 = vrot.slane %v2178, 1
        %v2228 = vsel %vm1603, %v2225, %v2227
        %v2229 = vrot.slane %v2179, 1
        %v2230 = vrot.slane %v2180, 1
        %v2231 = vsel %vm1603, %v2229, %v2230
        %v2232 = vrot.slane %v2181, 1
        %v2233 = vsel %vm1603, %v2230, %v2232
        %v2234 = vrot.slane %v2182, 1
        %v2235 = vrot.slane %v2183, 1
        %v2236 = vsel %vm1603, %v2234, %v2235
        %v2237 = vrot.slane %v2184, 1
        %v2238 = vsel %vm1603, %v2235, %v2237
        %v2239 = vrot.slane %v2185, 1
        %v2240 = vrot.slane %v2186, 1
        %v2241 = vsel %vm1603, %v2239, %v2240
        %v2242 = vrot.slane %v2187, 1
        %v2243 = vsel %vm1603, %v2240, %v2242
        %v2244 = vrot.slane %v2188, 1
        %v2245 = vrot.slane %v2189, 1
        %v2246 = vsel %vm1603, %v2244, %v2245
        %v2247 = vrot.slane %v2190, 1
        %v2248 = vsel %vm1603, %v2245, %v2247
        %v2249 = vrot.slane %v2191, 1
        %v2250 = vrot.slane %v2192, 1
        %v2251 = vsel %vm1603, %v2249, %v2250
        %v2252 = vrot.slane %v2193, 1
        %v2253 = vsel %vm1603, %v2250, %v2252
        %v2254 = vrot.slane %v2194, 1
        %v2255 = vrot.slane %v2195, 1
        %v2256 = vsel %vm1603, %v2254, %v2255
        %v2257 = vrot.slane %v2196, 1
        %v2258 = vsel %vm1603, %v2255, %v2257
        %v2259 = vrot.slane %v2197, 1
        %v2260 = vrot.slane %v2198, 1
        %v2261 = vsel %vm1603, %v2259, %v2260
        %v2262 = vrot.slane %v2199, 1
        %v2263 = vsel %vm1603, %v2260, %v2262
        %v2280 = vadd.f32 %v2156, %v2226
        %v2281 = vadd.f32 %v2157, %v2228
        %v2282 = vadd.f32 %v2158, %v2231
        %v2283 = vadd.f32 %v2159, %v2233
        %v2284 = vadd.f32 %v2160, %v2236
        %v2285 = vadd.f32 %v2161, %v2238
        %v2286 = vadd.f32 %v2162, %v2241
        %v2287 = vadd.f32 %v2163, %v2243
        %v2288 = vadd.f32 %v2164, %v2246
        %v2289 = vadd.f32 %v2165, %v2248
        %v2290 = vadd.f32 %v2166, %v2251
        %v2291 = vadd.f32 %v2167, %v2253
        %v2292 = vadd.f32 %v2168, %v2256
        %v2293 = vadd.f32 %v2169, %v2258
        %v2294 = vadd.f32 %v2170, %v2261
        %v2295 = vadd.f32 %v2171, %v2263
        %v2296 = vlaneseq
        %v2297 = vshrl.u32 %v2296, 7
        %v2298 = vsub.s32 3, %v2297
        %v2299 = vrot.slane %v1313, %v2298
        %v2300 = vmul.f32 %v1286, %v2299
        %v2301 = vmul.f32 %v1216, %v2299
        %v2302 = vmul.f32 %v1300, %v2299
        %v2303 = vmul.f32 %v1287, %v2299
        %v2304 = vmul.f32 %v1219, %v2299
        %v2305 = vmul.f32 %v1301, %v2299
        %v2306 = vmul.f32 %v1288, %v2299
        %v2307 = vmul.f32 %v1222, %v2299
        %v2308 = vmul.f32 %v1302, %v2299
        %v2309 = vmul.f32 %v1289, %v2299
        %v2310 = vmul.f32 %v1225, %v2299
        %v2311 = vmul.f32 %v1303, %v2299
        %v2312 = vmul.f32 %v1290, %v2299
        %v2313 = vmul.f32 %v1228, %v2299
        %v2314 = vmul.f32 %v1304, %v2299
        %v2315 = vmul.f32 %v1291, %v2299
        %v2316 = vmul.f32 %v1231, %v2299
        %v2317 = vmul.f32 %v1305, %v2299
        %v2318 = vmul.f32 %v1292, %v2299
        %v2319 = vmul.f32 %v1234, %v2299
        %v2320 = vmul.f32 %v1306, %v2299
        %v2321 = vmul.f32 %v1293, %v2299
        %v2322 = vmul.f32 %v1237, %v2299
        %v2323 = vmul.f32 %v1307, %v2299
        %v2348 = vrot.slane %v2300, 1
        %v2349 = vrot.slane %v2301, 1
        %v2350 = vsel %vm1603, %v2348, %v2349
        %v2351 = vrot.slane %v2302, 1
        %v2352 = vsel %vm1603, %v2349, %v2351
        %v2353 = vrot.slane %v2303, 1
        %v2354 = vrot.slane %v2304, 1
        %v2355 = vsel %vm1603, %v2353, %v2354
        %v2356 = vrot.slane %v2305, 1
        %v2357 = vsel %vm1603, %v2354, %v2356
        %v2358 = vrot.slane %v2306, 1
        %v2359 = vrot.slane %v2307, 1
        %v2360 = vsel %vm1603, %v2358, %v2359
        %v2361 = vrot.slane %v2308, 1
        %v2362 = vsel %vm1603, %v2359, %v2361
        %v2363 = vrot.slane %v2309, 1
        %v2364 = vrot.slane %v2310, 1
        %v2365 = vsel %vm1603, %v2363, %v2364
        %v2366 = vrot.slane %v2311, 1
        %v2367 = vsel %vm1603, %v2364, %v2366
        %v2368 = vrot.slane %v2312, 1
        %v2369 = vrot.slane %v2313, 1
        %v2370 = vsel %vm1603, %v2368, %v2369
        %v2371 = vrot.slane %v2314, 1
        %v2372 = vsel %vm1603, %v2369, %v2371
        %v2373 = vrot.slane %v2315, 1
        %v2374 = vrot.slane %v2316, 1
        %v2375 = vsel %vm1603, %v2373, %v2374
        %v2376 = vrot.slane %v2317, 1
        %v2377 = vsel %vm1603, %v2374, %v2376
        %v2378 = vrot.slane %v2318, 1
        %v2379 = vrot.slane %v2319, 1
        %v2380 = vsel %vm1603, %v2378, %v2379
        %v2381 = vrot.slane %v2320, 1
        %v2382 = vsel %vm1603, %v2379, %v2381
        %v2383 = vrot.slane %v2321, 1
        %v2384 = vrot.slane %v2322, 1
        %v2385 = vsel %vm1603, %v2383, %v2384
        %v2386 = vrot.slane %v2323, 1
        %v2387 = vsel %vm1603, %v2384, %v2386
        %v2404 = vadd.f32 %v2280, %v2350
        %v2405 = vadd.f32 %v2281, %v2352
        %v2406 = vadd.f32 %v2282, %v2355
        %v2407 = vadd.f32 %v2283, %v2357
        %v2408 = vadd.f32 %v2284, %v2360
        %v2409 = vadd.f32 %v2285, %v2362
        %v2410 = vadd.f32 %v2286, %v2365
        %v2411 = vadd.f32 %v2287, %v2367
        %v2412 = vadd.f32 %v2288, %v2370
        %v2413 = vadd.f32 %v2289, %v2372
        %v2414 = vadd.f32 %v2290, %v2375
        %v2415 = vadd.f32 %v2291, %v2377
        %v2416 = vadd.f32 %v2292, %v2380
        %v2417 = vadd.f32 %v2293, %v2382
        %v2418 = vadd.f32 %v2294, %v2385
        %v2419 = vadd.f32 %v2295, %v2387
        %v2420 = vlaneseq
        %v2421 = vshrl.u32 %v2420, 7
        %v2422 = vsub.s32 2, %v2421
        %v2423 = vrot.slane %v1308, %v2422
        %v2424 = vmul.f32 %v1280, %v2423
        %v2425 = vmul.f32 %v1198, %v2423
        %v2426 = vmul.f32 %v1294, %v2423
        %v2427 = vmul.f32 %v1281, %v2423
        %v2428 = vmul.f32 %v1201, %v2423
        %v2429 = vmul.f32 %v1295, %v2423
        %v2430 = vmul.f32 %v1282, %v2423
        %v2431 = vmul.f32 %v1204, %v2423
        %v2432 = vmul.f32 %v1296, %v2423
        %v2433 = vmul.f32 %v1283, %v2423
        %v2434 = vmul.f32 %v1207, %v2423
        %v2435 = vmul.f32 %v1297, %v2423
        %v2436 = vmul.f32 %v1284, %v2423
        %v2437 = vmul.f32 %v1210, %v2423
        %v2438 = vmul.f32 %v1298, %v2423
        %v2439 = vmul.f32 %v1285, %v2423
        %v2440 = vmul.f32 %v1213, %v2423
        %v2441 = vmul.f32 %v1299, %v2423
        %v2442 = vmul.f32 %v1286, %v2423
        %v2443 = vmul.f32 %v1216, %v2423
        %v2444 = vmul.f32 %v1300, %v2423
        %v2445 = vmul.f32 %v1287, %v2423
        %v2446 = vmul.f32 %v1219, %v2423
        %v2447 = vmul.f32 %v1301, %v2423
        %vm2472 = vcmask 1045504
        %v2473 = vrot.slane %v2424, 2
        %v2474 = vrot.slane %v2425, 2
        %v2475 = vsel %vm2472, %v2473, %v2474
        %v2476 = vrot.slane %v2426, 2
        %v2477 = vsel %vm2472, %v2474, %v2476
        %v2478 = vrot.slane %v2427, 2
        %v2479 = vrot.slane %v2428, 2
        %v2480 = vsel %vm2472, %v2478, %v2479
        %v2481 = vrot.slane %v2429, 2
        %v2482 = vsel %vm2472, %v2479, %v2481
        %v2483 = vrot.slane %v2430, 2
        %v2484 = vrot.slane %v2431, 2
        %v2485 = vsel %vm2472, %v2483, %v2484
        %v2486 = vrot.slane %v2432, 2
        %v2487 = vsel %vm2472, %v2484, %v2486
        %v2488 = vrot.slane %v2433, 2
        %v2489 = vrot.slane %v2434, 2
        %v2490 = vsel %vm2472, %v2488, %v2489
        %v2491 = vrot.slane %v2435, 2
        %v2492 = vsel %vm2472, %v2489, %v2491
        %v2493 = vrot.slane %v2436, 2
        %v2494 = vrot.slane %v2437, 2
        %v2495 = vsel %vm2472, %v2493, %v2494
        %v2496 = vrot.slane %v2438, 2
        %v2497 = vsel %vm2472, %v2494, %v2496
        %v2498 = vrot.slane %v2439, 2
        %v2499 = vrot.slane %v2440, 2
        %v2500 = vsel %vm2472, %v2498, %v2499
        %v2501 = vrot.slane %v2441, 2
        %v2502 = vsel %vm2472, %v2499, %v2501
        %v2503 = vrot.slane %v2442, 2
        %v2504 = vrot.slane %v2443, 2
        %v2505 = vsel %vm2472, %v2503, %v2504
        %v2506 = vrot.slane %v2444, 2
        %v2507 = vsel %vm2472, %v2504, %v2506
        %v2508 = vrot.slane %v2445, 2
        %v2509 = vrot.slane %v2446, 2
        %v2510 = vsel %vm2472, %v2508, %v2509
        %v2511 = vrot.slane %v2447, 2
        %v2512 = vsel %vm2472, %v2509, %v2511
        %v2529 = vadd.f32 %v2404, %v2475
        %v2530 = vadd.f32 %v2405, %v2477
        %v2531 = vadd.f32 %v2406, %v2480
        %v2532 = vadd.f32 %v2407, %v2482
        %v2533 = vadd.f32 %v2408, %v2485
        %v2534 = vadd.f32 %v2409, %v2487
        %v2535 = vadd.f32 %v2410, %v2490
        %v2536 = vadd.f32 %v2411, %v2492
        %v2537 = vadd.f32 %v2412, %v2495
        %v2538 = vadd.f32 %v2413, %v2497
        %v2539 = vadd.f32 %v2414, %v2500
        %v2540 = vadd.f32 %v2415, %v2502
        %v2541 = vadd.f32 %v2416, %v2505
        %v2542 = vadd.f32 %v2417, %v2507
        %v2543 = vadd.f32 %v2418, %v2510
        %v2544 = vadd.f32 %v2419, %v2512
        %v2545 = vlaneseq
        %v2546 = vshrl.u32 %v2545, 7
        %v2547 = vsub.s32 1, %v2546
        %v2548 = vrot.slane %v1309, %v2547
        %v2549 = vmul.f32 %v1281, %v2548
        %v2550 = vmul.f32 %v1201, %v2548
        %v2551 = vmul.f32 %v1295, %v2548
        %v2552 = vmul.f32 %v1282, %v2548
        %v2553 = vmul.f32 %v1204, %v2548
        %v2554 = vmul.f32 %v1296, %v2548
        %v2555 = vmul.f32 %v1283, %v2548
        %v2556 = vmul.f32 %v1207, %v2548
        %v2557 = vmul.f32 %v1297, %v2548
        %v2558 = vmul.f32 %v1284, %v2548
        %v2559 = vmul.f32 %v1210, %v2548
        %v2560 = vmul.f32 %v1298, %v2548
        %v2561 = vmul.f32 %v1285, %v2548
        %v2562 = vmul.f32 %v1213, %v2548
        %v2563 = vmul.f32 %v1299, %v2548
        %v2564 = vmul.f32 %v1286, %v2548
        %v2565 = vmul.f32 %v1216, %v2548
        %v2566 = vmul.f32 %v1300, %v2548
        %v2567 = vmul.f32 %v1287, %v2548
        %v2568 = vmul.f32 %v1219, %v2548
        %v2569 = vmul.f32 %v1301, %v2548
        %v2570 = vmul.f32 %v1288, %v2548
        %v2571 = vmul.f32 %v1222, %v2548
        %v2572 = vmul.f32 %v1302, %v2548
        %v2597 = vrot.slane %v2549, 2
        %v2598 = vrot.slane %v2550, 2
        %v2599 = vsel %vm2472, %v2597, %v2598
        %v2600 = vrot.slane %v2551, 2
        %v2601 = vsel %vm2472, %v2598, %v2600
        %v2602 = vrot.slane %v2552, 2
        %v2603 = vrot.slane %v2553, 2
        %v2604 = vsel %vm2472, %v2602, %v2603
        %v2605 = vrot.slane %v2554, 2
        %v2606 = vsel %vm2472, %v2603, %v2605
        %v2607 = vrot.slane %v2555, 2
        %v2608 = vrot.slane %v2556, 2
        %v2609 = vsel %vm2472, %v2607, %v2608
        %v2610 = vrot.slane %v2557, 2
        %v2611 = vsel %vm2472, %v2608, %v2610
        %v2612 = vrot.slane %v2558, 2
        %v2613 = vrot.slane %v2559, 2
        %v2614 = vsel %vm2472, %v2612, %v2613
        %v2615 = vrot.slane %v2560, 2
        %v2616 = vsel %vm2472, %v2613, %v2615
        %v2617 = vrot.slane %v2561, 2
        %v2618 = vrot.slane %v2562, 2
        %v2619 = vsel %vm2472, %v2617, %v2618
        %v2620 = vrot.slane %v2563, 2
        %v2621 = vsel %vm2472, %v2618, %v2620
        %v2622 = vrot.slane %v2564, 2
        %v2623 = vrot.slane %v2565, 2
        %v2624 = vsel %vm2472, %v2622, %v2623
        %v2625 = vrot.slane %v2566, 2
        %v2626 = vsel %vm2472, %v2623, %v2625
        %v2627 = vrot.slane %v2567, 2
        %v2628 = vrot.slane %v2568, 2
        %v2629 = vsel %vm2472, %v2627, %v2628
        %v2630 = vrot.slane %v2569, 2
        %v2631 = vsel %vm2472, %v2628, %v2630
        %v2632 = vrot.slane %v2570, 2
        %v2633 = vrot.slane %v2571, 2
        %v2634 = vsel %vm2472, %v2632, %v2633
        %v2635 = vrot.slane %v2572, 2
        %v2636 = vsel %vm2472, %v2633, %v2635
        %v2653 = vadd.f32 %v2529, %v2599
        %v2654 = vadd.f32 %v2530, %v2601
        %v2655 = vadd.f32 %v2531, %v2604
        %v2656 = vadd.f32 %v2532, %v2606
        %v2657 = vadd.f32 %v2533, %v2609
        %v2658 = vadd.f32 %v2534, %v2611
        %v2659 = vadd.f32 %v2535, %v2614
        %v2660 = vadd.f32 %v2536, %v2616
        %v2661 = vadd.f32 %v2537, %v2619
        %v2662 = vadd.f32 %v2538, %v2621
        %v2663 = vadd.f32 %v2539, %v2624
        %v2664 = vadd.f32 %v2540, %v2626
        %v2665 = vadd.f32 %v2541, %v2629
        %v2666 = vadd.f32 %v2542, %v2631
        %v2667 = vadd.f32 %v2543, %v2634
        %v2668 = vadd.f32 %v2544, %v2636
        %v2669 = vlaneseq
        %v2670 = vshrl.u32 %v2669, 7
        %v2671 = vsub.s32 0, %v2670
        %v2672 = vrot.slane %v1310, %v2671
        %v2673 = vmul.f32 %v1282, %v2672
        %v2674 = vmul.f32 %v1204, %v2672
        %v2675 = vmul.f32 %v1296, %v2672
        %v2676 = vmul.f32 %v1283, %v2672
        %v2677 = vmul.f32 %v1207, %v2672
        %v2678 = vmul.f32 %v1297, %v2672
        %v2679 = vmul.f32 %v1284, %v2672
        %v2680 = vmul.f32 %v1210, %v2672
        %v2681 = vmul.f32 %v1298, %v2672
        %v2682 = vmul.f32 %v1285, %v2672
        %v2683 = vmul.f32 %v1213, %v2672
        %v2684 = vmul.f32 %v1299, %v2672
        %v2685 = vmul.f32 %v1286, %v2672
        %v2686 = vmul.f32 %v1216, %v2672
        %v2687 = vmul.f32 %v1300, %v2672
        %v2688 = vmul.f32 %v1287, %v2672
        %v2689 = vmul.f32 %v1219, %v2672
        %v2690 = vmul.f32 %v1301, %v2672
        %v2691 = vmul.f32 %v1288, %v2672
        %v2692 = vmul.f32 %v1222, %v2672
        %v2693 = vmul.f32 %v1302, %v2672
        %v2694 = vmul.f32 %v1289, %v2672
        %v2695 = vmul.f32 %v1225, %v2672
        %v2696 = vmul.f32 %v1303, %v2672
        %v2721 = vrot.slane %v2673, 2
        %v2722 = vrot.slane %v2674, 2
        %v2723 = vsel %vm2472, %v2721, %v2722
        %v2724 = vrot.slane %v2675, 2
        %v2725 = vsel %vm2472, %v2722, %v2724
        %v2726 = vrot.slane %v2676, 2
        %v2727 = vrot.slane %v2677, 2
        %v2728 = vsel %vm2472, %v2726, %v2727
        %v2729 = vrot.slane %v2678, 2
        %v2730 = vsel %vm2472, %v2727, %v2729
        %v2731 = vrot.slane %v2679, 2
        %v2732 = vrot.slane %v2680, 2
        %v2733 = vsel %vm2472, %v2731, %v2732
        %v2734 = vrot.slane %v2681, 2
        %v2735 = vsel %vm2472, %v2732, %v2734
        %v2736 = vrot.slane %v2682, 2
        %v2737 = vrot.slane %v2683, 2
        %v2738 = vsel %vm2472, %v2736, %v2737
        %v2739 = vrot.slane %v2684, 2
        %v2740 = vsel %vm2472, %v2737, %v2739
        %v2741 = vrot.slane %v2685, 2
        %v2742 = vrot.slane %v2686, 2
        %v2743 = vsel %vm2472, %v2741, %v2742
        %v2744 = vrot.slane %v2687, 2
        %v2745 = vsel %vm2472, %v2742, %v2744
        %v2746 = vrot.slane %v2688, 2
        %v2747 = vrot.slane %v2689, 2
        %v2748 = vsel %vm2472, %v2746, %v2747
        %v2749 = vrot.slane %v2690, 2
        %v2750 = vsel %vm2472, %v2747, %v2749
        %v2751 = vrot.slane %v2691, 2
        %v2752 = vrot.slane %v2692, 2
        %v2753 = vsel %vm2472, %v2751, %v2752
        %v2754 = vrot.slane %v2693, 2
        %v2755 = vsel %vm2472, %v2752, %v2754
        %v2756 = vrot.slane %v2694, 2
        %v2757 = vrot.slane %v2695, 2
        %v2758 = vsel %vm2472, %v2756, %v2757
        %v2759 = vrot.slane %v2696, 2
        %v2760 = vsel %vm2472, %v2757, %v2759
        %v2777 = vadd.f32 %v2653, %v2723
        %v2778 = vadd.f32 %v2654, %v2725
        %v2779 = vadd.f32 %v2655, %v2728
        %v2780 = vadd.f32 %v2656, %v2730
        %v2781 = vadd.f32 %v2657, %v2733
        %v2782 = vadd.f32 %v2658, %v2735
        %v2783 = vadd.f32 %v2659, %v2738
        %v2784 = vadd.f32 %v2660, %v2740
        %v2785 = vadd.f32 %v2661, %v2743
        %v2786 = vadd.f32 %v2662, %v2745
        %v2787 = vadd.f32 %v2663, %v2748
        %v2788 = vadd.f32 %v2664, %v2750
        %v2789 = vadd.f32 %v2665, %v2753
        %v2790 = vadd.f32 %v2666, %v2755
        %v2791 = vadd.f32 %v2667, %v2758
        %v2792 = vadd.f32 %v2668, %v2760
        %v2793 = vlaneseq
        %v2794 = vshrl.u32 %v2793, 7
        %v2795 = vsub.s32 7, %v2794
        %v2796 = vrot.slane %v1310, %v2795
        %v2797 = vmul.f32 %v1283, %v2796
        %v2798 = vmul.f32 %v1207, %v2796
        %v2799 = vmul.f32 %v1297, %v2796
        %v2800 = vmul.f32 %v1284, %v2796
        %v2801 = vmul.f32 %v1210, %v2796
        %v2802 = vmul.f32 %v1298, %v2796
        %v2803 = vmul.f32 %v1285, %v2796
        %v2804 = vmul.f32 %v1213, %v2796
        %v2805 = vmul.f32 %v1299, %v2796
        %v2806 = vmul.f32 %v1286, %v2796
        %v2807 = vmul.f32 %v1216, %v2796
        %v2808 = vmul.f32 %v1300, %v2796
        %v2809 = vmul.f32 %v1287, %v2796
        %v2810 = vmul.f32 %v1219, %v2796
        %v2811 = vmul.f32 %v1301, %v2796
        %v2812 = vmul.f32 %v1288, %v2796
        %v2813 = vmul.f32 %v1222, %v2796
        %v2814 = vmul.f32 %v1302, %v2796
        %v2815 = vmul.f32 %v1289, %v2796
        %v2816 = vmul.f32 %v1225, %v2796
        %v2817 = vmul.f32 %v1303, %v2796
        %v2818 = vmul.f32 %v1290, %v2796
        %v2819 = vmul.f32 %v1228, %v2796
        %v2820 = vmul.f32 %v1304, %v2796
        %v2845 = vrot.slane %v2797, 2
        %v2846 = vrot.slane %v2798, 2
        %v2847 = vsel %vm2472, %v2845, %v2846
        %v2848 = vrot.slane %v2799, 2
        %v2849 = vsel %vm2472, %v2846, %v2848
        %v2850 = vrot.slane %v2800, 2
        %v2851 = vrot.slane %v2801, 2
        %v2852 = vsel %vm2472, %v2850, %v2851
        %v2853 = vrot.slane %v2802, 2
        %v2854 = vsel %vm2472, %v2851, %v2853
        %v2855 = vrot.slane %v2803, 2
        %v2856 = vrot.slane %v2804, 2
        %v2857 = vsel %vm2472, %v2855, %v2856
        %v2858 = vrot.slane %v2805, 2
        %v2859 = vsel %vm2472, %v2856, %v2858
        %v2860 = vrot.slane %v2806, 2
        %v2861 = vrot.slane %v2807, 2
        %v2862 = vsel %vm2472, %v2860, %v2861
        %v2863 = vrot.slane %v2808, 2
        %v2864 = vsel %vm2472, %v2861, %v2863
        %v2865 = vrot.slane %v2809, 2
        %v2866 = vrot.slane %v2810, 2
        %v2867 = vsel %vm2472, %v2865, %v2866
        %v2868 = vrot.slane %v2811, 2
        %v2869 = vsel %vm2472, %v2866, %v2868
        %v2870 = vrot.slane %v2812, 2
        %v2871 = vrot.slane %v2813, 2
        %v2872 = vsel %vm2472, %v2870, %v2871
        %v2873 = vrot.slane %v2814, 2
        %v2874 = vsel %vm2472, %v2871, %v2873
        %v2875 = vrot.slane %v2815, 2
        %v2876 = vrot.slane %v2816, 2
        %v2877 = vsel %vm2472, %v2875, %v2876
        %v2878 = vrot.slane %v2817, 2
        %v2879 = vsel %vm2472, %v2876, %v2878
        %v2880 = vrot.slane %v2818, 2
        %v2881 = vrot.slane %v2819, 2
        %v2882 = vsel %vm2472, %v2880, %v2881
        %v2883 = vrot.slane %v2820, 2
        %v2884 = vsel %vm2472, %v2881, %v2883
        %v2901 = vadd.f32 %v2777, %v2847
        %v2902 = vadd.f32 %v2778, %v2849
        %v2903 = vadd.f32 %v2779, %v2852
        %v2904 = vadd.f32 %v2780, %v2854
        %v2905 = vadd.f32 %v2781, %v2857
        %v2906 = vadd.f32 %v2782, %v2859
        %v2907 = vadd.f32 %v2783, %v2862
        %v2908 = vadd.f32 %v2784, %v2864
        %v2909 = vadd.f32 %v2785, %v2867
        %v2910 = vadd.f32 %v2786, %v2869
        %v2911 = vadd.f32 %v2787, %v2872
        %v2912 = vadd.f32 %v2788, %v2874
        %v2913 = vadd.f32 %v2789, %v2877
        %v2914 = vadd.f32 %v2790, %v2879
        %v2915 = vadd.f32 %v2791, %v2882
        %v2916 = vadd.f32 %v2792, %v2884
        %v2917 = vlaneseq
        %v2918 = vshrl.u32 %v2917, 7
        %v2919 = vsub.s32 6, %v2918
        %v2920 = vrot.slane %v1311, %v2919
        %v2921 = vmul.f32 %v1284, %v2920
        %v2922 = vmul.f32 %v1210, %v2920
        %v2923 = vmul.f32 %v1298, %v2920
        %v2924 = vmul.f32 %v1285, %v2920
        %v2925 = vmul.f32 %v1213, %v2920
        %v2926 = vmul.f32 %v1299, %v2920
        %v2927 = vmul.f32 %v1286, %v2920
        %v2928 = vmul.f32 %v1216, %v2920
        %v2929 = vmul.f32 %v1300, %v2920
        %v2930 = vmul.f32 %v1287, %v2920
        %v2931 = vmul.f32 %v1219, %v2920
        %v2932 = vmul.f32 %v1301, %v2920
        %v2933 = vmul.f32 %v1288, %v2920
        %v2934 = vmul.f32 %v1222, %v2920
        %v2935 = vmul.f32 %v1302, %v2920
        %v2936 = vmul.f32 %v1289, %v2920
        %v2937 = vmul.f32 %v1225, %v2920
        %v2938 = vmul.f32 %v1303, %v2920
        %v2939 = vmul.f32 %v1290, %v2920
        %v2940 = vmul.f32 %v1228, %v2920
        %v2941 = vmul.f32 %v1304, %v2920
        %v2942 = vmul.f32 %v1291, %v2920
        %v2943 = vmul.f32 %v1231, %v2920
        %v2944 = vmul.f32 %v1305, %v2920
        %v2969 = vrot.slane %v2921, 2
        %v2970 = vrot.slane %v2922, 2
        %v2971 = vsel %vm2472, %v2969, %v2970
        %v2972 = vrot.slane %v2923, 2
        %v2973 = vsel %vm2472, %v2970, %v2972
        %v2974 = vrot.slane %v2924, 2
        %v2975 = vrot.slane %v2925, 2
        %v2976 = vsel %vm2472, %v2974, %v2975
        %v2977 = vrot.slane %v2926, 2
        %v2978 = vsel %vm2472, %v2975, %v2977
        %v2979 = vrot.slane %v2927, 2
        %v2980 = vrot.slane %v2928, 2
        %v2981 = vsel %vm2472, %v2979, %v2980
        %v2982 = vrot.slane %v2929, 2
        %v2983 = vsel %vm2472, %v2980, %v2982
        %v2984 = vrot.slane %v2930, 2
        %v2985 = vrot.slane %v2931, 2
        %v2986 = vsel %vm2472, %v2984, %v2985
        %v2987 = vrot.slane %v2932, 2
        %v2988 = vsel %vm2472, %v2985, %v2987
        %v2989 = vrot.slane %v2933, 2
        %v2990 = vrot.slane %v2934, 2
        %v2991 = vsel %vm2472, %v2989, %v2990
        %v2992 = vrot.slane %v2935, 2
        %v2993 = vsel %vm2472, %v2990, %v2992
        %v2994 = vrot.slane %v2936, 2
        %v2995 = vrot.slane %v2937, 2
        %v2996 = vsel %vm2472, %v2994, %v2995
        %v2997 = vrot.slane %v2938, 2
        %v2998 = vsel %vm2472, %v2995, %v2997
        %v2999 = vrot.slane %v2939, 2
        %v3000 = vrot.slane %v2940, 2
        %v3001 = vsel %vm2472, %v2999, %v3000
        %v3002 = vrot.slane %v2941, 2
        %v3003 = vsel %vm2472, %v3000, %v3002
        %v3004 = vrot.slane %v2942, 2
        %v3005 = vrot.slane %v2943, 2
        %v3006 = vsel %vm2472, %v3004, %v3005
        %v3007 = vrot.slane %v2944, 2
        %v3008 = vsel %vm2472, %v3005, %v3007
        %v3025 = vadd.f32 %v2901, %v2971
        %v3026 = vadd.f32 %v2902, %v2973
        %v3027 = vadd.f32 %v2903, %v2976
        %v3028 = vadd.f32 %v2904, %v2978
        %v3029 = vadd.f32 %v2905, %v2981
        %v3030 = vadd.f32 %v2906, %v2983
        %v3031 = vadd.f32 %v2907, %v2986
        %v3032 = vadd.f32 %v2908, %v2988
        %v3033 = vadd.f32 %v2909, %v2991
        %v3034 = vadd.f32 %v2910, %v2993
        %v3035 = vadd.f32 %v2911, %v2996
        %v3036 = vadd.f32 %v2912, %v2998
        %v3037 = vadd.f32 %v2913, %v3001
        %v3038 = vadd.f32 %v2914, %v3003
        %v3039 = vadd.f32 %v2915, %v3006
        %v3040 = vadd.f32 %v2916, %v3008
        %v3041 = vlaneseq
        %v3042 = vshrl.u32 %v3041, 7
        %v3043 = vsub.s32 5, %v3042
        %v3044 = vrot.slane %v1312, %v3043
        %v3045 = vmul.f32 %v1285, %v3044
        %v3046 = vmul.f32 %v1213, %v3044
        %v3047 = vmul.f32 %v1299, %v3044
        %v3048 = vmul.f32 %v1286, %v3044
        %v3049 = vmul.f32 %v1216, %v3044
        %v3050 = vmul.f32 %v1300, %v3044
        %v3051 = vmul.f32 %v1287, %v3044
        %v3052 = vmul.f32 %v1219, %v3044
        %v3053 = vmul.f32 %v1301, %v3044
        %v3054 = vmul.f32 %v1288, %v3044
        %v3055 = vmul.f32 %v1222, %v3044
        %v3056 = vmul.f32 %v1302, %v3044
        %v3057 = vmul.f32 %v1289, %v3044
        %v3058 = vmul.f32 %v1225, %v3044
        %v3059 = vmul.f32 %v1303, %v3044
        %v3060 = vmul.f32 %v1290, %v3044
        %v3061 = vmul.f32 %v1228, %v3044
        %v3062 = vmul.f32 %v1304, %v3044
        %v3063 = vmul.f32 %v1291, %v3044
        %v3064 = vmul.f32 %v1231, %v3044
        %v3065 = vmul.f32 %v1305, %v3044
        %v3066 = vmul.f32 %v1292, %v3044
        %v3067 = vmul.f32 %v1234, %v3044
        %v3068 = vmul.f32 %v1306, %v3044
        %v3093 = vrot.slane %v3045, 2
        %v3094 = vrot.slane %v3046, 2
        %v3095 = vsel %vm2472, %v3093, %v3094
        %v3096 = vrot.slane %v3047, 2
        %v3097 = vsel %vm2472, %v3094, %v3096
        %v3098 = vrot.slane %v3048, 2
        %v3099 = vrot.slane %v3049, 2
        %v3100 = vsel %vm2472, %v3098, %v3099
        %v3101 = vrot.slane %v3050, 2
        %v3102 = vsel %vm2472, %v3099, %v3101
        %v3103 = vrot.slane %v3051, 2
        %v3104 = vrot.slane %v3052, 2
        %v3105 = vsel %vm2472, %v3103, %v3104
        %v3106 = vrot.slane %v3053, 2
        %v3107 = vsel %vm2472, %v3104, %v3106
        %v3108 = vrot.slane %v3054, 2
        %v3109 = vrot.slane %v3055, 2
        %v3110 = vsel %vm2472, %v3108, %v3109
        %v3111 = vrot.slane %v3056, 2
        %v3112 = vsel %vm2472, %v3109, %v3111
        %v3113 = vrot.slane %v3057, 2
        %v3114 = vrot.slane %v3058, 2
        %v3115 = vsel %vm2472, %v3113, %v3114
        %v3116 = vrot.slane %v3059, 2
        %v3117 = vsel %vm2472, %v3114, %v3116
        %v3118 = vrot.slane %v3060, 2
        %v3119 = vrot.slane %v3061, 2
        %v3120 = vsel %vm2472, %v3118, %v3119
        %v3121 = vrot.slane %v3062, 2
        %v3122 = vsel %vm2472, %v3119, %v3121
        %v3123 = vrot.slane %v3063, 2
        %v3124 = vrot.slane %v3064, 2
        %v3125 = vsel %vm2472, %v3123, %v3124
        %v3126 = vrot.slane %v3065, 2
        %v3127 = vsel %vm2472, %v3124, %v3126
        %v3128 = vrot.slane %v3066, 2
        %v3129 = vrot.slane %v3067, 2
        %v3130 = vsel %vm2472, %v3128, %v3129
        %v3131 = vrot.slane %v3068, 2
        %v3132 = vsel %vm2472, %v3129, %v3131
        %v3149 = vadd.f32 %v3025, %v3095
        %v3150 = vadd.f32 %v3026, %v3097
        %v3151 = vadd.f32 %v3027, %v3100
        %v3152 = vadd.f32 %v3028, %v3102
        %v3153 = vadd.f32 %v3029, %v3105
        %v3154 = vadd.f32 %v3030, %v3107
        %v3155 = vadd.f32 %v3031, %v3110
        %v3156 = vadd.f32 %v3032, %v3112
        %v3157 = vadd.f32 %v3033, %v3115
        %v3158 = vadd.f32 %v3034, %v3117
        %v3159 = vadd.f32 %v3035, %v3120
        %v3160 = vadd.f32 %v3036, %v3122
        %v3161 = vadd.f32 %v3037, %v3125
        %v3162 = vadd.f32 %v3038, %v3127
        %v3163 = vadd.f32 %v3039, %v3130
        %v3164 = vadd.f32 %v3040, %v3132
        %v3165 = vlaneseq
        %v3166 = vshrl.u32 %v3165, 7
        %v3167 = vsub.s32 4, %v3166
        %v3168 = vrot.slane %v1313, %v3167
        %v3169 = vmul.f32 %v1286, %v3168
        %v3170 = vmul.f32 %v1216, %v3168
        %v3171 = vmul.f32 %v1300, %v3168
        %v3172 = vmul.f32 %v1287, %v3168
        %v3173 = vmul.f32 %v1219, %v3168
        %v3174 = vmul.f32 %v1301, %v3168
        %v3175 = vmul.f32 %v1288, %v3168
        %v3176 = vmul.f32 %v1222, %v3168
        %v3177 = vmul.f32 %v1302, %v3168
        %v3178 = vmul.f32 %v1289, %v3168
        %v3179 = vmul.f32 %v1225, %v3168
        %v3180 = vmul.f32 %v1303, %v3168
        %v3181 = vmul.f32 %v1290, %v3168
        %v3182 = vmul.f32 %v1228, %v3168
        %v3183 = vmul.f32 %v1304, %v3168
        %v3184 = vmul.f32 %v1291, %v3168
        %v3185 = vmul.f32 %v1231, %v3168
        %v3186 = vmul.f32 %v1305, %v3168
        %v3187 = vmul.f32 %v1292, %v3168
        %v3188 = vmul.f32 %v1234, %v3168
        %v3189 = vmul.f32 %v1306, %v3168
        %v3190 = vmul.f32 %v1293, %v3168
        %v3191 = vmul.f32 %v1237, %v3168
        %v3192 = vmul.f32 %v1307, %v3168
        %v3217 = vrot.slane %v3169, 2
        %v3218 = vrot.slane %v3170, 2
        %v3219 = vsel %vm2472, %v3217, %v3218
        %v3220 = vrot.slane %v3171, 2
        %v3221 = vsel %vm2472, %v3218, %v3220
        %v3222 = vrot.slane %v3172, 2
        %v3223 = vrot.slane %v3173, 2
        %v3224 = vsel %vm2472, %v3222, %v3223
        %v3225 = vrot.slane %v3174, 2
        %v3226 = vsel %vm2472, %v3223, %v3225
        %v3227 = vrot.slane %v3175, 2
        %v3228 = vrot.slane %v3176, 2
        %v3229 = vsel %vm2472, %v3227, %v3228
        %v3230 = vrot.slane %v3177, 2
        %v3231 = vsel %vm2472, %v3228, %v3230
        %v3232 = vrot.slane %v3178, 2
        %v3233 = vrot.slane %v3179, 2
        %v3234 = vsel %vm2472, %v3232, %v3233
        %v3235 = vrot.slane %v3180, 2
        %v3236 = vsel %vm2472, %v3233, %v3235
        %v3237 = vrot.slane %v3181, 2
        %v3238 = vrot.slane %v3182, 2
        %v3239 = vsel %vm2472, %v3237, %v3238
        %v3240 = vrot.slane %v3183, 2
        %v3241 = vsel %vm2472, %v3238, %v3240
        %v3242 = vrot.slane %v3184, 2
        %v3243 = vrot.slane %v3185, 2
        %v3244 = vsel %vm2472, %v3242, %v3243
        %v3245 = vrot.slane %v3186, 2
        %v3246 = vsel %vm2472, %v3243, %v3245
        %v3247 = vrot.slane %v3187, 2
        %v3248 = vrot.slane %v3188, 2
        %v3249 = vsel %vm2472, %v3247, %v3248
        %v3250 = vrot.slane %v3189, 2
        %v3251 = vsel %vm2472, %v3248, %v3250
        %v3252 = vrot.slane %v3190, 2
        %v3253 = vrot.slane %v3191, 2
        %v3254 = vsel %vm2472, %v3252, %v3253
        %v3255 = vrot.slane %v3192, 2
        %v3256 = vsel %vm2472, %v3253, %v3255
        %v3273 = vadd.f32 %v3149, %v3219
        %v3274 = vadd.f32 %v3150, %v3221
        %v3275 = vadd.f32 %v3151, %v3224
        %v3276 = vadd.f32 %v3152, %v3226
        %v3277 = vadd.f32 %v3153, %v3229
        %v3278 = vadd.f32 %v3154, %v3231
        %v3279 = vadd.f32 %v3155, %v3234
        %v3280 = vadd.f32 %v3156, %v3236
        %v3281 = vadd.f32 %v3157, %v3239
        %v3282 = vadd.f32 %v3158, %v3241
        %v3283 = vadd.f32 %v3159, %v3244
        %v3284 = vadd.f32 %v3160, %v3246
        %v3285 = vadd.f32 %v3161, %v3249
        %v3286 = vadd.f32 %v3162, %v3251
        %v3287 = vadd.f32 %v3163, %v3254
        %v3288 = vadd.f32 %v3164, %v3256
        %v3289 = vlaneseq
        %v3290 = vshrl.u32 %v3289, 7
        %v3291 = vsub.s32 3, %v3290
        %v3292 = vrot.slane %v1308, %v3291
        %v3293 = vmul.f32 %v1280, %v3292
        %v3294 = vmul.f32 %v1198, %v3292
        %v3295 = vmul.f32 %v1294, %v3292
        %v3296 = vmul.f32 %v1281, %v3292
        %v3297 = vmul.f32 %v1201, %v3292
        %v3298 = vmul.f32 %v1295, %v3292
        %v3299 = vmul.f32 %v1282, %v3292
        %v3300 = vmul.f32 %v1204, %v3292
        %v3301 = vmul.f32 %v1296, %v3292
        %v3302 = vmul.f32 %v1283, %v3292
        %v3303 = vmul.f32 %v1207, %v3292
        %v3304 = vmul.f32 %v1297, %v3292
        %v3305 = vmul.f32 %v1284, %v3292
        %v3306 = vmul.f32 %v1210, %v3292
        %v3307 = vmul.f32 %v1298, %v3292
        %v3308 = vmul.f32 %v1285, %v3292
        %v3309 = vmul.f32 %v1213, %v3292
        %v3310 = vmul.f32 %v1299, %v3292
        %v3311 = vmul.f32 %v1286, %v3292
        %v3312 = vmul.f32 %v1216, %v3292
        %v3313 = vmul.f32 %v1300, %v3292
        %v3314 = vmul.f32 %v1287, %v3292
        %v3315 = vmul.f32 %v1219, %v3292
        %v3316 = vmul.f32 %v1301, %v3292
        %vm3341 = vcmask 1044480
        %v3342 = vrot.slane %v3293, 3
        %v3343 = vrot.slane %v3294, 3
        %v3344 = vsel %vm3341, %v3342, %v3343
        %v3345 = vrot.slane %v3295, 3
        %v3346 = vsel %vm3341, %v3343, %v3345
        %v3347 = vrot.slane %v3296, 3
        %v3348 = vrot.slane %v3297, 3
        %v3349 = vsel %vm3341, %v3347, %v3348
        %v3350 = vrot.slane %v3298, 3
        %v3351 = vsel %vm3341, %v3348, %v3350
        %v3352 = vrot.slane %v3299, 3
        %v3353 = vrot.slane %v3300, 3
        %v3354 = vsel %vm3341, %v3352, %v3353
        %v3355 = vrot.slane %v3301, 3
        %v3356 = vsel %vm3341, %v3353, %v3355
        %v3357 = vrot.slane %v3302, 3
        %v3358 = vrot.slane %v3303, 3
        %v3359 = vsel %vm3341, %v3357, %v3358
        %v3360 = vrot.slane %v3304, 3
        %v3361 = vsel %vm3341, %v3358, %v3360
        %v3362 = vrot.slane %v3305, 3
        %v3363 = vrot.slane %v3306, 3
        %v3364 = vsel %vm3341, %v3362, %v3363
        %v3365 = vrot.slane %v3307, 3
        %v3366 = vsel %vm3341, %v3363, %v3365
        %v3367 = vrot.slane %v3308, 3
        %v3368 = vrot.slane %v3309, 3
        %v3369 = vsel %vm3341, %v3367, %v3368
        %v3370 = vrot.slane %v3310, 3
        %v3371 = vsel %vm3341, %v3368, %v3370
        %v3372 = vrot.slane %v3311, 3
        %v3373 = vrot.slane %v3312, 3
        %v3374 = vsel %vm3341, %v3372, %v3373
        %v3375 = vrot.slane %v3313, 3
        %v3376 = vsel %vm3341, %v3373, %v3375
        %v3377 = vrot.slane %v3314, 3
        %v3378 = vrot.slane %v3315, 3
        %v3379 = vsel %vm3341, %v3377, %v3378
        %v3380 = vrot.slane %v3316, 3
        %v3381 = vsel %vm3341, %v3378, %v3380
        %v3398 = vadd.f32 %v3273, %v3344
        %v3399 = vadd.f32 %v3274, %v3346
        %v3400 = vadd.f32 %v3275, %v3349
        %v3401 = vadd.f32 %v3276, %v3351
        %v3402 = vadd.f32 %v3277, %v3354
        %v3403 = vadd.f32 %v3278, %v3356
        %v3404 = vadd.f32 %v3279, %v3359
        %v3405 = vadd.f32 %v3280, %v3361
        %v3406 = vadd.f32 %v3281, %v3364
        %v3407 = vadd.f32 %v3282, %v3366
        %v3408 = vadd.f32 %v3283, %v3369
        %v3409 = vadd.f32 %v3284, %v3371
        %v3410 = vadd.f32 %v3285, %v3374
        %v3411 = vadd.f32 %v3286, %v3376
        %v3412 = vadd.f32 %v3287, %v3379
        %v3413 = vadd.f32 %v3288, %v3381
        %v3414 = vlaneseq
        %v3415 = vshrl.u32 %v3414, 7
        %v3416 = vsub.s32 2, %v3415
        %v3417 = vrot.slane %v1309, %v3416
        %v3418 = vmul.f32 %v1281, %v3417
        %v3419 = vmul.f32 %v1201, %v3417
        %v3420 = vmul.f32 %v1295, %v3417
        %v3421 = vmul.f32 %v1282, %v3417
        %v3422 = vmul.f32 %v1204, %v3417
        %v3423 = vmul.f32 %v1296, %v3417
        %v3424 = vmul.f32 %v1283, %v3417
        %v3425 = vmul.f32 %v1207, %v3417
        %v3426 = vmul.f32 %v1297, %v3417
        %v3427 = vmul.f32 %v1284, %v3417
        %v3428 = vmul.f32 %v1210, %v3417
        %v3429 = vmul.f32 %v1298, %v3417
        %v3430 = vmul.f32 %v1285, %v3417
        %v3431 = vmul.f32 %v1213, %v3417
        %v3432 = vmul.f32 %v1299, %v3417
        %v3433 = vmul.f32 %v1286, %v3417
        %v3434 = vmul.f32 %v1216, %v3417
        %v3435 = vmul.f32 %v1300, %v3417
        %v3436 = vmul.f32 %v1287, %v3417
        %v3437 = vmul.f32 %v1219, %v3417
        %v3438 = vmul.f32 %v1301, %v3417
        %v3439 = vmul.f32 %v1288, %v3417
        %v3440 = vmul.f32 %v1222, %v3417
        %v3441 = vmul.f32 %v1302, %v3417
        %v3466 = vrot.slane %v3418, 3
        %v3467 = vrot.slane %v3419, 3
        %v3468 = vsel %vm3341, %v3466, %v3467
        %v3469 = vrot.slane %v3420, 3
        %v3470 = vsel %vm3341, %v3467, %v3469
        %v3471 = vrot.slane %v3421, 3
        %v3472 = vrot.slane %v3422, 3
        %v3473 = vsel %vm3341, %v3471, %v3472
        %v3474 = vrot.slane %v3423, 3
        %v3475 = vsel %vm3341, %v3472, %v3474
        %v3476 = vrot.slane %v3424, 3
        %v3477 = vrot.slane %v3425, 3
        %v3478 = vsel %vm3341, %v3476, %v3477
        %v3479 = vrot.slane %v3426, 3
        %v3480 = vsel %vm3341, %v3477, %v3479
        %v3481 = vrot.slane %v3427, 3
        %v3482 = vrot.slane %v3428, 3
        %v3483 = vsel %vm3341, %v3481, %v3482
        %v3484 = vrot.slane %v3429, 3
        %v3485 = vsel %vm3341, %v3482, %v3484
        %v3486 = vrot.slane %v3430, 3
        %v3487 = vrot.slane %v3431, 3
        %v3488 = vsel %vm3341, %v3486, %v3487
        %v3489 = vrot.slane %v3432, 3
        %v3490 = vsel %vm3341, %v3487, %v3489
        %v3491 = vrot.slane %v3433, 3
        %v3492 = vrot.slane %v3434, 3
        %v3493 = vsel %vm3341, %v3491, %v3492
        %v3494 = vrot.slane %v3435, 3
        %v3495 = vsel %vm3341, %v3492, %v3494
        %v3496 = vrot.slane %v3436, 3
        %v3497 = vrot.slane %v3437, 3
        %v3498 = vsel %vm3341, %v3496, %v3497
        %v3499 = vrot.slane %v3438, 3
        %v3500 = vsel %vm3341, %v3497, %v3499
        %v3501 = vrot.slane %v3439, 3
        %v3502 = vrot.slane %v3440, 3
        %v3503 = vsel %vm3341, %v3501, %v3502
        %v3504 = vrot.slane %v3441, 3
        %v3505 = vsel %vm3341, %v3502, %v3504
        %v3522 = vadd.f32 %v3398, %v3468
        %v3523 = vadd.f32 %v3399, %v3470
        %v3524 = vadd.f32 %v3400, %v3473
        %v3525 = vadd.f32 %v3401, %v3475
        %v3526 = vadd.f32 %v3402, %v3478
        %v3527 = vadd.f32 %v3403, %v3480
        %v3528 = vadd.f32 %v3404, %v3483
        %v3529 = vadd.f32 %v3405, %v3485
        %v3530 = vadd.f32 %v3406, %v3488
        %v3531 = vadd.f32 %v3407, %v3490
        %v3532 = vadd.f32 %v3408, %v3493
        %v3533 = vadd.f32 %v3409, %v3495
        %v3534 = vadd.f32 %v3410, %v3498
        %v3535 = vadd.f32 %v3411, %v3500
        %v3536 = vadd.f32 %v3412, %v3503
        %v3537 = vadd.f32 %v3413, %v3505
        %v3538 = vlaneseq
        %v3539 = vshrl.u32 %v3538, 7
        %v3540 = vsub.s32 1, %v3539
        %v3541 = vrot.slane %v1310, %v3540
        %v3542 = vmul.f32 %v1282, %v3541
        %v3543 = vmul.f32 %v1204, %v3541
        %v3544 = vmul.f32 %v1296, %v3541
        %v3545 = vmul.f32 %v1283, %v3541
        %v3546 = vmul.f32 %v1207, %v3541
        %v3547 = vmul.f32 %v1297, %v3541
        %v3548 = vmul.f32 %v1284, %v3541
        %v3549 = vmul.f32 %v1210, %v3541
        %v3550 = vmul.f32 %v1298, %v3541
        %v3551 = vmul.f32 %v1285, %v3541
        %v3552 = vmul.f32 %v1213, %v3541
        %v3553 = vmul.f32 %v1299, %v3541
        %v3554 = vmul.f32 %v1286, %v3541
        %v3555 = vmul.f32 %v1216, %v3541
        %v3556 = vmul.f32 %v1300, %v3541
        %v3557 = vmul.f32 %v1287, %v3541
        %v3558 = vmul.f32 %v1219, %v3541
        %v3559 = vmul.f32 %v1301, %v3541
        %v3560 = vmul.f32 %v1288, %v3541
        %v3561 = vmul.f32 %v1222, %v3541
        %v3562 = vmul.f32 %v1302, %v3541
        %v3563 = vmul.f32 %v1289, %v3541
        %v3564 = vmul.f32 %v1225, %v3541
        %v3565 = vmul.f32 %v1303, %v3541
        %v3590 = vrot.slane %v3542, 3
        %v3591 = vrot.slane %v3543, 3
        %v3592 = vsel %vm3341, %v3590, %v3591
        %v3593 = vrot.slane %v3544, 3
        %v3594 = vsel %vm3341, %v3591, %v3593
        %v3595 = vrot.slane %v3545, 3
        %v3596 = vrot.slane %v3546, 3
        %v3597 = vsel %vm3341, %v3595, %v3596
        %v3598 = vrot.slane %v3547, 3
        %v3599 = vsel %vm3341, %v3596, %v3598
        %v3600 = vrot.slane %v3548, 3
        %v3601 = vrot.slane %v3549, 3
        %v3602 = vsel %vm3341, %v3600, %v3601
        %v3603 = vrot.slane %v3550, 3
        %v3604 = vsel %vm3341, %v3601, %v3603
        %v3605 = vrot.slane %v3551, 3
        %v3606 = vrot.slane %v3552, 3
        %v3607 = vsel %vm3341, %v3605, %v3606
        %v3608 = vrot.slane %v3553, 3
        %v3609 = vsel %vm3341, %v3606, %v3608
        %v3610 = vrot.slane %v3554, 3
        %v3611 = vrot.slane %v3555, 3
        %v3612 = vsel %vm3341, %v3610, %v3611
        %v3613 = vrot.slane %v3556, 3
        %v3614 = vsel %vm3341, %v3611, %v3613
        %v3615 = vrot.slane %v3557, 3
        %v3616 = vrot.slane %v3558, 3
        %v3617 = vsel %vm3341, %v3615, %v3616
        %v3618 = vrot.slane %v3559, 3
        %v3619 = vsel %vm3341, %v3616, %v3618
        %v3620 = vrot.slane %v3560, 3
        %v3621 = vrot.slane %v3561, 3
        %v3622 = vsel %vm3341, %v3620, %v3621
        %v3623 = vrot.slane %v3562, 3
        %v3624 = vsel %vm3341, %v3621, %v3623
        %v3625 = vrot.slane %v3563, 3
        %v3626 = vrot.slane %v3564, 3
        %v3627 = vsel %vm3341, %v3625, %v3626
        %v3628 = vrot.slane %v3565, 3
        %v3629 = vsel %vm3341, %v3626, %v3628
        %v3646 = vadd.f32 %v3522, %v3592
        %v3647 = vadd.f32 %v3523, %v3594
        %v3648 = vadd.f32 %v3524, %v3597
        %v3649 = vadd.f32 %v3525, %v3599
        %v3650 = vadd.f32 %v3526, %v3602
        %v3651 = vadd.f32 %v3527, %v3604
        %v3652 = vadd.f32 %v3528, %v3607
        %v3653 = vadd.f32 %v3529, %v3609
        %v3654 = vadd.f32 %v3530, %v3612
        %v3655 = vadd.f32 %v3531, %v3614
        %v3656 = vadd.f32 %v3532, %v3617
        %v3657 = vadd.f32 %v3533, %v3619
        %v3658 = vadd.f32 %v3534, %v3622
        %v3659 = vadd.f32 %v3535, %v3624
        %v3660 = vadd.f32 %v3536, %v3627
        %v3661 = vadd.f32 %v3537, %v3629
        %v3662 = vlaneseq
        %v3663 = vshrl.u32 %v3662, 7
        %v3664 = vsub.s32 0, %v3663
        %v3665 = vrot.slane %v1311, %v3664
        %v3666 = vmul.f32 %v1283, %v3665
        %v3667 = vmul.f32 %v1207, %v3665
        %v3668 = vmul.f32 %v1297, %v3665
        %v3669 = vmul.f32 %v1284, %v3665
        %v3670 = vmul.f32 %v1210, %v3665
        %v3671 = vmul.f32 %v1298, %v3665
        %v3672 = vmul.f32 %v1285, %v3665
        %v3673 = vmul.f32 %v1213, %v3665
        %v3674 = vmul.f32 %v1299, %v3665
        %v3675 = vmul.f32 %v1286, %v3665
        %v3676 = vmul.f32 %v1216, %v3665
        %v3677 = vmul.f32 %v1300, %v3665
        %v3678 = vmul.f32 %v1287, %v3665
        %v3679 = vmul.f32 %v1219, %v3665
        %v3680 = vmul.f32 %v1301, %v3665
        %v3681 = vmul.f32 %v1288, %v3665
        %v3682 = vmul.f32 %v1222, %v3665
        %v3683 = vmul.f32 %v1302, %v3665
        %v3684 = vmul.f32 %v1289, %v3665
        %v3685 = vmul.f32 %v1225, %v3665
        %v3686 = vmul.f32 %v1303, %v3665
        %v3687 = vmul.f32 %v1290, %v3665
        %v3688 = vmul.f32 %v1228, %v3665
        %v3689 = vmul.f32 %v1304, %v3665
        %v3714 = vrot.slane %v3666, 3
        %v3715 = vrot.slane %v3667, 3
        %v3716 = vsel %vm3341, %v3714, %v3715
        %v3717 = vrot.slane %v3668, 3
        %v3718 = vsel %vm3341, %v3715, %v3717
        %v3719 = vrot.slane %v3669, 3
        %v3720 = vrot.slane %v3670, 3
        %v3721 = vsel %vm3341, %v3719, %v3720
        %v3722 = vrot.slane %v3671, 3
        %v3723 = vsel %vm3341, %v3720, %v3722
        %v3724 = vrot.slane %v3672, 3
        %v3725 = vrot.slane %v3673, 3
        %v3726 = vsel %vm3341, %v3724, %v3725
        %v3727 = vrot.slane %v3674, 3
        %v3728 = vsel %vm3341, %v3725, %v3727
        %v3729 = vrot.slane %v3675, 3
        %v3730 = vrot.slane %v3676, 3
        %v3731 = vsel %vm3341, %v3729, %v3730
        %v3732 = vrot.slane %v3677, 3
        %v3733 = vsel %vm3341, %v3730, %v3732
        %v3734 = vrot.slane %v3678, 3
        %v3735 = vrot.slane %v3679, 3
        %v3736 = vsel %vm3341, %v3734, %v3735
        %v3737 = vrot.slane %v3680, 3
        %v3738 = vsel %vm3341, %v3735, %v3737
        %v3739 = vrot.slane %v3681, 3
        %v3740 = vrot.slane %v3682, 3
        %v3741 = vsel %vm3341, %v3739, %v3740
        %v3742 = vrot.slane %v3683, 3
        %v3743 = vsel %vm3341, %v3740, %v3742
        %v3744 = vrot.slane %v3684, 3
        %v3745 = vrot.slane %v3685, 3
        %v3746 = vsel %vm3341, %v3744, %v3745
        %v3747 = vrot.slane %v3686, 3
        %v3748 = vsel %vm3341, %v3745, %v3747
        %v3749 = vrot.slane %v3687, 3
        %v3750 = vrot.slane %v3688, 3
        %v3751 = vsel %vm3341, %v3749, %v3750
        %v3752 = vrot.slane %v3689, 3
        %v3753 = vsel %vm3341, %v3750, %v3752
        %v3770 = vadd.f32 %v3646, %v3716
        %v3771 = vadd.f32 %v3647, %v3718
        %v3772 = vadd.f32 %v3648, %v3721
        %v3773 = vadd.f32 %v3649, %v3723
        %v3774 = vadd.f32 %v3650, %v3726
        %v3775 = vadd.f32 %v3651, %v3728
        %v3776 = vadd.f32 %v3652, %v3731
        %v3777 = vadd.f32 %v3653, %v3733
        %v3778 = vadd.f32 %v3654, %v3736
        %v3779 = vadd.f32 %v3655, %v3738
        %v3780 = vadd.f32 %v3656, %v3741
        %v3781 = vadd.f32 %v3657, %v3743
        %v3782 = vadd.f32 %v3658, %v3746
        %v3783 = vadd.f32 %v3659, %v3748
        %v3784 = vadd.f32 %v3660, %v3751
        %v3785 = vadd.f32 %v3661, %v3753
        %v3786 = vlaneseq
        %v3787 = vshrl.u32 %v3786, 7
        %v3788 = vsub.s32 7, %v3787
        %v3789 = vrot.slane %v1311, %v3788
        %v3790 = vmul.f32 %v1284, %v3789
        %v3791 = vmul.f32 %v1210, %v3789
        %v3792 = vmul.f32 %v1298, %v3789
        %v3793 = vmul.f32 %v1285, %v3789
        %v3794 = vmul.f32 %v1213, %v3789
        %v3795 = vmul.f32 %v1299, %v3789
        %v3796 = vmul.f32 %v1286, %v3789
        %v3797 = vmul.f32 %v1216, %v3789
        %v3798 = vmul.f32 %v1300, %v3789
        %v3799 = vmul.f32 %v1287, %v3789
        %v3800 = vmul.f32 %v1219, %v3789
        %v3801 = vmul.f32 %v1301, %v3789
        %v3802 = vmul.f32 %v1288, %v3789
        %v3803 = vmul.f32 %v1222, %v3789
        %v3804 = vmul.f32 %v1302, %v3789
        %v3805 = vmul.f32 %v1289, %v3789
        %v3806 = vmul.f32 %v1225, %v3789
        %v3807 = vmul.f32 %v1303, %v3789
        %v3808 = vmul.f32 %v1290, %v3789
        %v3809 = vmul.f32 %v1228, %v3789
        %v3810 = vmul.f32 %v1304, %v3789
        %v3811 = vmul.f32 %v1291, %v3789
        %v3812 = vmul.f32 %v1231, %v3789
        %v3813 = vmul.f32 %v1305, %v3789
        %v3838 = vrot.slane %v3790, 3
        %v3839 = vrot.slane %v3791, 3
        %v3840 = vsel %vm3341, %v3838, %v3839
        %v3841 = vrot.slane %v3792, 3
        %v3842 = vsel %vm3341, %v3839, %v3841
        %v3843 = vrot.slane %v3793, 3
        %v3844 = vrot.slane %v3794, 3
        %v3845 = vsel %vm3341, %v3843, %v3844
        %v3846 = vrot.slane %v3795, 3
        %v3847 = vsel %vm3341, %v3844, %v3846
        %v3848 = vrot.slane %v3796, 3
        %v3849 = vrot.slane %v3797, 3
        %v3850 = vsel %vm3341, %v3848, %v3849
        %v3851 = vrot.slane %v3798, 3
        %v3852 = vsel %vm3341, %v3849, %v3851
        %v3853 = vrot.slane %v3799, 3
        %v3854 = vrot.slane %v3800, 3
        %v3855 = vsel %vm3341, %v3853, %v3854
        %v3856 = vrot.slane %v3801, 3
        %v3857 = vsel %vm3341, %v3854, %v3856
        %v3858 = vrot.slane %v3802, 3
        %v3859 = vrot.slane %v3803, 3
        %v3860 = vsel %vm3341, %v3858, %v3859
        %v3861 = vrot.slane %v3804, 3
        %v3862 = vsel %vm3341, %v3859, %v3861
        %v3863 = vrot.slane %v3805, 3
        %v3864 = vrot.slane %v3806, 3
        %v3865 = vsel %vm3341, %v3863, %v3864
        %v3866 = vrot.slane %v3807, 3
        %v3867 = vsel %vm3341, %v3864, %v3866
        %v3868 = vrot.slane %v3808, 3
        %v3869 = vrot.slane %v3809, 3
        %v3870 = vsel %vm3341, %v3868, %v3869
        %v3871 = vrot.slane %v3810, 3
        %v3872 = vsel %vm3341, %v3869, %v3871
        %v3873 = vrot.slane %v3811, 3
        %v3874 = vrot.slane %v3812, 3
        %v3875 = vsel %vm3341, %v3873, %v3874
        %v3876 = vrot.slane %v3813, 3
        %v3877 = vsel %vm3341, %v3874, %v3876
        %v3894 = vadd.f32 %v3770, %v3840
        %v3895 = vadd.f32 %v3771, %v3842
        %v3896 = vadd.f32 %v3772, %v3845
        %v3897 = vadd.f32 %v3773, %v3847
        %v3898 = vadd.f32 %v3774, %v3850
        %v3899 = vadd.f32 %v3775, %v3852
        %v3900 = vadd.f32 %v3776, %v3855
        %v3901 = vadd.f32 %v3777, %v3857
        %v3902 = vadd.f32 %v3778, %v3860
        %v3903 = vadd.f32 %v3779, %v3862
        %v3904 = vadd.f32 %v3780, %v3865
        %v3905 = vadd.f32 %v3781, %v3867
        %v3906 = vadd.f32 %v3782, %v3870
        %v3907 = vadd.f32 %v3783, %v3872
        %v3908 = vadd.f32 %v3784, %v3875
        %v3909 = vadd.f32 %v3785, %v3877
        %v3910 = vlaneseq
        %v3911 = vshrl.u32 %v3910, 7
        %v3912 = vsub.s32 6, %v3911
        %v3913 = vrot.slane %v1312, %v3912
        %v3914 = vmul.f32 %v1285, %v3913
        %v3915 = vmul.f32 %v1213, %v3913
        %v3916 = vmul.f32 %v1299, %v3913
        %v3917 = vmul.f32 %v1286, %v3913
        %v3918 = vmul.f32 %v1216, %v3913
        %v3919 = vmul.f32 %v1300, %v3913
        %v3920 = vmul.f32 %v1287, %v3913
        %v3921 = vmul.f32 %v1219, %v3913
        %v3922 = vmul.f32 %v1301, %v3913
        %v3923 = vmul.f32 %v1288, %v3913
        %v3924 = vmul.f32 %v1222, %v3913
        %v3925 = vmul.f32 %v1302, %v3913
        %v3926 = vmul.f32 %v1289, %v3913
        %v3927 = vmul.f32 %v1225, %v3913
        %v3928 = vmul.f32 %v1303, %v3913
        %v3929 = vmul.f32 %v1290, %v3913
        %v3930 = vmul.f32 %v1228, %v3913
        %v3931 = vmul.f32 %v1304, %v3913
        %v3932 = vmul.f32 %v1291, %v3913
        %v3933 = vmul.f32 %v1231, %v3913
        %v3934 = vmul.f32 %v1305, %v3913
        %v3935 = vmul.f32 %v1292, %v3913
        %v3936 = vmul.f32 %v1234, %v3913
        %v3937 = vmul.f32 %v1306, %v3913
        %v3962 = vrot.slane %v3914, 3
        %v3963 = vrot.slane %v3915, 3
        %v3964 = vsel %vm3341, %v3962, %v3963
        %v3965 = vrot.slane %v3916, 3
        %v3966 = vsel %vm3341, %v3963, %v3965
        %v3967 = vrot.slane %v3917, 3
        %v3968 = vrot.slane %v3918, 3
        %v3969 = vsel %vm3341, %v3967, %v3968
        %v3970 = vrot.slane %v3919, 3
        %v3971 = vsel %vm3341, %v3968, %v3970
        %v3972 = vrot.slane %v3920, 3
        %v3973 = vrot.slane %v3921, 3
        %v3974 = vsel %vm3341, %v3972, %v3973
        %v3975 = vrot.slane %v3922, 3
        %v3976 = vsel %vm3341, %v3973, %v3975
        %v3977 = vrot.slane %v3923, 3
        %v3978 = vrot.slane %v3924, 3
        %v3979 = vsel %vm3341, %v3977, %v3978
        %v3980 = vrot.slane %v3925, 3
        %v3981 = vsel %vm3341, %v3978, %v3980
        %v3982 = vrot.slane %v3926, 3
        %v3983 = vrot.slane %v3927, 3
        %v3984 = vsel %vm3341, %v3982, %v3983
        %v3985 = vrot.slane %v3928, 3
        %v3986 = vsel %vm3341, %v3983, %v3985
        %v3987 = vrot.slane %v3929, 3
        %v3988 = vrot.slane %v3930, 3
        %v3989 = vsel %vm3341, %v3987, %v3988
        %v3990 = vrot.slane %v3931, 3
        %v3991 = vsel %vm3341, %v3988, %v3990
        %v3992 = vrot.slane %v3932, 3
        %v3993 = vrot.slane %v3933, 3
        %v3994 = vsel %vm3341, %v3992, %v3993
        %v3995 = vrot.slane %v3934, 3
        %v3996 = vsel %vm3341, %v3993, %v3995
        %v3997 = vrot.slane %v3935, 3
        %v3998 = vrot.slane %v3936, 3
        %v3999 = vsel %vm3341, %v3997, %v3998
        %v4000 = vrot.slane %v3937, 3
        %v4001 = vsel %vm3341, %v3998, %v4000
        %v4018 = vadd.f32 %v3894, %v3964
        %v4019 = vadd.f32 %v3895, %v3966
        %v4020 = vadd.f32 %v3896, %v3969
        %v4021 = vadd.f32 %v3897, %v3971
        %v4022 = vadd.f32 %v3898, %v3974
        %v4023 = vadd.f32 %v3899, %v3976
        %v4024 = vadd.f32 %v3900, %v3979
        %v4025 = vadd.f32 %v3901, %v3981
        %v4026 = vadd.f32 %v3902, %v3984
        %v4027 = vadd.f32 %v3903, %v3986
        %v4028 = vadd.f32 %v3904, %v3989
        %v4029 = vadd.f32 %v3905, %v3991
        %v4030 = vadd.f32 %v3906, %v3994
        %v4031 = vadd.f32 %v3907, %v3996
        %v4032 = vadd.f32 %v3908, %v3999
        %v4033 = vadd.f32 %v3909, %v4001
        %v4034 = vlaneseq
        %v4035 = vshrl.u32 %v4034, 7
        %v4036 = vsub.s32 5, %v4035
        %v4037 = vrot.slane %v1313, %v4036
        %v4038 = vmul.f32 %v1286, %v4037
        %v4039 = vmul.f32 %v1216, %v4037
        %v4040 = vmul.f32 %v1300, %v4037
        %v4041 = vmul.f32 %v1287, %v4037
        %v4042 = vmul.f32 %v1219, %v4037
        %v4043 = vmul.f32 %v1301, %v4037
        %v4044 = vmul.f32 %v1288, %v4037
        %v4045 = vmul.f32 %v1222, %v4037
        %v4046 = vmul.f32 %v1302, %v4037
        %v4047 = vmul.f32 %v1289, %v4037
        %v4048 = vmul.f32 %v1225, %v4037
        %v4049 = vmul.f32 %v1303, %v4037
        %v4050 = vmul.f32 %v1290, %v4037
        %v4051 = vmul.f32 %v1228, %v4037
        %v4052 = vmul.f32 %v1304, %v4037
        %v4053 = vmul.f32 %v1291, %v4037
        %v4054 = vmul.f32 %v1231, %v4037
        %v4055 = vmul.f32 %v1305, %v4037
        %v4056 = vmul.f32 %v1292, %v4037
        %v4057 = vmul.f32 %v1234, %v4037
        %v4058 = vmul.f32 %v1306, %v4037
        %v4059 = vmul.f32 %v1293, %v4037
        %v4060 = vmul.f32 %v1237, %v4037
        %v4061 = vmul.f32 %v1307, %v4037
        %v4086 = vrot.slane %v4038, 3
        %v4087 = vrot.slane %v4039, 3
        %v4088 = vsel %vm3341, %v4086, %v4087
        %v4089 = vrot.slane %v4040, 3
        %v4090 = vsel %vm3341, %v4087, %v4089
        %v4091 = vrot.slane %v4041, 3
        %v4092 = vrot.slane %v4042, 3
        %v4093 = vsel %vm3341, %v4091, %v4092
        %v4094 = vrot.slane %v4043, 3
        %v4095 = vsel %vm3341, %v4092, %v4094
        %v4096 = vrot.slane %v4044, 3
        %v4097 = vrot.slane %v4045, 3
        %v4098 = vsel %vm3341, %v4096, %v4097
        %v4099 = vrot.slane %v4046, 3
        %v4100 = vsel %vm3341, %v4097, %v4099
        %v4101 = vrot.slane %v4047, 3
        %v4102 = vrot.slane %v4048, 3
        %v4103 = vsel %vm3341, %v4101, %v4102
        %v4104 = vrot.slane %v4049, 3
        %v4105 = vsel %vm3341, %v4102, %v4104
        %v4106 = vrot.slane %v4050, 3
        %v4107 = vrot.slane %v4051, 3
        %v4108 = vsel %vm3341, %v4106, %v4107
        %v4109 = vrot.slane %v4052, 3
        %v4110 = vsel %vm3341, %v4107, %v4109
        %v4111 = vrot.slane %v4053, 3
        %v4112 = vrot.slane %v4054, 3
        %v4113 = vsel %vm3341, %v4111, %v4112
        %v4114 = vrot.slane %v4055, 3
        %v4115 = vsel %vm3341, %v4112, %v4114
        %v4116 = vrot.slane %v4056, 3
        %v4117 = vrot.slane %v4057, 3
        %v4118 = vsel %vm3341, %v4116, %v4117
        %v4119 = vrot.slane %v4058, 3
        %v4120 = vsel %vm3341, %v4117, %v4119
        %v4121 = vrot.slane %v4059, 3
        %v4122 = vrot.slane %v4060, 3
        %v4123 = vsel %vm3341, %v4121, %v4122
        %v4124 = vrot.slane %v4061, 3
        %v4125 = vsel %vm3341, %v4122, %v4124
        %v4142 = vadd.f32 %v4018, %v4088
        %v4143 = vadd.f32 %v4019, %v4090
        %v4144 = vadd.f32 %v4020, %v4093
        %v4145 = vadd.f32 %v4021, %v4095
        %v4146 = vadd.f32 %v4022, %v4098
        %v4147 = vadd.f32 %v4023, %v4100
        %v4148 = vadd.f32 %v4024, %v4103
        %v4149 = vadd.f32 %v4025, %v4105
        %v4150 = vadd.f32 %v4026, %v4108
        %v4151 = vadd.f32 %v4027, %v4110
        %v4152 = vadd.f32 %v4028, %v4113
        %v4153 = vadd.f32 %v4029, %v4115
        %v4154 = vadd.f32 %v4030, %v4118
        %v4155 = vadd.f32 %v4031, %v4120
        %v4156 = vadd.f32 %v4032, %v4123
        %v4157 = vadd.f32 %v4033, %v4125
        %v4158 = vlaneseq
        %v4159 = vshrl.u32 %v4158, 7
        %v4160 = vsub.s32 4, %v4159
        %v4161 = vrot.slane %v1308, %v4160
        %v4162 = vmul.f32 %v1280, %v4161
        %v4163 = vmul.f32 %v1198, %v4161
        %v4164 = vmul.f32 %v1294, %v4161
        %v4165 = vmul.f32 %v1281, %v4161
        %v4166 = vmul.f32 %v1201, %v4161
        %v4167 = vmul.f32 %v1295, %v4161
        %v4168 = vmul.f32 %v1282, %v4161
        %v4169 = vmul.f32 %v1204, %v4161
        %v4170 = vmul.f32 %v1296, %v4161
        %v4171 = vmul.f32 %v1283, %v4161
        %v4172 = vmul.f32 %v1207, %v4161
        %v4173 = vmul.f32 %v1297, %v4161
        %v4174 = vmul.f32 %v1284, %v4161
        %v4175 = vmul.f32 %v1210, %v4161
        %v4176 = vmul.f32 %v1298, %v4161
        %v4177 = vmul.f32 %v1285, %v4161
        %v4178 = vmul.f32 %v1213, %v4161
        %v4179 = vmul.f32 %v1299, %v4161
        %v4180 = vmul.f32 %v1286, %v4161
        %v4181 = vmul.f32 %v1216, %v4161
        %v4182 = vmul.f32 %v1300, %v4161
        %v4183 = vmul.f32 %v1287, %v4161
        %v4184 = vmul.f32 %v1219, %v4161
        %v4185 = vmul.f32 %v1301, %v4161
        %vm4210 = vcmask 1043456
        %v4211 = vrot.slane %v4162, 4
        %v4212 = vrot.slane %v4163, 4
        %v4213 = vsel %vm4210, %v4211, %v4212
        %v4214 = vrot.slane %v4164, 4
        %v4215 = vsel %vm4210, %v4212, %v4214
        %v4216 = vrot.slane %v4165, 4
        %v4217 = vrot.slane %v4166, 4
        %v4218 = vsel %vm4210, %v4216, %v4217
        %v4219 = vrot.slane %v4167, 4
        %v4220 = vsel %vm4210, %v4217, %v4219
        %v4221 = vrot.slane %v4168, 4
        %v4222 = vrot.slane %v4169, 4
        %v4223 = vsel %vm4210, %v4221, %v4222
        %v4224 = vrot.slane %v4170, 4
        %v4225 = vsel %vm4210, %v4222, %v4224
        %v4226 = vrot.slane %v4171, 4
        %v4227 = vrot.slane %v4172, 4
        %v4228 = vsel %vm4210, %v4226, %v4227
        %v4229 = vrot.slane %v4173, 4
        %v4230 = vsel %vm4210, %v4227, %v4229
        %v4231 = vrot.slane %v4174, 4
        %v4232 = vrot.slane %v4175, 4
        %v4233 = vsel %vm4210, %v4231, %v4232
        %v4234 = vrot.slane %v4176, 4
        %v4235 = vsel %vm4210, %v4232, %v4234
        %v4236 = vrot.slane %v4177, 4
        %v4237 = vrot.slane %v4178, 4
        %v4238 = vsel %vm4210, %v4236, %v4237
        %v4239 = vrot.slane %v4179, 4
        %v4240 = vsel %vm4210, %v4237, %v4239
        %v4241 = vrot.slane %v4180, 4
        %v4242 = vrot.slane %v4181, 4
        %v4243 = vsel %vm4210, %v4241, %v4242
        %v4244 = vrot.slane %v4182, 4
        %v4245 = vsel %vm4210, %v4242, %v4244
        %v4246 = vrot.slane %v4183, 4
        %v4247 = vrot.slane %v4184, 4
        %v4248 = vsel %vm4210, %v4246, %v4247
        %v4249 = vrot.slane %v4185, 4
        %v4250 = vsel %vm4210, %v4247, %v4249
        %v4267 = vadd.f32 %v4142, %v4213
        %v4268 = vadd.f32 %v4143, %v4215
        %v4269 = vadd.f32 %v4144, %v4218
        %v4270 = vadd.f32 %v4145, %v4220
        %v4271 = vadd.f32 %v4146, %v4223
        %v4272 = vadd.f32 %v4147, %v4225
        %v4273 = vadd.f32 %v4148, %v4228
        %v4274 = vadd.f32 %v4149, %v4230
        %v4275 = vadd.f32 %v4150, %v4233
        %v4276 = vadd.f32 %v4151, %v4235
        %v4277 = vadd.f32 %v4152, %v4238
        %v4278 = vadd.f32 %v4153, %v4240
        %v4279 = vadd.f32 %v4154, %v4243
        %v4280 = vadd.f32 %v4155, %v4245
        %v4281 = vadd.f32 %v4156, %v4248
        %v4282 = vadd.f32 %v4157, %v4250
        %v4283 = vlaneseq
        %v4284 = vshrl.u32 %v4283, 7
        %v4285 = vsub.s32 3, %v4284
        %v4286 = vrot.slane %v1309, %v4285
        %v4287 = vmul.f32 %v1281, %v4286
        %v4288 = vmul.f32 %v1201, %v4286
        %v4289 = vmul.f32 %v1295, %v4286
        %v4290 = vmul.f32 %v1282, %v4286
        %v4291 = vmul.f32 %v1204, %v4286
        %v4292 = vmul.f32 %v1296, %v4286
        %v4293 = vmul.f32 %v1283, %v4286
        %v4294 = vmul.f32 %v1207, %v4286
        %v4295 = vmul.f32 %v1297, %v4286
        %v4296 = vmul.f32 %v1284, %v4286
        %v4297 = vmul.f32 %v1210, %v4286
        %v4298 = vmul.f32 %v1298, %v4286
        %v4299 = vmul.f32 %v1285, %v4286
        %v4300 = vmul.f32 %v1213, %v4286
        %v4301 = vmul.f32 %v1299, %v4286
        %v4302 = vmul.f32 %v1286, %v4286
        %v4303 = vmul.f32 %v1216, %v4286
        %v4304 = vmul.f32 %v1300, %v4286
        %v4305 = vmul.f32 %v1287, %v4286
        %v4306 = vmul.f32 %v1219, %v4286
        %v4307 = vmul.f32 %v1301, %v4286
        %v4308 = vmul.f32 %v1288, %v4286
        %v4309 = vmul.f32 %v1222, %v4286
        %v4310 = vmul.f32 %v1302, %v4286
        %v4335 = vrot.slane %v4287, 4
        %v4336 = vrot.slane %v4288, 4
        %v4337 = vsel %vm4210, %v4335, %v4336
        %v4338 = vrot.slane %v4289, 4
        %v4339 = vsel %vm4210, %v4336, %v4338
        %v4340 = vrot.slane %v4290, 4
        %v4341 = vrot.slane %v4291, 4
        %v4342 = vsel %vm4210, %v4340, %v4341
        %v4343 = vrot.slane %v4292, 4
        %v4344 = vsel %vm4210, %v4341, %v4343
        %v4345 = vrot.slane %v4293, 4
        %v4346 = vrot.slane %v4294, 4
        %v4347 = vsel %vm4210, %v4345, %v4346
        %v4348 = vrot.slane %v4295, 4
        %v4349 = vsel %vm4210, %v4346, %v4348
        %v4350 = vrot.slane %v4296, 4
        %v4351 = vrot.slane %v4297, 4
        %v4352 = vsel %vm4210, %v4350, %v4351
        %v4353 = vrot.slane %v4298, 4
        %v4354 = vsel %vm4210, %v4351, %v4353
        %v4355 = vrot.slane %v4299, 4
        %v4356 = vrot.slane %v4300, 4
        %v4357 = vsel %vm4210, %v4355, %v4356
        %v4358 = vrot.slane %v4301, 4
        %v4359 = vsel %vm4210, %v4356, %v4358
        %v4360 = vrot.slane %v4302, 4
        %v4361 = vrot.slane %v4303, 4
        %v4362 = vsel %vm4210, %v4360, %v4361
        %v4363 = vrot.slane %v4304, 4
        %v4364 = vsel %vm4210, %v4361, %v4363
        %v4365 = vrot.slane %v4305, 4
        %v4366 = vrot.slane %v4306, 4
        %v4367 = vsel %vm4210, %v4365, %v4366
        %v4368 = vrot.slane %v4307, 4
        %v4369 = vsel %vm4210, %v4366, %v4368
        %v4370 = vrot.slane %v4308, 4
        %v4371 = vrot.slane %v4309, 4
        %v4372 = vsel %vm4210, %v4370, %v4371
        %v4373 = vrot.slane %v4310, 4
        %v4374 = vsel %vm4210, %v4371, %v4373
        %v4391 = vadd.f32 %v4267, %v4337
        %v4392 = vadd.f32 %v4268, %v4339
        %v4393 = vadd.f32 %v4269, %v4342
        %v4394 = vadd.f32 %v4270, %v4344
        %v4395 = vadd.f32 %v4271, %v4347
        %v4396 = vadd.f32 %v4272, %v4349
        %v4397 = vadd.f32 %v4273, %v4352
        %v4398 = vadd.f32 %v4274, %v4354
        %v4399 = vadd.f32 %v4275, %v4357
        %v4400 = vadd.f32 %v4276, %v4359
        %v4401 = vadd.f32 %v4277, %v4362
        %v4402 = vadd.f32 %v4278, %v4364
        %v4403 = vadd.f32 %v4279, %v4367
        %v4404 = vadd.f32 %v4280, %v4369
        %v4405 = vadd.f32 %v4281, %v4372
        %v4406 = vadd.f32 %v4282, %v4374
        %v4407 = vlaneseq
        %v4408 = vshrl.u32 %v4407, 7
        %v4409 = vsub.s32 2, %v4408
        %v4410 = vrot.slane %v1310, %v4409
        %v4411 = vmul.f32 %v1282, %v4410
        %v4412 = vmul.f32 %v1204, %v4410
        %v4413 = vmul.f32 %v1296, %v4410
        %v4414 = vmul.f32 %v1283, %v4410
        %v4415 = vmul.f32 %v1207, %v4410
        %v4416 = vmul.f32 %v1297, %v4410
        %v4417 = vmul.f32 %v1284, %v4410
        %v4418 = vmul.f32 %v1210, %v4410
        %v4419 = vmul.f32 %v1298, %v4410
        %v4420 = vmul.f32 %v1285, %v4410
        %v4421 = vmul.f32 %v1213, %v4410
        %v4422 = vmul.f32 %v1299, %v4410
        %v4423 = vmul.f32 %v1286, %v4410
        %v4424 = vmul.f32 %v1216, %v4410
        %v4425 = vmul.f32 %v1300, %v4410
        %v4426 = vmul.f32 %v1287, %v4410
        %v4427 = vmul.f32 %v1219, %v4410
        %v4428 = vmul.f32 %v1301, %v4410
        %v4429 = vmul.f32 %v1288, %v4410
        %v4430 = vmul.f32 %v1222, %v4410
        %v4431 = vmul.f32 %v1302, %v4410
        %v4432 = vmul.f32 %v1289, %v4410
        %v4433 = vmul.f32 %v1225, %v4410
        %v4434 = vmul.f32 %v1303, %v4410
        %v4459 = vrot.slane %v4411, 4
        %v4460 = vrot.slane %v4412, 4
        %v4461 = vsel %vm4210, %v4459, %v4460
        %v4462 = vrot.slane %v4413, 4
        %v4463 = vsel %vm4210, %v4460, %v4462
        %v4464 = vrot.slane %v4414, 4
        %v4465 = vrot.slane %v4415, 4
        %v4466 = vsel %vm4210, %v4464, %v4465
        %v4467 = vrot.slane %v4416, 4
        %v4468 = vsel %vm4210, %v4465, %v4467
        %v4469 = vrot.slane %v4417, 4
        %v4470 = vrot.slane %v4418, 4
        %v4471 = vsel %vm4210, %v4469, %v4470
        %v4472 = vrot.slane %v4419, 4
        %v4473 = vsel %vm4210, %v4470, %v4472
        %v4474 = vrot.slane %v4420, 4
        %v4475 = vrot.slane %v4421, 4
        %v4476 = vsel %vm4210, %v4474, %v4475
        %v4477 = vrot.slane %v4422, 4
        %v4478 = vsel %vm4210, %v4475, %v4477
        %v4479 = vrot.slane %v4423, 4
        %v4480 = vrot.slane %v4424, 4
        %v4481 = vsel %vm4210, %v4479, %v4480
        %v4482 = vrot.slane %v4425, 4
        %v4483 = vsel %vm4210, %v4480, %v4482
        %v4484 = vrot.slane %v4426, 4
        %v4485 = vrot.slane %v4427, 4
        %v4486 = vsel %vm4210, %v4484, %v4485
        %v4487 = vrot.slane %v4428, 4
        %v4488 = vsel %vm4210, %v4485, %v4487
        %v4489 = vrot.slane %v4429, 4
        %v4490 = vrot.slane %v4430, 4
        %v4491 = vsel %vm4210, %v4489, %v4490
        %v4492 = vrot.slane %v4431, 4
        %v4493 = vsel %vm4210, %v4490, %v4492
        %v4494 = vrot.slane %v4432, 4
        %v4495 = vrot.slane %v4433, 4
        %v4496 = vsel %vm4210, %v4494, %v4495
        %v4497 = vrot.slane %v4434, 4
        %v4498 = vsel %vm4210, %v4495, %v4497
        %v4515 = vadd.f32 %v4391, %v4461
        %v4516 = vadd.f32 %v4392, %v4463
        %v4517 = vadd.f32 %v4393, %v4466
        %v4518 = vadd.f32 %v4394, %v4468
        %v4519 = vadd.f32 %v4395, %v4471
        %v4520 = vadd.f32 %v4396, %v4473
        %v4521 = vadd.f32 %v4397, %v4476
        %v4522 = vadd.f32 %v4398, %v4478
        %v4523 = vadd.f32 %v4399, %v4481
        %v4524 = vadd.f32 %v4400, %v4483
        %v4525 = vadd.f32 %v4401, %v4486
        %v4526 = vadd.f32 %v4402, %v4488
        %v4527 = vadd.f32 %v4403, %v4491
        %v4528 = vadd.f32 %v4404, %v4493
        %v4529 = vadd.f32 %v4405, %v4496
        %v4530 = vadd.f32 %v4406, %v4498
        %v4531 = vlaneseq
        %v4532 = vshrl.u32 %v4531, 7
        %v4533 = vsub.s32 1, %v4532
        %v4534 = vrot.slane %v1311, %v4533
        %v4535 = vmul.f32 %v1283, %v4534
        %v4536 = vmul.f32 %v1207, %v4534
        %v4537 = vmul.f32 %v1297, %v4534
        %v4538 = vmul.f32 %v1284, %v4534
        %v4539 = vmul.f32 %v1210, %v4534
        %v4540 = vmul.f32 %v1298, %v4534
        %v4541 = vmul.f32 %v1285, %v4534
        %v4542 = vmul.f32 %v1213, %v4534
        %v4543 = vmul.f32 %v1299, %v4534
        %v4544 = vmul.f32 %v1286, %v4534
        %v4545 = vmul.f32 %v1216, %v4534
        %v4546 = vmul.f32 %v1300, %v4534
        %v4547 = vmul.f32 %v1287, %v4534
        %v4548 = vmul.f32 %v1219, %v4534
        %v4549 = vmul.f32 %v1301, %v4534
        %v4550 = vmul.f32 %v1288, %v4534
        %v4551 = vmul.f32 %v1222, %v4534
        %v4552 = vmul.f32 %v1302, %v4534
        %v4553 = vmul.f32 %v1289, %v4534
        %v4554 = vmul.f32 %v1225, %v4534
        %v4555 = vmul.f32 %v1303, %v4534
        %v4556 = vmul.f32 %v1290, %v4534
        %v4557 = vmul.f32 %v1228, %v4534
        %v4558 = vmul.f32 %v1304, %v4534
        %v4583 = vrot.slane %v4535, 4
        %v4584 = vrot.slane %v4536, 4
        %v4585 = vsel %vm4210, %v4583, %v4584
        %v4586 = vrot.slane %v4537, 4
        %v4587 = vsel %vm4210, %v4584, %v4586
        %v4588 = vrot.slane %v4538, 4
        %v4589 = vrot.slane %v4539, 4
        %v4590 = vsel %vm4210, %v4588, %v4589
        %v4591 = vrot.slane %v4540, 4
        %v4592 = vsel %vm4210, %v4589, %v4591
        %v4593 = vrot.slane %v4541, 4
        %v4594 = vrot.slane %v4542, 4
        %v4595 = vsel %vm4210, %v4593, %v4594
        %v4596 = vrot.slane %v4543, 4
        %v4597 = vsel %vm4210, %v4594, %v4596
        %v4598 = vrot.slane %v4544, 4
        %v4599 = vrot.slane %v4545, 4
        %v4600 = vsel %vm4210, %v4598, %v4599
        %v4601 = vrot.slane %v4546, 4
        %v4602 = vsel %vm4210, %v4599, %v4601
        %v4603 = vrot.slane %v4547, 4
        %v4604 = vrot.slane %v4548, 4
        %v4605 = vsel %vm4210, %v4603, %v4604
        %v4606 = vrot.slane %v4549, 4
        %v4607 = vsel %vm4210, %v4604, %v4606
        %v4608 = vrot.slane %v4550, 4
        %v4609 = vrot.slane %v4551, 4
        %v4610 = vsel %vm4210, %v4608, %v4609
        %v4611 = vrot.slane %v4552, 4
        %v4612 = vsel %vm4210, %v4609, %v4611
        %v4613 = vrot.slane %v4553, 4
        %v4614 = vrot.slane %v4554, 4
        %v4615 = vsel %vm4210, %v4613, %v4614
        %v4616 = vrot.slane %v4555, 4
        %v4617 = vsel %vm4210, %v4614, %v4616
        %v4618 = vrot.slane %v4556, 4
        %v4619 = vrot.slane %v4557, 4
        %v4620 = vsel %vm4210, %v4618, %v4619
        %v4621 = vrot.slane %v4558, 4
        %v4622 = vsel %vm4210, %v4619, %v4621
        %v4639 = vadd.f32 %v4515, %v4585
        %v4640 = vadd.f32 %v4516, %v4587
        %v4641 = vadd.f32 %v4517, %v4590
        %v4642 = vadd.f32 %v4518, %v4592
        %v4643 = vadd.f32 %v4519, %v4595
        %v4644 = vadd.f32 %v4520, %v4597
        %v4645 = vadd.f32 %v4521, %v4600
        %v4646 = vadd.f32 %v4522, %v4602
        %v4647 = vadd.f32 %v4523, %v4605
        %v4648 = vadd.f32 %v4524, %v4607
        %v4649 = vadd.f32 %v4525, %v4610
        %v4650 = vadd.f32 %v4526, %v4612
        %v4651 = vadd.f32 %v4527, %v4615
        %v4652 = vadd.f32 %v4528, %v4617
        %v4653 = vadd.f32 %v4529, %v4620
        %v4654 = vadd.f32 %v4530, %v4622
        %v4655 = vlaneseq
        %v4656 = vshrl.u32 %v4655, 7
        %v4657 = vsub.s32 0, %v4656
        %v4658 = vrot.slane %v1312, %v4657
        %v4659 = vmul.f32 %v1284, %v4658
        %v4660 = vmul.f32 %v1210, %v4658
        %v4661 = vmul.f32 %v1298, %v4658
        %v4662 = vmul.f32 %v1285, %v4658
        %v4663 = vmul.f32 %v1213, %v4658
        %v4664 = vmul.f32 %v1299, %v4658
        %v4665 = vmul.f32 %v1286, %v4658
        %v4666 = vmul.f32 %v1216, %v4658
        %v4667 = vmul.f32 %v1300, %v4658
        %v4668 = vmul.f32 %v1287, %v4658
        %v4669 = vmul.f32 %v1219, %v4658
        %v4670 = vmul.f32 %v1301, %v4658
        %v4671 = vmul.f32 %v1288, %v4658
        %v4672 = vmul.f32 %v1222, %v4658
        %v4673 = vmul.f32 %v1302, %v4658
        %v4674 = vmul.f32 %v1289, %v4658
        %v4675 = vmul.f32 %v1225, %v4658
        %v4676 = vmul.f32 %v1303, %v4658
        %v4677 = vmul.f32 %v1290, %v4658
        %v4678 = vmul.f32 %v1228, %v4658
        %v4679 = vmul.f32 %v1304, %v4658
        %v4680 = vmul.f32 %v1291, %v4658
        %v4681 = vmul.f32 %v1231, %v4658
        %v4682 = vmul.f32 %v1305, %v4658
        %v4707 = vrot.slane %v4659, 4
        %v4708 = vrot.slane %v4660, 4
        %v4709 = vsel %vm4210, %v4707, %v4708
        %v4710 = vrot.slane %v4661, 4
        %v4711 = vsel %vm4210, %v4708, %v4710
        %v4712 = vrot.slane %v4662, 4
        %v4713 = vrot.slane %v4663, 4
        %v4714 = vsel %vm4210, %v4712, %v4713
        %v4715 = vrot.slane %v4664, 4
        %v4716 = vsel %vm4210, %v4713, %v4715
        %v4717 = vrot.slane %v4665, 4
        %v4718 = vrot.slane %v4666, 4
        %v4719 = vsel %vm4210, %v4717, %v4718
        %v4720 = vrot.slane %v4667, 4
        %v4721 = vsel %vm4210, %v4718, %v4720
        %v4722 = vrot.slane %v4668, 4
        %v4723 = vrot.slane %v4669, 4
        %v4724 = vsel %vm4210, %v4722, %v4723
        %v4725 = vrot.slane %v4670, 4
        %v4726 = vsel %vm4210, %v4723, %v4725
        %v4727 = vrot.slane %v4671, 4
        %v4728 = vrot.slane %v4672, 4
        %v4729 = vsel %vm4210, %v4727, %v4728
        %v4730 = vrot.slane %v4673, 4
        %v4731 = vsel %vm4210, %v4728, %v4730
        %v4732 = vrot.slane %v4674, 4
        %v4733 = vrot.slane %v4675, 4
        %v4734 = vsel %vm4210, %v4732, %v4733
        %v4735 = vrot.slane %v4676, 4
        %v4736 = vsel %vm4210, %v4733, %v4735
        %v4737 = vrot.slane %v4677, 4
        %v4738 = vrot.slane %v4678, 4
        %v4739 = vsel %vm4210, %v4737, %v4738
        %v4740 = vrot.slane %v4679, 4
        %v4741 = vsel %vm4210, %v4738, %v4740
        %v4742 = vrot.slane %v4680, 4
        %v4743 = vrot.slane %v4681, 4
        %v4744 = vsel %vm4210, %v4742, %v4743
        %v4745 = vrot.slane %v4682, 4
        %v4746 = vsel %vm4210, %v4743, %v4745
        %v4763 = vadd.f32 %v4639, %v4709
        %v4764 = vadd.f32 %v4640, %v4711
        %v4765 = vadd.f32 %v4641, %v4714
        %v4766 = vadd.f32 %v4642, %v4716
        %v4767 = vadd.f32 %v4643, %v4719
        %v4768 = vadd.f32 %v4644, %v4721
        %v4769 = vadd.f32 %v4645, %v4724
        %v4770 = vadd.f32 %v4646, %v4726
        %v4771 = vadd.f32 %v4647, %v4729
        %v4772 = vadd.f32 %v4648, %v4731
        %v4773 = vadd.f32 %v4649, %v4734
        %v4774 = vadd.f32 %v4650, %v4736
        %v4775 = vadd.f32 %v4651, %v4739
        %v4776 = vadd.f32 %v4652, %v4741
        %v4777 = vadd.f32 %v4653, %v4744
        %v4778 = vadd.f32 %v4654, %v4746
        %v4779 = vlaneseq
        %v4780 = vshrl.u32 %v4779, 7
        %v4781 = vsub.s32 7, %v4780
        %v4782 = vrot.slane %v1312, %v4781
        %v4783 = vmul.f32 %v1285, %v4782
        %v4784 = vmul.f32 %v1213, %v4782
        %v4785 = vmul.f32 %v1299, %v4782
        %v4786 = vmul.f32 %v1286, %v4782
        %v4787 = vmul.f32 %v1216, %v4782
        %v4788 = vmul.f32 %v1300, %v4782
        %v4789 = vmul.f32 %v1287, %v4782
        %v4790 = vmul.f32 %v1219, %v4782
        %v4791 = vmul.f32 %v1301, %v4782
        %v4792 = vmul.f32 %v1288, %v4782
        %v4793 = vmul.f32 %v1222, %v4782
        %v4794 = vmul.f32 %v1302, %v4782
        %v4795 = vmul.f32 %v1289, %v4782
        %v4796 = vmul.f32 %v1225, %v4782
        %v4797 = vmul.f32 %v1303, %v4782
        %v4798 = vmul.f32 %v1290, %v4782
        %v4799 = vmul.f32 %v1228, %v4782
        %v4800 = vmul.f32 %v1304, %v4782
        %v4801 = vmul.f32 %v1291, %v4782
        %v4802 = vmul.f32 %v1231, %v4782
        %v4803 = vmul.f32 %v1305, %v4782
        %v4804 = vmul.f32 %v1292, %v4782
        %v4805 = vmul.f32 %v1234, %v4782
        %v4806 = vmul.f32 %v1306, %v4782
        %v4831 = vrot.slane %v4783, 4
        %v4832 = vrot.slane %v4784, 4
        %v4833 = vsel %vm4210, %v4831, %v4832
        %v4834 = vrot.slane %v4785, 4
        %v4835 = vsel %vm4210, %v4832, %v4834
        %v4836 = vrot.slane %v4786, 4
        %v4837 = vrot.slane %v4787, 4
        %v4838 = vsel %vm4210, %v4836, %v4837
        %v4839 = vrot.slane %v4788, 4
        %v4840 = vsel %vm4210, %v4837, %v4839
        %v4841 = vrot.slane %v4789, 4
        %v4842 = vrot.slane %v4790, 4
        %v4843 = vsel %vm4210, %v4841, %v4842
        %v4844 = vrot.slane %v4791, 4
        %v4845 = vsel %vm4210, %v4842, %v4844
        %v4846 = vrot.slane %v4792, 4
        %v4847 = vrot.slane %v4793, 4
        %v4848 = vsel %vm4210, %v4846, %v4847
        %v4849 = vrot.slane %v4794, 4
        %v4850 = vsel %vm4210, %v4847, %v4849
        %v4851 = vrot.slane %v4795, 4
        %v4852 = vrot.slane %v4796, 4
        %v4853 = vsel %vm4210, %v4851, %v4852
        %v4854 = vrot.slane %v4797, 4
        %v4855 = vsel %vm4210, %v4852, %v4854
        %v4856 = vrot.slane %v4798, 4
        %v4857 = vrot.slane %v4799, 4
        %v4858 = vsel %vm4210, %v4856, %v4857
        %v4859 = vrot.slane %v4800, 4
        %v4860 = vsel %vm4210, %v4857, %v4859
        %v4861 = vrot.slane %v4801, 4
        %v4862 = vrot.slane %v4802, 4
        %v4863 = vsel %vm4210, %v4861, %v4862
        %v4864 = vrot.slane %v4803, 4
        %v4865 = vsel %vm4210, %v4862, %v4864
        %v4866 = vrot.slane %v4804, 4
        %v4867 = vrot.slane %v4805, 4
        %v4868 = vsel %vm4210, %v4866, %v4867
        %v4869 = vrot.slane %v4806, 4
        %v4870 = vsel %vm4210, %v4867, %v4869
        %v4887 = vadd.f32 %v4763, %v4833
        %v4888 = vadd.f32 %v4764, %v4835
        %v4889 = vadd.f32 %v4765, %v4838
        %v4890 = vadd.f32 %v4766, %v4840
        %v4891 = vadd.f32 %v4767, %v4843
        %v4892 = vadd.f32 %v4768, %v4845
        %v4893 = vadd.f32 %v4769, %v4848
        %v4894 = vadd.f32 %v4770, %v4850
        %v4895 = vadd.f32 %v4771, %v4853
        %v4896 = vadd.f32 %v4772, %v4855
        %v4897 = vadd.f32 %v4773, %v4858
        %v4898 = vadd.f32 %v4774, %v4860
        %v4899 = vadd.f32 %v4775, %v4863
        %v4900 = vadd.f32 %v4776, %v4865
        %v4901 = vadd.f32 %v4777, %v4868
        %v4902 = vadd.f32 %v4778, %v4870
        %v4903 = vlaneseq
        %v4904 = vshrl.u32 %v4903, 7
        %v4905 = vsub.s32 6, %v4904
        %v4906 = vrot.slane %v1313, %v4905
        %v4907 = vmul.f32 %v1286, %v4906
        %v4908 = vmul.f32 %v1216, %v4906
        %v4909 = vmul.f32 %v1300, %v4906
        %v4910 = vmul.f32 %v1287, %v4906
        %v4911 = vmul.f32 %v1219, %v4906
        %v4912 = vmul.f32 %v1301, %v4906
        %v4913 = vmul.f32 %v1288, %v4906
        %v4914 = vmul.f32 %v1222, %v4906
        %v4915 = vmul.f32 %v1302, %v4906
        %v4916 = vmul.f32 %v1289, %v4906
        %v4917 = vmul.f32 %v1225, %v4906
        %v4918 = vmul.f32 %v1303, %v4906
        %v4919 = vmul.f32 %v1290, %v4906
        %v4920 = vmul.f32 %v1228, %v4906
        %v4921 = vmul.f32 %v1304, %v4906
        %v4922 = vmul.f32 %v1291, %v4906
        %v4923 = vmul.f32 %v1231, %v4906
        %v4924 = vmul.f32 %v1305, %v4906
        %v4925 = vmul.f32 %v1292, %v4906
        %v4926 = vmul.f32 %v1234, %v4906
        %v4927 = vmul.f32 %v1306, %v4906
        %v4928 = vmul.f32 %v1293, %v4906
        %v4929 = vmul.f32 %v1237, %v4906
        %v4930 = vmul.f32 %v1307, %v4906
        %v4955 = vrot.slane %v4907, 4
        %v4956 = vrot.slane %v4908, 4
        %v4957 = vsel %vm4210, %v4955, %v4956
        %v4958 = vrot.slane %v4909, 4
        %v4959 = vsel %vm4210, %v4956, %v4958
        %v4960 = vrot.slane %v4910, 4
        %v4961 = vrot.slane %v4911, 4
        %v4962 = vsel %vm4210, %v4960, %v4961
        %v4963 = vrot.slane %v4912, 4
        %v4964 = vsel %vm4210, %v4961, %v4963
        %v4965 = vrot.slane %v4913, 4
        %v4966 = vrot.slane %v4914, 4
        %v4967 = vsel %vm4210, %v4965, %v4966
        %v4968 = vrot.slane %v4915, 4
        %v4969 = vsel %vm4210, %v4966, %v4968
        %v4970 = vrot.slane %v4916, 4
        %v4971 = vrot.slane %v4917, 4
        %v4972 = vsel %vm4210, %v4970, %v4971
        %v4973 = vrot.slane %v4918, 4
        %v4974 = vsel %vm4210, %v4971, %v4973
        %v4975 = vrot.slane %v4919, 4
        %v4976 = vrot.slane %v4920, 4
        %v4977 = vsel %vm4210, %v4975, %v4976
        %v4978 = vrot.slane %v4921, 4
        %v4979 = vsel %vm4210, %v4976, %v4978
        %v4980 = vrot.slane %v4922, 4
        %v4981 = vrot.slane %v4923, 4
        %v4982 = vsel %vm4210, %v4980, %v4981
        %v4983 = vrot.slane %v4924, 4
        %v4984 = vsel %vm4210, %v4981, %v4983
        %v4985 = vrot.slane %v4925, 4
        %v4986 = vrot.slane %v4926, 4
        %v4987 = vsel %vm4210, %v4985, %v4986
        %v4988 = vrot.slane %v4927, 4
        %v4989 = vsel %vm4210, %v4986, %v4988
        %v4990 = vrot.slane %v4928, 4
        %v4991 = vrot.slane %v4929, 4
        %v4992 = vsel %vm4210, %v4990, %v4991
        %v4993 = vrot.slane %v4930, 4
        %v4994 = vsel %vm4210, %v4991, %v4993
        %v5011 = vadd.f32 %v4887, %v4957
        %v5012 = vadd.f32 %v4888, %v4959
        %v5013 = vadd.f32 %v4889, %v4962
        %v5014 = vadd.f32 %v4890, %v4964
        %v5015 = vadd.f32 %v4891, %v4967
        %v5016 = vadd.f32 %v4892, %v4969
        %v5017 = vadd.f32 %v4893, %v4972
        %v5018 = vadd.f32 %v4894, %v4974
        %v5019 = vadd.f32 %v4895, %v4977
        %v5020 = vadd.f32 %v4896, %v4979
        %v5021 = vadd.f32 %v4897, %v4982
        %v5022 = vadd.f32 %v4898, %v4984
        %v5023 = vadd.f32 %v4899, %v4987
        %v5024 = vadd.f32 %v4900, %v4989
        %v5025 = vadd.f32 %v4901, %v4992
        %v5026 = vadd.f32 %v4902, %v4994
        %v5027 = vlaneseq
        %v5028 = vshrl.u32 %v5027, 7
        %v5029 = vsub.s32 5, %v5028
        %v5030 = vrot.slane %v1308, %v5029
        %v5031 = vmul.f32 %v1280, %v5030
        %v5032 = vmul.f32 %v1198, %v5030
        %v5033 = vmul.f32 %v1294, %v5030
        %v5034 = vmul.f32 %v1281, %v5030
        %v5035 = vmul.f32 %v1201, %v5030
        %v5036 = vmul.f32 %v1295, %v5030
        %v5037 = vmul.f32 %v1282, %v5030
        %v5038 = vmul.f32 %v1204, %v5030
        %v5039 = vmul.f32 %v1296, %v5030
        %v5040 = vmul.f32 %v1283, %v5030
        %v5041 = vmul.f32 %v1207, %v5030
        %v5042 = vmul.f32 %v1297, %v5030
        %v5043 = vmul.f32 %v1284, %v5030
        %v5044 = vmul.f32 %v1210, %v5030
        %v5045 = vmul.f32 %v1298, %v5030
        %v5046 = vmul.f32 %v1285, %v5030
        %v5047 = vmul.f32 %v1213, %v5030
        %v5048 = vmul.f32 %v1299, %v5030
        %v5049 = vmul.f32 %v1286, %v5030
        %v5050 = vmul.f32 %v1216, %v5030
        %v5051 = vmul.f32 %v1300, %v5030
        %v5052 = vmul.f32 %v1287, %v5030
        %v5053 = vmul.f32 %v1219, %v5030
        %v5054 = vmul.f32 %v1301, %v5030
        %v5079 = vrot.slane %v5031, 5
        %v5080 = vrot.slane %v5032, 5
        %v5081 = vsel %vm1195, %v5079, %v5080
        %v5082 = vrot.slane %v5033, 5
        %v5083 = vsel %vm1195, %v5080, %v5082
        %v5084 = vrot.slane %v5034, 5
        %v5085 = vrot.slane %v5035, 5
        %v5086 = vsel %vm1195, %v5084, %v5085
        %v5087 = vrot.slane %v5036, 5
        %v5088 = vsel %vm1195, %v5085, %v5087
        %v5089 = vrot.slane %v5037, 5
        %v5090 = vrot.slane %v5038, 5
        %v5091 = vsel %vm1195, %v5089, %v5090
        %v5092 = vrot.slane %v5039, 5
        %v5093 = vsel %vm1195, %v5090, %v5092
        %v5094 = vrot.slane %v5040, 5
        %v5095 = vrot.slane %v5041, 5
        %v5096 = vsel %vm1195, %v5094, %v5095
        %v5097 = vrot.slane %v5042, 5
        %v5098 = vsel %vm1195, %v5095, %v5097
        %v5099 = vrot.slane %v5043, 5
        %v5100 = vrot.slane %v5044, 5
        %v5101 = vsel %vm1195, %v5099, %v5100
        %v5102 = vrot.slane %v5045, 5
        %v5103 = vsel %vm1195, %v5100, %v5102
        %v5104 = vrot.slane %v5046, 5
        %v5105 = vrot.slane %v5047, 5
        %v5106 = vsel %vm1195, %v5104, %v5105
        %v5107 = vrot.slane %v5048, 5
        %v5108 = vsel %vm1195, %v5105, %v5107
        %v5109 = vrot.slane %v5049, 5
        %v5110 = vrot.slane %v5050, 5
        %v5111 = vsel %vm1195, %v5109, %v5110
        %v5112 = vrot.slane %v5051, 5
        %v5113 = vsel %vm1195, %v5110, %v5112
        %v5114 = vrot.slane %v5052, 5
        %v5115 = vrot.slane %v5053, 5
        %v5116 = vsel %vm1195, %v5114, %v5115
        %v5117 = vrot.slane %v5054, 5
        %v5118 = vsel %vm1195, %v5115, %v5117
        %v5135 = vadd.f32 %v5011, %v5081
        %v5136 = vadd.f32 %v5012, %v5083
        %v5137 = vadd.f32 %v5013, %v5086
        %v5138 = vadd.f32 %v5014, %v5088
        %v5139 = vadd.f32 %v5015, %v5091
        %v5140 = vadd.f32 %v5016, %v5093
        %v5141 = vadd.f32 %v5017, %v5096
        %v5142 = vadd.f32 %v5018, %v5098
        %v5143 = vadd.f32 %v5019, %v5101
        %v5144 = vadd.f32 %v5020, %v5103
        %v5145 = vadd.f32 %v5021, %v5106
        %v5146 = vadd.f32 %v5022, %v5108
        %v5147 = vadd.f32 %v5023, %v5111
        %v5148 = vadd.f32 %v5024, %v5113
        %v5149 = vadd.f32 %v5025, %v5116
        %v5150 = vadd.f32 %v5026, %v5118
        %v5151 = vlaneseq
        %v5152 = vshrl.u32 %v5151, 7
        %v5153 = vsub.s32 4, %v5152
        %v5154 = vrot.slane %v1309, %v5153
        %v5155 = vmul.f32 %v1281, %v5154
        %v5156 = vmul.f32 %v1201, %v5154
        %v5157 = vmul.f32 %v1295, %v5154
        %v5158 = vmul.f32 %v1282, %v5154
        %v5159 = vmul.f32 %v1204, %v5154
        %v5160 = vmul.f32 %v1296, %v5154
        %v5161 = vmul.f32 %v1283, %v5154
        %v5162 = vmul.f32 %v1207, %v5154
        %v5163 = vmul.f32 %v1297, %v5154
        %v5164 = vmul.f32 %v1284, %v5154
        %v5165 = vmul.f32 %v1210, %v5154
        %v5166 = vmul.f32 %v1298, %v5154
        %v5167 = vmul.f32 %v1285, %v5154
        %v5168 = vmul.f32 %v1213, %v5154
        %v5169 = vmul.f32 %v1299, %v5154
        %v5170 = vmul.f32 %v1286, %v5154
        %v5171 = vmul.f32 %v1216, %v5154
        %v5172 = vmul.f32 %v1300, %v5154
        %v5173 = vmul.f32 %v1287, %v5154
        %v5174 = vmul.f32 %v1219, %v5154
        %v5175 = vmul.f32 %v1301, %v5154
        %v5176 = vmul.f32 %v1288, %v5154
        %v5177 = vmul.f32 %v1222, %v5154
        %v5178 = vmul.f32 %v1302, %v5154
        %v5203 = vrot.slane %v5155, 5
        %v5204 = vrot.slane %v5156, 5
        %v5205 = vsel %vm1195, %v5203, %v5204
        %v5206 = vrot.slane %v5157, 5
        %v5207 = vsel %vm1195, %v5204, %v5206
        %v5208 = vrot.slane %v5158, 5
        %v5209 = vrot.slane %v5159, 5
        %v5210 = vsel %vm1195, %v5208, %v5209
        %v5211 = vrot.slane %v5160, 5
        %v5212 = vsel %vm1195, %v5209, %v5211
        %v5213 = vrot.slane %v5161, 5
        %v5214 = vrot.slane %v5162, 5
        %v5215 = vsel %vm1195, %v5213, %v5214
        %v5216 = vrot.slane %v5163, 5
        %v5217 = vsel %vm1195, %v5214, %v5216
        %v5218 = vrot.slane %v5164, 5
        %v5219 = vrot.slane %v5165, 5
        %v5220 = vsel %vm1195, %v5218, %v5219
        %v5221 = vrot.slane %v5166, 5
        %v5222 = vsel %vm1195, %v5219, %v5221
        %v5223 = vrot.slane %v5167, 5
        %v5224 = vrot.slane %v5168, 5
        %v5225 = vsel %vm1195, %v5223, %v5224
        %v5226 = vrot.slane %v5169, 5
        %v5227 = vsel %vm1195, %v5224, %v5226
        %v5228 = vrot.slane %v5170, 5
        %v5229 = vrot.slane %v5171, 5
        %v5230 = vsel %vm1195, %v5228, %v5229
        %v5231 = vrot.slane %v5172, 5
        %v5232 = vsel %vm1195, %v5229, %v5231
        %v5233 = vrot.slane %v5173, 5
        %v5234 = vrot.slane %v5174, 5
        %v5235 = vsel %vm1195, %v5233, %v5234
        %v5236 = vrot.slane %v5175, 5
        %v5237 = vsel %vm1195, %v5234, %v5236
        %v5238 = vrot.slane %v5176, 5
        %v5239 = vrot.slane %v5177, 5
        %v5240 = vsel %vm1195, %v5238, %v5239
        %v5241 = vrot.slane %v5178, 5
        %v5242 = vsel %vm1195, %v5239, %v5241
        %v5259 = vadd.f32 %v5135, %v5205
        %v5260 = vadd.f32 %v5136, %v5207
        %v5261 = vadd.f32 %v5137, %v5210
        %v5262 = vadd.f32 %v5138, %v5212
        %v5263 = vadd.f32 %v5139, %v5215
        %v5264 = vadd.f32 %v5140, %v5217
        %v5265 = vadd.f32 %v5141, %v5220
        %v5266 = vadd.f32 %v5142, %v5222
        %v5267 = vadd.f32 %v5143, %v5225
        %v5268 = vadd.f32 %v5144, %v5227
        %v5269 = vadd.f32 %v5145, %v5230
        %v5270 = vadd.f32 %v5146, %v5232
        %v5271 = vadd.f32 %v5147, %v5235
        %v5272 = vadd.f32 %v5148, %v5237
        %v5273 = vadd.f32 %v5149, %v5240
        %v5274 = vadd.f32 %v5150, %v5242
        %v5275 = vlaneseq
        %v5276 = vshrl.u32 %v5275, 7
        %v5277 = vsub.s32 3, %v5276
        %v5278 = vrot.slane %v1310, %v5277
        %v5279 = vmul.f32 %v1282, %v5278
        %v5280 = vmul.f32 %v1204, %v5278
        %v5281 = vmul.f32 %v1296, %v5278
        %v5282 = vmul.f32 %v1283, %v5278
        %v5283 = vmul.f32 %v1207, %v5278
        %v5284 = vmul.f32 %v1297, %v5278
        %v5285 = vmul.f32 %v1284, %v5278
        %v5286 = vmul.f32 %v1210, %v5278
        %v5287 = vmul.f32 %v1298, %v5278
        %v5288 = vmul.f32 %v1285, %v5278
        %v5289 = vmul.f32 %v1213, %v5278
        %v5290 = vmul.f32 %v1299, %v5278
        %v5291 = vmul.f32 %v1286, %v5278
        %v5292 = vmul.f32 %v1216, %v5278
        %v5293 = vmul.f32 %v1300, %v5278
        %v5294 = vmul.f32 %v1287, %v5278
        %v5295 = vmul.f32 %v1219, %v5278
        %v5296 = vmul.f32 %v1301, %v5278
        %v5297 = vmul.f32 %v1288, %v5278
        %v5298 = vmul.f32 %v1222, %v5278
        %v5299 = vmul.f32 %v1302, %v5278
        %v5300 = vmul.f32 %v1289, %v5278
        %v5301 = vmul.f32 %v1225, %v5278
        %v5302 = vmul.f32 %v1303, %v5278
        %v5327 = vrot.slane %v5279, 5
        %v5328 = vrot.slane %v5280, 5
        %v5329 = vsel %vm1195, %v5327, %v5328
        %v5330 = vrot.slane %v5281, 5
        %v5331 = vsel %vm1195, %v5328, %v5330
        %v5332 = vrot.slane %v5282, 5
        %v5333 = vrot.slane %v5283, 5
        %v5334 = vsel %vm1195, %v5332, %v5333
        %v5335 = vrot.slane %v5284, 5
        %v5336 = vsel %vm1195, %v5333, %v5335
        %v5337 = vrot.slane %v5285, 5
        %v5338 = vrot.slane %v5286, 5
        %v5339 = vsel %vm1195, %v5337, %v5338
        %v5340 = vrot.slane %v5287, 5
        %v5341 = vsel %vm1195, %v5338, %v5340
        %v5342 = vrot.slane %v5288, 5
        %v5343 = vrot.slane %v5289, 5
        %v5344 = vsel %vm1195, %v5342, %v5343
        %v5345 = vrot.slane %v5290, 5
        %v5346 = vsel %vm1195, %v5343, %v5345
        %v5347 = vrot.slane %v5291, 5
        %v5348 = vrot.slane %v5292, 5
        %v5349 = vsel %vm1195, %v5347, %v5348
        %v5350 = vrot.slane %v5293, 5
        %v5351 = vsel %vm1195, %v5348, %v5350
        %v5352 = vrot.slane %v5294, 5
        %v5353 = vrot.slane %v5295, 5
        %v5354 = vsel %vm1195, %v5352, %v5353
        %v5355 = vrot.slane %v5296, 5
        %v5356 = vsel %vm1195, %v5353, %v5355
        %v5357 = vrot.slane %v5297, 5
        %v5358 = vrot.slane %v5298, 5
        %v5359 = vsel %vm1195, %v5357, %v5358
        %v5360 = vrot.slane %v5299, 5
        %v5361 = vsel %vm1195, %v5358, %v5360
        %v5362 = vrot.slane %v5300, 5
        %v5363 = vrot.slane %v5301, 5
        %v5364 = vsel %vm1195, %v5362, %v5363
        %v5365 = vrot.slane %v5302, 5
        %v5366 = vsel %vm1195, %v5363, %v5365
        %v5383 = vadd.f32 %v5259, %v5329
        %v5384 = vadd.f32 %v5260, %v5331
        %v5385 = vadd.f32 %v5261, %v5334
        %v5386 = vadd.f32 %v5262, %v5336
        %v5387 = vadd.f32 %v5263, %v5339
        %v5388 = vadd.f32 %v5264, %v5341
        %v5389 = vadd.f32 %v5265, %v5344
        %v5390 = vadd.f32 %v5266, %v5346
        %v5391 = vadd.f32 %v5267, %v5349
        %v5392 = vadd.f32 %v5268, %v5351
        %v5393 = vadd.f32 %v5269, %v5354
        %v5394 = vadd.f32 %v5270, %v5356
        %v5395 = vadd.f32 %v5271, %v5359
        %v5396 = vadd.f32 %v5272, %v5361
        %v5397 = vadd.f32 %v5273, %v5364
        %v5398 = vadd.f32 %v5274, %v5366
        %v5399 = vlaneseq
        %v5400 = vshrl.u32 %v5399, 7
        %v5401 = vsub.s32 2, %v5400
        %v5402 = vrot.slane %v1311, %v5401
        %v5403 = vmul.f32 %v1283, %v5402
        %v5404 = vmul.f32 %v1207, %v5402
        %v5405 = vmul.f32 %v1297, %v5402
        %v5406 = vmul.f32 %v1284, %v5402
        %v5407 = vmul.f32 %v1210, %v5402
        %v5408 = vmul.f32 %v1298, %v5402
        %v5409 = vmul.f32 %v1285, %v5402
        %v5410 = vmul.f32 %v1213, %v5402
        %v5411 = vmul.f32 %v1299, %v5402
        %v5412 = vmul.f32 %v1286, %v5402
        %v5413 = vmul.f32 %v1216, %v5402
        %v5414 = vmul.f32 %v1300, %v5402
        %v5415 = vmul.f32 %v1287, %v5402
        %v5416 = vmul.f32 %v1219, %v5402
        %v5417 = vmul.f32 %v1301, %v5402
        %v5418 = vmul.f32 %v1288, %v5402
        %v5419 = vmul.f32 %v1222, %v5402
        %v5420 = vmul.f32 %v1302, %v5402
        %v5421 = vmul.f32 %v1289, %v5402
        %v5422 = vmul.f32 %v1225, %v5402
        %v5423 = vmul.f32 %v1303, %v5402
        %v5424 = vmul.f32 %v1290, %v5402
        %v5425 = vmul.f32 %v1228, %v5402
        %v5426 = vmul.f32 %v1304, %v5402
        %v5451 = vrot.slane %v5403, 5
        %v5452 = vrot.slane %v5404, 5
        %v5453 = vsel %vm1195, %v5451, %v5452
        %v5454 = vrot.slane %v5405, 5
        %v5455 = vsel %vm1195, %v5452, %v5454
        %v5456 = vrot.slane %v5406, 5
        %v5457 = vrot.slane %v5407, 5
        %v5458 = vsel %vm1195, %v5456, %v5457
        %v5459 = vrot.slane %v5408, 5
        %v5460 = vsel %vm1195, %v5457, %v5459
        %v5461 = vrot.slane %v5409, 5
        %v5462 = vrot.slane %v5410, 5
        %v5463 = vsel %vm1195, %v5461, %v5462
        %v5464 = vrot.slane %v5411, 5
        %v5465 = vsel %vm1195, %v5462, %v5464
        %v5466 = vrot.slane %v5412, 5
        %v5467 = vrot.slane %v5413, 5
        %v5468 = vsel %vm1195, %v5466, %v5467
        %v5469 = vrot.slane %v5414, 5
        %v5470 = vsel %vm1195, %v5467, %v5469
        %v5471 = vrot.slane %v5415, 5
        %v5472 = vrot.slane %v5416, 5
        %v5473 = vsel %vm1195, %v5471, %v5472
        %v5474 = vrot.slane %v5417, 5
        %v5475 = vsel %vm1195, %v5472, %v5474
        %v5476 = vrot.slane %v5418, 5
        %v5477 = vrot.slane %v5419, 5
        %v5478 = vsel %vm1195, %v5476, %v5477
        %v5479 = vrot.slane %v5420, 5
        %v5480 = vsel %vm1195, %v5477, %v5479
        %v5481 = vrot.slane %v5421, 5
        %v5482 = vrot.slane %v5422, 5
        %v5483 = vsel %vm1195, %v5481, %v5482
        %v5484 = vrot.slane %v5423, 5
        %v5485 = vsel %vm1195, %v5482, %v5484
        %v5486 = vrot.slane %v5424, 5
        %v5487 = vrot.slane %v5425, 5
        %v5488 = vsel %vm1195, %v5486, %v5487
        %v5489 = vrot.slane %v5426, 5
        %v5490 = vsel %vm1195, %v5487, %v5489
        %v5507 = vadd.f32 %v5383, %v5453
        %v5508 = vadd.f32 %v5384, %v5455
        %v5509 = vadd.f32 %v5385, %v5458
        %v5510 = vadd.f32 %v5386, %v5460
        %v5511 = vadd.f32 %v5387, %v5463
        %v5512 = vadd.f32 %v5388, %v5465
        %v5513 = vadd.f32 %v5389, %v5468
        %v5514 = vadd.f32 %v5390, %v5470
        %v5515 = vadd.f32 %v5391, %v5473
        %v5516 = vadd.f32 %v5392, %v5475
        %v5517 = vadd.f32 %v5393, %v5478
        %v5518 = vadd.f32 %v5394, %v5480
        %v5519 = vadd.f32 %v5395, %v5483
        %v5520 = vadd.f32 %v5396, %v5485
        %v5521 = vadd.f32 %v5397, %v5488
        %v5522 = vadd.f32 %v5398, %v5490
        %v5523 = vlaneseq
        %v5524 = vshrl.u32 %v5523, 7
        %v5525 = vsub.s32 1, %v5524
        %v5526 = vrot.slane %v1312, %v5525
        %v5527 = vmul.f32 %v1284, %v5526
        %v5528 = vmul.f32 %v1210, %v5526
        %v5529 = vmul.f32 %v1298, %v5526
        %v5530 = vmul.f32 %v1285, %v5526
        %v5531 = vmul.f32 %v1213, %v5526
        %v5532 = vmul.f32 %v1299, %v5526
        %v5533 = vmul.f32 %v1286, %v5526
        %v5534 = vmul.f32 %v1216, %v5526
        %v5535 = vmul.f32 %v1300, %v5526
        %v5536 = vmul.f32 %v1287, %v5526
        %v5537 = vmul.f32 %v1219, %v5526
        %v5538 = vmul.f32 %v1301, %v5526
        %v5539 = vmul.f32 %v1288, %v5526
        %v5540 = vmul.f32 %v1222, %v5526
        %v5541 = vmul.f32 %v1302, %v5526
        %v5542 = vmul.f32 %v1289, %v5526
        %v5543 = vmul.f32 %v1225, %v5526
        %v5544 = vmul.f32 %v1303, %v5526
        %v5545 = vmul.f32 %v1290, %v5526
        %v5546 = vmul.f32 %v1228, %v5526
        %v5547 = vmul.f32 %v1304, %v5526
        %v5548 = vmul.f32 %v1291, %v5526
        %v5549 = vmul.f32 %v1231, %v5526
        %v5550 = vmul.f32 %v1305, %v5526
        %v5575 = vrot.slane %v5527, 5
        %v5576 = vrot.slane %v5528, 5
        %v5577 = vsel %vm1195, %v5575, %v5576
        %v5578 = vrot.slane %v5529, 5
        %v5579 = vsel %vm1195, %v5576, %v5578
        %v5580 = vrot.slane %v5530, 5
        %v5581 = vrot.slane %v5531, 5
        %v5582 = vsel %vm1195, %v5580, %v5581
        %v5583 = vrot.slane %v5532, 5
        %v5584 = vsel %vm1195, %v5581, %v5583
        %v5585 = vrot.slane %v5533, 5
        %v5586 = vrot.slane %v5534, 5
        %v5587 = vsel %vm1195, %v5585, %v5586
        %v5588 = vrot.slane %v5535, 5
        %v5589 = vsel %vm1195, %v5586, %v5588
        %v5590 = vrot.slane %v5536, 5
        %v5591 = vrot.slane %v5537, 5
        %v5592 = vsel %vm1195, %v5590, %v5591
        %v5593 = vrot.slane %v5538, 5
        %v5594 = vsel %vm1195, %v5591, %v5593
        %v5595 = vrot.slane %v5539, 5
        %v5596 = vrot.slane %v5540, 5
        %v5597 = vsel %vm1195, %v5595, %v5596
        %v5598 = vrot.slane %v5541, 5
        %v5599 = vsel %vm1195, %v5596, %v5598
        %v5600 = vrot.slane %v5542, 5
        %v5601 = vrot.slane %v5543, 5
        %v5602 = vsel %vm1195, %v5600, %v5601
        %v5603 = vrot.slane %v5544, 5
        %v5604 = vsel %vm1195, %v5601, %v5603
        %v5605 = vrot.slane %v5545, 5
        %v5606 = vrot.slane %v5546, 5
        %v5607 = vsel %vm1195, %v5605, %v5606
        %v5608 = vrot.slane %v5547, 5
        %v5609 = vsel %vm1195, %v5606, %v5608
        %v5610 = vrot.slane %v5548, 5
        %v5611 = vrot.slane %v5549, 5
        %v5612 = vsel %vm1195, %v5610, %v5611
        %v5613 = vrot.slane %v5550, 5
        %v5614 = vsel %vm1195, %v5611, %v5613
        %v5631 = vadd.f32 %v5507, %v5577
        %v5632 = vadd.f32 %v5508, %v5579
        %v5633 = vadd.f32 %v5509, %v5582
        %v5634 = vadd.f32 %v5510, %v5584
        %v5635 = vadd.f32 %v5511, %v5587
        %v5636 = vadd.f32 %v5512, %v5589
        %v5637 = vadd.f32 %v5513, %v5592
        %v5638 = vadd.f32 %v5514, %v5594
        %v5639 = vadd.f32 %v5515, %v5597
        %v5640 = vadd.f32 %v5516, %v5599
        %v5641 = vadd.f32 %v5517, %v5602
        %v5642 = vadd.f32 %v5518, %v5604
        %v5643 = vadd.f32 %v5519, %v5607
        %v5644 = vadd.f32 %v5520, %v5609
        %v5645 = vadd.f32 %v5521, %v5612
        %v5646 = vadd.f32 %v5522, %v5614
        %v5647 = vlaneseq
        %v5648 = vshrl.u32 %v5647, 7
        %v5649 = vsub.s32 0, %v5648
        %v5650 = vrot.slane %v1313, %v5649
        %v5651 = vmul.f32 %v1285, %v5650
        %v5652 = vmul.f32 %v1213, %v5650
        %v5653 = vmul.f32 %v1299, %v5650
        %v5654 = vmul.f32 %v1286, %v5650
        %v5655 = vmul.f32 %v1216, %v5650
        %v5656 = vmul.f32 %v1300, %v5650
        %v5657 = vmul.f32 %v1287, %v5650
        %v5658 = vmul.f32 %v1219, %v5650
        %v5659 = vmul.f32 %v1301, %v5650
        %v5660 = vmul.f32 %v1288, %v5650
        %v5661 = vmul.f32 %v1222, %v5650
        %v5662 = vmul.f32 %v1302, %v5650
        %v5663 = vmul.f32 %v1289, %v5650
        %v5664 = vmul.f32 %v1225, %v5650
        %v5665 = vmul.f32 %v1303, %v5650
        %v5666 = vmul.f32 %v1290, %v5650
        %v5667 = vmul.f32 %v1228, %v5650
        %v5668 = vmul.f32 %v1304, %v5650
        %v5669 = vmul.f32 %v1291, %v5650
        %v5670 = vmul.f32 %v1231, %v5650
        %v5671 = vmul.f32 %v1305, %v5650
        %v5672 = vmul.f32 %v1292, %v5650
        %v5673 = vmul.f32 %v1234, %v5650
        %v5674 = vmul.f32 %v1306, %v5650
        %v5699 = vrot.slane %v5651, 5
        %v5700 = vrot.slane %v5652, 5
        %v5701 = vsel %vm1195, %v5699, %v5700
        %v5702 = vrot.slane %v5653, 5
        %v5703 = vsel %vm1195, %v5700, %v5702
        %v5704 = vrot.slane %v5654, 5
        %v5705 = vrot.slane %v5655, 5
        %v5706 = vsel %vm1195, %v5704, %v5705
        %v5707 = vrot.slane %v5656, 5
        %v5708 = vsel %vm1195, %v5705, %v5707
        %v5709 = vrot.slane %v5657, 5
        %v5710 = vrot.slane %v5658, 5
        %v5711 = vsel %vm1195, %v5709, %v5710
        %v5712 = vrot.slane %v5659, 5
        %v5713 = vsel %vm1195, %v5710, %v5712
        %v5714 = vrot.slane %v5660, 5
        %v5715 = vrot.slane %v5661, 5
        %v5716 = vsel %vm1195, %v5714, %v5715
        %v5717 = vrot.slane %v5662, 5
        %v5718 = vsel %vm1195, %v5715, %v5717
        %v5719 = vrot.slane %v5663, 5
        %v5720 = vrot.slane %v5664, 5
        %v5721 = vsel %vm1195, %v5719, %v5720
        %v5722 = vrot.slane %v5665, 5
        %v5723 = vsel %vm1195, %v5720, %v5722
        %v5724 = vrot.slane %v5666, 5
        %v5725 = vrot.slane %v5667, 5
        %v5726 = vsel %vm1195, %v5724, %v5725
        %v5727 = vrot.slane %v5668, 5
        %v5728 = vsel %vm1195, %v5725, %v5727
        %v5729 = vrot.slane %v5669, 5
        %v5730 = vrot.slane %v5670, 5
        %v5731 = vsel %vm1195, %v5729, %v5730
        %v5732 = vrot.slane %v5671, 5
        %v5733 = vsel %vm1195, %v5730, %v5732
        %v5734 = vrot.slane %v5672, 5
        %v5735 = vrot.slane %v5673, 5
        %v5736 = vsel %vm1195, %v5734, %v5735
        %v5737 = vrot.slane %v5674, 5
        %v5738 = vsel %vm1195, %v5735, %v5737
        %v5755 = vadd.f32 %v5631, %v5701
        %v5756 = vadd.f32 %v5632, %v5703
        %v5757 = vadd.f32 %v5633, %v5706
        %v5758 = vadd.f32 %v5634, %v5708
        %v5759 = vadd.f32 %v5635, %v5711
        %v5760 = vadd.f32 %v5636, %v5713
        %v5761 = vadd.f32 %v5637, %v5716
        %v5762 = vadd.f32 %v5638, %v5718
        %v5763 = vadd.f32 %v5639, %v5721
        %v5764 = vadd.f32 %v5640, %v5723
        %v5765 = vadd.f32 %v5641, %v5726
        %v5766 = vadd.f32 %v5642, %v5728
        %v5767 = vadd.f32 %v5643, %v5731
        %v5768 = vadd.f32 %v5644, %v5733
        %v5769 = vadd.f32 %v5645, %v5736
        %v5770 = vadd.f32 %v5646, %v5738
        %v5771 = vlaneseq
        %v5772 = vshrl.u32 %v5771, 7
        %v5773 = vsub.s32 7, %v5772
        %v5774 = vrot.slane %v1313, %v5773
        %v5775 = vmul.f32 %v1286, %v5774
        %v5776 = vmul.f32 %v1216, %v5774
        %v5777 = vmul.f32 %v1300, %v5774
        %v5778 = vmul.f32 %v1287, %v5774
        %v5779 = vmul.f32 %v1219, %v5774
        %v5780 = vmul.f32 %v1301, %v5774
        %v5781 = vmul.f32 %v1288, %v5774
        %v5782 = vmul.f32 %v1222, %v5774
        %v5783 = vmul.f32 %v1302, %v5774
        %v5784 = vmul.f32 %v1289, %v5774
        %v5785 = vmul.f32 %v1225, %v5774
        %v5786 = vmul.f32 %v1303, %v5774
        %v5787 = vmul.f32 %v1290, %v5774
        %v5788 = vmul.f32 %v1228, %v5774
        %v5789 = vmul.f32 %v1304, %v5774
        %v5790 = vmul.f32 %v1291, %v5774
        %v5791 = vmul.f32 %v1231, %v5774
        %v5792 = vmul.f32 %v1305, %v5774
        %v5793 = vmul.f32 %v1292, %v5774
        %v5794 = vmul.f32 %v1234, %v5774
        %v5795 = vmul.f32 %v1306, %v5774
        %v5796 = vmul.f32 %v1293, %v5774
        %v5797 = vmul.f32 %v1237, %v5774
        %v5798 = vmul.f32 %v1307, %v5774
        %v5823 = vrot.slane %v5775, 5
        %v5824 = vrot.slane %v5776, 5
        %v5825 = vsel %vm1195, %v5823, %v5824
        %v5826 = vrot.slane %v5777, 5
        %v5827 = vsel %vm1195, %v5824, %v5826
        %v5828 = vrot.slane %v5778, 5
        %v5829 = vrot.slane %v5779, 5
        %v5830 = vsel %vm1195, %v5828, %v5829
        %v5831 = vrot.slane %v5780, 5
        %v5832 = vsel %vm1195, %v5829, %v5831
        %v5833 = vrot.slane %v5781, 5
        %v5834 = vrot.slane %v5782, 5
        %v5835 = vsel %vm1195, %v5833, %v5834
        %v5836 = vrot.slane %v5783, 5
        %v5837 = vsel %vm1195, %v5834, %v5836
        %v5838 = vrot.slane %v5784, 5
        %v5839 = vrot.slane %v5785, 5
        %v5840 = vsel %vm1195, %v5838, %v5839
        %v5841 = vrot.slane %v5786, 5
        %v5842 = vsel %vm1195, %v5839, %v5841
        %v5843 = vrot.slane %v5787, 5
        %v5844 = vrot.slane %v5788, 5
        %v5845 = vsel %vm1195, %v5843, %v5844
        %v5846 = vrot.slane %v5789, 5
        %v5847 = vsel %vm1195, %v5844, %v5846
        %v5848 = vrot.slane %v5790, 5
        %v5849 = vrot.slane %v5791, 5
        %v5850 = vsel %vm1195, %v5848, %v5849
        %v5851 = vrot.slane %v5792, 5
        %v5852 = vsel %vm1195, %v5849, %v5851
        %v5853 = vrot.slane %v5793, 5
        %v5854 = vrot.slane %v5794, 5
        %v5855 = vsel %vm1195, %v5853, %v5854
        %v5856 = vrot.slane %v5795, 5
        %v5857 = vsel %vm1195, %v5854, %v5856
        %v5858 = vrot.slane %v5796, 5
        %v5859 = vrot.slane %v5797, 5
        %v5860 = vsel %vm1195, %v5858, %v5859
        %v5861 = vrot.slane %v5798, 5
        %v5862 = vsel %vm1195, %v5859, %v5861
        %v5879 = vadd.f32 %v5755, %v5825
        %v5880 = vadd.f32 %v5756, %v5827
        %v5881 = vadd.f32 %v5757, %v5830
        %v5882 = vadd.f32 %v5758, %v5832
        %v5883 = vadd.f32 %v5759, %v5835
        %v5884 = vadd.f32 %v5760, %v5837
        %v5885 = vadd.f32 %v5761, %v5840
        %v5886 = vadd.f32 %v5762, %v5842
        %v5887 = vadd.f32 %v5763, %v5845
        %v5888 = vadd.f32 %v5764, %v5847
        %v5889 = vadd.f32 %v5765, %v5850
        %v5890 = vadd.f32 %v5766, %v5852
        %v5891 = vadd.f32 %v5767, %v5855
        %v5892 = vadd.f32 %v5768, %v5857
        %v5893 = vadd.f32 %v5769, %v5860
        %v5894 = vadd.f32 %v5770, %v5862
        %v5895 = vlaneseq
        %v5896 = vshrl.u32 %v5895, 7
        %v5897 = vsub.s32 6, %v5896
        %v5898 = vrot.slane %v1308, %v5897
        %v5899 = vmul.f32 %v1280, %v5898
        %v5900 = vmul.f32 %v1198, %v5898
        %v5901 = vmul.f32 %v1294, %v5898
        %v5902 = vmul.f32 %v1281, %v5898
        %v5903 = vmul.f32 %v1201, %v5898
        %v5904 = vmul.f32 %v1295, %v5898
        %v5905 = vmul.f32 %v1282, %v5898
        %v5906 = vmul.f32 %v1204, %v5898
        %v5907 = vmul.f32 %v1296, %v5898
        %v5908 = vmul.f32 %v1283, %v5898
        %v5909 = vmul.f32 %v1207, %v5898
        %v5910 = vmul.f32 %v1297, %v5898
        %v5911 = vmul.f32 %v1284, %v5898
        %v5912 = vmul.f32 %v1210, %v5898
        %v5913 = vmul.f32 %v1298, %v5898
        %v5914 = vmul.f32 %v1285, %v5898
        %v5915 = vmul.f32 %v1213, %v5898
        %v5916 = vmul.f32 %v1299, %v5898
        %v5917 = vmul.f32 %v1286, %v5898
        %v5918 = vmul.f32 %v1216, %v5898
        %v5919 = vmul.f32 %v1300, %v5898
        %v5920 = vmul.f32 %v1287, %v5898
        %v5921 = vmul.f32 %v1219, %v5898
        %v5922 = vmul.f32 %v1301, %v5898
        %vm5947 = vcmask 1041408
        %v5948 = vrot.slane %v5899, 6
        %v5949 = vrot.slane %v5900, 6
        %v5950 = vsel %vm5947, %v5948, %v5949
        %v5951 = vrot.slane %v5901, 6
        %v5952 = vsel %vm5947, %v5949, %v5951
        %v5953 = vrot.slane %v5902, 6
        %v5954 = vrot.slane %v5903, 6
        %v5955 = vsel %vm5947, %v5953, %v5954
        %v5956 = vrot.slane %v5904, 6
        %v5957 = vsel %vm5947, %v5954, %v5956
        %v5958 = vrot.slane %v5905, 6
        %v5959 = vrot.slane %v5906, 6
        %v5960 = vsel %vm5947, %v5958, %v5959
        %v5961 = vrot.slane %v5907, 6
        %v5962 = vsel %vm5947, %v5959, %v5961
        %v5963 = vrot.slane %v5908, 6
        %v5964 = vrot.slane %v5909, 6
        %v5965 = vsel %vm5947, %v5963, %v5964
        %v5966 = vrot.slane %v5910, 6
        %v5967 = vsel %vm5947, %v5964, %v5966
        %v5968 = vrot.slane %v5911, 6
        %v5969 = vrot.slane %v5912, 6
        %v5970 = vsel %vm5947, %v5968, %v5969
        %v5971 = vrot.slane %v5913, 6
        %v5972 = vsel %vm5947, %v5969, %v5971
        %v5973 = vrot.slane %v5914, 6
        %v5974 = vrot.slane %v5915, 6
        %v5975 = vsel %vm5947, %v5973, %v5974
        %v5976 = vrot.slane %v5916, 6
        %v5977 = vsel %vm5947, %v5974, %v5976
        %v5978 = vrot.slane %v5917, 6
        %v5979 = vrot.slane %v5918, 6
        %v5980 = vsel %vm5947, %v5978, %v5979
        %v5981 = vrot.slane %v5919, 6
        %v5982 = vsel %vm5947, %v5979, %v5981
        %v5983 = vrot.slane %v5920, 6
        %v5984 = vrot.slane %v5921, 6
        %v5985 = vsel %vm5947, %v5983, %v5984
        %v5986 = vrot.slane %v5922, 6
        %v5987 = vsel %vm5947, %v5984, %v5986
        %v6004 = vadd.f32 %v5879, %v5950
        %v6005 = vadd.f32 %v5880, %v5952
        %v6006 = vadd.f32 %v5881, %v5955
        %v6007 = vadd.f32 %v5882, %v5957
        %v6008 = vadd.f32 %v5883, %v5960
        %v6009 = vadd.f32 %v5884, %v5962
        %v6010 = vadd.f32 %v5885, %v5965
        %v6011 = vadd.f32 %v5886, %v5967
        %v6012 = vadd.f32 %v5887, %v5970
        %v6013 = vadd.f32 %v5888, %v5972
        %v6014 = vadd.f32 %v5889, %v5975
        %v6015 = vadd.f32 %v5890, %v5977
        %v6016 = vadd.f32 %v5891, %v5980
        %v6017 = vadd.f32 %v5892, %v5982
        %v6018 = vadd.f32 %v5893, %v5985
        %v6019 = vadd.f32 %v5894, %v5987
        %v6020 = vlaneseq
        %v6021 = vshrl.u32 %v6020, 7
        %v6022 = vsub.s32 5, %v6021
        %v6023 = vrot.slane %v1309, %v6022
        %v6024 = vmul.f32 %v1281, %v6023
        %v6025 = vmul.f32 %v1201, %v6023
        %v6026 = vmul.f32 %v1295, %v6023
        %v6027 = vmul.f32 %v1282, %v6023
        %v6028 = vmul.f32 %v1204, %v6023
        %v6029 = vmul.f32 %v1296, %v6023
        %v6030 = vmul.f32 %v1283, %v6023
        %v6031 = vmul.f32 %v1207, %v6023
        %v6032 = vmul.f32 %v1297, %v6023
        %v6033 = vmul.f32 %v1284, %v6023
        %v6034 = vmul.f32 %v1210, %v6023
        %v6035 = vmul.f32 %v1298, %v6023
        %v6036 = vmul.f32 %v1285, %v6023
        %v6037 = vmul.f32 %v1213, %v6023
        %v6038 = vmul.f32 %v1299, %v6023
        %v6039 = vmul.f32 %v1286, %v6023
        %v6040 = vmul.f32 %v1216, %v6023
        %v6041 = vmul.f32 %v1300, %v6023
        %v6042 = vmul.f32 %v1287, %v6023
        %v6043 = vmul.f32 %v1219, %v6023
        %v6044 = vmul.f32 %v1301, %v6023
        %v6045 = vmul.f32 %v1288, %v6023
        %v6046 = vmul.f32 %v1222, %v6023
        %v6047 = vmul.f32 %v1302, %v6023
        %v6072 = vrot.slane %v6024, 6
        %v6073 = vrot.slane %v6025, 6
        %v6074 = vsel %vm5947, %v6072, %v6073
        %v6075 = vrot.slane %v6026, 6
        %v6076 = vsel %vm5947, %v6073, %v6075
        %v6077 = vrot.slane %v6027, 6
        %v6078 = vrot.slane %v6028, 6
        %v6079 = vsel %vm5947, %v6077, %v6078
        %v6080 = vrot.slane %v6029, 6
        %v6081 = vsel %vm5947, %v6078, %v6080
        %v6082 = vrot.slane %v6030, 6
        %v6083 = vrot.slane %v6031, 6
        %v6084 = vsel %vm5947, %v6082, %v6083
        %v6085 = vrot.slane %v6032, 6
        %v6086 = vsel %vm5947, %v6083, %v6085
        %v6087 = vrot.slane %v6033, 6
        %v6088 = vrot.slane %v6034, 6
        %v6089 = vsel %vm5947, %v6087, %v6088
        %v6090 = vrot.slane %v6035, 6
        %v6091 = vsel %vm5947, %v6088, %v6090
        %v6092 = vrot.slane %v6036, 6
        %v6093 = vrot.slane %v6037, 6
        %v6094 = vsel %vm5947, %v6092, %v6093
        %v6095 = vrot.slane %v6038, 6
        %v6096 = vsel %vm5947, %v6093, %v6095
        %v6097 = vrot.slane %v6039, 6
        %v6098 = vrot.slane %v6040, 6
        %v6099 = vsel %vm5947, %v6097, %v6098
        %v6100 = vrot.slane %v6041, 6
        %v6101 = vsel %vm5947, %v6098, %v6100
        %v6102 = vrot.slane %v6042, 6
        %v6103 = vrot.slane %v6043, 6
        %v6104 = vsel %vm5947, %v6102, %v6103
        %v6105 = vrot.slane %v6044, 6
        %v6106 = vsel %vm5947, %v6103, %v6105
        %v6107 = vrot.slane %v6045, 6
        %v6108 = vrot.slane %v6046, 6
        %v6109 = vsel %vm5947, %v6107, %v6108
        %v6110 = vrot.slane %v6047, 6
        %v6111 = vsel %vm5947, %v6108, %v6110
        %v6128 = vadd.f32 %v6004, %v6074
        %v6129 = vadd.f32 %v6005, %v6076
        %v6130 = vadd.f32 %v6006, %v6079
        %v6131 = vadd.f32 %v6007, %v6081
        %v6132 = vadd.f32 %v6008, %v6084
        %v6133 = vadd.f32 %v6009, %v6086
        %v6134 = vadd.f32 %v6010, %v6089
        %v6135 = vadd.f32 %v6011, %v6091
        %v6136 = vadd.f32 %v6012, %v6094
        %v6137 = vadd.f32 %v6013, %v6096
        %v6138 = vadd.f32 %v6014, %v6099
        %v6139 = vadd.f32 %v6015, %v6101
        %v6140 = vadd.f32 %v6016, %v6104
        %v6141 = vadd.f32 %v6017, %v6106
        %v6142 = vadd.f32 %v6018, %v6109
        %v6143 = vadd.f32 %v6019, %v6111
        %v6144 = vlaneseq
        %v6145 = vshrl.u32 %v6144, 7
        %v6146 = vsub.s32 4, %v6145
        %v6147 = vrot.slane %v1310, %v6146
        %v6148 = vmul.f32 %v1282, %v6147
        %v6149 = vmul.f32 %v1204, %v6147
        %v6150 = vmul.f32 %v1296, %v6147
        %v6151 = vmul.f32 %v1283, %v6147
        %v6152 = vmul.f32 %v1207, %v6147
        %v6153 = vmul.f32 %v1297, %v6147
        %v6154 = vmul.f32 %v1284, %v6147
        %v6155 = vmul.f32 %v1210, %v6147
        %v6156 = vmul.f32 %v1298, %v6147
        %v6157 = vmul.f32 %v1285, %v6147
        %v6158 = vmul.f32 %v1213, %v6147
        %v6159 = vmul.f32 %v1299, %v6147
        %v6160 = vmul.f32 %v1286, %v6147
        %v6161 = vmul.f32 %v1216, %v6147
        %v6162 = vmul.f32 %v1300, %v6147
        %v6163 = vmul.f32 %v1287, %v6147
        %v6164 = vmul.f32 %v1219, %v6147
        %v6165 = vmul.f32 %v1301, %v6147
        %v6166 = vmul.f32 %v1288, %v6147
        %v6167 = vmul.f32 %v1222, %v6147
        %v6168 = vmul.f32 %v1302, %v6147
        %v6169 = vmul.f32 %v1289, %v6147
        %v6170 = vmul.f32 %v1225, %v6147
        %v6171 = vmul.f32 %v1303, %v6147
        %v6196 = vrot.slane %v6148, 6
        %v6197 = vrot.slane %v6149, 6
        %v6198 = vsel %vm5947, %v6196, %v6197
        %v6199 = vrot.slane %v6150, 6
        %v6200 = vsel %vm5947, %v6197, %v6199
        %v6201 = vrot.slane %v6151, 6
        %v6202 = vrot.slane %v6152, 6
        %v6203 = vsel %vm5947, %v6201, %v6202
        %v6204 = vrot.slane %v6153, 6
        %v6205 = vsel %vm5947, %v6202, %v6204
        %v6206 = vrot.slane %v6154, 6
        %v6207 = vrot.slane %v6155, 6
        %v6208 = vsel %vm5947, %v6206, %v6207
        %v6209 = vrot.slane %v6156, 6
        %v6210 = vsel %vm5947, %v6207, %v6209
        %v6211 = vrot.slane %v6157, 6
        %v6212 = vrot.slane %v6158, 6
        %v6213 = vsel %vm5947, %v6211, %v6212
        %v6214 = vrot.slane %v6159, 6
        %v6215 = vsel %vm5947, %v6212, %v6214
        %v6216 = vrot.slane %v6160, 6
        %v6217 = vrot.slane %v6161, 6
        %v6218 = vsel %vm5947, %v6216, %v6217
        %v6219 = vrot.slane %v6162, 6
        %v6220 = vsel %vm5947, %v6217, %v6219
        %v6221 = vrot.slane %v6163, 6
        %v6222 = vrot.slane %v6164, 6
        %v6223 = vsel %vm5947, %v6221, %v6222
        %v6224 = vrot.slane %v6165, 6
        %v6225 = vsel %vm5947, %v6222, %v6224
        %v6226 = vrot.slane %v6166, 6
        %v6227 = vrot.slane %v6167, 6
        %v6228 = vsel %vm5947, %v6226, %v6227
        %v6229 = vrot.slane %v6168, 6
        %v6230 = vsel %vm5947, %v6227, %v6229
        %v6231 = vrot.slane %v6169, 6
        %v6232 = vrot.slane %v6170, 6
        %v6233 = vsel %vm5947, %v6231, %v6232
        %v6234 = vrot.slane %v6171, 6
        %v6235 = vsel %vm5947, %v6232, %v6234
        %v6252 = vadd.f32 %v6128, %v6198
        %v6253 = vadd.f32 %v6129, %v6200
        %v6254 = vadd.f32 %v6130, %v6203
        %v6255 = vadd.f32 %v6131, %v6205
        %v6256 = vadd.f32 %v6132, %v6208
        %v6257 = vadd.f32 %v6133, %v6210
        %v6258 = vadd.f32 %v6134, %v6213
        %v6259 = vadd.f32 %v6135, %v6215
        %v6260 = vadd.f32 %v6136, %v6218
        %v6261 = vadd.f32 %v6137, %v6220
        %v6262 = vadd.f32 %v6138, %v6223
        %v6263 = vadd.f32 %v6139, %v6225
        %v6264 = vadd.f32 %v6140, %v6228
        %v6265 = vadd.f32 %v6141, %v6230
        %v6266 = vadd.f32 %v6142, %v6233
        %v6267 = vadd.f32 %v6143, %v6235
        %v6268 = vlaneseq
        %v6269 = vshrl.u32 %v6268, 7
        %v6270 = vsub.s32 3, %v6269
        %v6271 = vrot.slane %v1311, %v6270
        %v6272 = vmul.f32 %v1283, %v6271
        %v6273 = vmul.f32 %v1207, %v6271
        %v6274 = vmul.f32 %v1297, %v6271
        %v6275 = vmul.f32 %v1284, %v6271
        %v6276 = vmul.f32 %v1210, %v6271
        %v6277 = vmul.f32 %v1298, %v6271
        %v6278 = vmul.f32 %v1285, %v6271
        %v6279 = vmul.f32 %v1213, %v6271
        %v6280 = vmul.f32 %v1299, %v6271
        %v6281 = vmul.f32 %v1286, %v6271
        %v6282 = vmul.f32 %v1216, %v6271
        %v6283 = vmul.f32 %v1300, %v6271
        %v6284 = vmul.f32 %v1287, %v6271
        %v6285 = vmul.f32 %v1219, %v6271
        %v6286 = vmul.f32 %v1301, %v6271
        %v6287 = vmul.f32 %v1288, %v6271
        %v6288 = vmul.f32 %v1222, %v6271
        %v6289 = vmul.f32 %v1302, %v6271
        %v6290 = vmul.f32 %v1289, %v6271
        %v6291 = vmul.f32 %v1225, %v6271
        %v6292 = vmul.f32 %v1303, %v6271
        %v6293 = vmul.f32 %v1290, %v6271
        %v6294 = vmul.f32 %v1228, %v6271
        %v6295 = vmul.f32 %v1304, %v6271
        %v6320 = vrot.slane %v6272, 6
        %v6321 = vrot.slane %v6273, 6
        %v6322 = vsel %vm5947, %v6320, %v6321
        %v6323 = vrot.slane %v6274, 6
        %v6324 = vsel %vm5947, %v6321, %v6323
        %v6325 = vrot.slane %v6275, 6
        %v6326 = vrot.slane %v6276, 6
        %v6327 = vsel %vm5947, %v6325, %v6326
        %v6328 = vrot.slane %v6277, 6
        %v6329 = vsel %vm5947, %v6326, %v6328
        %v6330 = vrot.slane %v6278, 6
        %v6331 = vrot.slane %v6279, 6
        %v6332 = vsel %vm5947, %v6330, %v6331
        %v6333 = vrot.slane %v6280, 6
        %v6334 = vsel %vm5947, %v6331, %v6333
        %v6335 = vrot.slane %v6281, 6
        %v6336 = vrot.slane %v6282, 6
        %v6337 = vsel %vm5947, %v6335, %v6336
        %v6338 = vrot.slane %v6283, 6
        %v6339 = vsel %vm5947, %v6336, %v6338
        %v6340 = vrot.slane %v6284, 6
        %v6341 = vrot.slane %v6285, 6
        %v6342 = vsel %vm5947, %v6340, %v6341
        %v6343 = vrot.slane %v6286, 6
        %v6344 = vsel %vm5947, %v6341, %v6343
        %v6345 = vrot.slane %v6287, 6
        %v6346 = vrot.slane %v6288, 6
        %v6347 = vsel %vm5947, %v6345, %v6346
        %v6348 = vrot.slane %v6289, 6
        %v6349 = vsel %vm5947, %v6346, %v6348
        %v6350 = vrot.slane %v6290, 6
        %v6351 = vrot.slane %v6291, 6
        %v6352 = vsel %vm5947, %v6350, %v6351
        %v6353 = vrot.slane %v6292, 6
        %v6354 = vsel %vm5947, %v6351, %v6353
        %v6355 = vrot.slane %v6293, 6
        %v6356 = vrot.slane %v6294, 6
        %v6357 = vsel %vm5947, %v6355, %v6356
        %v6358 = vrot.slane %v6295, 6
        %v6359 = vsel %vm5947, %v6356, %v6358
        %v6376 = vadd.f32 %v6252, %v6322
        %v6377 = vadd.f32 %v6253, %v6324
        %v6378 = vadd.f32 %v6254, %v6327
        %v6379 = vadd.f32 %v6255, %v6329
        %v6380 = vadd.f32 %v6256, %v6332
        %v6381 = vadd.f32 %v6257, %v6334
        %v6382 = vadd.f32 %v6258, %v6337
        %v6383 = vadd.f32 %v6259, %v6339
        %v6384 = vadd.f32 %v6260, %v6342
        %v6385 = vadd.f32 %v6261, %v6344
        %v6386 = vadd.f32 %v6262, %v6347
        %v6387 = vadd.f32 %v6263, %v6349
        %v6388 = vadd.f32 %v6264, %v6352
        %v6389 = vadd.f32 %v6265, %v6354
        %v6390 = vadd.f32 %v6266, %v6357
        %v6391 = vadd.f32 %v6267, %v6359
        %v6392 = vlaneseq
        %v6393 = vshrl.u32 %v6392, 7
        %v6394 = vsub.s32 2, %v6393
        %v6395 = vrot.slane %v1312, %v6394
        %v6396 = vmul.f32 %v1284, %v6395
        %v6397 = vmul.f32 %v1210, %v6395
        %v6398 = vmul.f32 %v1298, %v6395
        %v6399 = vmul.f32 %v1285, %v6395
        %v6400 = vmul.f32 %v1213, %v6395
        %v6401 = vmul.f32 %v1299, %v6395
        %v6402 = vmul.f32 %v1286, %v6395
        %v6403 = vmul.f32 %v1216, %v6395
        %v6404 = vmul.f32 %v1300, %v6395
        %v6405 = vmul.f32 %v1287, %v6395
        %v6406 = vmul.f32 %v1219, %v6395
        %v6407 = vmul.f32 %v1301, %v6395
        %v6408 = vmul.f32 %v1288, %v6395
        %v6409 = vmul.f32 %v1222, %v6395
        %v6410 = vmul.f32 %v1302, %v6395
        %v6411 = vmul.f32 %v1289, %v6395
        %v6412 = vmul.f32 %v1225, %v6395
        %v6413 = vmul.f32 %v1303, %v6395
        %v6414 = vmul.f32 %v1290, %v6395
        %v6415 = vmul.f32 %v1228, %v6395
        %v6416 = vmul.f32 %v1304, %v6395
        %v6417 = vmul.f32 %v1291, %v6395
        %v6418 = vmul.f32 %v1231, %v6395
        %v6419 = vmul.f32 %v1305, %v6395
        %v6444 = vrot.slane %v6396, 6
        %v6445 = vrot.slane %v6397, 6
        %v6446 = vsel %vm5947, %v6444, %v6445
        %v6447 = vrot.slane %v6398, 6
        %v6448 = vsel %vm5947, %v6445, %v6447
        %v6449 = vrot.slane %v6399, 6
        %v6450 = vrot.slane %v6400, 6
        %v6451 = vsel %vm5947, %v6449, %v6450
        %v6452 = vrot.slane %v6401, 6
        %v6453 = vsel %vm5947, %v6450, %v6452
        %v6454 = vrot.slane %v6402, 6
        %v6455 = vrot.slane %v6403, 6
        %v6456 = vsel %vm5947, %v6454, %v6455
        %v6457 = vrot.slane %v6404, 6
        %v6458 = vsel %vm5947, %v6455, %v6457
        %v6459 = vrot.slane %v6405, 6
        %v6460 = vrot.slane %v6406, 6
        %v6461 = vsel %vm5947, %v6459, %v6460
        %v6462 = vrot.slane %v6407, 6
        %v6463 = vsel %vm5947, %v6460, %v6462
        %v6464 = vrot.slane %v6408, 6
        %v6465 = vrot.slane %v6409, 6
        %v6466 = vsel %vm5947, %v6464, %v6465
        %v6467 = vrot.slane %v6410, 6
        %v6468 = vsel %vm5947, %v6465, %v6467
        %v6469 = vrot.slane %v6411, 6
        %v6470 = vrot.slane %v6412, 6
        %v6471 = vsel %vm5947, %v6469, %v6470
        %v6472 = vrot.slane %v6413, 6
        %v6473 = vsel %vm5947, %v6470, %v6472
        %v6474 = vrot.slane %v6414, 6
        %v6475 = vrot.slane %v6415, 6
        %v6476 = vsel %vm5947, %v6474, %v6475
        %v6477 = vrot.slane %v6416, 6
        %v6478 = vsel %vm5947, %v6475, %v6477
        %v6479 = vrot.slane %v6417, 6
        %v6480 = vrot.slane %v6418, 6
        %v6481 = vsel %vm5947, %v6479, %v6480
        %v6482 = vrot.slane %v6419, 6
        %v6483 = vsel %vm5947, %v6480, %v6482
        %v6500 = vadd.f32 %v6376, %v6446
        %v6501 = vadd.f32 %v6377, %v6448
        %v6502 = vadd.f32 %v6378, %v6451
        %v6503 = vadd.f32 %v6379, %v6453
        %v6504 = vadd.f32 %v6380, %v6456
        %v6505 = vadd.f32 %v6381, %v6458
        %v6506 = vadd.f32 %v6382, %v6461
        %v6507 = vadd.f32 %v6383, %v6463
        %v6508 = vadd.f32 %v6384, %v6466
        %v6509 = vadd.f32 %v6385, %v6468
        %v6510 = vadd.f32 %v6386, %v6471
        %v6511 = vadd.f32 %v6387, %v6473
        %v6512 = vadd.f32 %v6388, %v6476
        %v6513 = vadd.f32 %v6389, %v6478
        %v6514 = vadd.f32 %v6390, %v6481
        %v6515 = vadd.f32 %v6391, %v6483
        %v6516 = vlaneseq
        %v6517 = vshrl.u32 %v6516, 7
        %v6518 = vsub.s32 1, %v6517
        %v6519 = vrot.slane %v1313, %v6518
        %v6520 = vmul.f32 %v1285, %v6519
        %v6521 = vmul.f32 %v1213, %v6519
        %v6522 = vmul.f32 %v1299, %v6519
        %v6523 = vmul.f32 %v1286, %v6519
        %v6524 = vmul.f32 %v1216, %v6519
        %v6525 = vmul.f32 %v1300, %v6519
        %v6526 = vmul.f32 %v1287, %v6519
        %v6527 = vmul.f32 %v1219, %v6519
        %v6528 = vmul.f32 %v1301, %v6519
        %v6529 = vmul.f32 %v1288, %v6519
        %v6530 = vmul.f32 %v1222, %v6519
        %v6531 = vmul.f32 %v1302, %v6519
        %v6532 = vmul.f32 %v1289, %v6519
        %v6533 = vmul.f32 %v1225, %v6519
        %v6534 = vmul.f32 %v1303, %v6519
        %v6535 = vmul.f32 %v1290, %v6519
        %v6536 = vmul.f32 %v1228, %v6519
        %v6537 = vmul.f32 %v1304, %v6519
        %v6538 = vmul.f32 %v1291, %v6519
        %v6539 = vmul.f32 %v1231, %v6519
        %v6540 = vmul.f32 %v1305, %v6519
        %v6541 = vmul.f32 %v1292, %v6519
        %v6542 = vmul.f32 %v1234, %v6519
        %v6543 = vmul.f32 %v1306, %v6519
        %v6568 = vrot.slane %v6520, 6
        %v6569 = vrot.slane %v6521, 6
        %v6570 = vsel %vm5947, %v6568, %v6569
        %v6571 = vrot.slane %v6522, 6
        %v6572 = vsel %vm5947, %v6569, %v6571
        %v6573 = vrot.slane %v6523, 6
        %v6574 = vrot.slane %v6524, 6
        %v6575 = vsel %vm5947, %v6573, %v6574
        %v6576 = vrot.slane %v6525, 6
        %v6577 = vsel %vm5947, %v6574, %v6576
        %v6578 = vrot.slane %v6526, 6
        %v6579 = vrot.slane %v6527, 6
        %v6580 = vsel %vm5947, %v6578, %v6579
        %v6581 = vrot.slane %v6528, 6
        %v6582 = vsel %vm5947, %v6579, %v6581
        %v6583 = vrot.slane %v6529, 6
        %v6584 = vrot.slane %v6530, 6
        %v6585 = vsel %vm5947, %v6583, %v6584
        %v6586 = vrot.slane %v6531, 6
        %v6587 = vsel %vm5947, %v6584, %v6586
        %v6588 = vrot.slane %v6532, 6
        %v6589 = vrot.slane %v6533, 6
        %v6590 = vsel %vm5947, %v6588, %v6589
        %v6591 = vrot.slane %v6534, 6
        %v6592 = vsel %vm5947, %v6589, %v6591
        %v6593 = vrot.slane %v6535, 6
        %v6594 = vrot.slane %v6536, 6
        %v6595 = vsel %vm5947, %v6593, %v6594
        %v6596 = vrot.slane %v6537, 6
        %v6597 = vsel %vm5947, %v6594, %v6596
        %v6598 = vrot.slane %v6538, 6
        %v6599 = vrot.slane %v6539, 6
        %v6600 = vsel %vm5947, %v6598, %v6599
        %v6601 = vrot.slane %v6540, 6
        %v6602 = vsel %vm5947, %v6599, %v6601
        %v6603 = vrot.slane %v6541, 6
        %v6604 = vrot.slane %v6542, 6
        %v6605 = vsel %vm5947, %v6603, %v6604
        %v6606 = vrot.slane %v6543, 6
        %v6607 = vsel %vm5947, %v6604, %v6606
        %v6624 = vadd.f32 %v6500, %v6570
        %v6625 = vadd.f32 %v6501, %v6572
        %v6626 = vadd.f32 %v6502, %v6575
        %v6627 = vadd.f32 %v6503, %v6577
        %v6628 = vadd.f32 %v6504, %v6580
        %v6629 = vadd.f32 %v6505, %v6582
        %v6630 = vadd.f32 %v6506, %v6585
        %v6631 = vadd.f32 %v6507, %v6587
        %v6632 = vadd.f32 %v6508, %v6590
        %v6633 = vadd.f32 %v6509, %v6592
        %v6634 = vadd.f32 %v6510, %v6595
        %v6635 = vadd.f32 %v6511, %v6597
        %v6636 = vadd.f32 %v6512, %v6600
        %v6637 = vadd.f32 %v6513, %v6602
        %v6638 = vadd.f32 %v6514, %v6605
        %v6639 = vadd.f32 %v6515, %v6607
        %v6640 = vlaneseq
        %v6641 = vshrl.u32 %v6640, 7
        %v6642 = vsub.s32 0, %v6641
        %v6643 = vrot.slane %v1314, %v6642
        %v6644 = vmul.f32 %v1286, %v6643
        %v6645 = vmul.f32 %v1216, %v6643
        %v6646 = vmul.f32 %v1300, %v6643
        %v6647 = vmul.f32 %v1287, %v6643
        %v6648 = vmul.f32 %v1219, %v6643
        %v6649 = vmul.f32 %v1301, %v6643
        %v6650 = vmul.f32 %v1288, %v6643
        %v6651 = vmul.f32 %v1222, %v6643
        %v6652 = vmul.f32 %v1302, %v6643
        %v6653 = vmul.f32 %v1289, %v6643
        %v6654 = vmul.f32 %v1225, %v6643
        %v6655 = vmul.f32 %v1303, %v6643
        %v6656 = vmul.f32 %v1290, %v6643
        %v6657 = vmul.f32 %v1228, %v6643
        %v6658 = vmul.f32 %v1304, %v6643
        %v6659 = vmul.f32 %v1291, %v6643
        %v6660 = vmul.f32 %v1231, %v6643
        %v6661 = vmul.f32 %v1305, %v6643
        %v6662 = vmul.f32 %v1292, %v6643
        %v6663 = vmul.f32 %v1234, %v6643
        %v6664 = vmul.f32 %v1306, %v6643
        %v6665 = vmul.f32 %v1293, %v6643
        %v6666 = vmul.f32 %v1237, %v6643
        %v6667 = vmul.f32 %v1307, %v6643
        %v6692 = vrot.slane %v6644, 6
        %v6693 = vrot.slane %v6645, 6
        %v6694 = vsel %vm5947, %v6692, %v6693
        %v6695 = vrot.slane %v6646, 6
        %v6696 = vsel %vm5947, %v6693, %v6695
        %v6697 = vrot.slane %v6647, 6
        %v6698 = vrot.slane %v6648, 6
        %v6699 = vsel %vm5947, %v6697, %v6698
        %v6700 = vrot.slane %v6649, 6
        %v6701 = vsel %vm5947, %v6698, %v6700
        %v6702 = vrot.slane %v6650, 6
        %v6703 = vrot.slane %v6651, 6
        %v6704 = vsel %vm5947, %v6702, %v6703
        %v6705 = vrot.slane %v6652, 6
        %v6706 = vsel %vm5947, %v6703, %v6705
        %v6707 = vrot.slane %v6653, 6
        %v6708 = vrot.slane %v6654, 6
        %v6709 = vsel %vm5947, %v6707, %v6708
        %v6710 = vrot.slane %v6655, 6
        %v6711 = vsel %vm5947, %v6708, %v6710
        %v6712 = vrot.slane %v6656, 6
        %v6713 = vrot.slane %v6657, 6
        %v6714 = vsel %vm5947, %v6712, %v6713
        %v6715 = vrot.slane %v6658, 6
        %v6716 = vsel %vm5947, %v6713, %v6715
        %v6717 = vrot.slane %v6659, 6
        %v6718 = vrot.slane %v6660, 6
        %v6719 = vsel %vm5947, %v6717, %v6718
        %v6720 = vrot.slane %v6661, 6
        %v6721 = vsel %vm5947, %v6718, %v6720
        %v6722 = vrot.slane %v6662, 6
        %v6723 = vrot.slane %v6663, 6
        %v6724 = vsel %vm5947, %v6722, %v6723
        %v6725 = vrot.slane %v6664, 6
        %v6726 = vsel %vm5947, %v6723, %v6725
        %v6727 = vrot.slane %v6665, 6
        %v6728 = vrot.slane %v6666, 6
        %v6729 = vsel %vm5947, %v6727, %v6728
        %v6730 = vrot.slane %v6667, 6
        %v6731 = vsel %vm5947, %v6728, %v6730
        %v6748 = vadd.f32 %v6624, %v6694
        %v6749 = vadd.f32 %v6625, %v6696
        %v6750 = vadd.f32 %v6626, %v6699
        %v6751 = vadd.f32 %v6627, %v6701
        %v6752 = vadd.f32 %v6628, %v6704
        %v6753 = vadd.f32 %v6629, %v6706
        %v6754 = vadd.f32 %v6630, %v6709
        %v6755 = vadd.f32 %v6631, %v6711
        %v6756 = vadd.f32 %v6632, %v6714
        %v6757 = vadd.f32 %v6633, %v6716
        %v6758 = vadd.f32 %v6634, %v6719
        %v6759 = vadd.f32 %v6635, %v6721
        %v6760 = vadd.f32 %v6636, %v6724
        %v6761 = vadd.f32 %v6637, %v6726
        %v6762 = vadd.f32 %v6638, %v6729
        %v6763 = vadd.f32 %v6639, %v6731
        %v6764 = vld [vmem:[#allocation8] sm:$0x1]
        %v6766 = vlaneseq
        %v6767 = vshrl.u32 %v6766, 7
        %v6768 = vsub.s32 0, %v6767
        %v6769 = vrot.slane %v6764, %v6768
        %v6771 = vadd.f32 %v6748, %v6769
        %v6772 = vadd.f32 %v6749, %v6769
        %v6773 = vadd.f32 %v6750, %v6769
        %v6774 = vadd.f32 %v6751, %v6769
        %v6775 = vadd.f32 %v6752, %v6769
        %v6776 = vadd.f32 %v6753, %v6769
        %v6777 = vadd.f32 %v6754, %v6769
        %v6778 = vadd.f32 %v6755, %v6769
        %v6779 = vadd.f32 %v6756, %v6769
        %v6780 = vadd.f32 %v6757, %v6769
        %v6781 = vadd.f32 %v6758, %v6769
        %v6782 = vadd.f32 %v6759, %v6769
        %v6783 = vadd.f32 %v6760, %v6769
        %v6784 = vadd.f32 %v6761, %v6769
        %v6785 = vadd.f32 %v6762, %v6769
        %v6786 = vadd.f32 %v6763, %v6769
        %v6803 = vrot.slane %v1283, 3
        %v6804 = vrot.slane %v1207, 3
        %v6805 = vsel %vm3341, %v6803, %v6804
        %v6806 = vrot.slane %v1297, 3
        %v6807 = vsel %vm3341, %v6804, %v6806
        %v6808 = vrot.slane %v1284, 3
        %v6809 = vrot.slane %v1210, 3
        %v6810 = vsel %vm3341, %v6808, %v6809
        %v6811 = vrot.slane %v1298, 3
        %v6812 = vsel %vm3341, %v6809, %v6811
        %v6813 = vrot.slane %v1285, 3
        %v6814 = vrot.slane %v1213, 3
        %v6815 = vsel %vm3341, %v6813, %v6814
        %v6816 = vrot.slane %v1299, 3
        %v6817 = vsel %vm3341, %v6814, %v6816
        %v6818 = vrot.slane %v1286, 3
        %v6819 = vrot.slane %v1216, 3
        %v6820 = vsel %vm3341, %v6818, %v6819
        %v6821 = vrot.slane %v1300, 3
        %v6822 = vsel %vm3341, %v6819, %v6821
        %v6823 = vrot.slane %v1287, 3
        %v6824 = vrot.slane %v1219, 3
        %v6825 = vsel %vm3341, %v6823, %v6824
        %v6826 = vrot.slane %v1301, 3
        %v6827 = vsel %vm3341, %v6824, %v6826
        %v6828 = vrot.slane %v1288, 3
        %v6829 = vrot.slane %v1222, 3
        %v6830 = vsel %vm3341, %v6828, %v6829
        %v6831 = vrot.slane %v1302, 3
        %v6832 = vsel %vm3341, %v6829, %v6831
        %v6833 = vrot.slane %v1289, 3
        %v6834 = vrot.slane %v1225, 3
        %v6835 = vsel %vm3341, %v6833, %v6834
        %v6836 = vrot.slane %v1303, 3
        %v6837 = vsel %vm3341, %v6834, %v6836
        %v6838 = vrot.slane %v1290, 3
        %v6839 = vrot.slane %v1228, 3
        %v6840 = vsel %vm3341, %v6838, %v6839
        %v6841 = vrot.slane %v1304, 3
        %v6842 = vsel %vm3341, %v6839, %v6841
        %6875 = vrot.lane.b32.xlu0 %v6771, 126
        %v6876 = vpop.permute.xlu0 %6875
        %6877 = vrot.lane.b32.xlu0 %v6772, 126
        %v6878 = vpop.permute.xlu0 %6877
        %6879 = vrot.lane.b32.xlu0 %v6773, 126
        %v6880 = vpop.permute.xlu0 %6879
        %6881 = vrot.lane.b32.xlu0 %v6774, 126
        %v6882 = vpop.permute.xlu0 %6881
        %6883 = vrot.lane.b32.xlu0 %v6775, 126
        %v6884 = vpop.permute.xlu0 %6883
        %6885 = vrot.lane.b32.xlu0 %v6776, 126
        %v6886 = vpop.permute.xlu0 %6885
        %6887 = vrot.lane.b32.xlu0 %v6777, 126
        %v6888 = vpop.permute.xlu0 %6887
        %6889 = vrot.lane.b32.xlu0 %v6778, 126
        %v6890 = vpop.permute.xlu0 %6889
        %6891 = vrot.lane.b32.xlu0 %v6779, 126
        %v6892 = vpop.permute.xlu0 %6891
        %6893 = vrot.lane.b32.xlu0 %v6780, 126
        %v6894 = vpop.permute.xlu0 %6893
        %6895 = vrot.lane.b32.xlu0 %v6781, 126
        %v6896 = vpop.permute.xlu0 %6895
        %6897 = vrot.lane.b32.xlu0 %v6782, 126
        %v6898 = vpop.permute.xlu0 %6897
        %6899 = vrot.lane.b32.xlu0 %v6783, 126
        %v6900 = vpop.permute.xlu0 %6899
        %6901 = vrot.lane.b32.xlu0 %v6784, 126
        %v6902 = vpop.permute.xlu0 %6901
        %6903 = vrot.lane.b32.xlu0 %v6785, 126
        %v6904 = vpop.permute.xlu0 %6903
        %6905 = vrot.lane.b32.xlu0 %v6786, 126
        %v6906 = vpop.permute.xlu0 %6905
        %v6923 = vmul.f32 %v6805, %v6876
        %v6924 = vmul.f32 %v6807, %v6878
        %v6925 = vmul.f32 %v6810, %v6880
        %v6926 = vmul.f32 %v6812, %v6882
        %v6927 = vmul.f32 %v6815, %v6884
        %v6928 = vmul.f32 %v6817, %v6886
        %v6929 = vmul.f32 %v6820, %v6888
        %v6930 = vmul.f32 %v6822, %v6890
        %v6931 = vmul.f32 %v6825, %v6892
        %v6932 = vmul.f32 %v6827, %v6894
        %v6933 = vmul.f32 %v6830, %v6896
        %v6934 = vmul.f32 %v6832, %v6898
        %v6935 = vmul.f32 %v6835, %v6900
        %v6936 = vmul.f32 %v6837, %v6902
        %v6937 = vmul.f32 %v6840, %v6904
        %v6938 = vmul.f32 %v6842, %v6906
        %v6939 = vld [vmem:[%s5] sm:$0x3]
        %v6940 = vld [vmem:[#allocation10] sm:$0x1]
        %v6942 = vlaneseq
        %v6943 = vshrl.u32 %v6942, 7
        %v6944 = vsub.s32 0, %v6943
        %v6945 = vrot.slane %v6940, %v6944
        %vm6947 = vcmask 15360
        %v6949 = vsel %vm6947, %v6923, 0
        %v6952 = vsel %vm6947, %v6924, 0
        %v6955 = vsel %vm6947, %v6925, 0
        %v6958 = vsel %vm6947, %v6926, 0
        %v6961 = vsel %vm6947, %v6927, 0
        %v6964 = vsel %vm6947, %v6928, 0
        %v6967 = vsel %vm6947, %v6929, 0
        %v6970 = vsel %vm6947, %v6930, 0
        %v6973 = vsel %vm6947, %v6931, 0
        %v6976 = vsel %vm6947, %v6932, 0
        %v6979 = vsel %vm6947, %v6933, 0
        %v6982 = vsel %vm6947, %v6934, 0
        %v6985 = vsel %vm6947, %v6935, 0
        %v6988 = vsel %vm6947, %v6936, 0
        %v6991 = vsel %vm6947, %v6937, 0
        %v6994 = vsel %vm6947, %v6938, 0
        %v6997 = vsel %vm5947, %v6939, 0
        %6999 = vmatprep.subr.mxu0 0.0
        %7000 = vmatpush1.msra.mxu0 %v6997
        %7001 = vmatprep.subr.mxu0 0.0
        %7002 = vmatpush1.msra.mxu0 0.0
        %7003 = vmatprep.subr.mxu0 0.0
        %7004 = vmatpush1.msra.mxu0 0.0
        %7005 = vmatprep.subr.mxu0 0.0
        %7006 = vmatpush1.msra.mxu0 0.0
        %7007 = vmatprep.subr.mxu0 0.0
        %7008 = vmatpush1.msra.mxu0 0.0
        %7009 = vmatprep.subr.mxu0 0.0
        %7010 = vmatpush1.msra.mxu0 0.0
        %7011 = vmatprep.subr.mxu0 0.0
        %7012 = vmatpush1.msra.mxu0 0.0
        %7013 = vmatprep.subr.mxu0 0.0
        %7014 = vmatpush1.msra.mxu0 0.0
        %7015 = vmatprep.subr.mxu0 0.0
        %7016 = vmatpush1.msra.mxu0 0.0
        %7017 = vmatprep.subr.mxu0 0.0
        %7018 = vmatpush1.msra.mxu0 0.0
        %7019 = vmatprep.subr.mxu0 0.0
        %7020 = vmatpush1.msra.mxu0 0.0
        %7021 = vmatprep.subr.mxu0 0.0
        %7022 = vmatpush1.msra.mxu0 0.0
        %7023 = vmatprep.subr.mxu0 0.0
        %7024 = vmatpush1.msra.mxu0 0.0
        %7025 = vmatprep.subr.mxu0 0.0
        %7026 = vmatpush1.msra.mxu0 0.0
        %7027 = vmatprep.subr.mxu0 0.0
        %7028 = vmatpush1.msra.mxu0 0.0
        %7029 = vmatprep.subr.mxu0 0.0
        %7030 = vmatpush1.msra.mxu0 0.0
        %7031 = vmatprep.subr.mxu0 0.0
        %7032 = vmatpush1.msra.mxu0 0.0
        %7033 = vmatprep.subr.mxu0 0.0
        %7034 = vmatpush1.msra.mxu0 0.0
        %7035 = vmatprep.subr.mxu0 0.0
        %7036 = vmatpush1.msra.mxu0 0.0
        %7037 = vmatprep.subr.mxu0 0.0
        %7038 = vmatpush1.msra.mxu0 0.0
        %7039 = vmatprep.subr.mxu0 0.0
        %7040 = vmatpush1.msra.mxu0 0.0
        %7041 = vmatprep.subr.mxu0 0.0
        %7042 = vmatpush1.msra.mxu0 0.0
        %7043 = vmatprep.subr.mxu0 0.0
        %7044 = vmatpush1.msra.mxu0 0.0
        %7045 = vmatprep.subr.mxu0 0.0
        %7046 = vmatpush1.msra.mxu0 0.0
        %7047 = vmatprep.subr.mxu0 0.0
        %7048 = vmatpush1.msra.mxu0 0.0
        %7049 = vmatprep.subr.mxu0 0.0
        %7050 = vmatpush1.msra.mxu0 0.0
        %7051 = vmatprep.subr.mxu0 0.0
        %7052 = vmatpush1.msra.mxu0 0.0
        %7053 = vmatprep.subr.mxu0 0.0
        %7054 = vmatpush1.msra.mxu0 0.0
        %7055 = vmatprep.subr.mxu0 0.0
        %7056 = vmatpush1.msra.mxu0 0.0
        %7057 = vmatprep.subr.mxu0 0.0
        %7058 = vmatpush1.msra.mxu0 0.0
        %7059 = vmatprep.subr.mxu0 0.0
        %7060 = vmatpush1.msra.mxu0 0.0
        %7061 = vmatprep.subr.mxu0 0.0
        %7062 = vmatpush1.msra.mxu0 0.0
        %7063 = vmatprep.mubr.f32.mxu0 0.0
        %7064 = vmatmul.mubr.f32.gmra.mrb[0].mxu0 %v6949
        %v7065 = vpop.f32.mrb[0].mxu0
        %v7066 = vadd.f32 %v6945, %v7065
        %v7067 = vpop.f32.mrb[0].mxu0
        %7068 = vmatprep.mubr.f32.mxu0 0.0
        %7069 = vmatmul.mubr.f32.gmra.mrb[0].mxu0 %v6952
        %v7070 = vpop.f32.mrb[0].mxu0
        %v7071 = vadd.f32 %v6945, %v7070
        %v7072 = vpop.f32.mrb[0].mxu0
        %7073 = vmatprep.mubr.f32.mxu0 0.0
        %7074 = vmatmul.mubr.f32.gmra.mrb[0].mxu0 %v6955
        %v7075 = vpop.f32.mrb[0].mxu0
        %v7076 = vadd.f32 %v6945, %v7075
        %v7077 = vpop.f32.mrb[0].mxu0
        %7078 = vmatprep.mubr.f32.mxu0 0.0
        %7079 = vmatmul.mubr.f32.gmra.mrb[0].mxu0 %v6958
        %v7080 = vpop.f32.mrb[0].mxu0
        %v7081 = vadd.f32 %v6945, %v7080
        %v7082 = vpop.f32.mrb[0].mxu0
        %7083 = vmatprep.mubr.f32.mxu0 0.0
        %7084 = vmatmul.mubr.f32.gmra.mrb[0].mxu0 %v6961
        %v7085 = vpop.f32.mrb[0].mxu0
        %v7086 = vadd.f32 %v6945, %v7085
        %v7087 = vpop.f32.mrb[0].mxu0
        %7088 = vmatprep.mubr.f32.mxu0 0.0
        %7089 = vmatmul.mubr.f32.gmra.mrb[0].mxu0 %v6964
        %v7090 = vpop.f32.mrb[0].mxu0
        %v7091 = vadd.f32 %v6945, %v7090
        %v7092 = vpop.f32.mrb[0].mxu0
        %7093 = vmatprep.mubr.f32.mxu0 0.0
        %7094 = vmatmul.mubr.f32.gmra.mrb[0].mxu0 %v6967
        %v7095 = vpop.f32.mrb[0].mxu0
        %v7096 = vadd.f32 %v6945, %v7095
        %v7097 = vpop.f32.mrb[0].mxu0
        %7098 = vmatprep.mubr.f32.mxu0 0.0
        %7099 = vmatmul.mubr.f32.gmra.mrb[0].mxu0 %v6970
        %v7100 = vpop.f32.mrb[0].mxu0
        %v7101 = vadd.f32 %v6945, %v7100
        %v7102 = vpop.f32.mrb[0].mxu0
        %7103 = vmatprep.mubr.f32.mxu0 0.0
        %7104 = vmatmul.mubr.f32.gmra.mrb[0].mxu0 %v6973
        %v7105 = vpop.f32.mrb[0].mxu0
        %v7106 = vadd.f32 %v6945, %v7105
        %v7107 = vpop.f32.mrb[0].mxu0
        %7108 = vmatprep.mubr.f32.mxu0 0.0
        %7109 = vmatmul.mubr.f32.gmra.mrb[0].mxu0 %v6976
        %v7110 = vpop.f32.mrb[0].mxu0
        %v7111 = vadd.f32 %v6945, %v7110
        %v7112 = vpop.f32.mrb[0].mxu0
        %7113 = vmatprep.mubr.f32.mxu0 0.0
        %7114 = vmatmul.mubr.f32.gmra.mrb[0].mxu0 %v6979
        %v7115 = vpop.f32.mrb[0].mxu0
        %v7116 = vadd.f32 %v6945, %v7115
        %v7117 = vpop.f32.mrb[0].mxu0
        %7118 = vmatprep.mubr.f32.mxu0 0.0
        %7119 = vmatmul.mubr.f32.gmra.mrb[0].mxu0 %v6982
        %v7120 = vpop.f32.mrb[0].mxu0
        %v7121 = vadd.f32 %v6945, %v7120
        %v7122 = vpop.f32.mrb[0].mxu0
        %7123 = vmatprep.mubr.f32.mxu0 0.0
        %7124 = vmatmul.mubr.f32.gmra.mrb[0].mxu0 %v6985
        %v7125 = vpop.f32.mrb[0].mxu0
        %v7126 = vadd.f32 %v6945, %v7125
        %v7127 = vpop.f32.mrb[0].mxu0
        %7128 = vmatprep.mubr.f32.mxu0 0.0
        %7129 = vmatmul.mubr.f32.gmra.mrb[0].mxu0 %v6988
        %v7130 = vpop.f32.mrb[0].mxu0
        %v7131 = vadd.f32 %v6945, %v7130
        %v7132 = vpop.f32.mrb[0].mxu0
        %7133 = vmatprep.mubr.f32.mxu0 0.0
        %7134 = vmatmul.mubr.f32.gmra.mrb[0].mxu0 %v6991
        %v7135 = vpop.f32.mrb[0].mxu0
        %v7136 = vadd.f32 %v6945, %v7135
        %v7137 = vpop.f32.mrb[0].mxu0
        %7138 = vmatprep.mubr.f32.mxu0 0.0
        %7139 = vmatmul.mubr.f32.gmra.mrb[0].mxu0 %v6994
        %v7140 = vpop.f32.mrb[0].mxu0
        %v7141 = vadd.f32 %v6945, %v7140
        %v7142 = vpop.f32.mrb[0].mxu0
        %7143 = vdwg.mxu0
        %7144 = vrot.lane.b32.xlu0 %v6771, 124
        %v7145 = vpop.permute.xlu0 %7144
        %7146 = vrot.lane.b32.xlu0 %v6772, 124
        %v7147 = vpop.permute.xlu0 %7146
        %7148 = vrot.lane.b32.xlu0 %v6773, 124
        %v7149 = vpop.permute.xlu0 %7148
        %7150 = vrot.lane.b32.xlu0 %v6774, 124
        %v7151 = vpop.permute.xlu0 %7150
        %7152 = vrot.lane.b32.xlu0 %v6775, 124
        %v7153 = vpop.permute.xlu0 %7152
        %7154 = vrot.lane.b32.xlu0 %v6776, 124
        %v7155 = vpop.permute.xlu0 %7154
        %7156 = vrot.lane.b32.xlu0 %v6777, 124
        %v7157 = vpop.permute.xlu0 %7156
        %7158 = vrot.lane.b32.xlu0 %v6778, 124
        %v7159 = vpop.permute.xlu0 %7158
        %7160 = vrot.lane.b32.xlu0 %v6779, 124
        %v7161 = vpop.permute.xlu0 %7160
        %7162 = vrot.lane.b32.xlu0 %v6780, 124
        %v7163 = vpop.permute.xlu0 %7162
        %7164 = vrot.lane.b32.xlu0 %v6781, 124
        %v7165 = vpop.permute.xlu0 %7164
        %7166 = vrot.lane.b32.xlu0 %v6782, 124
        %v7167 = vpop.permute.xlu0 %7166
        %7168 = vrot.lane.b32.xlu0 %v6783, 124
        %v7169 = vpop.permute.xlu0 %7168
        %7170 = vrot.lane.b32.xlu0 %v6784, 124
        %v7171 = vpop.permute.xlu0 %7170
        %7172 = vrot.lane.b32.xlu0 %v6785, 124
        %v7173 = vpop.permute.xlu0 %7172
        %7174 = vrot.lane.b32.xlu0 %v6786, 124
        %v7175 = vpop.permute.xlu0 %7174
        %v7192 = vmul.f32 %v7066, %v7145
        %v7193 = vmul.f32 %v7071, %v7147
        %v7194 = vmul.f32 %v7076, %v7149
        %v7195 = vmul.f32 %v7081, %v7151
        %v7196 = vmul.f32 %v7086, %v7153
        %v7197 = vmul.f32 %v7091, %v7155
        %v7198 = vmul.f32 %v7096, %v7157
        %v7199 = vmul.f32 %v7101, %v7159
        %v7200 = vmul.f32 %v7106, %v7161
        %v7201 = vmul.f32 %v7111, %v7163
        %v7202 = vmul.f32 %v7116, %v7165
        %v7203 = vmul.f32 %v7121, %v7167
        %v7204 = vmul.f32 %v7126, %v7169
        %v7205 = vmul.f32 %v7131, %v7171
        %v7206 = vmul.f32 %v7136, %v7173
        %v7207 = vmul.f32 %v7141, %v7175
        %v7208 = vld [vmem:[#allocation11] sm:$0xf]
        %v7209 = vld [vmem:[#allocation13] sm:$0x1]
        %v7211 = vlaneseq
        %v7212 = vshrl.u32 %v7211, 7
        %v7213 = vsub.s32 0, %v7212
        %v7214 = vrot.slane %v7209, %v7213
        %vm7216 = vcmask 31744
        %v7218 = vsel %vm7216, %v7192, 0
        %v7221 = vsel %vm7216, %v7193, 0
        %v7224 = vsel %vm7216, %v7194, 0
        %v7227 = vsel %vm7216, %v7195, 0
        %v7230 = vsel %vm7216, %v7196, 0
        %v7233 = vsel %vm7216, %v7197, 0
        %v7236 = vsel %vm7216, %v7198, 0
        %v7239 = vsel %vm7216, %v7199, 0
        %v7242 = vsel %vm7216, %v7200, 0
        %v7245 = vsel %vm7216, %v7201, 0
        %v7248 = vsel %vm7216, %v7202, 0
        %v7251 = vsel %vm7216, %v7203, 0
        %v7254 = vsel %vm7216, %v7204, 0
        %v7257 = vsel %vm7216, %v7205, 0
        %v7260 = vsel %vm7216, %v7206, 0
        %v7263 = vsel %vm7216, %v7207, 0
        %v7266 = vsel %vm4210, %v7208, 0
        %7268 = vmatprep.subr.mxu0 0.0
        %7269 = vmatpush1.msra.mxu0 %v7266
        %7270 = vmatprep.subr.mxu0 0.0
        %7271 = vmatpush1.msra.mxu0 0.0
        %7272 = vmatprep.subr.mxu0 0.0
        %7273 = vmatpush1.msra.mxu0 0.0
        %7274 = vmatprep.subr.mxu0 0.0
        %7275 = vmatpush1.msra.mxu0 0.0
        %7276 = vmatprep.subr.mxu0 0.0
        %7277 = vmatpush1.msra.mxu0 0.0
        %7278 = vmatprep.subr.mxu0 0.0
        %7279 = vmatpush1.msra.mxu0 0.0
        %7280 = vmatprep.subr.mxu0 0.0
        %7281 = vmatpush1.msra.mxu0 0.0
        %7282 = vmatprep.subr.mxu0 0.0
        %7283 = vmatpush1.msra.mxu0 0.0
        %7284 = vmatprep.subr.mxu0 0.0
        %7285 = vmatpush1.msra.mxu0 0.0
        %7286 = vmatprep.subr.mxu0 0.0
        %7287 = vmatpush1.msra.mxu0 0.0
        %7288 = vmatprep.subr.mxu0 0.0
        %7289 = vmatpush1.msra.mxu0 0.0
        %7290 = vmatprep.subr.mxu0 0.0
        %7291 = vmatpush1.msra.mxu0 0.0
        %7292 = vmatprep.subr.mxu0 0.0
        %7293 = vmatpush1.msra.mxu0 0.0
        %7294 = vmatprep.subr.mxu0 0.0
        %7295 = vmatpush1.msra.mxu0 0.0
        %7296 = vmatprep.subr.mxu0 0.0
        %7297 = vmatpush1.msra.mxu0 0.0
        %7298 = vmatprep.subr.mxu0 0.0
        %7299 = vmatpush1.msra.mxu0 0.0
        %7300 = vmatprep.subr.mxu0 0.0
        %7301 = vmatpush1.msra.mxu0 0.0
        %7302 = vmatprep.subr.mxu0 0.0
        %7303 = vmatpush1.msra.mxu0 0.0
        %7304 = vmatprep.subr.mxu0 0.0
        %7305 = vmatpush1.msra.mxu0 0.0
        %7306 = vmatprep.subr.mxu0 0.0
        %7307 = vmatpush1.msra.mxu0 0.0
        %7308 = vmatprep.subr.mxu0 0.0
        %7309 = vmatpush1.msra.mxu0 0.0
        %7310 = vmatprep.subr.mxu0 0.0
        %7311 = vmatpush1.msra.mxu0 0.0
        %7312 = vmatprep.subr.mxu0 0.0
        %7313 = vmatpush1.msra.mxu0 0.0
        %7314 = vmatprep.subr.mxu0 0.0
        %7315 = vmatpush1.msra.mxu0 0.0
        %7316 = vmatprep.subr.mxu0 0.0
        %7317 = vmatpush1.msra.mxu0 0.0
        %7318 = vmatprep.subr.mxu0 0.0
        %7319 = vmatpush1.msra.mxu0 0.0
        %7320 = vmatprep.subr.mxu0 0.0
        %7321 = vmatpush1.msra.mxu0 0.0
        %7322 = vmatprep.subr.mxu0 0.0
        %7323 = vmatpush1.msra.mxu0 0.0
        %7324 = vmatprep.subr.mxu0 0.0
        %7325 = vmatpush1.msra.mxu0 0.0
        %7326 = vmatprep.subr.mxu0 0.0
        %7327 = vmatpush1.msra.mxu0 0.0
        %7328 = vmatprep.subr.mxu0 0.0
        %7329 = vmatpush1.msra.mxu0 0.0
        %7330 = vmatprep.subr.mxu0 0.0
        %7331 = vmatpush1.msra.mxu0 0.0
        %7332 = vmatprep.mubr.f32.mxu0 0.0
        %7333 = vmatmul.mubr.f32.gmra.mrb[0].mxu0 %v7218
        %v7334 = vpop.f32.mrb[0].mxu0
        %v7335 = vadd.f32 %v7214, %v7334
        %v7336 = vpop.f32.mrb[0].mxu0
        %7337 = vmatprep.mubr.f32.mxu0 0.0
        %7338 = vmatmul.mubr.f32.gmra.mrb[0].mxu0 %v7221
        %v7339 = vpop.f32.mrb[0].mxu0
        %v7340 = vadd.f32 %v7214, %v7339
        %v7341 = vpop.f32.mrb[0].mxu0
        %7342 = vmatprep.mubr.f32.mxu0 0.0
        %7343 = vmatmul.mubr.f32.gmra.mrb[0].mxu0 %v7224
        %v7344 = vpop.f32.mrb[0].mxu0
        %v7345 = vadd.f32 %v7214, %v7344
        %v7346 = vpop.f32.mrb[0].mxu0
        %7347 = vmatprep.mubr.f32.mxu0 0.0
        %7348 = vmatmul.mubr.f32.gmra.mrb[0].mxu0 %v7227
        %v7349 = vpop.f32.mrb[0].mxu0
        %v7350 = vadd.f32 %v7214, %v7349
        %v7351 = vpop.f32.mrb[0].mxu0
        %7352 = vmatprep.mubr.f32.mxu0 0.0
        %7353 = vmatmul.mubr.f32.gmra.mrb[0].mxu0 %v7230
        %v7354 = vpop.f32.mrb[0].mxu0
        %v7355 = vadd.f32 %v7214, %v7354
        %v7356 = vpop.f32.mrb[0].mxu0
        %7357 = vmatprep.mubr.f32.mxu0 0.0
        %7358 = vmatmul.mubr.f32.gmra.mrb[0].mxu0 %v7233
        %v7359 = vpop.f32.mrb[0].mxu0
        %v7360 = vadd.f32 %v7214, %v7359
        %v7361 = vpop.f32.mrb[0].mxu0
        %7362 = vmatprep.mubr.f32.mxu0 0.0
        %7363 = vmatmul.mubr.f32.gmra.mrb[0].mxu0 %v7236
        %v7364 = vpop.f32.mrb[0].mxu0
        %v7365 = vadd.f32 %v7214, %v7364
        %v7366 = vpop.f32.mrb[0].mxu0
        %7367 = vmatprep.mubr.f32.mxu0 0.0
        %7368 = vmatmul.mubr.f32.gmra.mrb[0].mxu0 %v7239
        %v7369 = vpop.f32.mrb[0].mxu0
        %v7370 = vadd.f32 %v7214, %v7369
        %v7371 = vpop.f32.mrb[0].mxu0
        %7372 = vmatprep.mubr.f32.mxu0 0.0
        %7373 = vmatmul.mubr.f32.gmra.mrb[0].mxu0 %v7242
        %v7374 = vpop.f32.mrb[0].mxu0
        %v7375 = vadd.f32 %v7214, %v7374
        %v7376 = vpop.f32.mrb[0].mxu0
        %7377 = vmatprep.mubr.f32.mxu0 0.0
        %7378 = vmatmul.mubr.f32.gmra.mrb[0].mxu0 %v7245
        %v7379 = vpop.f32.mrb[0].mxu0
        %v7380 = vadd.f32 %v7214, %v7379
        %v7381 = vpop.f32.mrb[0].mxu0
        %7382 = vmatprep.mubr.f32.mxu0 0.0
        %7383 = vmatmul.mubr.f32.gmra.mrb[0].mxu0 %v7248
        %v7384 = vpop.f32.mrb[0].mxu0
        %v7385 = vadd.f32 %v7214, %v7384
        %v7386 = vpop.f32.mrb[0].mxu0
        %7387 = vmatprep.mubr.f32.mxu0 0.0
        %7388 = vmatmul.mubr.f32.gmra.mrb[0].mxu0 %v7251
        %v7389 = vpop.f32.mrb[0].mxu0
        %v7390 = vadd.f32 %v7214, %v7389
        %v7391 = vpop.f32.mrb[0].mxu0
        %7392 = vmatprep.mubr.f32.mxu0 0.0
        %7393 = vmatmul.mubr.f32.gmra.mrb[0].mxu0 %v7254
        %v7394 = vpop.f32.mrb[0].mxu0
        %v7395 = vadd.f32 %v7214, %v7394
        %v7396 = vpop.f32.mrb[0].mxu0
        %7397 = vmatprep.mubr.f32.mxu0 0.0
        %7398 = vmatmul.mubr.f32.gmra.mrb[0].mxu0 %v7257
        %v7399 = vpop.f32.mrb[0].mxu0
        %v7400 = vadd.f32 %v7214, %v7399
        %v7401 = vpop.f32.mrb[0].mxu0
        %7402 = vmatprep.mubr.f32.mxu0 0.0
        %7403 = vmatmul.mubr.f32.gmra.mrb[0].mxu0 %v7260
        %v7404 = vpop.f32.mrb[0].mxu0
        %v7405 = vadd.f32 %v7214, %v7404
        %v7406 = vpop.f32.mrb[0].mxu0
        %7407 = vmatprep.mubr.f32.mxu0 0.0
        %7408 = vmatmul.mubr.f32.gmra.mrb[0].mxu0 %v7263
        %v7409 = vpop.f32.mrb[0].mxu0
        %v7410 = vadd.f32 %v7214, %v7409
        %v7411 = vpop.f32.mrb[0].mxu0
        %7412 = vdwg.mxu0
        %7413 = vrot.lane.b32.xlu0 %v6771, 120
        %v7414 = vpop.permute.xlu0 %7413
        %7415 = vrot.lane.b32.xlu0 %v6772, 120
        %v7416 = vpop.permute.xlu0 %7415
        %7417 = vrot.lane.b32.xlu0 %v6773, 120
        %v7418 = vpop.permute.xlu0 %7417
        %7419 = vrot.lane.b32.xlu0 %v6774, 120
        %v7420 = vpop.permute.xlu0 %7419
        %7421 = vrot.lane.b32.xlu0 %v6775, 120
        %v7422 = vpop.permute.xlu0 %7421
        %7423 = vrot.lane.b32.xlu0 %v6776, 120
        %v7424 = vpop.permute.xlu0 %7423
        %7425 = vrot.lane.b32.xlu0 %v6777, 120
        %v7426 = vpop.permute.xlu0 %7425
        %7427 = vrot.lane.b32.xlu0 %v6778, 120
        %v7428 = vpop.permute.xlu0 %7427
        %7429 = vrot.lane.b32.xlu0 %v6779, 120
        %v7430 = vpop.permute.xlu0 %7429
        %7431 = vrot.lane.b32.xlu0 %v6780, 120
        %v7432 = vpop.permute.xlu0 %7431
        %7433 = vrot.lane.b32.xlu0 %v6781, 120
        %v7434 = vpop.permute.xlu0 %7433
        %7435 = vrot.lane.b32.xlu0 %v6782, 120
        %v7436 = vpop.permute.xlu0 %7435
        %7437 = vrot.lane.b32.xlu0 %v6783, 120
        %v7438 = vpop.permute.xlu0 %7437
        %7439 = vrot.lane.b32.xlu0 %v6784, 120
        %v7440 = vpop.permute.xlu0 %7439
        %7441 = vrot.lane.b32.xlu0 %v6785, 120
        %v7442 = vpop.permute.xlu0 %7441
        %7443 = vrot.lane.b32.xlu0 %v6786, 120
        %v7444 = vpop.permute.xlu0 %7443
        %v7461 = vmul.f32 %v7335, %v7414
        %v7462 = vmul.f32 %v7340, %v7416
        %v7463 = vmul.f32 %v7345, %v7418
        %v7464 = vmul.f32 %v7350, %v7420
        %v7465 = vmul.f32 %v7355, %v7422
        %v7466 = vmul.f32 %v7360, %v7424
        %v7467 = vmul.f32 %v7365, %v7426
        %v7468 = vmul.f32 %v7370, %v7428
        %v7469 = vmul.f32 %v7375, %v7430
        %v7470 = vmul.f32 %v7380, %v7432
        %v7471 = vmul.f32 %v7385, %v7434
        %v7472 = vmul.f32 %v7390, %v7436
        %v7473 = vmul.f32 %v7395, %v7438
        %v7474 = vmul.f32 %v7400, %v7440
        %v7475 = vmul.f32 %v7405, %v7442
        %v7476 = vmul.f32 %v7410, %v7444
        %v7477 = vld [vmem:[#allocation14] sm:$0xff]
        %v7478 = vld [vmem:[%s10] sm:$0x1]
        %v7480 = vlaneseq
        %v7481 = vshrl.u32 %v7480, 7
        %v7482 = vsub.s32 0, %v7481
        %v7483 = vrot.slane %v7478, %v7482
        %vm7485 = vcmask 64512
        %v7487 = vsel %vm7485, %v7461, 0
        %v7490 = vsel %vm7485, %v7462, 0
        %v7493 = vsel %vm7485, %v7463, 0
        %v7496 = vsel %vm7485, %v7464, 0
        %v7499 = vsel %vm7485, %v7465, 0
        %v7502 = vsel %vm7485, %v7466, 0
        %v7505 = vsel %vm7485, %v7467, 0
        %v7508 = vsel %vm7485, %v7468, 0
        %v7511 = vsel %vm7485, %v7469, 0
        %v7514 = vsel %vm7485, %v7470, 0
        %v7517 = vsel %vm7485, %v7471, 0
        %v7520 = vsel %vm7485, %v7472, 0
        %v7523 = vsel %vm7485, %v7473, 0
        %v7526 = vsel %vm7485, %v7474, 0
        %v7529 = vsel %vm7485, %v7475, 0
        %v7532 = vsel %vm7485, %v7476, 0
        %7534 = vmatprep.subr.mxu0 0.0
        %7535 = vmatpush1.msra.mxu0 %v7477
        %7536 = vmatprep.subr.mxu0 0.0
        %7537 = vmatpush1.msra.mxu0 0.0
        %7538 = vmatprep.subr.mxu0 0.0
        %7539 = vmatpush1.msra.mxu0 0.0
        %7540 = vmatprep.subr.mxu0 0.0
        %7541 = vmatpush1.msra.mxu0 0.0
        %7542 = vmatprep.subr.mxu0 0.0
        %7543 = vmatpush1.msra.mxu0 0.0
        %7544 = vmatprep.subr.mxu0 0.0
        %7545 = vmatpush1.msra.mxu0 0.0
        %7546 = vmatprep.subr.mxu0 0.0
        %7547 = vmatpush1.msra.mxu0 0.0
        %7548 = vmatprep.subr.mxu0 0.0
        %7549 = vmatpush1.msra.mxu0 0.0
        %7550 = vmatprep.subr.mxu0 0.0
        %7551 = vmatpush1.msra.mxu0 0.0
        %7552 = vmatprep.subr.mxu0 0.0
        %7553 = vmatpush1.msra.mxu0 0.0
        %7554 = vmatprep.subr.mxu0 0.0
        %7555 = vmatpush1.msra.mxu0 0.0
        %7556 = vmatprep.subr.mxu0 0.0
        %7557 = vmatpush1.msra.mxu0 0.0
        %7558 = vmatprep.subr.mxu0 0.0
        %7559 = vmatpush1.msra.mxu0 0.0
        %7560 = vmatprep.subr.mxu0 0.0
        %7561 = vmatpush1.msra.mxu0 0.0
        %7562 = vmatprep.subr.mxu0 0.0
        %7563 = vmatpush1.msra.mxu0 0.0
        %7564 = vmatprep.subr.mxu0 0.0
        %7565 = vmatpush1.msra.mxu0 0.0
        %7566 = vmatprep.subr.mxu0 0.0
        %7567 = vmatpush1.msra.mxu0 0.0
        %7568 = vmatprep.subr.mxu0 0.0
        %7569 = vmatpush1.msra.mxu0 0.0
        %7570 = vmatprep.subr.mxu0 0.0
        %7571 = vmatpush1.msra.mxu0 0.0
        %7572 = vmatprep.subr.mxu0 0.0
        %7573 = vmatpush1.msra.mxu0 0.0
        %7574 = vmatprep.subr.mxu0 0.0
        %7575 = vmatpush1.msra.mxu0 0.0
        %7576 = vmatprep.subr.mxu0 0.0
        %7577 = vmatpush1.msra.mxu0 0.0
        %7578 = vmatprep.subr.mxu0 0.0
        %7579 = vmatpush1.msra.mxu0 0.0
        %7580 = vmatprep.subr.mxu0 0.0
        %7581 = vmatpush1.msra.mxu0 0.0
        %7582 = vmatprep.subr.mxu0 0.0
        %7583 = vmatpush1.msra.mxu0 0.0
        %7584 = vmatprep.subr.mxu0 0.0
        %7585 = vmatpush1.msra.mxu0 0.0
        %7586 = vmatprep.subr.mxu0 0.0
        %7587 = vmatpush1.msra.mxu0 0.0
        %7588 = vmatprep.subr.mxu0 0.0
        %7589 = vmatpush1.msra.mxu0 0.0
        %7590 = vmatprep.subr.mxu0 0.0
        %7591 = vmatpush1.msra.mxu0 0.0
        %7592 = vmatprep.subr.mxu0 0.0
        %7593 = vmatpush1.msra.mxu0 0.0
        %7594 = vmatprep.subr.mxu0 0.0
        %7595 = vmatpush1.msra.mxu0 0.0
        %7596 = vmatprep.subr.mxu0 0.0
        %7597 = vmatpush1.msra.mxu0 0.0
        %7598 = vmatprep.mubr.f32.mxu0 0.0
        %7599 = vmatmul.mubr.f32.gmra.mrb[0].mxu0 %v7487
        %v7600 = vpop.f32.mrb[0].mxu0
        %v7601 = vadd.f32 %v7483, %v7600
        %v7602 = vpop.f32.mrb[0].mxu0
        %7603 = vmatprep.mubr.f32.mxu0 0.0
        %7604 = vmatmul.mubr.f32.gmra.mrb[0].mxu0 %v7490
        %v7605 = vpop.f32.mrb[0].mxu0
        %v7606 = vadd.f32 %v7483, %v7605
        %v7607 = vpop.f32.mrb[0].mxu0
        %7608 = vmatprep.mubr.f32.mxu0 0.0
        %7609 = vmatmul.mubr.f32.gmra.mrb[0].mxu0 %v7493
        %v7610 = vpop.f32.mrb[0].mxu0
        %v7611 = vadd.f32 %v7483, %v7610
        %v7612 = vpop.f32.mrb[0].mxu0
        %7613 = vmatprep.mubr.f32.mxu0 0.0
        %7614 = vmatmul.mubr.f32.gmra.mrb[0].mxu0 %v7496
        %v7615 = vpop.f32.mrb[0].mxu0
        %v7616 = vadd.f32 %v7483, %v7615
        %v7617 = vpop.f32.mrb[0].mxu0
        %7618 = vmatprep.mubr.f32.mxu0 0.0
        %7619 = vmatmul.mubr.f32.gmra.mrb[0].mxu0 %v7499
        %v7620 = vpop.f32.mrb[0].mxu0
        %v7621 = vadd.f32 %v7483, %v7620
        %v7622 = vpop.f32.mrb[0].mxu0
        %7623 = vmatprep.mubr.f32.mxu0 0.0
        %7624 = vmatmul.mubr.f32.gmra.mrb[0].mxu0 %v7502
        %v7625 = vpop.f32.mrb[0].mxu0
        %v7626 = vadd.f32 %v7483, %v7625
        %v7627 = vpop.f32.mrb[0].mxu0
        %7628 = vmatprep.mubr.f32.mxu0 0.0
        %7629 = vmatmul.mubr.f32.gmra.mrb[0].mxu0 %v7505
        %v7630 = vpop.f32.mrb[0].mxu0
        %v7631 = vadd.f32 %v7483, %v7630
        %v7632 = vpop.f32.mrb[0].mxu0
        %7633 = vmatprep.mubr.f32.mxu0 0.0
        %7634 = vmatmul.mubr.f32.gmra.mrb[0].mxu0 %v7508
        %v7635 = vpop.f32.mrb[0].mxu0
        %v7636 = vadd.f32 %v7483, %v7635
        %v7637 = vpop.f32.mrb[0].mxu0
        %7638 = vmatprep.mubr.f32.mxu0 0.0
        %7639 = vmatmul.mubr.f32.gmra.mrb[0].mxu0 %v7511
        %v7640 = vpop.f32.mrb[0].mxu0
        %v7641 = vadd.f32 %v7483, %v7640
        %v7642 = vpop.f32.mrb[0].mxu0
        %7643 = vmatprep.mubr.f32.mxu0 0.0
        %7644 = vmatmul.mubr.f32.gmra.mrb[0].mxu0 %v7514
        %v7645 = vpop.f32.mrb[0].mxu0
        %v7646 = vadd.f32 %v7483, %v7645
        %v7647 = vpop.f32.mrb[0].mxu0
        %7648 = vmatprep.mubr.f32.mxu0 0.0
        %7649 = vmatmul.mubr.f32.gmra.mrb[0].mxu0 %v7517
        %v7650 = vpop.f32.mrb[0].mxu0
        %v7651 = vadd.f32 %v7483, %v7650
        %v7652 = vpop.f32.mrb[0].mxu0
        %7653 = vmatprep.mubr.f32.mxu0 0.0
        %7654 = vmatmul.mubr.f32.gmra.mrb[0].mxu0 %v7520
        %v7655 = vpop.f32.mrb[0].mxu0
        %v7656 = vadd.f32 %v7483, %v7655
        %v7657 = vpop.f32.mrb[0].mxu0
        %7658 = vmatprep.mubr.f32.mxu0 0.0
        %7659 = vmatmul.mubr.f32.gmra.mrb[0].mxu0 %v7523
        %v7660 = vpop.f32.mrb[0].mxu0
        %v7661 = vadd.f32 %v7483, %v7660
        %v7662 = vpop.f32.mrb[0].mxu0
        %7663 = vmatprep.mubr.f32.mxu0 0.0
        %7664 = vmatmul.mubr.f32.gmra.mrb[0].mxu0 %v7526
        %v7665 = vpop.f32.mrb[0].mxu0
        %v7666 = vadd.f32 %v7483, %v7665
        %v7667 = vpop.f32.mrb[0].mxu0
        %7668 = vmatprep.mubr.f32.mxu0 0.0
        %7669 = vmatmul.mubr.f32.gmra.mrb[0].mxu0 %v7529
        %v7670 = vpop.f32.mrb[0].mxu0
        %v7671 = vadd.f32 %v7483, %v7670
        %v7672 = vpop.f32.mrb[0].mxu0
        %7673 = vmatprep.mubr.f32.mxu0 0.0
        %7674 = vmatmul.mubr.f32.gmra.mrb[0].mxu0 %v7532
        %v7675 = vpop.f32.mrb[0].mxu0
        %v7676 = vadd.f32 %v7483, %v7675
        %v7677 = vpop.f32.mrb[0].mxu0
        %7678 = vdwg.mxu0
        %7679 = vrot.lane.b32.xlu0 %v6771, 112
        %v7680 = vpop.permute.xlu0 %7679
        %7681 = vrot.lane.b32.xlu0 %v6772, 112
        %v7682 = vpop.permute.xlu0 %7681
        %7683 = vrot.lane.b32.xlu0 %v6773, 112
        %v7684 = vpop.permute.xlu0 %7683
        %7685 = vrot.lane.b32.xlu0 %v6774, 112
        %v7686 = vpop.permute.xlu0 %7685
        %7687 = vrot.lane.b32.xlu0 %v6775, 112
        %v7688 = vpop.permute.xlu0 %7687
        %7689 = vrot.lane.b32.xlu0 %v6776, 112
        %v7690 = vpop.permute.xlu0 %7689
        %7691 = vrot.lane.b32.xlu0 %v6777, 112
        %v7692 = vpop.permute.xlu0 %7691
        %7693 = vrot.lane.b32.xlu0 %v6778, 112
        %v7694 = vpop.permute.xlu0 %7693
        %7695 = vrot.lane.b32.xlu0 %v6779, 112
        %v7696 = vpop.permute.xlu0 %7695
        %7697 = vrot.lane.b32.xlu0 %v6780, 112
        %v7698 = vpop.permute.xlu0 %7697
        %7699 = vrot.lane.b32.xlu0 %v6781, 112
        %v7700 = vpop.permute.xlu0 %7699
        %7701 = vrot.lane.b32.xlu0 %v6782, 112
        %v7702 = vpop.permute.xlu0 %7701
        %7703 = vrot.lane.b32.xlu0 %v6783, 112
        %v7704 = vpop.permute.xlu0 %7703
        %7705 = vrot.lane.b32.xlu0 %v6784, 112
        %v7706 = vpop.permute.xlu0 %7705
        %7707 = vrot.lane.b32.xlu0 %v6785, 112
        %v7708 = vpop.permute.xlu0 %7707
        %7709 = vrot.lane.b32.xlu0 %v6786, 112
        %v7710 = vpop.permute.xlu0 %7709
        %v7727 = vmul.f32 %v7601, %v7680
        %v7728 = vmul.f32 %v7606, %v7682
        %v7729 = vmul.f32 %v7611, %v7684
        %v7730 = vmul.f32 %v7616, %v7686
        %v7731 = vmul.f32 %v7621, %v7688
        %v7732 = vmul.f32 %v7626, %v7690
        %v7733 = vmul.f32 %v7631, %v7692
        %v7734 = vmul.f32 %v7636, %v7694
        %v7735 = vmul.f32 %v7641, %v7696
        %v7736 = vmul.f32 %v7646, %v7698
        %v7737 = vmul.f32 %v7651, %v7700
        %v7738 = vmul.f32 %v7656, %v7702
        %v7739 = vmul.f32 %v7661, %v7704
        %v7740 = vmul.f32 %v7666, %v7706
        %v7741 = vmul.f32 %v7671, %v7708
        %v7742 = vmul.f32 %v7676, %v7710
        %v7743 = vld [vmem:[#allocation16] sm:$0xff]
        %v7744 = vld [vmem:[#allocation16 + $0x8] sm:$0xff]
        %v7745 = vld [vmem:[%s12] sm:$0x1]
        %v7747 = vlaneseq
        %v7748 = vshrl.u32 %v7747, 7
        %v7749 = vsub.s32 0, %v7748
        %v7750 = vrot.slane %v7745, %v7749
        %vm7752 = vcmask 130048
        %v7754 = vsel %vm7752, %v7727, 0
        %v7757 = vsel %vm7752, %v7728, 0
        %v7760 = vsel %vm7752, %v7729, 0
        %v7763 = vsel %vm7752, %v7730, 0
        %v7766 = vsel %vm7752, %v7731, 0
        %v7769 = vsel %vm7752, %v7732, 0
        %v7772 = vsel %vm7752, %v7733, 0
        %v7775 = vsel %vm7752, %v7734, 0
        %v7778 = vsel %vm7752, %v7735, 0
        %v7781 = vsel %vm7752, %v7736, 0
        %v7784 = vsel %vm7752, %v7737, 0
        %v7787 = vsel %vm7752, %v7738, 0
        %v7790 = vsel %vm7752, %v7739, 0
        %v7793 = vsel %vm7752, %v7740, 0
        %v7796 = vsel %vm7752, %v7741, 0
        %v7799 = vsel %vm7752, %v7742, 0
        %7801 = vmatprep.subr.mxu0 0.0
        %7802 = vmatpush1.msra.mxu0 %v7743
        %7803 = vmatprep.subr.mxu0 0.0
        %7804 = vmatpush1.msra.mxu0 %v7744
        %7805 = vmatprep.subr.mxu0 0.0
        %7806 = vmatpush1.msra.mxu0 0.0
        %7807 = vmatprep.subr.mxu0 0.0
        %7808 = vmatpush1.msra.mxu0 0.0
        %7809 = vmatprep.subr.mxu0 0.0
        %7810 = vmatpush1.msra.mxu0 0.0
        %7811 = vmatprep.subr.mxu0 0.0
        %7812 = vmatpush1.msra.mxu0 0.0
        %7813 = vmatprep.subr.mxu0 0.0
        %7814 = vmatpush1.msra.mxu0 0.0
        %7815 = vmatprep.subr.mxu0 0.0
        %7816 = vmatpush1.msra.mxu0 0.0
        %7817 = vmatprep.subr.mxu0 0.0
        %7818 = vmatpush1.msra.mxu0 0.0
        %7819 = vmatprep.subr.mxu0 0.0
        %7820 = vmatpush1.msra.mxu0 0.0
        %7821 = vmatprep.subr.mxu0 0.0
        %7822 = vmatpush1.msra.mxu0 0.0
        %7823 = vmatprep.subr.mxu0 0.0
        %7824 = vmatpush1.msra.mxu0 0.0
        %7825 = vmatprep.subr.mxu0 0.0
        %7826 = vmatpush1.msra.mxu0 0.0
        %7827 = vmatprep.subr.mxu0 0.0
        %7828 = vmatpush1.msra.mxu0 0.0
        %7829 = vmatprep.subr.mxu0 0.0
        %7830 = vmatpush1.msra.mxu0 0.0
        %7831 = vmatprep.subr.mxu0 0.0
        %7832 = vmatpush1.msra.mxu0 0.0
        %7833 = vmatprep.subr.mxu0 0.0
        %7834 = vmatpush1.msra.mxu0 0.0
        %7835 = vmatprep.subr.mxu0 0.0
        %7836 = vmatpush1.msra.mxu0 0.0
        %7837 = vmatprep.subr.mxu0 0.0
        %7838 = vmatpush1.msra.mxu0 0.0
        %7839 = vmatprep.subr.mxu0 0.0
        %7840 = vmatpush1.msra.mxu0 0.0
        %7841 = vmatprep.subr.mxu0 0.0
        %7842 = vmatpush1.msra.mxu0 0.0
        %7843 = vmatprep.subr.mxu0 0.0
        %7844 = vmatpush1.msra.mxu0 0.0
        %7845 = vmatprep.subr.mxu0 0.0
        %7846 = vmatpush1.msra.mxu0 0.0
        %7847 = vmatprep.subr.mxu0 0.0
        %7848 = vmatpush1.msra.mxu0 0.0
        %7849 = vmatprep.subr.mxu0 0.0
        %7850 = vmatpush1.msra.mxu0 0.0
        %7851 = vmatprep.subr.mxu0 0.0
        %7852 = vmatpush1.msra.mxu0 0.0
        %7853 = vmatprep.subr.mxu0 0.0
        %7854 = vmatpush1.msra.mxu0 0.0
        %7855 = vmatprep.subr.mxu0 0.0
        %7856 = vmatpush1.msra.mxu0 0.0
        %7857 = vmatprep.subr.mxu0 0.0
        %7858 = vmatpush1.msra.mxu0 0.0
        %7859 = vmatprep.subr.mxu0 0.0
        %7860 = vmatpush1.msra.mxu0 0.0
        %7861 = vmatprep.subr.mxu0 0.0
        %7862 = vmatpush1.msra.mxu0 0.0
        %7863 = vmatprep.subr.mxu0 0.0
        %7864 = vmatpush1.msra.mxu0 0.0
        %7865 = vmatprep.mubr.f32.mxu0 0.0
        %7866 = vmatmul.mubr.f32.gmra.mrb[0].mxu0 %v7754
        %v7867 = vpop.f32.mrb[0].mxu0
        %v7868 = vadd.f32 %v7750, %v7867
        %v7869 = vpop.f32.mrb[0].mxu0
        %7870 = vmatprep.mubr.f32.mxu0 0.0
        %7871 = vmatmul.mubr.f32.gmra.mrb[0].mxu0 %v7757
        %v7872 = vpop.f32.mrb[0].mxu0
        %v7873 = vadd.f32 %v7750, %v7872
        %v7874 = vpop.f32.mrb[0].mxu0
        %7875 = vmatprep.mubr.f32.mxu0 0.0
        %7876 = vmatmul.mubr.f32.gmra.mrb[0].mxu0 %v7760
        %v7877 = vpop.f32.mrb[0].mxu0
        %v7878 = vadd.f32 %v7750, %v7877
        %v7879 = vpop.f32.mrb[0].mxu0
        %7880 = vmatprep.mubr.f32.mxu0 0.0
        %7881 = vmatmul.mubr.f32.gmra.mrb[0].mxu0 %v7763
        %v7882 = vpop.f32.mrb[0].mxu0
        %v7883 = vadd.f32 %v7750, %v7882
        %v7884 = vpop.f32.mrb[0].mxu0
        %7885 = vmatprep.mubr.f32.mxu0 0.0
        %7886 = vmatmul.mubr.f32.gmra.mrb[0].mxu0 %v7766
        %v7887 = vpop.f32.mrb[0].mxu0
        %v7888 = vadd.f32 %v7750, %v7887
        %v7889 = vpop.f32.mrb[0].mxu0
        %7890 = vmatprep.mubr.f32.mxu0 0.0
        %7891 = vmatmul.mubr.f32.gmra.mrb[0].mxu0 %v7769
        %v7892 = vpop.f32.mrb[0].mxu0
        %v7893 = vadd.f32 %v7750, %v7892
        %v7894 = vpop.f32.mrb[0].mxu0
        %7895 = vmatprep.mubr.f32.mxu0 0.0
        %7896 = vmatmul.mubr.f32.gmra.mrb[0].mxu0 %v7772
        %v7897 = vpop.f32.mrb[0].mxu0
        %v7898 = vadd.f32 %v7750, %v7897
        %v7899 = vpop.f32.mrb[0].mxu0
        %7900 = vmatprep.mubr.f32.mxu0 0.0
        %7901 = vmatmul.mubr.f32.gmra.mrb[0].mxu0 %v7775
        %v7902 = vpop.f32.mrb[0].mxu0
        %v7903 = vadd.f32 %v7750, %v7902
        %v7904 = vpop.f32.mrb[0].mxu0
        %7905 = vmatprep.mubr.f32.mxu0 0.0
        %7906 = vmatmul.mubr.f32.gmra.mrb[0].mxu0 %v7778
        %v7907 = vpop.f32.mrb[0].mxu0
        %v7908 = vadd.f32 %v7750, %v7907
        %v7909 = vpop.f32.mrb[0].mxu0
        %7910 = vmatprep.mubr.f32.mxu0 0.0
        %7911 = vmatmul.mubr.f32.gmra.mrb[0].mxu0 %v7781
        %v7912 = vpop.f32.mrb[0].mxu0
        %v7913 = vadd.f32 %v7750, %v7912
        %v7914 = vpop.f32.mrb[0].mxu0
        %7915 = vmatprep.mubr.f32.mxu0 0.0
        %7916 = vmatmul.mubr.f32.gmra.mrb[0].mxu0 %v7784
        %v7917 = vpop.f32.mrb[0].mxu0
        %v7918 = vadd.f32 %v7750, %v7917
        %v7919 = vpop.f32.mrb[0].mxu0
        %7920 = vmatprep.mubr.f32.mxu0 0.0
        %7921 = vmatmul.mubr.f32.gmra.mrb[0].mxu0 %v7787
        %v7922 = vpop.f32.mrb[0].mxu0
        %v7923 = vadd.f32 %v7750, %v7922
        %v7924 = vpop.f32.mrb[0].mxu0
        %7925 = vmatprep.mubr.f32.mxu0 0.0
        %7926 = vmatmul.mubr.f32.gmra.mrb[0].mxu0 %v7790
        %v7927 = vpop.f32.mrb[0].mxu0
        %v7928 = vadd.f32 %v7750, %v7927
        %v7929 = vpop.f32.mrb[0].mxu0
        %7930 = vmatprep.mubr.f32.mxu0 0.0
        %7931 = vmatmul.mubr.f32.gmra.mrb[0].mxu0 %v7793
        %v7932 = vpop.f32.mrb[0].mxu0
        %v7933 = vadd.f32 %v7750, %v7932
        %v7934 = vpop.f32.mrb[0].mxu0
        %7935 = vmatprep.mubr.f32.mxu0 0.0
        %7936 = vmatmul.mubr.f32.gmra.mrb[0].mxu0 %v7796
        %v7937 = vpop.f32.mrb[0].mxu0
        %v7938 = vadd.f32 %v7750, %v7937
        %v7939 = vpop.f32.mrb[0].mxu0
        %7940 = vmatprep.mubr.f32.mxu0 0.0
        %7941 = vmatmul.mubr.f32.gmra.mrb[0].mxu0 %v7799
        %v7942 = vpop.f32.mrb[0].mxu0
        %v7943 = vadd.f32 %v7750, %v7942
        %v7944 = vpop.f32.mrb[0].mxu0
        %7945 = vdwg.mxu0
        %7946 = vrot.lane.b32.xlu0 %v6771, 96
        %v7947 = vpop.permute.xlu0 %7946
        %7948 = vrot.lane.b32.xlu0 %v6772, 96
        %v7949 = vpop.permute.xlu0 %7948
        %7950 = vrot.lane.b32.xlu0 %v6773, 96
        %v7951 = vpop.permute.xlu0 %7950
        %7952 = vrot.lane.b32.xlu0 %v6774, 96
        %v7953 = vpop.permute.xlu0 %7952
        %7954 = vrot.lane.b32.xlu0 %v6775, 96
        %v7955 = vpop.permute.xlu0 %7954
        %7956 = vrot.lane.b32.xlu0 %v6776, 96
        %v7957 = vpop.permute.xlu0 %7956
        %7958 = vrot.lane.b32.xlu0 %v6777, 96
        %v7959 = vpop.permute.xlu0 %7958
        %7960 = vrot.lane.b32.xlu0 %v6778, 96
        %v7961 = vpop.permute.xlu0 %7960
        %7962 = vrot.lane.b32.xlu0 %v6779, 96
        %v7963 = vpop.permute.xlu0 %7962
        %7964 = vrot.lane.b32.xlu0 %v6780, 96
        %v7965 = vpop.permute.xlu0 %7964
        %7966 = vrot.lane.b32.xlu0 %v6781, 96
        %v7967 = vpop.permute.xlu0 %7966
        %7968 = vrot.lane.b32.xlu0 %v6782, 96
        %v7969 = vpop.permute.xlu0 %7968
        %7970 = vrot.lane.b32.xlu0 %v6783, 96
        %v7971 = vpop.permute.xlu0 %7970
        %7972 = vrot.lane.b32.xlu0 %v6784, 96
        %v7973 = vpop.permute.xlu0 %7972
        %7974 = vrot.lane.b32.xlu0 %v6785, 96
        %v7975 = vpop.permute.xlu0 %7974
        %7976 = vrot.lane.b32.xlu0 %v6786, 96
        %v7977 = vpop.permute.xlu0 %7976
        %v7994 = vmul.f32 %v7868, %v7947
        %v7995 = vmul.f32 %v7873, %v7949
        %v7996 = vmul.f32 %v7878, %v7951
        %v7997 = vmul.f32 %v7883, %v7953
        %v7998 = vmul.f32 %v7888, %v7955
        %v7999 = vmul.f32 %v7893, %v7957
        %v8000 = vmul.f32 %v7898, %v7959
        %v8001 = vmul.f32 %v7903, %v7961
        %v8002 = vmul.f32 %v7908, %v7963
        %v8003 = vmul.f32 %v7913, %v7965
        %v8004 = vmul.f32 %v7918, %v7967
        %v8005 = vmul.f32 %v7923, %v7969
        %v8006 = vmul.f32 %v7928, %v7971
        %v8007 = vmul.f32 %v7933, %v7973
        %v8008 = vmul.f32 %v7938, %v7975
        %v8009 = vmul.f32 %v7943, %v7977
        %v8010 = vld [vmem:[%s13] sm:$0xff]
        %v8011 = vld [vmem:[%s13 + $0x8] sm:$0xff]
        %v8012 = vld [vmem:[%s13 + $0x10] sm:$0xff]
        %v8013 = vld [vmem:[%s13 + $0x18] sm:$0xff]
        %v8014 = vld [vmem:[%s14] sm:$0xff]
        %v8015 = vld [vmem:[%s14 + $0x8] sm:$0xff]
        %v8016 = vld [vmem:[%s14 + $0x10] sm:$0xff]
        %v8017 = vld [vmem:[%s14 + $0x18] sm:$0xff]
        %8019 = vset.pattern.permute.xlu0 0
        %8020 = vperm.xlu0 %8019, %v8014
        %v8021 = vpop.permute.xlu0 %8020
        %8024 = vset.pattern.permute.xlu0 0
        %8025 = vperm.xlu0 %8024, %v8015
        %v8026 = vpop.permute.xlu0 %8025
        %8029 = vset.pattern.permute.xlu0 0
        %8030 = vperm.xlu0 %8029, %v8016
        %v8031 = vpop.permute.xlu0 %8030
        %8034 = vset.pattern.permute.xlu0 0
        %8035 = vperm.xlu0 %8034, %v8017
        %v8036 = vpop.permute.xlu0 %8035
        %v8039 = vsel %vm666, %v8010, 0
        %v8042 = vsel %vm666, %v8011, 0
        %v8045 = vsel %vm666, %v8012, 0
        %v8048 = vsel %vm666, %v8013, 0
        %v8051 = vsel %vm666, %v7994, 0
        %v8054 = vsel %vm666, %v7995, 0
        %v8057 = vsel %vm666, %v7996, 0
        %v8060 = vsel %vm666, %v7997, 0
        %v8063 = vsel %vm666, %v7998, 0
        %v8066 = vsel %vm666, %v7999, 0
        %v8069 = vsel %vm666, %v8000, 0
        %v8072 = vsel %vm666, %v8001, 0
        %v8075 = vsel %vm666, %v8002, 0
        %v8078 = vsel %vm666, %v8003, 0
        %v8081 = vsel %vm666, %v8004, 0
        %v8084 = vsel %vm666, %v8005, 0
        %v8087 = vsel %vm666, %v8006, 0
        %v8090 = vsel %vm666, %v8007, 0
        %v8093 = vsel %vm666, %v8008, 0
        %v8096 = vsel %vm666, %v8009, 0
        %8098 = vmatprep.subr.mxu0 0.0
        %8099 = vmatpush1.xpose.msra.mxu0 %v8051
        %8100 = vmatprep.subr.mxu0 0.0
        %8101 = vmatpush1.xpose.msra.mxu0 %v8054
        %8102 = vmatprep.subr.mxu0 0.0
        %8103 = vmatpush1.xpose.msra.mxu0 %v8057
        %8104 = vmatprep.subr.mxu0 0.0
        %8105 = vmatpush1.xpose.msra.mxu0 %v8060
        %8106 = vmatprep.subr.mxu0 0.0
        %8107 = vmatpush1.xpose.msra.mxu0 %v8063
        %8108 = vmatprep.subr.mxu0 0.0
        %8109 = vmatpush1.xpose.msra.mxu0 %v8066
        %8110 = vmatprep.subr.mxu0 0.0
        %8111 = vmatpush1.xpose.msra.mxu0 %v8069
        %8112 = vmatprep.subr.mxu0 0.0
        %8113 = vmatpush1.xpose.msra.mxu0 %v8072
        %8114 = vmatprep.subr.mxu0 0.0
        %8115 = vmatpush1.xpose.msra.mxu0 %v8075
        %8116 = vmatprep.subr.mxu0 0.0
        %8117 = vmatpush1.xpose.msra.mxu0 %v8078
        %8118 = vmatprep.subr.mxu0 0.0
        %8119 = vmatpush1.xpose.msra.mxu0 %v8081
        %8120 = vmatprep.subr.mxu0 0.0
        %8121 = vmatpush1.xpose.msra.mxu0 %v8084
        %8122 = vmatprep.subr.mxu0 0.0
        %8123 = vmatpush1.xpose.msra.mxu0 %v8087
        %8124 = vmatprep.subr.mxu0 0.0
        %8125 = vmatpush1.xpose.msra.mxu0 %v8090
        %8126 = vmatprep.subr.mxu0 0.0
        %8127 = vmatpush1.xpose.msra.mxu0 %v8093
        %8128 = vmatprep.subr.mxu0 0.0
        %8129 = vmatpush1.xpose.msra.mxu0 %v8096
        %8130 = vmatprep.subr.mxu0 0.0
        %8131 = vmatpush1.xpose.msra.mxu0 0.0
        %8132 = vmatprep.subr.mxu0 0.0
        %8133 = vmatpush1.xpose.msra.mxu0 0.0
        %8134 = vmatprep.subr.mxu0 0.0
        %8135 = vmatpush1.xpose.msra.mxu0 0.0
        %8136 = vmatprep.subr.mxu0 0.0
        %8137 = vmatpush1.xpose.msra.mxu0 0.0
        %8138 = vmatprep.subr.mxu0 0.0
        %8139 = vmatpush1.xpose.msra.mxu0 0.0
        %8140 = vmatprep.subr.mxu0 0.0
        %8141 = vmatpush1.xpose.msra.mxu0 0.0
        %8142 = vmatprep.subr.mxu0 0.0
        %8143 = vmatpush1.xpose.msra.mxu0 0.0
        %8144 = vmatprep.subr.mxu0 0.0
        %8145 = vmatpush1.xpose.msra.mxu0 0.0
        %8146 = vmatprep.subr.mxu0 0.0
        %8147 = vmatpush1.xpose.msra.mxu0 0.0
        %8148 = vmatprep.subr.mxu0 0.0
        %8149 = vmatpush1.xpose.msra.mxu0 0.0
        %8150 = vmatprep.subr.mxu0 0.0
        %8151 = vmatpush1.xpose.msra.mxu0 0.0
        %8152 = vmatprep.subr.mxu0 0.0
        %8153 = vmatpush1.xpose.msra.mxu0 0.0
        %8154 = vmatprep.subr.mxu0 0.0
        %8155 = vmatpush1.xpose.msra.mxu0 0.0
        %8156 = vmatprep.subr.mxu0 0.0
        %8157 = vmatpush1.xpose.msra.mxu0 0.0
        %8158 = vmatprep.subr.mxu0 0.0
        %8159 = vmatpush1.xpose.msra.mxu0 0.0
        %8160 = vmatprep.subr.mxu0 0.0
        %8161 = vmatpush1.xpose.msra.mxu0 0.0
        %8162 = vmatprep.mubr.f32.mxu0 0.0
        %8163 = vmatmul.mubr.f32.gmra.mrb[0].mxu0 %v8039
        %v8164 = vpop.f32.mrb[0].mxu0
        %v8165 = vadd.f32 %v8021, %v8164
        %v8166 = vpop.f32.mrb[0].mxu0
        %8167 = vmatprep.mubr.f32.mxu0 0.0
        %8168 = vmatmul.mubr.f32.gmra.mrb[0].mxu0 %v8042
        %v8169 = vpop.f32.mrb[0].mxu0
        %v8170 = vadd.f32 %v8026, %v8169
        %v8171 = vpop.f32.mrb[0].mxu0
        %8172 = vmatprep.mubr.f32.mxu0 0.0
        %8173 = vmatmul.mubr.f32.gmra.mrb[0].mxu0 %v8045
        %v8174 = vpop.f32.mrb[0].mxu0
        %v8175 = vadd.f32 %v8031, %v8174
        %v8176 = vpop.f32.mrb[0].mxu0
        %8177 = vmatprep.mubr.f32.mxu0 0.0
        %8178 = vmatmul.mubr.f32.gmra.mrb[0].mxu0 %v8048
        %v8179 = vpop.f32.mrb[0].mxu0
        %v8180 = vadd.f32 %v8036, %v8179
        %v8181 = vpop.f32.mrb[0].mxu0
        %8182 = vdwg.mxu0
        %8183 = vst [vmem:[%s630] sm:$0xff] %v8165
        %8184 = vst [vmem:[%s630 + $0x8] sm:$0xff] %v8170
        %8185 = vst [vmem:[%s630 + $0x10] sm:$0xff] %v8175
        %8186 = vst [vmem:[%s630 + $0x18] sm:$0xff] %v8180
        %s8187 = sand.u32 %s378, 1
        %s8188 = scalar_lea.sflag [#allocation4], %s8187
        %s8189 = sand.u32 %s378, 1
        %s8190 = smul.addr %s8189, 32
        %s8191 = scalar_lea.vmem [#allocation17], %s8190
        // Predicated region
        $region117: #{tpu_custom_call.1} parent=79 // pred_check
          %p8192 = pneg %p388
        $region118: #{tpu_custom_call.1} parent=79 // pred_check_branch
          %8194 = sbr.rel (%p8192) target = $region120
        $region119: #{tpu_custom_call.1} parent=79 // pred_region
          %s8196 = ssub.s32 512, 512
          %8197 = vsyncadd %s8188, %s8196
          %s8198 = smul.addr %s40, 8
          %s8199 = sadd.s32 %s41, %s8198
          %s8200 = smul.addr %s8199, 128
          %s8201 = scalar_lea.hbm %s15, %s8200
          %s8202 = sshll.u32 %s8191, 4
          %s8203 = int_to_ptr.vmem [resolvable:$true] %s8202
          %8208 = dma.vmem_to_hbm [thread:$0]  %s8203, 512, %s8201, %s8188, 128, 256, 8
        $region120: #{tpu_custom_call.1} parent=79 // pred_fallthru
          _
      $region80: #{tpu_custom_call.1} parent=5 // pred_fallthru
        _
      %p8209 = scmp.le.s32.totalorder 2, %s31
      // Predicated region
      $region121: #{tpu_custom_call.1} parent=5 // pred_check
        %p8210 = pneg %p8209
      $region122: #{tpu_custom_call.1} parent=5 // pred_check_branch
        %8212 = sbr.rel (%p8210) target = $region124
      $region123: #{tpu_custom_call.1} parent=5 // pred_region
        %s8213 = ssub.s32 %s31, 2
        // Predicated region
        $region125: #{tpu_custom_call.1} parent=123 // pred_check
          %p8214 = pneg %p394
        $region126: #{tpu_custom_call.1} parent=123 // pred_check_branch
          %8216 = sbr.rel (%p8214) target = $region128
        $region127: #{tpu_custom_call.1} parent=123 // pred_region
          %s8217 = sand.u32 %s379, 1
          %s8218 = scalar_lea.sflag [#allocation4], %s8217
          %s8219 = sand.u32 %s379, 1
          %s8220 = smul.addr %s8219, 32
          %s8221 = scalar_lea.vmem [#allocation17], %s8220
          %8222 = dma.done %s8218, 512
        $region128: #{tpu_custom_call.1} parent=123 // pred_fallthru
          _
      $region124: #{tpu_custom_call.1} parent=5 // pred_fallthru
        _
    $region6: #{tpu_custom_call.1} parent=1 // loop_footer
      %s35 = sadd.s32 1, %s31
    $region7: #{tpu_custom_call.1} parent=1 // loop_footer_branch
      %30 = sbr.rel target = $region3
    $region8: #{tpu_custom_call.1} parent=1 // loop_exit
      _
    %8223 = vsyncpa [#allocation3], 1
    %s8224 = scalar_lea.sflag [#allocation3], 1
    %8225 = vsyncpa %s8224, 1
    %8226 = vsyncpa [#allocation6], 1
    %8227 = vsyncpa [#allocation9], 1
    %8228 = vsyncpa [#allocation12], 1
    %8229 = vsyncpa [#allocation15], 1
    %8230 = vsyncpa [#allocation4], 1
    %s8231 = scalar_lea.sflag [#allocation4], 1
    %8232 = vsyncpa %s8231, 1

</llo_original>
